<compile_context>
chip_gen: v5e
topology: v5e:2x2
jax: 0.10.0
libtpu: 0.0.40
codegen_flags: <defaults>
</compile_context>

<pallas_src>
import functools
import math

import jax
import jax.numpy as jnp
from jax.experimental import pallas as pl
from jax.experimental.pallas import tpu as pltpu


def _round_up(x, m):
    return (x + m - 1) // m * m


# ----------------------------------------------------------------------------
# Fused conv kernel: sum of shifted matmuls + bias + LeakyReLU(0.2).
# One grid step = one image; the flattened (phase-decomposed) plane(s) are
# resident in VMEM, each tap reads a contiguous window at a static offset.
# ----------------------------------------------------------------------------
def _conv_taps_kernel(*args, taps, n_planes, lout, apply_act):
    """planes[p]: (1, L_p, Cin) bf16.  w_ref: (T, Cin, Cout) bf16 (pre-scaled).
       b_ref: (1, Cout) f32.           o_ref: (1, lout, Cout) bf16."""
    planes = args[:n_planes]
    w_ref, b_ref, o_ref = args[n_planes:]
    cout = o_ref.shape[-1]
    acc = jnp.zeros((lout, cout), jnp.float32)
    for t, (p, off) in enumerate(taps):          # static unroll, T <= 9
        xa = planes[p][0, pl.ds(off, lout), :]   # bf16 window
        acc = acc + jnp.dot(xa, w_ref[t], preferred_element_type=jnp.float32)
    acc = acc + b_ref[...]
    if apply_act:
        acc = jnp.where(acc >= 0.0, acc, 0.2 * acc)   # LeakyReLU(0.2)
    o_ref[0] = acc.astype(o_ref.dtype)


def conv2d_fused(x, w_taps, b, *, ksize, stride, pad, apply_act=True):
    """x: (N, H, W, Cin) bf16 NHWC.  w_taps: (k*k, Cin, Cout) bf16.
       b: (1, Cout) f32.  Returns (N, Ho, Wo, Cout) bf16."""
    N, H, W, Cin = x.shape
    T, _, Cout = w_taps.shape
    assert T == ksize * ksize
    Ho = (H + 2 * pad - ksize) // stride + 1
    Wo = (W + 2 * pad - ksize) // stride + 1

    if pad:
        x = jnp.pad(x, ((0, 0), (pad, pad), (pad, pad), (0, 0)))
    Hp, Wp = H + 2 * pad, W + 2 * pad

    if stride == 1:
        # Row-major flattened plane (row stride = padded width); tap (kh, kw)
        # is a contiguous window starting at kh*Wp + kw.
        planes = [x.reshape(N, Hp * Wp, Cin)]
        w_row = Wp
        taps = [(0, kh * Wp + kw) for kh in range(ksize) for kw in range(ksize)]
    else:
        assert stride == 2 and ksize == 3 and pad == 1
        assert Hp % 2 == 0 and Wp % 2 == 0
        # Decompose into 4 even/odd phase planes (separate inputs -> no
        # concatenate copy); each tap is again a contiguous shifted window.
        Hq, Wq = Hp // 2, Wp // 2
        planes = [x[:, ph::2, pw::2, :].reshape(N, Hq * Wq, Cin)
                  for ph in (0, 1) for pw in (0, 1)]
        w_row = Wq
        taps = []
        for kh in range(3):
            for kw in range(3):
                p = (kh % 2) * 2 + (kw % 2)
                taps.append((p, (kh // 2) * Wq + (kw // 2)))

    Lout = (Ho - 1) * w_row + Wo                 # valid rows of flat output
    for p, off in taps:
        assert off + Lout <= planes[p].shape[1]

    kern = functools.partial(_conv_taps_kernel, taps=tuple(taps),
                             n_planes=len(planes), lout=Lout,
                             apply_act=apply_act)
    flops = 2 * N * Lout * Cin * Cout * T
    bytes_accessed = int(sum(p_.size for p_ in planes) * 2
                         + w_taps.size * 2 + N * Lout * Cout * 2)

    in_specs = [pl.BlockSpec((1, p_.shape[1], Cin), lambda n: (n, 0, 0))
                for p_ in planes]
    in_specs += [pl.BlockSpec((T, Cin, Cout), lambda n: (0, 0, 0)),
                 pl.BlockSpec((1, Cout), lambda n: (0, 0))]

    out_flat = pl.pallas_call(
        kern,
        out_shape=jax.ShapeDtypeStruct((N, Lout, Cout), jnp.bfloat16),
        grid=(N,),
        in_specs=in_specs,
        out_specs=pl.BlockSpec((1, Lout, Cout), lambda n: (n, 0, 0)),
        compiler_params=pltpu.CompilerParams(
            dimension_semantics=("parallel",)),
        cost_estimate=pl.CostEstimate(flops=flops, transcendentals=0,
                                      bytes_accessed=bytes_accessed),
    )(*planes, w_taps, b)

    # Un-flatten: output rows have stride w_row; crop the garbage columns.
    tail = Ho * w_row - Lout                     # == w_row - Wo
    if tail:
        out_flat = jnp.pad(out_flat, ((0, 0), (0, tail), (0, 0)))
    return out_flat.reshape(N, Ho, w_row, Cout)[:, :, :Wo, :]


# ----------------------------------------------------------------------------
# Tiled matmul kernel (fc1): K grid axis + f32 VMEM accumulator, fused
# bias + LeakyReLU on the last K step.
# ----------------------------------------------------------------------------
def _mm_bias_act_kernel(a_ref, w_ref, b_ref, o_ref, acc_ref, *, apply_act):
    k = pl.program_id(1)

    @pl.when(k == 0)
    def _init():
        acc_ref[...] = jnp.zeros_like(acc_ref)

    acc_ref[...] += jnp.dot(a_ref[...], w_ref[...],
                            preferred_element_type=jnp.float32)

    @pl.when(k == pl.num_programs(1) - 1)
    def _finalize():
        y = acc_ref[...] + b_ref[...]
        if apply_act:
            y = jnp.where(y >= 0.0, y, 0.2 * y)
        o_ref[...] = y.astype(o_ref.dtype)


def matmul_bias_act(a, w, b, *, apply_act, tm=256, tk=512):
    """a: (M, K) bf16.  w: (K, N) bf16 pre-scaled.  b: (1, N) f32 -> (M, N) f32."""
    M, K = a.shape
    Kw, N = w.shape
    assert K == Kw and N % 128 == 0
    tm = min(tm, _round_up(M, 16))               # bf16-friendly sublane tile
    tk = min(tk, _round_up(K, 128))
    M_pad = _round_up(M, tm)
    K_pad = _round_up(K, tk)
    if M_pad != M or K_pad != K:
        a = jnp.pad(a, ((0, M_pad - M), (0, K_pad - K)))
    if K_pad != K:
        w = jnp.pad(w, ((0, K_pad - K), (0, 0)))
    grid = (M_pad // tm, K_pad // tk)

    out = pl.pallas_call(
        functools.partial(_mm_bias_act_kernel, apply_act=apply_act),
        out_shape=jax.ShapeDtypeStruct((M_pad, N), jnp.float32),
        grid=grid,
        in_specs=[
            pl.BlockSpec((tm, tk), lambda i, k: (i, k)),
            pl.BlockSpec((tk, N), lambda i, k: (k, 0)),
            pl.BlockSpec((1, N), lambda i, k: (0, 0)),
        ],
        out_specs=pl.BlockSpec((tm, N), lambda i, k: (i, 0)),
        scratch_shapes=[pltpu.VMEM((tm, N), jnp.float32)],
        compiler_params=pltpu.CompilerParams(
            dimension_semantics=("parallel", "arbitrary")),
        cost_estimate=pl.CostEstimate(
            flops=2 * M_pad * K_pad * N, transcendentals=0,
            bytes_accessed=int(M_pad * K_pad * 2 + K_pad * N * 2 + M_pad * N * 4)),
    )(a, w, b)
    return out[:M]


# ----------------------------------------------------------------------------
# Parameters: raw init (matches the PyTorch module) + one-time preparation.
# ----------------------------------------------------------------------------
def init_discriminator(key, in_channel, img_size, max_channel=512):
    num_blocks = int(math.log2(img_size)) - 2
    mid = [min(2 ** i, max_channel) for i in range(4, num_blocks + 5)]

    def conv_p(k_, cin, cout, ks):
        return {"w": jax.random.normal(k_, (cout, cin, ks, ks), jnp.float32),
                "b": jnp.zeros((cout,), jnp.float32)}

    def lin_p(k_, fin, fout):
        return {"w": jax.random.normal(k_, (fout, fin), jnp.float32),
                "b": jnp.zeros((fout,), jnp.float32)}

    nk = 1 + 2 * num_blocks + 1 + 2
    keys = iter(jax.random.split(key, nk))
    raw = {"from_rgb": conv_p(next(keys), in_channel, mid[0], 1)}
    raw["blocks"] = [{"conv": conv_p(next(keys), mid[i], mid[i + 1], 3),
                      "down": conv_p(next(keys), mid[i + 1], mid[i + 1], 3)}
                     for i in range(num_blocks)]
    raw["final_conv"] = conv_p(next(keys), mid[-1], mid[-1], 3)
    raw["fc1"] = lin_p(next(keys), mid[-1] * 4 * 4, mid[-1])
    raw["fc2"] = lin_p(next(keys), mid[-1], 1)
    return raw


def prepare_params(raw, in_channel):
    """Fold equalized-lr scales, weight transposes, the fc1 flatten
    permutation, bf16 casts and lane/K padding into the params (done once)."""

    def prep_conv(p, cin_pad=None):
        cout, cin, ks, _ = p["w"].shape
        scale = math.sqrt(2.0 / (cin * ks * ks))         # equalized LR
        w = p["w"].astype(jnp.float32) * jnp.float32(scale)
        w = jnp.transpose(w, (2, 3, 1, 0)).reshape(ks * ks, cin, cout)
        if cin_pad is not None and cin_pad > cin:
            w = jnp.pad(w, ((0, 0), (0, cin_pad - cin), (0, 0)))
        return {"w": w.astype(jnp.bfloat16),
                "b": p["b"].astype(jnp.float32).reshape(1, cout)}

    cin_pad = _round_up(in_channel, 8)          # sane K for the 1x1 from_rgb
    params = {
        "from_rgb": prep_conv(raw["from_rgb"], cin_pad=cin_pad),
        "blocks": [{"conv": prep_conv(b["conv"]), "down": prep_conv(b["down"])}
                   for b in raw["blocks"]],
        "final_conv": prep_conv(raw["final_conv"]),
    }

    # fc1: fold scale + the NCHW-flatten -> NHWC-flatten permutation, pad
    # output features to a lane-dense multiple of 128.
    w1, b1 = raw["fc1"]["w"], raw["fc1"]["b"]
    out_f, in_f = w1.shape
    c_last = raw["final_conv"]["w"].shape[0]
    hw = in_f // c_last
    side = int(round(math.sqrt(hw)))
    scale1 = math.sqrt(2.0 / in_f)
    w1 = (w1.astype(jnp.float32) * jnp.float32(scale1)).reshape(out_f, c_last, side, side)
    w1 = jnp.transpose(w1, (2, 3, 1, 0)).reshape(hw * c_last, out_f)
    out_pad = _round_up(out_f, 128)
    w1 = jnp.pad(w1, ((0, 0), (0, out_pad - out_f)))
    b1 = jnp.pad(b1.astype(jnp.float32), (0, out_pad - out_f))
    params["fc1"] = {"w": w1.astype(jnp.bfloat16), "b": b1.reshape(1, out_pad)}

    # fc2: single output column -> kept in plain XLA; pad its input rows with
    # zeros to match fc1's padded output features.
    w2, b2 = raw["fc2"]["w"], raw["fc2"]["b"]
    scale2 = math.sqrt(2.0 / w2.shape[1])
    w2 = (w2.astype(jnp.float32) * jnp.float32(scale2)).T      # (out_f, 1)
    w2 = jnp.pad(w2, ((0, out_pad - w2.shape[0]), (0, 0)))
    params["fc2"] = {"w": w2, "b": b2.astype(jnp.float32).reshape(1, 1)}
    return params


# ----------------------------------------------------------------------------
# Forward pass
# ----------------------------------------------------------------------------
def discriminator_forward(params, x_nchw):
    # NCHW -> NHWC; activations carried bf16 between layers (MXU operands
    # were bf16 anyway, this just halves intermediate HBM traffic).
    x = jnp.transpose(x_nchw, (0, 2, 3, 1)).astype(jnp.float32)
    cpad = params["from_rgb"]["w"].shape[1]          # static shape info
    if cpad > x.shape[-1]:
        x = jnp.pad(x, ((0, 0), (0, 0), (0, 0), (0, cpad - x.shape[-1])))
    x = x.astype(jnp.bfloat16)

    p = params["from_rgb"]                           # 1x1 conv + LeakyReLU
    x = conv2d_fused(x, p["w"], p["b"], ksize=1, stride=1, pad=0)

    for blk in params["blocks"]:                     # conv + down (stride 2)
        c = blk["conv"]
        x = conv2d_fused(x, c["w"], c["b"], ksize=3, stride=1, pad=1)
        d = blk["down"]
        x = conv2d_fused(x, d["w"], d["b"], ksize=3, stride=2, pad=1)

    f = params["final_conv"]                         # final conv (no down)
    x = conv2d_fused(x, f["w"], f["b"], ksize=3, stride=1, pad=1)

    # NHWC flatten; fc1 weight rows were pre-permuted to accept this order.
    n = x.shape[0]
    x = x.reshape(n, -1)                             # bf16 (N, 4*4*C)
    x = matmul_bias_act(x, params["fc1"]["w"], params["fc1"]["b"], apply_act=True)

    # fc2: N=1 output column -> lane-sparse Pallas store; plain XLA is better.
    x = x @ params["fc2"]["w"] + params["fc2"]["b"]
    return x                                          # (N, 1) f32


# ----------------------------------------------------------------------------
if __name__ == "__main__":
    IN_CHANNEL = 3
    IMG_SIZE = 16          # num_blocks = 2 -> mid channels [16, 32, 64]
    BATCH = 2

    key = jax.random.PRNGKey(0)
    k_params, k_x = jax.random.split(key)

    raw = init_discriminator(k_params, IN_CHANNEL, IMG_SIZE)
    params = prepare_params(raw, IN_CHANNEL)

    x = jax.random.normal(k_x, (BATCH, IN_CHANNEL, IMG_SIZE, IMG_SIZE),
                          jnp.float32)

    fwd = jax.jit(discriminator_forward)
    out = jax.block_until_ready(fwd(params, x))

    assert out.shape == (BATCH, 1), out.shape
    assert out.dtype == jnp.float32, out.dtype
    assert bool(jnp.all(jnp.isfinite(out)))
    print("KERNEL_OK")
</pallas_src>

<mosaic_0001>
module attributes {stable_mosaic.version = 11 : i64} {
  func.func @_conv_taps_kernel(%arg0: i32, %arg1: memref<1x256x8xbf16, #tpu.memory_space<vmem>>, %arg2: memref<1x8x16xbf16, #tpu.memory_space<vmem>>, %arg3: memref<1x16xf32, #tpu.memory_space<vmem>>, %arg4: memref<1x256x16xbf16, #tpu.memory_space<vmem>>) attributes {dimension_semantics = [#tpu.dimension_semantics<parallel>], iteration_bounds = array<i64: 2>, scalar_prefetch = 0 : i64, scratch_operands = 0 : i64, tpu.core_type = #tpu.core_type<tc>, window_params = [{transform_indices = @transform_0, window_bounds = array<i64: 1, 256, 8>}, {pipeline_mode = #tpu.pipeline_mode<synchronous>, transform_indices = @transform_1, window_bounds = array<i64: 1, 8, 16>}, {pipeline_mode = #tpu.pipeline_mode<synchronous>, transform_indices = @transform_2, window_bounds = array<i64: 1, 16>}, {transform_indices = @transform_3, window_bounds = array<i64: 1, 256, 16>}]} {
    %cst = arith.constant 0.000000e+00 : f32
    %0 = vector.broadcast %cst : f32 to vector<256x16xf32>
    %c0 = arith.constant 0 : index
    %c0_0 = arith.constant 0 : index
    %c0_1 = arith.constant 0 : index
    %1 = vector.load %arg1[%c0, %c0_0, %c0_1] : memref<1x256x8xbf16, #tpu.memory_space<vmem>>, vector<1x256x8xbf16>
    %2 = vector.shape_cast %1 : vector<1x256x8xbf16> to vector<256x8xbf16>
    %c0_2 = arith.constant 0 : index
    %c0_3 = arith.constant 0 : index
    %c0_4 = arith.constant 0 : index
    %3 = vector.load %arg2[%c0_2, %c0_3, %c0_4] : memref<1x8x16xbf16, #tpu.memory_space<vmem>>, vector<1x8x16xbf16>
    %4 = vector.shape_cast %3 : vector<1x8x16xbf16> to vector<8x16xbf16>
    %cst_5 = arith.constant dense<0.000000e+00> : vector<256x16xf32>
    %5 = tpu.matmul %2, %4, %cst_5 {dimension_numbers = #tpu.dot_dimension_numbers<[1], [0], [0], [1], [0, 0, 1, 1], [], []>} : vector<256x8xbf16>, vector<8x16xbf16>, vector<256x16xf32> -> vector<256x16xf32>
    %6 = arith.addf %0, %5 : vector<256x16xf32>
    %c0_6 = arith.constant 0 : index
    %c0_7 = arith.constant 0 : index
    %7 = vector.load %arg3[%c0_6, %c0_7] : memref<1x16xf32, #tpu.memory_space<vmem>>, vector<1x16xf32>
    %8 = vector.broadcast %7 : vector<1x16xf32> to vector<256x16xf32>
    %9 = arith.addf %6, %8 : vector<256x16xf32>
    %cst_8 = arith.constant 0.000000e+00 : f32
    %10 = vector.broadcast %cst_8 : f32 to vector<256x16xf32>
    %11 = arith.cmpf oge, %9, %10 : vector<256x16xf32>
    %cst_9 = arith.constant 2.000000e-01 : f32
    %12 = vector.broadcast %cst_9 : f32 to vector<256x16xf32>
    %13 = arith.mulf %12, %9 : vector<256x16xf32>
    %14 = arith.select %11, %9, %13 : vector<256x16xi1>, vector<256x16xf32>
    %15 = arith.truncf %14 : vector<256x16xf32> to vector<256x16xbf16>
    %c0_10 = arith.constant 0 : index
    %c0_11 = arith.constant 0 : index
    %c0_12 = arith.constant 0 : index
    %16 = vector.load %arg4[%c0_10, %c0_11, %c0_12] : memref<1x256x16xbf16, #tpu.memory_space<vmem>>, vector<1x256x16xbf16>
    %17 = vector.shape_cast %16 : vector<1x256x16xbf16> to vector<256x16xbf16>
    %18 = vector.shape_cast %15 : vector<256x16xbf16> to vector<1x256x16xbf16>
    tpu.vector_store %arg4[%c0_10, %c0_11, %c0_12], %18 {strides = array<i32>} : memref<1x256x16xbf16, #tpu.memory_space<vmem>>, vector<1x256x16xbf16>,
    return
  }
  func.func @transform_0(%arg0: i32) -> (i32, i32, i32) {
    %c0_i32 = arith.constant 0 : i32
    %c0_i32_0 = arith.constant 0 : i32
    %c0_i32_1 = arith.constant 0 : i32
    return %arg0, %c0_i32, %c0_i32_0 : i32, i32, i32
  }
  func.func @transform_1(%arg0: i32) -> (i32, i32, i32) {
    %c0_i32 = arith.constant 0 : i32
    %c0_i32_0 = arith.constant 0 : i32
    %c0_i32_1 = arith.constant 0 : i32
    %c0_i32_2 = arith.constant 0 : i32
    return %c0_i32, %c0_i32_0, %c0_i32_1 : i32, i32, i32
  }
  func.func @transform_2(%arg0: i32) -> (i32, i32) {
    %c0_i32 = arith.constant 0 : i32
    %c0_i32_0 = arith.constant 0 : i32
    %c0_i32_1 = arith.constant 0 : i32
    return %c0_i32, %c0_i32_0 : i32, i32
  }
  func.func @transform_3(%arg0: i32) -> (i32, i32, i32) {
    %c0_i32 = arith.constant 0 : i32
    %c0_i32_0 = arith.constant 0 : i32
    %c0_i32_1 = arith.constant 0 : i32
    return %arg0, %c0_i32, %c0_i32_0 : i32, i32, i32
  }
}

module attributes {stable_mosaic.version = 11 : i64} {
  func.func @_conv_taps_kernel(%arg0: i32, %arg1: memref<1x324x16xbf16, #tpu.memory_space<vmem>>, %arg2: memref<9x16x32xbf16, #tpu.memory_space<vmem>>, %arg3: memref<1x32xf32, #tpu.memory_space<vmem>>, %arg4: memref<1x286x32xbf16, #tpu.memory_space<vmem>>) attributes {dimension_semantics = [#tpu.dimension_semantics<parallel>], iteration_bounds = array<i64: 2>, scalar_prefetch = 0 : i64, scratch_operands = 0 : i64, tpu.core_type = #tpu.core_type<tc>, window_params = [{transform_indices = @transform_0, window_bounds = array<i64: 1, 324, 16>}, {pipeline_mode = #tpu.pipeline_mode<synchronous>, transform_indices = @transform_1, window_bounds = array<i64: 9, 16, 32>}, {pipeline_mode = #tpu.pipeline_mode<synchronous>, transform_indices = @transform_2, window_bounds = array<i64: 1, 32>}, {transform_indices = @transform_3, window_bounds = array<i64: 1, 286, 32>}]} {
    %cst = arith.constant 0.000000e+00 : f32
    %0 = vector.broadcast %cst : f32 to vector<286x32xf32>
    %c0 = arith.constant 0 : index
    %c0_0 = arith.constant 0 : index
    %c0_1 = arith.constant 0 : index
    %1 = vector.load %arg1[%c0, %c0_0, %c0_1] : memref<1x324x16xbf16, #tpu.memory_space<vmem>>, vector<1x286x16xbf16>
    %2 = vector.shape_cast %1 : vector<1x286x16xbf16> to vector<286x16xbf16>
    %c0_2 = arith.constant 0 : index
    %c0_3 = arith.constant 0 : index
    %c0_4 = arith.constant 0 : index
    %3 = vector.load %arg2[%c0_2, %c0_3, %c0_4] : memref<9x16x32xbf16, #tpu.memory_space<vmem>>, vector<1x16x32xbf16>
    %4 = vector.shape_cast %3 : vector<1x16x32xbf16> to vector<16x32xbf16>
    %cst_5 = arith.constant dense<0.000000e+00> : vector<286x32xf32>
    %5 = tpu.matmul %2, %4, %cst_5 {dimension_numbers = #tpu.dot_dimension_numbers<[1], [0], [0], [1], [0, 0, 1, 1], [], []>} : vector<286x16xbf16>, vector<16x32xbf16>, vector<286x32xf32> -> vector<286x32xf32>
    %6 = arith.addf %0, %5 : vector<286x32xf32>
    %c0_6 = arith.constant 0 : index
    %c1 = arith.constant 1 : index
    %c0_7 = arith.constant 0 : index
    %7 = vector.load %arg1[%c0_6, %c1, %c0_7] : memref<1x324x16xbf16, #tpu.memory_space<vmem>>, vector<1x286x16xbf16>
    %8 = vector.shape_cast %7 : vector<1x286x16xbf16> to vector<286x16xbf16>
    %c1_8 = arith.constant 1 : index
    %c0_9 = arith.constant 0 : index
    %c0_10 = arith.constant 0 : index
    %9 = vector.load %arg2[%c1_8, %c0_9, %c0_10] : memref<9x16x32xbf16, #tpu.memory_space<vmem>>, vector<1x16x32xbf16>
    %10 = vector.shape_cast %9 : vector<1x16x32xbf16> to vector<16x32xbf16>
    %cst_11 = arith.constant dense<0.000000e+00> : vector<286x32xf32>
    %11 = tpu.matmul %8, %10, %cst_11 {dimension_numbers = #tpu.dot_dimension_numbers<[1], [0], [0], [1], [0, 0, 1, 1], [], []>} : vector<286x16xbf16>, vector<16x32xbf16>, vector<286x32xf32> -> vector<286x32xf32>
    %12 = arith.addf %6, %11 : vector<286x32xf32>
    %c0_12 = arith.constant 0 : index
    %c2 = arith.constant 2 : index
    %c0_13 = arith.constant 0 : index
    %13 = vector.load %arg1[%c0_12, %c2, %c0_13] : memref<1x324x16xbf16, #tpu.memory_space<vmem>>, vector<1x286x16xbf16>
    %14 = vector.shape_cast %13 : vector<1x286x16xbf16> to vector<286x16xbf16>
    %c2_14 = arith.constant 2 : index
    %c0_15 = arith.constant 0 : index
    %c0_16 = arith.constant 0 : index
    %15 = vector.load %arg2[%c2_14, %c0_15, %c0_16] : memref<9x16x32xbf16, #tpu.memory_space<vmem>>, vector<1x16x32xbf16>
    %16 = vector.shape_cast %15 : vector<1x16x32xbf16> to vector<16x32xbf16>
    %cst_17 = arith.constant dense<0.000000e+00> : vector<286x32xf32>
    %17 = tpu.matmul %14, %16, %cst_17 {dimension_numbers = #tpu.dot_dimension_numbers<[1], [0], [0], [1], [0, 0, 1, 1], [], []>} : vector<286x16xbf16>, vector<16x32xbf16>, vector<286x32xf32> -> vector<286x32xf32>
    %18 = arith.addf %12, %17 : vector<286x32xf32>
    %c0_18 = arith.constant 0 : index
    %c18 = arith.constant 18 : index
    %c0_19 = arith.constant 0 : index
    %19 = vector.load %arg1[%c0_18, %c18, %c0_19] : memref<1x324x16xbf16, #tpu.memory_space<vmem>>, vector<1x286x16xbf16>
    %20 = vector.shape_cast %19 : vector<1x286x16xbf16> to vector<286x16xbf16>
    %c3 = arith.constant 3 : index
    %c0_20 = arith.constant 0 : index
    %c0_21 = arith.constant 0 : index
    %21 = vector.load %arg2[%c3, %c0_20, %c0_21] : memref<9x16x32xbf16, #tpu.memory_space<vmem>>, vector<1x16x32xbf16>
    %22 = vector.shape_cast %21 : vector<1x16x32xbf16> to vector<16x32xbf16>
    %cst_22 = arith.constant dense<0.000000e+00> : vector<286x32xf32>
    %23 = tpu.matmul %20, %22, %cst_22 {dimension_numbers = #tpu.dot_dimension_numbers<[1], [0], [0], [1], [0, 0, 1, 1], [], []>} : vector<286x16xbf16>, vector<16x32xbf16>, vector<286x32xf32> -> vector<286x32xf32>
    %24 = arith.addf %18, %23 : vector<286x32xf32>
    %c0_23 = arith.constant 0 : index
    %c19 = arith.constant 19 : index
    %c0_24 = arith.constant 0 : index
    %25 = vector.load %arg1[%c0_23, %c19, %c0_24] : memref<1x324x16xbf16, #tpu.memory_space<vmem>>, vector<1x286x16xbf16>
    %26 = vector.shape_cast %25 : vector<1x286x16xbf16> to vector<286x16xbf16>
    %c4 = arith.constant 4 : index
    %c0_25 = arith.constant 0 : index
    %c0_26 = arith.constant 0 : index
    %27 = vector.load %arg2[%c4, %c0_25, %c0_26] : memref<9x16x32xbf16, #tpu.memory_space<vmem>>, vector<1x16x32xbf16>
    %28 = vector.shape_cast %27 : vector<1x16x32xbf16> to vector<16x32xbf16>
    %cst_27 = arith.constant dense<0.000000e+00> : vector<286x32xf32>
    %29 = tpu.matmul %26, %28, %cst_27 {dimension_numbers = #tpu.dot_dimension_numbers<[1], [0], [0], [1], [0, 0, 1, 1], [], []>} : vector<286x16xbf16>, vector<16x32xbf16>, vector<286x32xf32> -> vector<286x32xf32>
    %30 = arith.addf %24, %29 : vector<286x32xf32>
    %c0_28 = arith.constant 0 : index
    %c20 = arith.constant 20 : index
    %c0_29 = arith.constant 0 : index
    %31 = vector.load %arg1[%c0_28, %c20, %c0_29] : memref<1x324x16xbf16, #tpu.memory_space<vmem>>, vector<1x286x16xbf16>
    %32 = vector.shape_cast %31 : vector<1x286x16xbf16> to vector<286x16xbf16>
    %c5 = arith.constant 5 : index
    %c0_30 = arith.constant 0 : index
    %c0_31 = arith.constant 0 : index
    %33 = vector.load %arg2[%c5, %c0_30, %c0_31] : memref<9x16x32xbf16, #tpu.memory_space<vmem>>, vector<1x16x32xbf16>
    %34 = vector.shape_cast %33 : vector<1x16x32xbf16> to vector<16x32xbf16>
    %cst_32 = arith.constant dense<0.000000e+00> : vector<286x32xf32>
    %35 = tpu.matmul %32, %34, %cst_32 {dimension_numbers = #tpu.dot_dimension_numbers<[1], [0], [0], [1], [0, 0, 1, 1], [], []>} : vector<286x16xbf16>, vector<16x32xbf16>, vector<286x32xf32> -> vector<286x32xf32>
    %36 = arith.addf %30, %35 : vector<286x32xf32>
    %c0_33 = arith.constant 0 : index
    %c36 = arith.constant 36 : index
    %c0_34 = arith.constant 0 : index
    %37 = vector.load %arg1[%c0_33, %c36, %c0_34] : memref<1x324x16xbf16, #tpu.memory_space<vmem>>, vector<1x286x16xbf16>
    %38 = vector.shape_cast %37 : vector<1x286x16xbf16> to vector<286x16xbf16>
    %c6 = arith.constant 6 : index
    %c0_35 = arith.constant 0 : index
    %c0_36 = arith.constant 0 : index
    %39 = vector.load %arg2[%c6, %c0_35, %c0_36] : memref<9x16x32xbf16, #tpu.memory_space<vmem>>, vector<1x16x32xbf16>
    %40 = vector.shape_cast %39 : vector<1x16x32xbf16> to vector<16x32xbf16>
    %cst_37 = arith.constant dense<0.000000e+00> : vector<286x32xf32>
    %41 = tpu.matmul %38, %40, %cst_37 {dimension_numbers = #tpu.dot_dimension_numbers<[1], [0], [0], [1], [0, 0, 1, 1], [], []>} : vector<286x16xbf16>, vector<16x32xbf16>, vector<286x32xf32> -> vector<286x32xf32>
    %42 = arith.addf %36, %41 : vector<286x32xf32>
    %c0_38 = arith.constant 0 : index
    %c37 = arith.constant 37 : index
    %c0_39 = arith.constant 0 : index
    %43 = vector.load %arg1[%c0_38, %c37, %c0_39] : memref<1x324x16xbf16, #tpu.memory_space<vmem>>, vector<1x286x16xbf16>
    %44 = vector.shape_cast %43 : vector<1x286x16xbf16> to vector<286x16xbf16>
    %c7 = arith.constant 7 : index
    %c0_40 = arith.constant 0 : index
    %c0_41 = arith.constant 0 : index
    %45 = vector.load %arg2[%c7, %c0_40, %c0_41] : memref<9x16x32xbf16, #tpu.memory_space<vmem>>, vector<1x16x32xbf16>
    %46 = vector.shape_cast %45 : vector<1x16x32xbf16> to vector<16x32xbf16>
    %cst_42 = arith.constant dense<0.000000e+00> : vector<286x32xf32>
    %47 = tpu.matmul %44, %46, %cst_42 {dimension_numbers = #tpu.dot_dimension_numbers<[1], [0], [0], [1], [0, 0, 1, 1], [], []>} : vector<286x16xbf16>, vector<16x32xbf16>, vector<286x32xf32> -> vector<286x32xf32>
    %48 = arith.addf %42, %47 : vector<286x32xf32>
    %c0_43 = arith.constant 0 : index
    %c38 = arith.constant 38 : index
    %c0_44 = arith.constant 0 : index
    %49 = vector.load %arg1[%c0_43, %c38, %c0_44] : memref<1x324x16xbf16, #tpu.memory_space<vmem>>, vector<1x286x16xbf16>
    %50 = vector.shape_cast %49 : vector<1x286x16xbf16> to vector<286x16xbf16>
    %c8 = arith.constant 8 : index
    %c0_45 = arith.constant 0 : index
    %c0_46 = arith.constant 0 : index
    %51 = vector.load %arg2[%c8, %c0_45, %c0_46] : memref<9x16x32xbf16, #tpu.memory_space<vmem>>, vector<1x16x32xbf16>
    %52 = vector.shape_cast %51 : vector<1x16x32xbf16> to vector<16x32xbf16>
    %cst_47 = arith.constant dense<0.000000e+00> : vector<286x32xf32>
    %53 = tpu.matmul %50, %52, %cst_47 {dimension_numbers = #tpu.dot_dimension_numbers<[1], [0], [0], [1], [0, 0, 1, 1], [], []>} : vector<286x16xbf16>, vector<16x32xbf16>, vector<286x32xf32> -> vector<286x32xf32>
    %54 = arith.addf %48, %53 : vector<286x32xf32>
    %c0_48 = arith.constant 0 : index
    %c0_49 = arith.constant 0 : index
    %55 = vector.load %arg3[%c0_48, %c0_49] : memref<1x32xf32, #tpu.memory_space<vmem>>, vector<1x32xf32>
    %56 = vector.broadcast %55 : vector<1x32xf32> to vector<286x32xf32>
    %57 = arith.addf %54, %56 : vector<286x32xf32>
    %cst_50 = arith.constant 0.000000e+00 : f32
    %58 = vector.broadcast %cst_50 : f32 to vector<286x32xf32>
    %59 = arith.cmpf oge, %57, %58 : vector<286x32xf32>
    %cst_51 = arith.constant 2.000000e-01 : f32
    %60 = vector.broadcast %cst_51 : f32 to vector<286x32xf32>
    %61 = arith.mulf %60, %57 : vector<286x32xf32>
    %62 = arith.select %59, %57, %61 : vector<286x32xi1>, vector<286x32xf32>
    %63 = arith.truncf %62 : vector<286x32xf32> to vector<286x32xbf16>
    %c0_52 = arith.constant 0 : index
    %c0_53 = arith.constant 0 : index
    %c0_54 = arith.constant 0 : index
    %64 = vector.load %arg4[%c0_52, %c0_53, %c0_54] : memref<1x286x32xbf16, #tpu.memory_space<vmem>>, vector<1x286x32xbf16>
    %65 = vector.shape_cast %64 : vector<1x286x32xbf16> to vector<286x32xbf16>
    %66 = vector.shape_cast %63 : vector<286x32xbf16> to vector<1x286x32xbf16>
    tpu.vector_store %arg4[%c0_52, %c0_53, %c0_54], %66 {strides = array<i32>} : memref<1x286x32xbf16, #tpu.memory_space<vmem>>, vector<1x286x32xbf16>,
    return
  }
  func.func @transform_0(%arg0: i32) -> (i32, i32, i32) {
    %c0_i32 = arith.constant 0 : i32
    %c0_i32_0 = arith.constant 0 : i32
    %c0_i32_1 = arith.constant 0 : i32
    return %arg0, %c0_i32, %c0_i32_0 : i32, i32, i32
  }
  func.func @transform_1(%arg0: i32) -> (i32, i32, i32) {
    %c0_i32 = arith.constant 0 : i32
    %c0_i32_0 = arith.constant 0 : i32
    %c0_i32_1 = arith.constant 0 : i32
    %c0_i32_2 = arith.constant 0 : i32
    return %c0_i32, %c0_i32_0, %c0_i32_1 : i32, i32, i32
  }
  func.func @transform_2(%arg0: i32) -> (i32, i32) {
    %c0_i32 = arith.constant 0 : i32
    %c0_i32_0 = arith.constant 0 : i32
    %c0_i32_1 = arith.constant 0 : i32
    return %c0_i32, %c0_i32_0 : i32, i32
  }
  func.func @transform_3(%arg0: i32) -> (i32, i32, i32) {
    %c0_i32 = arith.constant 0 : i32
    %c0_i32_0 = arith.constant 0 : i32
    %c0_i32_1 = arith.constant 0 : i32
    return %arg0, %c0_i32, %c0_i32_0 : i32, i32, i32
  }
}

module attributes {stable_mosaic.version = 11 : i64} {
  func.func @_conv_taps_kernel(%arg0: i32, %arg1: memref<1x81x32xbf16, #tpu.memory_space<vmem>>, %arg2: memref<1x81x32xbf16, #tpu.memory_space<vmem>>, %arg3: memref<1x81x32xbf16, #tpu.memory_space<vmem>>, %arg4: memref<1x81x32xbf16, #tpu.memory_space<vmem>>, %arg5: memref<9x32x32xbf16, #tpu.memory_space<vmem>>, %arg6: memref<1x32xf32, #tpu.memory_space<vmem>>, %arg7: memref<1x71x32xbf16, #tpu.memory_space<vmem>>) attributes {dimension_semantics = [#tpu.dimension_semantics<parallel>], iteration_bounds = array<i64: 2>, scalar_prefetch = 0 : i64, scratch_operands = 0 : i64, tpu.core_type = #tpu.core_type<tc>, window_params = [{transform_indices = @transform_0, window_bounds = array<i64: 1, 81, 32>}, {transform_indices = @transform_1, window_bounds = array<i64: 1, 81, 32>}, {transform_indices = @transform_2, window_bounds = array<i64: 1, 81, 32>}, {transform_indices = @transform_3, window_bounds = array<i64: 1, 81, 32>}, {pipeline_mode = #tpu.pipeline_mode<synchronous>, transform_indices = @transform_4, window_bounds = array<i64: 9, 32, 32>}, {pipeline_mode = #tpu.pipeline_mode<synchronous>, transform_indices = @transform_5, window_bounds = array<i64: 1, 32>}, {transform_indices = @transform_6, window_bounds = array<i64: 1, 71, 32>}]} {
    %cst = arith.constant 0.000000e+00 : f32
    %0 = vector.broadcast %cst : f32 to vector<71x32xf32>
    %c0 = arith.constant 0 : index
    %c0_0 = arith.constant 0 : index
    %c0_1 = arith.constant 0 : index
    %1 = vector.load %arg1[%c0, %c0_0, %c0_1] : memref<1x81x32xbf16, #tpu.memory_space<vmem>>, vector<1x71x32xbf16>
    %2 = vector.shape_cast %1 : vector<1x71x32xbf16> to vector<71x32xbf16>
    %c0_2 = arith.constant 0 : index
    %c0_3 = arith.constant 0 : index
    %c0_4 = arith.constant 0 : index
    %3 = vector.load %arg5[%c0_2, %c0_3, %c0_4] : memref<9x32x32xbf16, #tpu.memory_space<vmem>>, vector<1x32x32xbf16>
    %4 = vector.shape_cast %3 : vector<1x32x32xbf16> to vector<32x32xbf16>
    %cst_5 = arith.constant dense<0.000000e+00> : vector<71x32xf32>
    %5 = tpu.matmul %2, %4, %cst_5 {dimension_numbers = #tpu.dot_dimension_numbers<[1], [0], [0], [1], [0, 0, 1, 1], [], []>} : vector<71x32xbf16>, vector<32x32xbf16>, vector<71x32xf32> -> vector<71x32xf32>
    %6 = arith.addf %0, %5 : vector<71x32xf32>
    %c0_6 = arith.constant 0 : index
    %c0_7 = arith.constant 0 : index
    %c0_8 = arith.constant 0 : index
    %7 = vector.load %arg2[%c0_6, %c0_7, %c0_8] : memref<1x81x32xbf16, #tpu.memory_space<vmem>>, vector<1x71x32xbf16>
    %8 = vector.shape_cast %7 : vector<1x71x32xbf16> to vector<71x32xbf16>
    %c1 = arith.constant 1 : index
    %c0_9 = arith.constant 0 : index
    %c0_10 = arith.constant 0 : index
    %9 = vector.load %arg5[%c1, %c0_9, %c0_10] : memref<9x32x32xbf16, #tpu.memory_space<vmem>>, vector<1x32x32xbf16>
    %10 = vector.shape_cast %9 : vector<1x32x32xbf16> to vector<32x32xbf16>
    %cst_11 = arith.constant dense<0.000000e+00> : vector<71x32xf32>
    %11 = tpu.matmul %8, %10, %cst_11 {dimension_numbers = #tpu.dot_dimension_numbers<[1], [0], [0], [1], [0, 0, 1, 1], [], []>} : vector<71x32xbf16>, vector<32x32xbf16>, vector<71x32xf32> -> vector<71x32xf32>
    %12 = arith.addf %6, %11 : vector<71x32xf32>
    %c0_12 = arith.constant 0 : index
    %c1_13 = arith.constant 1 : index
    %c0_14 = arith.constant 0 : index
    %13 = vector.load %arg1[%c0_12, %c1_13, %c0_14] : memref<1x81x32xbf16, #tpu.memory_space<vmem>>, vector<1x71x32xbf16>
    %14 = vector.shape_cast %13 : vector<1x71x32xbf16> to vector<71x32xbf16>
    %c2 = arith.constant 2 : index
    %c0_15 = arith.constant 0 : index
    %c0_16 = arith.constant 0 : index
    %15 = vector.load %arg5[%c2, %c0_15, %c0_16] : memref<9x32x32xbf16, #tpu.memory_space<vmem>>, vector<1x32x32xbf16>
    %16 = vector.shape_cast %15 : vector<1x32x32xbf16> to vector<32x32xbf16>
    %cst_17 = arith.constant dense<0.000000e+00> : vector<71x32xf32>
    %17 = tpu.matmul %14, %16, %cst_17 {dimension_numbers = #tpu.dot_dimension_numbers<[1], [0], [0], [1], [0, 0, 1, 1], [], []>} : vector<71x32xbf16>, vector<32x32xbf16>, vector<71x32xf32> -> vector<71x32xf32>
    %18 = arith.addf %12, %17 : vector<71x32xf32>
    %c0_18 = arith.constant 0 : index
    %c0_19 = arith.constant 0 : index
    %c0_20 = arith.constant 0 : index
    %19 = vector.load %arg3[%c0_18, %c0_19, %c0_20] : memref<1x81x32xbf16, #tpu.memory_space<vmem>>, vector<1x71x32xbf16>
    %20 = vector.shape_cast %19 : vector<1x71x32xbf16> to vector<71x32xbf16>
    %c3 = arith.constant 3 : index
    %c0_21 = arith.constant 0 : index
    %c0_22 = arith.constant 0 : index
    %21 = vector.load %arg5[%c3, %c0_21, %c0_22] : memref<9x32x32xbf16, #tpu.memory_space<vmem>>, vector<1x32x32xbf16>
    %22 = vector.shape_cast %21 : vector<1x32x32xbf16> to vector<32x32xbf16>
    %cst_23 = arith.constant dense<0.000000e+00> : vector<71x32xf32>
    %23 = tpu.matmul %20, %22, %cst_23 {dimension_numbers = #tpu.dot_dimension_numbers<[1], [0], [0], [1], [0, 0, 1, 1], [], []>} : vector<71x32xbf16>, vector<32x32xbf16>, vector<71x32xf32> -> vector<71x32xf32>
    %24 = arith.addf %18, %23 : vector<71x32xf32>
    %c0_24 = arith.constant 0 : index
    %c0_25 = arith.constant 0 : index
    %c0_26 = arith.constant 0 : index
    %25 = vector.load %arg4[%c0_24, %c0_25, %c0_26] : memref<1x81x32xbf16, #tpu.memory_space<vmem>>, vector<1x71x32xbf16>
    %26 = vector.shape_cast %25 : vector<1x71x32xbf16> to vector<71x32xbf16>
    %c4 = arith.constant 4 : index
    %c0_27 = arith.constant 0 : index
    %c0_28 = arith.constant 0 : index
    %27 = vector.load %arg5[%c4, %c0_27, %c0_28] : memref<9x32x32xbf16, #tpu.memory_space<vmem>>, vector<1x32x32xbf16>
    %28 = vector.shape_cast %27 : vector<1x32x32xbf16> to vector<32x32xbf16>
    %cst_29 = arith.constant dense<0.000000e+00> : vector<71x32xf32>
    %29 = tpu.matmul %26, %28, %cst_29 {dimension_numbers = #tpu.dot_dimension_numbers<[1], [0], [0], [1], [0, 0, 1, 1], [], []>} : vector<71x32xbf16>, vector<32x32xbf16>, vector<71x32xf32> -> vector<71x32xf32>
    %30 = arith.addf %24, %29 : vector<71x32xf32>
    %c0_30 = arith.constant 0 : index
    %c1_31 = arith.constant 1 : index
    %c0_32 = arith.constant 0 : index
    %31 = vector.load %arg3[%c0_30, %c1_31, %c0_32] : memref<1x81x32xbf16, #tpu.memory_space<vmem>>, vector<1x71x32xbf16>
    %32 = vector.shape_cast %31 : vector<1x71x32xbf16> to vector<71x32xbf16>
    %c5 = arith.constant 5 : index
    %c0_33 = arith.constant 0 : index
    %c0_34 = arith.constant 0 : index
    %33 = vector.load %arg5[%c5, %c0_33, %c0_34] : memref<9x32x32xbf16, #tpu.memory_space<vmem>>, vector<1x32x32xbf16>
    %34 = vector.shape_cast %33 : vector<1x32x32xbf16> to vector<32x32xbf16>
    %cst_35 = arith.constant dense<0.000000e+00> : vector<71x32xf32>
    %35 = tpu.matmul %32, %34, %cst_35 {dimension_numbers = #tpu.dot_dimension_numbers<[1], [0], [0], [1], [0, 0, 1, 1], [], []>} : vector<71x32xbf16>, vector<32x32xbf16>, vector<71x32xf32> -> vector<71x32xf32>
    %36 = arith.addf %30, %35 : vector<71x32xf32>
    %c0_36 = arith.constant 0 : index
    %c9 = arith.constant 9 : index
    %c0_37 = arith.constant 0 : index
    %37 = vector.load %arg1[%c0_36, %c9, %c0_37] : memref<1x81x32xbf16, #tpu.memory_space<vmem>>, vector<1x71x32xbf16>
    %38 = vector.shape_cast %37 : vector<1x71x32xbf16> to vector<71x32xbf16>
    %c6 = arith.constant 6 : index
    %c0_38 = arith.constant 0 : index
    %c0_39 = arith.constant 0 : index
    %39 = vector.load %arg5[%c6, %c0_38, %c0_39] : memref<9x32x32xbf16, #tpu.memory_space<vmem>>, vector<1x32x32xbf16>
    %40 = vector.shape_cast %39 : vector<1x32x32xbf16> to vector<32x32xbf16>
    %cst_40 = arith.constant dense<0.000000e+00> : vector<71x32xf32>
    %41 = tpu.matmul %38, %40, %cst_40 {dimension_numbers = #tpu.dot_dimension_numbers<[1], [0], [0], [1], [0, 0, 1, 1], [], []>} : vector<71x32xbf16>, vector<32x32xbf16>, vector<71x32xf32> -> vector<71x32xf32>
    %42 = arith.addf %36, %41 : vector<71x32xf32>
    %c0_41 = arith.constant 0 : index
    %c9_42 = arith.constant 9 : index
    %c0_43 = arith.constant 0 : index
    %43 = vector.load %arg2[%c0_41, %c9_42, %c0_43] : memref<1x81x32xbf16, #tpu.memory_space<vmem>>, vector<1x71x32xbf16>
    %44 = vector.shape_cast %43 : vector<1x71x32xbf16> to vector<71x32xbf16>
    %c7 = arith.constant 7 : index
    %c0_44 = arith.constant 0 : index
    %c0_45 = arith.constant 0 : index
    %45 = vector.load %arg5[%c7, %c0_44, %c0_45] : memref<9x32x32xbf16, #tpu.memory_space<vmem>>, vector<1x32x32xbf16>
    %46 = vector.shape_cast %45 : vector<1x32x32xbf16> to vector<32x32xbf16>
    %cst_46 = arith.constant dense<0.000000e+00> : vector<71x32xf32>
    %47 = tpu.matmul %44, %46, %cst_46 {dimension_numbers = #tpu.dot_dimension_numbers<[1], [0], [0], [1], [0, 0, 1, 1], [], []>} : vector<71x32xbf16>, vector<32x32xbf16>, vector<71x32xf32> -> vector<71x32xf32>
    %48 = arith.addf %42, %47 : vector<71x32xf32>
    %c0_47 = arith.constant 0 : index
    %c10 = arith.constant 10 : index
    %c0_48 = arith.constant 0 : index
    %49 = vector.load %arg1[%c0_47, %c10, %c0_48] : memref<1x81x32xbf16, #tpu.memory_space<vmem>>, vector<1x71x32xbf16>
    %50 = vector.shape_cast %49 : vector<1x71x32xbf16> to vector<71x32xbf16>
    %c8 = arith.constant 8 : index
    %c0_49 = arith.constant 0 : index
    %c0_50 = arith.constant 0 : index
    %51 = vector.load %arg5[%c8, %c0_49, %c0_50] : memref<9x32x32xbf16, #tpu.memory_space<vmem>>, vector<1x32x32xbf16>
    %52 = vector.shape_cast %51 : vector<1x32x32xbf16> to vector<32x32xbf16>
    %cst_51 = arith.constant dense<0.000000e+00> : vector<71x32xf32>
    %53 = tpu.matmul %50, %52, %cst_51 {dimension_numbers = #tpu.dot_dimension_numbers<[1], [0], [0], [1], [0, 0, 1, 1], [], []>} : vector<71x32xbf16>, vector<32x32xbf16>, vector<71x32xf32> -> vector<71x32xf32>
    %54 = arith.addf %48, %53 : vector<71x32xf32>
    %c0_52 = arith.constant 0 : index
    %c0_53 = arith.constant 0 : index
    %55 = vector.load %arg6[%c0_52, %c0_53] : memref<1x32xf32, #tpu.memory_space<vmem>>, vector<1x32xf32>
    %56 = vector.broadcast %55 : vector<1x32xf32> to vector<71x32xf32>
    %57 = arith.addf %54, %56 : vector<71x32xf32>
    %cst_54 = arith.constant 0.000000e+00 : f32
    %58 = vector.broadcast %cst_54 : f32 to vector<71x32xf32>
    %59 = arith.cmpf oge, %57, %58 : vector<71x32xf32>
    %cst_55 = arith.constant 2.000000e-01 : f32
    %60 = vector.broadcast %cst_55 : f32 to vector<71x32xf32>
    %61 = arith.mulf %60, %57 : vector<71x32xf32>
    %62 = arith.select %59, %57, %61 : vector<71x32xi1>, vector<71x32xf32>
    %63 = arith.truncf %62 : vector<71x32xf32> to vector<71x32xbf16>
    %c0_56 = arith.constant 0 : index
    %c0_57 = arith.constant 0 : index
    %c0_58 = arith.constant 0 : index
    %64 = vector.load %arg7[%c0_56, %c0_57, %c0_58] : memref<1x71x32xbf16, #tpu.memory_space<vmem>>, vector<1x71x32xbf16>
    %65 = vector.shape_cast %64 : vector<1x71x32xbf16> to vector<71x32xbf16>
    %66 = vector.shape_cast %63 : vector<71x32xbf16> to vector<1x71x32xbf16>
    tpu.vector_store %arg7[%c0_56, %c0_57, %c0_58], %66 {strides = array<i32>} : memref<1x71x32xbf16, #tpu.memory_space<vmem>>, vector<1x71x32xbf16>,
    return
  }
  func.func @transform_0(%arg0: i32) -> (i32, i32, i32) {
    %c0_i32 = arith.constant 0 : i32
    %c0_i32_0 = arith.constant 0 : i32
    %c0_i32_1 = arith.constant 0 : i32
    return %arg0, %c0_i32, %c0_i32_0 : i32, i32, i32
  }
  func.func @transform_1(%arg0: i32) -> (i32, i32, i32) {
    %c0_i32 = arith.constant 0 : i32
    %c0_i32_0 = arith.constant 0 : i32
    %c0_i32_1 = arith.constant 0 : i32
    return %arg0, %c0_i32, %c0_i32_0 : i32, i32, i32
  }
  func.func @transform_2(%arg0: i32) -> (i32, i32, i32) {
    %c0_i32 = arith.constant 0 : i32
    %c0_i32_0 = arith.constant 0 : i32
    %c0_i32_1 = arith.constant 0 : i32
    return %arg0, %c0_i32, %c0_i32_0 : i32, i32, i32
  }
  func.func @transform_3(%arg0: i32) -> (i32, i32, i32) {
    %c0_i32 = arith.constant 0 : i32
    %c0_i32_0 = arith.constant 0 : i32
    %c0_i32_1 = arith.constant 0 : i32
    return %arg0, %c0_i32, %c0_i32_0 : i32, i32, i32
  }
  func.func @transform_4(%arg0: i32) -> (i32, i32, i32) {
    %c0_i32 = arith.constant 0 : i32
    %c0_i32_0 = arith.constant 0 : i32
    %c0_i32_1 = arith.constant 0 : i32
    %c0_i32_2 = arith.constant 0 : i32
    return %c0_i32, %c0_i32_0, %c0_i32_1 : i32, i32, i32
  }
  func.func @transform_5(%arg0: i32) -> (i32, i32) {
    %c0_i32 = arith.constant 0 : i32
    %c0_i32_0 = arith.constant 0 : i32
    %c0_i32_1 = arith.constant 0 : i32
    return %c0_i32, %c0_i32_0 : i32, i32
  }
  func.func @transform_6(%arg0: i32) -> (i32, i32, i32) {
    %c0_i32 = arith.constant 0 : i32
    %c0_i32_0 = arith.constant 0 : i32
    %c0_i32_1 = arith.constant 0 : i32
    return %arg0, %c0_i32, %c0_i32_0 : i32, i32, i32
  }
}

module attributes {stable_mosaic.version = 11 : i64} {
  func.func @_conv_taps_kernel(%arg0: i32, %arg1: memref<1x100x32xbf16, #tpu.memory_space<vmem>>, %arg2: memref<9x32x64xbf16, #tpu.memory_space<vmem>>, %arg3: memref<1x64xf32, #tpu.memory_space<vmem>>, %arg4: memref<1x78x64xbf16, #tpu.memory_space<vmem>>) attributes {dimension_semantics = [#tpu.dimension_semantics<parallel>], iteration_bounds = array<i64: 2>, scalar_prefetch = 0 : i64, scratch_operands = 0 : i64, tpu.core_type = #tpu.core_type<tc>, window_params = [{transform_indices = @transform_0, window_bounds = array<i64: 1, 100, 32>}, {pipeline_mode = #tpu.pipeline_mode<synchronous>, transform_indices = @transform_1, window_bounds = array<i64: 9, 32, 64>}, {pipeline_mode = #tpu.pipeline_mode<synchronous>, transform_indices = @transform_2, window_bounds = array<i64: 1, 64>}, {transform_indices = @transform_3, window_bounds = array<i64: 1, 78, 64>}]} {
    %cst = arith.constant 0.000000e+00 : f32
    %0 = vector.broadcast %cst : f32 to vector<78x64xf32>
    %c0 = arith.constant 0 : index
    %c0_0 = arith.constant 0 : index
    %c0_1 = arith.constant 0 : index
    %1 = vector.load %arg1[%c0, %c0_0, %c0_1] : memref<1x100x32xbf16, #tpu.memory_space<vmem>>, vector<1x78x32xbf16>
    %2 = vector.shape_cast %1 : vector<1x78x32xbf16> to vector<78x32xbf16>
    %c0_2 = arith.constant 0 : index
    %c0_3 = arith.constant 0 : index
    %c0_4 = arith.constant 0 : index
    %3 = vector.load %arg2[%c0_2, %c0_3, %c0_4] : memref<9x32x64xbf16, #tpu.memory_space<vmem>>, vector<1x32x64xbf16>
    %4 = vector.shape_cast %3 : vector<1x32x64xbf16> to vector<32x64xbf16>
    %cst_5 = arith.constant dense<0.000000e+00> : vector<78x64xf32>
    %5 = tpu.matmul %2, %4, %cst_5 {dimension_numbers = #tpu.dot_dimension_numbers<[1], [0], [0], [1], [0, 0, 1, 1], [], []>} : vector<78x32xbf16>, vector<32x64xbf16>, vector<78x64xf32> -> vector<78x64xf32>
    %6 = arith.addf %0, %5 : vector<78x64xf32>
    %c0_6 = arith.constant 0 : index
    %c1 = arith.constant 1 : index
    %c0_7 = arith.constant 0 : index
    %7 = vector.load %arg1[%c0_6, %c1, %c0_7] : memref<1x100x32xbf16, #tpu.memory_space<vmem>>, vector<1x78x32xbf16>
    %8 = vector.shape_cast %7 : vector<1x78x32xbf16> to vector<78x32xbf16>
    %c1_8 = arith.constant 1 : index
    %c0_9 = arith.constant 0 : index
    %c0_10 = arith.constant 0 : index
    %9 = vector.load %arg2[%c1_8, %c0_9, %c0_10] : memref<9x32x64xbf16, #tpu.memory_space<vmem>>, vector<1x32x64xbf16>
    %10 = vector.shape_cast %9 : vector<1x32x64xbf16> to vector<32x64xbf16>
    %cst_11 = arith.constant dense<0.000000e+00> : vector<78x64xf32>
    %11 = tpu.matmul %8, %10, %cst_11 {dimension_numbers = #tpu.dot_dimension_numbers<[1], [0], [0], [1], [0, 0, 1, 1], [], []>} : vector<78x32xbf16>, vector<32x64xbf16>, vector<78x64xf32> -> vector<78x64xf32>
    %12 = arith.addf %6, %11 : vector<78x64xf32>
    %c0_12 = arith.constant 0 : index
    %c2 = arith.constant 2 : index
    %c0_13 = arith.constant 0 : index
    %13 = vector.load %arg1[%c0_12, %c2, %c0_13] : memref<1x100x32xbf16, #tpu.memory_space<vmem>>, vector<1x78x32xbf16>
    %14 = vector.shape_cast %13 : vector<1x78x32xbf16> to vector<78x32xbf16>
    %c2_14 = arith.constant 2 : index
    %c0_15 = arith.constant 0 : index
    %c0_16 = arith.constant 0 : index
    %15 = vector.load %arg2[%c2_14, %c0_15, %c0_16] : memref<9x32x64xbf16, #tpu.memory_space<vmem>>, vector<1x32x64xbf16>
    %16 = vector.shape_cast %15 : vector<1x32x64xbf16> to vector<32x64xbf16>
    %cst_17 = arith.constant dense<0.000000e+00> : vector<78x64xf32>
    %17 = tpu.matmul %14, %16, %cst_17 {dimension_numbers = #tpu.dot_dimension_numbers<[1], [0], [0], [1], [0, 0, 1, 1], [], []>} : vector<78x32xbf16>, vector<32x64xbf16>, vector<78x64xf32> -> vector<78x64xf32>
    %18 = arith.addf %12, %17 : vector<78x64xf32>
    %c0_18 = arith.constant 0 : index
    %c10 = arith.constant 10 : index
    %c0_19 = arith.constant 0 : index
    %19 = vector.load %arg1[%c0_18, %c10, %c0_19] : memref<1x100x32xbf16, #tpu.memory_space<vmem>>, vector<1x78x32xbf16>
    %20 = vector.shape_cast %19 : vector<1x78x32xbf16> to vector<78x32xbf16>
    %c3 = arith.constant 3 : index
    %c0_20 = arith.constant 0 : index
    %c0_21 = arith.constant 0 : index
    %21 = vector.load %arg2[%c3, %c0_20, %c0_21] : memref<9x32x64xbf16, #tpu.memory_space<vmem>>, vector<1x32x64xbf16>
    %22 = vector.shape_cast %21 : vector<1x32x64xbf16> to vector<32x64xbf16>
    %cst_22 = arith.constant dense<0.000000e+00> : vector<78x64xf32>
    %23 = tpu.matmul %20, %22, %cst_22 {dimension_numbers = #tpu.dot_dimension_numbers<[1], [0], [0], [1], [0, 0, 1, 1], [], []>} : vector<78x32xbf16>, vector<32x64xbf16>, vector<78x64xf32> -> vector<78x64xf32>
    %24 = arith.addf %18, %23 : vector<78x64xf32>
    %c0_23 = arith.constant 0 : index
    %c11 = arith.constant 11 : index
    %c0_24 = arith.constant 0 : index
    %25 = vector.load %arg1[%c0_23, %c11, %c0_24] : memref<1x100x32xbf16, #tpu.memory_space<vmem>>, vector<1x78x32xbf16>
    %26 = vector.shape_cast %25 : vector<1x78x32xbf16> to vector<78x32xbf16>
    %c4 = arith.constant 4 : index
    %c0_25 = arith.constant 0 : index
    %c0_26 = arith.constant 0 : index
    %27 = vector.load %arg2[%c4, %c0_25, %c0_26] : memref<9x32x64xbf16, #tpu.memory_space<vmem>>, vector<1x32x64xbf16>
    %28 = vector.shape_cast %27 : vector<1x32x64xbf16> to vector<32x64xbf16>
    %cst_27 = arith.constant dense<0.000000e+00> : vector<78x64xf32>
    %29 = tpu.matmul %26, %28, %cst_27 {dimension_numbers = #tpu.dot_dimension_numbers<[1], [0], [0], [1], [0, 0, 1, 1], [], []>} : vector<78x32xbf16>, vector<32x64xbf16>, vector<78x64xf32> -> vector<78x64xf32>
    %30 = arith.addf %24, %29 : vector<78x64xf32>
    %c0_28 = arith.constant 0 : index
    %c12 = arith.constant 12 : index
    %c0_29 = arith.constant 0 : index
    %31 = vector.load %arg1[%c0_28, %c12, %c0_29] : memref<1x100x32xbf16, #tpu.memory_space<vmem>>, vector<1x78x32xbf16>
    %32 = vector.shape_cast %31 : vector<1x78x32xbf16> to vector<78x32xbf16>
    %c5 = arith.constant 5 : index
    %c0_30 = arith.constant 0 : index
    %c0_31 = arith.constant 0 : index
    %33 = vector.load %arg2[%c5, %c0_30, %c0_31] : memref<9x32x64xbf16, #tpu.memory_space<vmem>>, vector<1x32x64xbf16>
    %34 = vector.shape_cast %33 : vector<1x32x64xbf16> to vector<32x64xbf16>
    %cst_32 = arith.constant dense<0.000000e+00> : vector<78x64xf32>
    %35 = tpu.matmul %32, %34, %cst_32 {dimension_numbers = #tpu.dot_dimension_numbers<[1], [0], [0], [1], [0, 0, 1, 1], [], []>} : vector<78x32xbf16>, vector<32x64xbf16>, vector<78x64xf32> -> vector<78x64xf32>
    %36 = arith.addf %30, %35 : vector<78x64xf32>
    %c0_33 = arith.constant 0 : index
    %c20 = arith.constant 20 : index
    %c0_34 = arith.constant 0 : index
    %37 = vector.load %arg1[%c0_33, %c20, %c0_34] : memref<1x100x32xbf16, #tpu.memory_space<vmem>>, vector<1x78x32xbf16>
    %38 = vector.shape_cast %37 : vector<1x78x32xbf16> to vector<78x32xbf16>
    %c6 = arith.constant 6 : index
    %c0_35 = arith.constant 0 : index
    %c0_36 = arith.constant 0 : index
    %39 = vector.load %arg2[%c6, %c0_35, %c0_36] : memref<9x32x64xbf16, #tpu.memory_space<vmem>>, vector<1x32x64xbf16>
    %40 = vector.shape_cast %39 : vector<1x32x64xbf16> to vector<32x64xbf16>
    %cst_37 = arith.constant dense<0.000000e+00> : vector<78x64xf32>
    %41 = tpu.matmul %38, %40, %cst_37 {dimension_numbers = #tpu.dot_dimension_numbers<[1], [0], [0], [1], [0, 0, 1, 1], [], []>} : vector<78x32xbf16>, vector<32x64xbf16>, vector<78x64xf32> -> vector<78x64xf32>
    %42 = arith.addf %36, %41 : vector<78x64xf32>
    %c0_38 = arith.constant 0 : index
    %c21 = arith.constant 21 : index
    %c0_39 = arith.constant 0 : index
    %43 = vector.load %arg1[%c0_38, %c21, %c0_39] : memref<1x100x32xbf16, #tpu.memory_space<vmem>>, vector<1x78x32xbf16>
    %44 = vector.shape_cast %43 : vector<1x78x32xbf16> to vector<78x32xbf16>
    %c7 = arith.constant 7 : index
    %c0_40 = arith.constant 0 : index
    %c0_41 = arith.constant 0 : index
    %45 = vector.load %arg2[%c7, %c0_40, %c0_41] : memref<9x32x64xbf16, #tpu.memory_space<vmem>>, vector<1x32x64xbf16>
    %46 = vector.shape_cast %45 : vector<1x32x64xbf16> to vector<32x64xbf16>
    %cst_42 = arith.constant dense<0.000000e+00> : vector<78x64xf32>
    %47 = tpu.matmul %44, %46, %cst_42 {dimension_numbers = #tpu.dot_dimension_numbers<[1], [0], [0], [1], [0, 0, 1, 1], [], []>} : vector<78x32xbf16>, vector<32x64xbf16>, vector<78x64xf32> -> vector<78x64xf32>
    %48 = arith.addf %42, %47 : vector<78x64xf32>
    %c0_43 = arith.constant 0 : index
    %c22 = arith.constant 22 : index
    %c0_44 = arith.constant 0 : index
    %49 = vector.load %arg1[%c0_43, %c22, %c0_44] : memref<1x100x32xbf16, #tpu.memory_space<vmem>>, vector<1x78x32xbf16>
    %50 = vector.shape_cast %49 : vector<1x78x32xbf16> to vector<78x32xbf16>
    %c8 = arith.constant 8 : index
    %c0_45 = arith.constant 0 : index
    %c0_46 = arith.constant 0 : index
    %51 = vector.load %arg2[%c8, %c0_45, %c0_46] : memref<9x32x64xbf16, #tpu.memory_space<vmem>>, vector<1x32x64xbf16>
    %52 = vector.shape_cast %51 : vector<1x32x64xbf16> to vector<32x64xbf16>
    %cst_47 = arith.constant dense<0.000000e+00> : vector<78x64xf32>
    %53 = tpu.matmul %50, %52, %cst_47 {dimension_numbers = #tpu.dot_dimension_numbers<[1], [0], [0], [1], [0, 0, 1, 1], [], []>} : vector<78x32xbf16>, vector<32x64xbf16>, vector<78x64xf32> -> vector<78x64xf32>
    %54 = arith.addf %48, %53 : vector<78x64xf32>
    %c0_48 = arith.constant 0 : index
    %c0_49 = arith.constant 0 : index
    %55 = vector.load %arg3[%c0_48, %c0_49] : memref<1x64xf32, #tpu.memory_space<vmem>>, vector<1x64xf32>
    %56 = vector.broadcast %55 : vector<1x64xf32> to vector<78x64xf32>
    %57 = arith.addf %54, %56 : vector<78x64xf32>
    %cst_50 = arith.constant 0.000000e+00 : f32
    %58 = vector.broadcast %cst_50 : f32 to vector<78x64xf32>
    %59 = arith.cmpf oge, %57, %58 : vector<78x64xf32>
    %cst_51 = arith.constant 2.000000e-01 : f32
    %60 = vector.broadcast %cst_51 : f32 to vector<78x64xf32>
    %61 = arith.mulf %60, %57 : vector<78x64xf32>
    %62 = arith.select %59, %57, %61 : vector<78x64xi1>, vector<78x64xf32>
    %63 = arith.truncf %62 : vector<78x64xf32> to vector<78x64xbf16>
    %c0_52 = arith.constant 0 : index
    %c0_53 = arith.constant 0 : index
    %c0_54 = arith.constant 0 : index
    %64 = vector.load %arg4[%c0_52, %c0_53, %c0_54] : memref<1x78x64xbf16, #tpu.memory_space<vmem>>, vector<1x78x64xbf16>
    %65 = vector.shape_cast %64 : vector<1x78x64xbf16> to vector<78x64xbf16>
    %66 = vector.shape_cast %63 : vector<78x64xbf16> to vector<1x78x64xbf16>
    tpu.vector_store %arg4[%c0_52, %c0_53, %c0_54], %66 {strides = array<i32>} : memref<1x78x64xbf16, #tpu.memory_space<vmem>>, vector<1x78x64xbf16>,
    return
  }
  func.func @transform_0(%arg0: i32) -> (i32, i32, i32) {
    %c0_i32 = arith.constant 0 : i32
    %c0_i32_0 = arith.constant 0 : i32
    %c0_i32_1 = arith.constant 0 : i32
    return %arg0, %c0_i32, %c0_i32_0 : i32, i32, i32
  }
  func.func @transform_1(%arg0: i32) -> (i32, i32, i32) {
    %c0_i32 = arith.constant 0 : i32
    %c0_i32_0 = arith.constant 0 : i32
    %c0_i32_1 = arith.constant 0 : i32
    %c0_i32_2 = arith.constant 0 : i32
    return %c0_i32, %c0_i32_0, %c0_i32_1 : i32, i32, i32
  }
  func.func @transform_2(%arg0: i32) -> (i32, i32) {
    %c0_i32 = arith.constant 0 : i32
    %c0_i32_0 = arith.constant 0 : i32
    %c0_i32_1 = arith.constant 0 : i32
    return %c0_i32, %c0_i32_0 : i32, i32
  }
  func.func @transform_3(%arg0: i32) -> (i32, i32, i32) {
    %c0_i32 = arith.constant 0 : i32
    %c0_i32_0 = arith.constant 0 : i32
    %c0_i32_1 = arith.constant 0 : i32
    return %arg0, %c0_i32, %c0_i32_0 : i32, i32, i32
  }
}

module attributes {stable_mosaic.version = 11 : i64} {
  func.func @_conv_taps_kernel(%arg0: i32, %arg1: memref<1x25x64xbf16, #tpu.memory_space<vmem>>, %arg2: memref<1x25x64xbf16, #tpu.memory_space<vmem>>, %arg3: memref<1x25x64xbf16, #tpu.memory_space<vmem>>, %arg4: memref<1x25x64xbf16, #tpu.memory_space<vmem>>, %arg5: memref<9x64x64xbf16, #tpu.memory_space<vmem>>, %arg6: memref<1x64xf32, #tpu.memory_space<vmem>>, %arg7: memref<1x19x64xbf16, #tpu.memory_space<vmem>>) attributes {dimension_semantics = [#tpu.dimension_semantics<parallel>], iteration_bounds = array<i64: 2>, scalar_prefetch = 0 : i64, scratch_operands = 0 : i64, tpu.core_type = #tpu.core_type<tc>, window_params = [{transform_indices = @transform_0, window_bounds = array<i64: 1, 25, 64>}, {transform_indices = @transform_1, window_bounds = array<i64: 1, 25, 64>}, {transform_indices = @transform_2, window_bounds = array<i64: 1, 25, 64>}, {transform_indices = @transform_3, window_bounds = array<i64: 1, 25, 64>}, {pipeline_mode = #tpu.pipeline_mode<synchronous>, transform_indices = @transform_4, window_bounds = array<i64: 9, 64, 64>}, {pipeline_mode = #tpu.pipeline_mode<synchronous>, transform_indices = @transform_5, window_bounds = array<i64: 1, 64>}, {transform_indices = @transform_6, window_bounds = array<i64: 1, 19, 64>}]} {
    %cst = arith.constant 0.000000e+00 : f32
    %0 = vector.broadcast %cst : f32 to vector<19x64xf32>
    %c0 = arith.constant 0 : index
    %c0_0 = arith.constant 0 : index
    %c0_1 = arith.constant 0 : index
    %1 = vector.load %arg1[%c0, %c0_0, %c0_1] : memref<1x25x64xbf16, #tpu.memory_space<vmem>>, vector<1x19x64xbf16>
    %2 = vector.shape_cast %1 : vector<1x19x64xbf16> to vector<19x64xbf16>
    %c0_2 = arith.constant 0 : index
    %c0_3 = arith.constant 0 : index
    %c0_4 = arith.constant 0 : index
    %3 = vector.load %arg5[%c0_2, %c0_3, %c0_4] : memref<9x64x64xbf16, #tpu.memory_space<vmem>>, vector<1x64x64xbf16>
    %4 = vector.shape_cast %3 : vector<1x64x64xbf16> to vector<64x64xbf16>
    %cst_5 = arith.constant dense<0.000000e+00> : vector<19x64xf32>
    %5 = tpu.matmul %2, %4, %cst_5 {dimension_numbers = #tpu.dot_dimension_numbers<[1], [0], [0], [1], [0, 0, 1, 1], [], []>} : vector<19x64xbf16>, vector<64x64xbf16>, vector<19x64xf32> -> vector<19x64xf32>
    %6 = arith.addf %0, %5 : vector<19x64xf32>
    %c0_6 = arith.constant 0 : index
    %c0_7 = arith.constant 0 : index
    %c0_8 = arith.constant 0 : index
    %7 = vector.load %arg2[%c0_6, %c0_7, %c0_8] : memref<1x25x64xbf16, #tpu.memory_space<vmem>>, vector<1x19x64xbf16>
    %8 = vector.shape_cast %7 : vector<1x19x64xbf16> to vector<19x64xbf16>
    %c1 = arith.constant 1 : index
    %c0_9 = arith.constant 0 : index
    %c0_10 = arith.constant 0 : index
    %9 = vector.load %arg5[%c1, %c0_9, %c0_10] : memref<9x64x64xbf16, #tpu.memory_space<vmem>>, vector<1x64x64xbf16>
    %10 = vector.shape_cast %9 : vector<1x64x64xbf16> to vector<64x64xbf16>
    %cst_11 = arith.constant dense<0.000000e+00> : vector<19x64xf32>
    %11 = tpu.matmul %8, %10, %cst_11 {dimension_numbers = #tpu.dot_dimension_numbers<[1], [0], [0], [1], [0, 0, 1, 1], [], []>} : vector<19x64xbf16>, vector<64x64xbf16>, vector<19x64xf32> -> vector<19x64xf32>
    %12 = arith.addf %6, %11 : vector<19x64xf32>
    %c0_12 = arith.constant 0 : index
    %c1_13 = arith.constant 1 : index
    %c0_14 = arith.constant 0 : index
    %13 = vector.load %arg1[%c0_12, %c1_13, %c0_14] : memref<1x25x64xbf16, #tpu.memory_space<vmem>>, vector<1x19x64xbf16>
    %14 = vector.shape_cast %13 : vector<1x19x64xbf16> to vector<19x64xbf16>
    %c2 = arith.constant 2 : index
    %c0_15 = arith.constant 0 : index
    %c0_16 = arith.constant 0 : index
    %15 = vector.load %arg5[%c2, %c0_15, %c0_16] : memref<9x64x64xbf16, #tpu.memory_space<vmem>>, vector<1x64x64xbf16>
    %16 = vector.shape_cast %15 : vector<1x64x64xbf16> to vector<64x64xbf16>
    %cst_17 = arith.constant dense<0.000000e+00> : vector<19x64xf32>
    %17 = tpu.matmul %14, %16, %cst_17 {dimension_numbers = #tpu.dot_dimension_numbers<[1], [0], [0], [1], [0, 0, 1, 1], [], []>} : vector<19x64xbf16>, vector<64x64xbf16>, vector<19x64xf32> -> vector<19x64xf32>
    %18 = arith.addf %12, %17 : vector<19x64xf32>
    %c0_18 = arith.constant 0 : index
    %c0_19 = arith.constant 0 : index
    %c0_20 = arith.constant 0 : index
    %19 = vector.load %arg3[%c0_18, %c0_19, %c0_20] : memref<1x25x64xbf16, #tpu.memory_space<vmem>>, vector<1x19x64xbf16>
    %20 = vector.shape_cast %19 : vector<1x19x64xbf16> to vector<19x64xbf16>
    %c3 = arith.constant 3 : index
    %c0_21 = arith.constant 0 : index
    %c0_22 = arith.constant 0 : index
    %21 = vector.load %arg5[%c3, %c0_21, %c0_22] : memref<9x64x64xbf16, #tpu.memory_space<vmem>>, vector<1x64x64xbf16>
    %22 = vector.shape_cast %21 : vector<1x64x64xbf16> to vector<64x64xbf16>
    %cst_23 = arith.constant dense<0.000000e+00> : vector<19x64xf32>
    %23 = tpu.matmul %20, %22, %cst_23 {dimension_numbers = #tpu.dot_dimension_numbers<[1], [0], [0], [1], [0, 0, 1, 1], [], []>} : vector<19x64xbf16>, vector<64x64xbf16>, vector<19x64xf32> -> vector<19x64xf32>
    %24 = arith.addf %18, %23 : vector<19x64xf32>
    %c0_24 = arith.constant 0 : index
    %c0_25 = arith.constant 0 : index
    %c0_26 = arith.constant 0 : index
    %25 = vector.load %arg4[%c0_24, %c0_25, %c0_26] : memref<1x25x64xbf16, #tpu.memory_space<vmem>>, vector<1x19x64xbf16>
    %26 = vector.shape_cast %25 : vector<1x19x64xbf16> to vector<19x64xbf16>
    %c4 = arith.constant 4 : index
    %c0_27 = arith.constant 0 : index
    %c0_28 = arith.constant 0 : index
    %27 = vector.load %arg5[%c4, %c0_27, %c0_28] : memref<9x64x64xbf16, #tpu.memory_space<vmem>>, vector<1x64x64xbf16>
    %28 = vector.shape_cast %27 : vector<1x64x64xbf16> to vector<64x64xbf16>
    %cst_29 = arith.constant dense<0.000000e+00> : vector<19x64xf32>
    %29 = tpu.matmul %26, %28, %cst_29 {dimension_numbers = #tpu.dot_dimension_numbers<[1], [0], [0], [1], [0, 0, 1, 1], [], []>} : vector<19x64xbf16>, vector<64x64xbf16>, vector<19x64xf32> -> vector<19x64xf32>
    %30 = arith.addf %24, %29 : vector<19x64xf32>
    %c0_30 = arith.constant 0 : index
    %c1_31 = arith.constant 1 : index
    %c0_32 = arith.constant 0 : index
    %31 = vector.load %arg3[%c0_30, %c1_31, %c0_32] : memref<1x25x64xbf16, #tpu.memory_space<vmem>>, vector<1x19x64xbf16>
    %32 = vector.shape_cast %31 : vector<1x19x64xbf16> to vector<19x64xbf16>
    %c5 = arith.constant 5 : index
    %c0_33 = arith.constant 0 : index
    %c0_34 = arith.constant 0 : index
    %33 = vector.load %arg5[%c5, %c0_33, %c0_34] : memref<9x64x64xbf16, #tpu.memory_space<vmem>>, vector<1x64x64xbf16>
    %34 = vector.shape_cast %33 : vector<1x64x64xbf16> to vector<64x64xbf16>
    %cst_35 = arith.constant dense<0.000000e+00> : vector<19x64xf32>
    %35 = tpu.matmul %32, %34, %cst_35 {dimension_numbers = #tpu.dot_dimension_numbers<[1], [0], [0], [1], [0, 0, 1, 1], [], []>} : vector<19x64xbf16>, vector<64x64xbf16>, vector<19x64xf32> -> vector<19x64xf32>
    %36 = arith.addf %30, %35 : vector<19x64xf32>
    %c0_36 = arith.constant 0 : index
    %c5_37 = arith.constant 5 : index
    %c0_38 = arith.constant 0 : index
    %37 = vector.load %arg1[%c0_36, %c5_37, %c0_38] : memref<1x25x64xbf16, #tpu.memory_space<vmem>>, vector<1x19x64xbf16>
    %38 = vector.shape_cast %37 : vector<1x19x64xbf16> to vector<19x64xbf16>
    %c6 = arith.constant 6 : index
    %c0_39 = arith.constant 0 : index
    %c0_40 = arith.constant 0 : index
    %39 = vector.load %arg5[%c6, %c0_39, %c0_40] : memref<9x64x64xbf16, #tpu.memory_space<vmem>>, vector<1x64x64xbf16>
    %40 = vector.shape_cast %39 : vector<1x64x64xbf16> to vector<64x64xbf16>
    %cst_41 = arith.constant dense<0.000000e+00> : vector<19x64xf32>
    %41 = tpu.matmul %38, %40, %cst_41 {dimension_numbers = #tpu.dot_dimension_numbers<[1], [0], [0], [1], [0, 0, 1, 1], [], []>} : vector<19x64xbf16>, vector<64x64xbf16>, vector<19x64xf32> -> vector<19x64xf32>
    %42 = arith.addf %36, %41 : vector<19x64xf32>
    %c0_42 = arith.constant 0 : index
    %c5_43 = arith.constant 5 : index
    %c0_44 = arith.constant 0 : index
    %43 = vector.load %arg2[%c0_42, %c5_43, %c0_44] : memref<1x25x64xbf16, #tpu.memory_space<vmem>>, vector<1x19x64xbf16>
    %44 = vector.shape_cast %43 : vector<1x19x64xbf16> to vector<19x64xbf16>
    %c7 = arith.constant 7 : index
    %c0_45 = arith.constant 0 : index
    %c0_46 = arith.constant 0 : index
    %45 = vector.load %arg5[%c7, %c0_45, %c0_46] : memref<9x64x64xbf16, #tpu.memory_space<vmem>>, vector<1x64x64xbf16>
    %46 = vector.shape_cast %45 : vector<1x64x64xbf16> to vector<64x64xbf16>
    %cst_47 = arith.constant dense<0.000000e+00> : vector<19x64xf32>
    %47 = tpu.matmul %44, %46, %cst_47 {dimension_numbers = #tpu.dot_dimension_numbers<[1], [0], [0], [1], [0, 0, 1, 1], [], []>} : vector<19x64xbf16>, vector<64x64xbf16>, vector<19x64xf32> -> vector<19x64xf32>
    %48 = arith.addf %42, %47 : vector<19x64xf32>
    %c0_48 = arith.constant 0 : index
    %c6_49 = arith.constant 6 : index
    %c0_50 = arith.constant 0 : index
    %49 = vector.load %arg1[%c0_48, %c6_49, %c0_50] : memref<1x25x64xbf16, #tpu.memory_space<vmem>>, vector<1x19x64xbf16>
    %50 = vector.shape_cast %49 : vector<1x19x64xbf16> to vector<19x64xbf16>
    %c8 = arith.constant 8 : index
    %c0_51 = arith.constant 0 : index
    %c0_52 = arith.constant 0 : index
    %51 = vector.load %arg5[%c8, %c0_51, %c0_52] : memref<9x64x64xbf16, #tpu.memory_space<vmem>>, vector<1x64x64xbf16>
    %52 = vector.shape_cast %51 : vector<1x64x64xbf16> to vector<64x64xbf16>
    %cst_53 = arith.constant dense<0.000000e+00> : vector<19x64xf32>
    %53 = tpu.matmul %50, %52, %cst_53 {dimension_numbers = #tpu.dot_dimension_numbers<[1], [0], [0], [1], [0, 0, 1, 1], [], []>} : vector<19x64xbf16>, vector<64x64xbf16>, vector<19x64xf32> -> vector<19x64xf32>
    %54 = arith.addf %48, %53 : vector<19x64xf32>
    %c0_54 = arith.constant 0 : index
    %c0_55 = arith.constant 0 : index
    %55 = vector.load %arg6[%c0_54, %c0_55] : memref<1x64xf32, #tpu.memory_space<vmem>>, vector<1x64xf32>
    %56 = vector.broadcast %55 : vector<1x64xf32> to vector<19x64xf32>
    %57 = arith.addf %54, %56 : vector<19x64xf32>
    %cst_56 = arith.constant 0.000000e+00 : f32
    %58 = vector.broadcast %cst_56 : f32 to vector<19x64xf32>
    %59 = arith.cmpf oge, %57, %58 : vector<19x64xf32>
    %cst_57 = arith.constant 2.000000e-01 : f32
    %60 = vector.broadcast %cst_57 : f32 to vector<19x64xf32>
    %61 = arith.mulf %60, %57 : vector<19x64xf32>
    %62 = arith.select %59, %57, %61 : vector<19x64xi1>, vector<19x64xf32>
    %63 = arith.truncf %62 : vector<19x64xf32> to vector<19x64xbf16>
    %c0_58 = arith.constant 0 : index
    %c0_59 = arith.constant 0 : index
    %c0_60 = arith.constant 0 : index
    %64 = vector.load %arg7[%c0_58, %c0_59, %c0_60] : memref<1x19x64xbf16, #tpu.memory_space<vmem>>, vector<1x19x64xbf16>
    %65 = vector.shape_cast %64 : vector<1x19x64xbf16> to vector<19x64xbf16>
    %66 = vector.shape_cast %63 : vector<19x64xbf16> to vector<1x19x64xbf16>
    tpu.vector_store %arg7[%c0_58, %c0_59, %c0_60], %66 {strides = array<i32>} : memref<1x19x64xbf16, #tpu.memory_space<vmem>>, vector<1x19x64xbf16>,
    return
  }
  func.func @transform_0(%arg0: i32) -> (i32, i32, i32) {
    %c0_i32 = arith.constant 0 : i32
    %c0_i32_0 = arith.constant 0 : i32
    %c0_i32_1 = arith.constant 0 : i32
    return %arg0, %c0_i32, %c0_i32_0 : i32, i32, i32
  }
  func.func @transform_1(%arg0: i32) -> (i32, i32, i32) {
    %c0_i32 = arith.constant 0 : i32
    %c0_i32_0 = arith.constant 0 : i32
    %c0_i32_1 = arith.constant 0 : i32
    return %arg0, %c0_i32, %c0_i32_0 : i32, i32, i32
  }
  func.func @transform_2(%arg0: i32) -> (i32, i32, i32) {
    %c0_i32 = arith.constant 0 : i32
    %c0_i32_0 = arith.constant 0 : i32
    %c0_i32_1 = arith.constant 0 : i32
    return %arg0, %c0_i32, %c0_i32_0 : i32, i32, i32
  }
  func.func @transform_3(%arg0: i32) -> (i32, i32, i32) {
    %c0_i32 = arith.constant 0 : i32
    %c0_i32_0 = arith.constant 0 : i32
    %c0_i32_1 = arith.constant 0 : i32
    return %arg0, %c0_i32, %c0_i32_0 : i32, i32, i32
  }
  func.func @transform_4(%arg0: i32) -> (i32, i32, i32) {
    %c0_i32 = arith.constant 0 : i32
    %c0_i32_0 = arith.constant 0 : i32
    %c0_i32_1 = arith.constant 0 : i32
    %c0_i32_2 = arith.constant 0 : i32
    return %c0_i32, %c0_i32_0, %c0_i32_1 : i32, i32, i32
  }
  func.func @transform_5(%arg0: i32) -> (i32, i32) {
    %c0_i32 = arith.constant 0 : i32
    %c0_i32_0 = arith.constant 0 : i32
    %c0_i32_1 = arith.constant 0 : i32
    return %c0_i32, %c0_i32_0 : i32, i32
  }
  func.func @transform_6(%arg0: i32) -> (i32, i32, i32) {
    %c0_i32 = arith.constant 0 : i32
    %c0_i32_0 = arith.constant 0 : i32
    %c0_i32_1 = arith.constant 0 : i32
    return %arg0, %c0_i32, %c0_i32_0 : i32, i32, i32
  }
}

module attributes {stable_mosaic.version = 11 : i64} {
  func.func @_conv_taps_kernel(%arg0: i32, %arg1: memref<1x36x64xbf16, #tpu.memory_space<vmem>>, %arg2: memref<9x64x64xbf16, #tpu.memory_space<vmem>>, %arg3: memref<1x64xf32, #tpu.memory_space<vmem>>, %arg4: memref<1x22x64xbf16, #tpu.memory_space<vmem>>) attributes {dimension_semantics = [#tpu.dimension_semantics<parallel>], iteration_bounds = array<i64: 2>, scalar_prefetch = 0 : i64, scratch_operands = 0 : i64, tpu.core_type = #tpu.core_type<tc>, window_params = [{transform_indices = @transform_0, window_bounds = array<i64: 1, 36, 64>}, {pipeline_mode = #tpu.pipeline_mode<synchronous>, transform_indices = @transform_1, window_bounds = array<i64: 9, 64, 64>}, {pipeline_mode = #tpu.pipeline_mode<synchronous>, transform_indices = @transform_2, window_bounds = array<i64: 1, 64>}, {transform_indices = @transform_3, window_bounds = array<i64: 1, 22, 64>}]} {
    %cst = arith.constant 0.000000e+00 : f32
    %0 = vector.broadcast %cst : f32 to vector<22x64xf32>
    %c0 = arith.constant 0 : index
    %c0_0 = arith.constant 0 : index
    %c0_1 = arith.constant 0 : index
    %1 = vector.load %arg1[%c0, %c0_0, %c0_1] : memref<1x36x64xbf16, #tpu.memory_space<vmem>>, vector<1x22x64xbf16>
    %2 = vector.shape_cast %1 : vector<1x22x64xbf16> to vector<22x64xbf16>
    %c0_2 = arith.constant 0 : index
    %c0_3 = arith.constant 0 : index
    %c0_4 = arith.constant 0 : index
    %3 = vector.load %arg2[%c0_2, %c0_3, %c0_4] : memref<9x64x64xbf16, #tpu.memory_space<vmem>>, vector<1x64x64xbf16>
    %4 = vector.shape_cast %3 : vector<1x64x64xbf16> to vector<64x64xbf16>
    %cst_5 = arith.constant dense<0.000000e+00> : vector<22x64xf32>
    %5 = tpu.matmul %2, %4, %cst_5 {dimension_numbers = #tpu.dot_dimension_numbers<[1], [0], [0], [1], [0, 0, 1, 1], [], []>} : vector<22x64xbf16>, vector<64x64xbf16>, vector<22x64xf32> -> vector<22x64xf32>
    %6 = arith.addf %0, %5 : vector<22x64xf32>
    %c0_6 = arith.constant 0 : index
    %c1 = arith.constant 1 : index
    %c0_7 = arith.constant 0 : index
    %7 = vector.load %arg1[%c0_6, %c1, %c0_7] : memref<1x36x64xbf16, #tpu.memory_space<vmem>>, vector<1x22x64xbf16>
    %8 = vector.shape_cast %7 : vector<1x22x64xbf16> to vector<22x64xbf16>
    %c1_8 = arith.constant 1 : index
    %c0_9 = arith.constant 0 : index
    %c0_10 = arith.constant 0 : index
    %9 = vector.load %arg2[%c1_8, %c0_9, %c0_10] : memref<9x64x64xbf16, #tpu.memory_space<vmem>>, vector<1x64x64xbf16>
    %10 = vector.shape_cast %9 : vector<1x64x64xbf16> to vector<64x64xbf16>
    %cst_11 = arith.constant dense<0.000000e+00> : vector<22x64xf32>
    %11 = tpu.matmul %8, %10, %cst_11 {dimension_numbers = #tpu.dot_dimension_numbers<[1], [0], [0], [1], [0, 0, 1, 1], [], []>} : vector<22x64xbf16>, vector<64x64xbf16>, vector<22x64xf32> -> vector<22x64xf32>
    %12 = arith.addf %6, %11 : vector<22x64xf32>
    %c0_12 = arith.constant 0 : index
    %c2 = arith.constant 2 : index
    %c0_13 = arith.constant 0 : index
    %13 = vector.load %arg1[%c0_12, %c2, %c0_13] : memref<1x36x64xbf16, #tpu.memory_space<vmem>>, vector<1x22x64xbf16>
    %14 = vector.shape_cast %13 : vector<1x22x64xbf16> to vector<22x64xbf16>
    %c2_14 = arith.constant 2 : index
    %c0_15 = arith.constant 0 : index
    %c0_16 = arith.constant 0 : index
    %15 = vector.load %arg2[%c2_14, %c0_15, %c0_16] : memref<9x64x64xbf16, #tpu.memory_space<vmem>>, vector<1x64x64xbf16>
    %16 = vector.shape_cast %15 : vector<1x64x64xbf16> to vector<64x64xbf16>
    %cst_17 = arith.constant dense<0.000000e+00> : vector<22x64xf32>
    %17 = tpu.matmul %14, %16, %cst_17 {dimension_numbers = #tpu.dot_dimension_numbers<[1], [0], [0], [1], [0, 0, 1, 1], [], []>} : vector<22x64xbf16>, vector<64x64xbf16>, vector<22x64xf32> -> vector<22x64xf32>
    %18 = arith.addf %12, %17 : vector<22x64xf32>
    %c0_18 = arith.constant 0 : index
    %c6 = arith.constant 6 : index
    %c0_19 = arith.constant 0 : index
    %19 = vector.load %arg1[%c0_18, %c6, %c0_19] : memref<1x36x64xbf16, #tpu.memory_space<vmem>>, vector<1x22x64xbf16>
    %20 = vector.shape_cast %19 : vector<1x22x64xbf16> to vector<22x64xbf16>
    %c3 = arith.constant 3 : index
    %c0_20 = arith.constant 0 : index
    %c0_21 = arith.constant 0 : index
    %21 = vector.load %arg2[%c3, %c0_20, %c0_21] : memref<9x64x64xbf16, #tpu.memory_space<vmem>>, vector<1x64x64xbf16>
    %22 = vector.shape_cast %21 : vector<1x64x64xbf16> to vector<64x64xbf16>
    %cst_22 = arith.constant dense<0.000000e+00> : vector<22x64xf32>
    %23 = tpu.matmul %20, %22, %cst_22 {dimension_numbers = #tpu.dot_dimension_numbers<[1], [0], [0], [1], [0, 0, 1, 1], [], []>} : vector<22x64xbf16>, vector<64x64xbf16>, vector<22x64xf32> -> vector<22x64xf32>
    %24 = arith.addf %18, %23 : vector<22x64xf32>
    %c0_23 = arith.constant 0 : index
    %c7 = arith.constant 7 : index
    %c0_24 = arith.constant 0 : index
    %25 = vector.load %arg1[%c0_23, %c7, %c0_24] : memref<1x36x64xbf16, #tpu.memory_space<vmem>>, vector<1x22x64xbf16>
    %26 = vector.shape_cast %25 : vector<1x22x64xbf16> to vector<22x64xbf16>
    %c4 = arith.constant 4 : index
    %c0_25 = arith.constant 0 : index
    %c0_26 = arith.constant 0 : index
    %27 = vector.load %arg2[%c4, %c0_25, %c0_26] : memref<9x64x64xbf16, #tpu.memory_space<vmem>>, vector<1x64x64xbf16>
    %28 = vector.shape_cast %27 : vector<1x64x64xbf16> to vector<64x64xbf16>
    %cst_27 = arith.constant dense<0.000000e+00> : vector<22x64xf32>
    %29 = tpu.matmul %26, %28, %cst_27 {dimension_numbers = #tpu.dot_dimension_numbers<[1], [0], [0], [1], [0, 0, 1, 1], [], []>} : vector<22x64xbf16>, vector<64x64xbf16>, vector<22x64xf32> -> vector<22x64xf32>
    %30 = arith.addf %24, %29 : vector<22x64xf32>
    %c0_28 = arith.constant 0 : index
    %c8 = arith.constant 8 : index
    %c0_29 = arith.constant 0 : index
    %31 = vector.load %arg1[%c0_28, %c8, %c0_29] : memref<1x36x64xbf16, #tpu.memory_space<vmem>>, vector<1x22x64xbf16>
    %32 = vector.shape_cast %31 : vector<1x22x64xbf16> to vector<22x64xbf16>
    %c5 = arith.constant 5 : index
    %c0_30 = arith.constant 0 : index
    %c0_31 = arith.constant 0 : index
    %33 = vector.load %arg2[%c5, %c0_30, %c0_31] : memref<9x64x64xbf16, #tpu.memory_space<vmem>>, vector<1x64x64xbf16>
    %34 = vector.shape_cast %33 : vector<1x64x64xbf16> to vector<64x64xbf16>
    %cst_32 = arith.constant dense<0.000000e+00> : vector<22x64xf32>
    %35 = tpu.matmul %32, %34, %cst_32 {dimension_numbers = #tpu.dot_dimension_numbers<[1], [0], [0], [1], [0, 0, 1, 1], [], []>} : vector<22x64xbf16>, vector<64x64xbf16>, vector<22x64xf32> -> vector<22x64xf32>
    %36 = arith.addf %30, %35 : vector<22x64xf32>
    %c0_33 = arith.constant 0 : index
    %c12 = arith.constant 12 : index
    %c0_34 = arith.constant 0 : index
    %37 = vector.load %arg1[%c0_33, %c12, %c0_34] : memref<1x36x64xbf16, #tpu.memory_space<vmem>>, vector<1x22x64xbf16>
    %38 = vector.shape_cast %37 : vector<1x22x64xbf16> to vector<22x64xbf16>
    %c6_35 = arith.constant 6 : index
    %c0_36 = arith.constant 0 : index
    %c0_37 = arith.constant 0 : index
    %39 = vector.load %arg2[%c6_35, %c0_36, %c0_37] : memref<9x64x64xbf16, #tpu.memory_space<vmem>>, vector<1x64x64xbf16>
    %40 = vector.shape_cast %39 : vector<1x64x64xbf16> to vector<64x64xbf16>
    %cst_38 = arith.constant dense<0.000000e+00> : vector<22x64xf32>
    %41 = tpu.matmul %38, %40, %cst_38 {dimension_numbers = #tpu.dot_dimension_numbers<[1], [0], [0], [1], [0, 0, 1, 1], [], []>} : vector<22x64xbf16>, vector<64x64xbf16>, vector<22x64xf32> -> vector<22x64xf32>
    %42 = arith.addf %36, %41 : vector<22x64xf32>
    %c0_39 = arith.constant 0 : index
    %c13 = arith.constant 13 : index
    %c0_40 = arith.constant 0 : index
    %43 = vector.load %arg1[%c0_39, %c13, %c0_40] : memref<1x36x64xbf16, #tpu.memory_space<vmem>>, vector<1x22x64xbf16>
    %44 = vector.shape_cast %43 : vector<1x22x64xbf16> to vector<22x64xbf16>
    %c7_41 = arith.constant 7 : index
    %c0_42 = arith.constant 0 : index
    %c0_43 = arith.constant 0 : index
    %45 = vector.load %arg2[%c7_41, %c0_42, %c0_43] : memref<9x64x64xbf16, #tpu.memory_space<vmem>>, vector<1x64x64xbf16>
    %46 = vector.shape_cast %45 : vector<1x64x64xbf16> to vector<64x64xbf16>
    %cst_44 = arith.constant dense<0.000000e+00> : vector<22x64xf32>
    %47 = tpu.matmul %44, %46, %cst_44 {dimension_numbers = #tpu.dot_dimension_numbers<[1], [0], [0], [1], [0, 0, 1, 1], [], []>} : vector<22x64xbf16>, vector<64x64xbf16>, vector<22x64xf32> -> vector<22x64xf32>
    %48 = arith.addf %42, %47 : vector<22x64xf32>
    %c0_45 = arith.constant 0 : index
    %c14 = arith.constant 14 : index
    %c0_46 = arith.constant 0 : index
    %49 = vector.load %arg1[%c0_45, %c14, %c0_46] : memref<1x36x64xbf16, #tpu.memory_space<vmem>>, vector<1x22x64xbf16>
    %50 = vector.shape_cast %49 : vector<1x22x64xbf16> to vector<22x64xbf16>
    %c8_47 = arith.constant 8 : index
    %c0_48 = arith.constant 0 : index
    %c0_49 = arith.constant 0 : index
    %51 = vector.load %arg2[%c8_47, %c0_48, %c0_49] : memref<9x64x64xbf16, #tpu.memory_space<vmem>>, vector<1x64x64xbf16>
    %52 = vector.shape_cast %51 : vector<1x64x64xbf16> to vector<64x64xbf16>
    %cst_50 = arith.constant dense<0.000000e+00> : vector<22x64xf32>
    %53 = tpu.matmul %50, %52, %cst_50 {dimension_numbers = #tpu.dot_dimension_numbers<[1], [0], [0], [1], [0, 0, 1, 1], [], []>} : vector<22x64xbf16>, vector<64x64xbf16>, vector<22x64xf32> -> vector<22x64xf32>
    %54 = arith.addf %48, %53 : vector<22x64xf32>
    %c0_51 = arith.constant 0 : index
    %c0_52 = arith.constant 0 : index
    %55 = vector.load %arg3[%c0_51, %c0_52] : memref<1x64xf32, #tpu.memory_space<vmem>>, vector<1x64xf32>
    %56 = vector.broadcast %55 : vector<1x64xf32> to vector<22x64xf32>
    %57 = arith.addf %54, %56 : vector<22x64xf32>
    %cst_53 = arith.constant 0.000000e+00 : f32
    %58 = vector.broadcast %cst_53 : f32 to vector<22x64xf32>
    %59 = arith.cmpf oge, %57, %58 : vector<22x64xf32>
    %cst_54 = arith.constant 2.000000e-01 : f32
    %60 = vector.broadcast %cst_54 : f32 to vector<22x64xf32>
    %61 = arith.mulf %60, %57 : vector<22x64xf32>
    %62 = arith.select %59, %57, %61 : vector<22x64xi1>, vector<22x64xf32>
    %63 = arith.truncf %62 : vector<22x64xf32> to vector<22x64xbf16>
    %c0_55 = arith.constant 0 : index
    %c0_56 = arith.constant 0 : index
    %c0_57 = arith.constant 0 : index
    %64 = vector.load %arg4[%c0_55, %c0_56, %c0_57] : memref<1x22x64xbf16, #tpu.memory_space<vmem>>, vector<1x22x64xbf16>
    %65 = vector.shape_cast %64 : vector<1x22x64xbf16> to vector<22x64xbf16>
    %66 = vector.shape_cast %63 : vector<22x64xbf16> to vector<1x22x64xbf16>
    tpu.vector_store %arg4[%c0_55, %c0_56, %c0_57], %66 {strides = array<i32>} : memref<1x22x64xbf16, #tpu.memory_space<vmem>>, vector<1x22x64xbf16>,
    return
  }
  func.func @transform_0(%arg0: i32) -> (i32, i32, i32) {
    %c0_i32 = arith.constant 0 : i32
    %c0_i32_0 = arith.constant 0 : i32
    %c0_i32_1 = arith.constant 0 : i32
    return %arg0, %c0_i32, %c0_i32_0 : i32, i32, i32
  }
  func.func @transform_1(%arg0: i32) -> (i32, i32, i32) {
    %c0_i32 = arith.constant 0 : i32
    %c0_i32_0 = arith.constant 0 : i32
    %c0_i32_1 = arith.constant 0 : i32
    %c0_i32_2 = arith.constant 0 : i32
    return %c0_i32, %c0_i32_0, %c0_i32_1 : i32, i32, i32
  }
  func.func @transform_2(%arg0: i32) -> (i32, i32) {
    %c0_i32 = arith.constant 0 : i32
    %c0_i32_0 = arith.constant 0 : i32
    %c0_i32_1 = arith.constant 0 : i32
    return %c0_i32, %c0_i32_0 : i32, i32
  }
  func.func @transform_3(%arg0: i32) -> (i32, i32, i32) {
    %c0_i32 = arith.constant 0 : i32
    %c0_i32_0 = arith.constant 0 : i32
    %c0_i32_1 = arith.constant 0 : i32
    return %arg0, %c0_i32, %c0_i32_0 : i32, i32, i32
  }
}

module attributes {stable_mosaic.version = 11 : i64} {
  func.func @_mm_bias_act_kernel(%arg0: i32, %arg1: i32, %arg2: memref<16x512xbf16, #tpu.memory_space<vmem>>, %arg3: memref<512x128xbf16, #tpu.memory_space<vmem>>, %arg4: memref<1x128xf32, #tpu.memory_space<vmem>>, %arg5: memref<16x128xf32, #tpu.memory_space<vmem>>, %arg6: memref<16x128xf32, #tpu.memory_space<vmem>>) attributes {dimension_semantics = [#tpu.dimension_semantics<parallel>, #tpu.dimension_semantics<arbitrary>], iteration_bounds = array<i64: 1, 2>, scalar_prefetch = 0 : i64, scratch_operands = 1 : i64, tpu.core_type = #tpu.core_type<tc>, window_params = [{transform_indices = @transform_0, window_bounds = array<i64: 16, 512>}, {transform_indices = @transform_1, window_bounds = array<i64: 512, 128>}, {pipeline_mode = #tpu.pipeline_mode<synchronous>, transform_indices = @transform_2, window_bounds = array<i64: 1, 128>}, {transform_indices = @transform_3, window_bounds = array<i64: 16, 128>}]} {
    %c0_i32 = arith.constant 0 : i32
    %0 = arith.cmpi eq, %arg1, %c0_i32 : i32
    %1 = arith.extui %0 : i1 to i32
    %c0_i32_0 = arith.constant 0 : i32
    %2 = arith.cmpi ne, %1, %c0_i32_0 : i32
    scf.if %2 {
      %cst_9 = arith.constant 0.000000e+00 : f32
      %12 = vector.broadcast %cst_9 : f32 to vector<16x128xf32>
      %c0_10 = arith.constant 0 : index
      %c0_11 = arith.constant 0 : index
      %13 = vector.load %arg6[%c0_10, %c0_11] : memref<16x128xf32, #tpu.memory_space<vmem>>, vector<16x128xf32>
      tpu.vector_store %arg6[%c0_10, %c0_11], %12 {strides = array<i32>} : memref<16x128xf32, #tpu.memory_space<vmem>>, vector<16x128xf32>,
    } else {
    }
    %c0 = arith.constant 0 : index
    %c0_1 = arith.constant 0 : index
    %3 = vector.load %arg6[%c0, %c0_1] : memref<16x128xf32, #tpu.memory_space<vmem>>, vector<16x128xf32>
    %c0_2 = arith.constant 0 : index
    %c0_3 = arith.constant 0 : index
    %4 = vector.load %arg2[%c0_2, %c0_3] : memref<16x512xbf16, #tpu.memory_space<vmem>>, vector<16x512xbf16>
    %c0_4 = arith.constant 0 : index
    %c0_5 = arith.constant 0 : index
    %5 = vector.load %arg3[%c0_4, %c0_5] : memref<512x128xbf16, #tpu.memory_space<vmem>>, vector<512x128xbf16>
    %cst = arith.constant dense<0.000000e+00> : vector<16x128xf32>
    %6 = tpu.matmul %4, %5, %cst {dimension_numbers = #tpu.dot_dimension_numbers<[1], [0], [0], [1], [0, 0, 1, 1], [], []>} : vector<16x512xbf16>, vector<512x128xbf16>, vector<16x128xf32> -> vector<16x128xf32>
    %7 = arith.addf %3, %6 : vector<16x128xf32>
    %c0_6 = arith.constant 0 : index
    %c0_7 = arith.constant 0 : index
    %8 = vector.load %arg6[%c0_6, %c0_7] : memref<16x128xf32, #tpu.memory_space<vmem>>, vector<16x128xf32>
    tpu.vector_store %arg6[%c0_6, %c0_7], %7 {strides = array<i32>} : memref<16x128xf32, #tpu.memory_space<vmem>>, vector<16x128xf32>,
    %c1_i32 = arith.constant 1 : i32
    %9 = arith.cmpi eq, %arg1, %c1_i32 : i32
    %10 = arith.extui %9 : i1 to i32
    %c0_i32_8 = arith.constant 0 : i32
    %11 = arith.cmpi ne, %10, %c0_i32_8 : i32
    scf.if %11 {
      %c0_9 = arith.constant 0 : index
      %c0_10 = arith.constant 0 : index
      %12 = vector.load %arg6[%c0_9, %c0_10] : memref<16x128xf32, #tpu.memory_space<vmem>>, vector<16x128xf32>
      %c0_11 = arith.constant 0 : index
      %c0_12 = arith.constant 0 : index
      %13 = vector.load %arg4[%c0_11, %c0_12] : memref<1x128xf32, #tpu.memory_space<vmem>>, vector<1x128xf32>
      %14 = vector.broadcast %13 : vector<1x128xf32> to vector<16x128xf32>
      %15 = arith.addf %12, %14 : vector<16x128xf32>
      %cst_13 = arith.constant 0.000000e+00 : f32
      %16 = vector.broadcast %cst_13 : f32 to vector<16x128xf32>
      %17 = arith.cmpf oge, %15, %16 : vector<16x128xf32>
      %cst_14 = arith.constant 2.000000e-01 : f32
      %18 = vector.broadcast %cst_14 : f32 to vector<16x128xf32>
      %19 = arith.mulf %18, %15 : vector<16x128xf32>
      %20 = arith.select %17, %15, %19 : vector<16x128xi1>, vector<16x128xf32>
      %c0_15 = arith.constant 0 : index
      %c0_16 = arith.constant 0 : index
      %21 = vector.load %arg5[%c0_15, %c0_16] : memref<16x128xf32, #tpu.memory_space<vmem>>, vector<16x128xf32>
      tpu.vector_store %arg5[%c0_15, %c0_16], %20 {strides = array<i32>} : memref<16x128xf32, #tpu.memory_space<vmem>>, vector<16x128xf32>,
    } else {
    }
    return
  }
  func.func @transform_0(%arg0: i32, %arg1: i32) -> (i32, i32) {
    %c0_i32 = arith.constant 0 : i32
    return %arg0, %arg1 : i32, i32
  }
  func.func @transform_1(%arg0: i32, %arg1: i32) -> (i32, i32) {
    %c0_i32 = arith.constant 0 : i32
    %c0_i32_0 = arith.constant 0 : i32
    return %arg1, %c0_i32 : i32, i32
  }
  func.func @transform_2(%arg0: i32, %arg1: i32) -> (i32, i32) {
    %c0_i32 = arith.constant 0 : i32
    %c0_i32_0 = arith.constant 0 : i32
    %c0_i32_1 = arith.constant 0 : i32
    return %c0_i32, %c0_i32_0 : i32, i32
  }
  func.func @transform_3(%arg0: i32, %arg1: i32) -> (i32, i32) {
    %c0_i32 = arith.constant 0 : i32
    %c0_i32_0 = arith.constant 0 : i32
    return %arg0, %c0_i32 : i32, i32
  }
}

</mosaic_0001>

<llo_original>
// kernel: discriminator_forward.7
$region0: #{discriminator_forward.7}
  #allocation0 [shape = 'u32[]', space=smem, size = 0x4, offset = 0x4, fixed_abs, tag = 'smem constant byte address 0x4 - core index']
  #allocation1 [shape = 'u32[72,128]{1,0:T(1,128)}', space=vmem, size = 0x9000, scoped, tag = 'internal scratch']
  %s0 = inlined_call_operand.vmem [shape: bf16[2,256,8], index: 0, kind: input, shape index: {}]
  %s1 = inlined_call_operand.vmem [shape: bf16[1,8,16], index: 1, kind: input, shape index: {}]
  %s2 = inlined_call_operand.vmem [shape: f32[1,16], index: 2, kind: input, shape index: {}]
  %s3 = inlined_call_operand.vmem [shape: bf16[2,256,16], index: 3, kind: output, shape index: {}]
  %s4 = sld [smem:[#allocation0]]
  $region45: #{discriminator_forward.7} parent=0
    _
  %s6 = ssub.s32 1, %s4
  %s7 = scalar_select 0, %s6, %s4
  loop: start=0, step=1, limit=4
  $region2: #{discriminator_forward.7} parent=0 // loop_pre_header
    _
  $region3: #{discriminator_forward.7} parent=0 // loop_header
    %s9 = sphi 0, %s13
    %p10 = scmp.ge.s32.totalorder %s9, 4
    %s19 = sphi 0, %s21
    %s22 = sphi 0, %s19
    %s23 = sphi 0, %s22
    %s39 = sphi 0, %s23
    %s43 = sphi 0, %s43
    %s45 = sphi 0, %s43
    %s46 = sphi 0, %s45
    %s60 = sphi 0, %s46
    %s64 = sphi 0, %s64
    %s66 = sphi 0, %s64
    %s67 = sphi 0, %s66
    %s81 = sphi 0, %s67
    %s87 = sphi 0, %s89
    %s90 = sphi 0, %s87
    %s91 = sphi 0, %s90
    %s107 = sphi 0, %s91
  $region4: #{discriminator_forward.7} parent=0 // loop_header_branch
    %12 = sbr.rel (%p10) target = $region8
  $region5: #{discriminator_forward.7} parent=0 // loop_body
    %s14 = ssub.s32 %s9, 1
    %s15 = ssub.s32 %s9, 2
    %s16 = sadd.s32 %s9, 1
    %s17 = ssub.s32 %s9, %s16
    %p18 = scmp.eq.s32.totalorder %s17, 0
    %s20 = sadd.s32 %s19, 1
    %s21 = scalar_select %p18, %s19, %s20
    %p24 = pneg %p18
    %p25 = scmp.eq.s32.totalorder %s9, 1
    %p26 = por %p24, %p25
    %p27 = scmp.ne.s32.totalorder %s19, %s22
    %p28 = scmp.eq.s32.totalorder %s9, 0
    %p29 = por %p27, %p28
    %p30 = scmp.ne.s32.totalorder %s19, %s22
    %p31 = scmp.eq.s32.totalorder %s14, 1
    %p32 = por %p30, %p31
    %p33 = scmp.ne.s32.totalorder %s22, %s23
    %p34 = scmp.eq.s32.totalorder %s14, 0
    %p35 = por %p33, %p34
    %p36 = scmp.ne.s32.totalorder %s22, %s23
    %p37 = scmp.eq.s32.totalorder %s15, 1
    %p38 = por %p36, %p37
    %p40 = scmp.ne.s32.totalorder %s23, %s39
    %p41 = scmp.eq.s32.totalorder %s15, 0
    %p42 = por %p40, %p41
    %s44 = sadd.s32 %s43, 1
    %p47 = scmp.eq.s32.totalorder %s9, 1
    %p48 = scmp.ne.s32.totalorder %s43, %s45
    %p49 = scmp.eq.s32.totalorder %s9, 0
    %p50 = por %p48, %p49
    %p51 = scmp.ne.s32.totalorder %s43, %s45
    %p52 = scmp.eq.s32.totalorder %s14, 1
    %p53 = por %p51, %p52
    %p54 = scmp.ne.s32.totalorder %s45, %s46
    %p55 = scmp.eq.s32.totalorder %s14, 0
    %p56 = por %p54, %p55
    %p57 = scmp.ne.s32.totalorder %s45, %s46
    %p58 = scmp.eq.s32.totalorder %s15, 1
    %p59 = por %p57, %p58
    %p61 = scmp.ne.s32.totalorder %s46, %s60
    %p62 = scmp.eq.s32.totalorder %s15, 0
    %p63 = por %p61, %p62
    %s65 = sadd.s32 %s64, 1
    %p68 = scmp.eq.s32.totalorder %s9, 1
    %p69 = scmp.ne.s32.totalorder %s64, %s66
    %p70 = scmp.eq.s32.totalorder %s9, 0
    %p71 = por %p69, %p70
    %p72 = scmp.ne.s32.totalorder %s64, %s66
    %p73 = scmp.eq.s32.totalorder %s14, 1
    %p74 = por %p72, %p73
    %p75 = scmp.ne.s32.totalorder %s66, %s67
    %p76 = scmp.eq.s32.totalorder %s14, 0
    %p77 = por %p75, %p76
    %p78 = scmp.ne.s32.totalorder %s66, %s67
    %p79 = scmp.eq.s32.totalorder %s15, 1
    %p80 = por %p78, %p79
    %p82 = scmp.ne.s32.totalorder %s67, %s81
    %p83 = scmp.eq.s32.totalorder %s15, 0
    %p84 = por %p82, %p83
    %s85 = ssub.s32 %s9, %s16
    %p86 = scmp.eq.s32.totalorder %s85, 0
    %s88 = sadd.s32 %s87, 1
    %s89 = scalar_select %p86, %s87, %s88
    %p92 = pneg %p86
    %p93 = scmp.eq.s32.totalorder %s9, 1
    %p94 = por %p92, %p93
    %p95 = scmp.ne.s32.totalorder %s87, %s90
    %p96 = scmp.eq.s32.totalorder %s9, 0
    %p97 = por %p95, %p96
    %p98 = scmp.ne.s32.totalorder %s87, %s90
    %p99 = scmp.eq.s32.totalorder %s14, 1
    %p100 = por %p98, %p99
    %p101 = scmp.ne.s32.totalorder %s90, %s91
    %p102 = scmp.eq.s32.totalorder %s14, 0
    %p103 = por %p101, %p102
    %p104 = scmp.ne.s32.totalorder %s90, %s91
    %p105 = scmp.eq.s32.totalorder %s15, 1
    %p106 = por %p104, %p105
    %p108 = scmp.ne.s32.totalorder %s91, %s107
    %p109 = scmp.eq.s32.totalorder %s15, 0
    %p110 = por %p108, %p109
    %p111 = scmp.le.s32.totalorder 1, %s9
    %p112 = scmp.lt.s32.totalorder %s9, 3
    %p113 = pnand %p111, %p112
    %p114 = pneg %p113
    // Predicated region
    $region9: #{discriminator_forward.7} parent=5 // pred_check
      _
    $region10: #{discriminator_forward.7} parent=5 // pred_check_branch
      %116 = sbr.rel (%p113) target = $region12
    $region11: #{discriminator_forward.7} parent=5 // pred_region
      %s117 = ssub.s32 %s9, 1
      // Predicated region
      $region13: #{discriminator_forward.7} parent=11 // pred_check
        %p118 = pneg %p56
      $region14: #{discriminator_forward.7} parent=11 // pred_check_branch
        %120 = sbr.rel (%p118) target = $region16
      $region15: #{discriminator_forward.7} parent=11 // pred_region
        _
      $region16: #{discriminator_forward.7} parent=11 // pred_fallthru
        _
      // Predicated region
      $region17: #{discriminator_forward.7} parent=11 // pred_check
        %p121 = pneg %p77
      $region18: #{discriminator_forward.7} parent=11 // pred_check_branch
        %123 = sbr.rel (%p121) target = $region20
      $region19: #{discriminator_forward.7} parent=11 // pred_region
        _
      $region20: #{discriminator_forward.7} parent=11 // pred_fallthru
        _
    $region12: #{discriminator_forward.7} parent=5 // pred_fallthru
      _
    %p124 = scmp.lt.s32.totalorder %s9, 2
    // Predicated region
    $region21: #{discriminator_forward.7} parent=5 // pred_check
      %p125 = pneg %p124
    $region22: #{discriminator_forward.7} parent=5 // pred_check_branch
      %127 = sbr.rel (%p125) target = $region24
    $region23: #{discriminator_forward.7} parent=5 // pred_region
      // Predicated region
      $region25: #{discriminator_forward.7} parent=23 // pred_check
        %p128 = pneg %p29
      $region26: #{discriminator_forward.7} parent=23 // pred_check_branch
        %130 = sbr.rel (%p128) target = $region28
      $region27: #{discriminator_forward.7} parent=23 // pred_region
        %p131 = scmp.lt.s32.totalorder %s9, 1
        %s132 = scalar_select %p131, %s9, 1
        %s133 = smul.addr %s132, 32
        %s134 = smul.addr %s133, 4
        %s135 = scalar_lea.vmem %s0, %s134
      $region28: #{discriminator_forward.7} parent=23 // pred_fallthru
        _
    $region24: #{discriminator_forward.7} parent=5 // pred_fallthru
      _
    %p136 = scmp.le.s32.totalorder 1, %s9
    %p137 = scmp.lt.s32.totalorder %s9, 3
    %p138 = pnand %p136, %p137
    %p139 = pneg %p138
    // Predicated region
    $region29: #{discriminator_forward.7} parent=5 // pred_check
      _
    $region30: #{discriminator_forward.7} parent=5 // pred_check_branch
      %141 = sbr.rel (%p138) target = $region32
    $region31: #{discriminator_forward.7} parent=5 // pred_region
      %s142 = ssub.s32 %s9, 1
      %p143 = scmp.lt.s32.totalorder %s14, 1
      %s144 = scalar_select %p143, %s14, 1
      %s145 = smul.addr %s144, 32
      %s146 = smul.addr %s145, 4
      %s147 = scalar_lea.vmem %s0, %s146
      %p148 = pneg %p35
      %p149 = pneg %p32
      %p150 = pneg %p56
      %p151 = pneg %p53
      %p152 = pneg %p77
      %p153 = pneg %p74
      %p154 = pneg %p103
      %p155 = pneg %p100
      %p156 = scmp.lt.s32.totalorder %s14, 1
      %s157 = scalar_select %p156, %s14, 1
      %s158 = smul.addr %s157, 32
      %s159 = smul.addr %s158, 4
      %s160 = scalar_lea.vmem %s3, %s159
      %p161 = scmp.lt.s32.totalorder %s14, 1
      %s162 = scalar_select %p161, %s14, 1
      %s163 = smul.addr %s162, 32
      %s164 = smul.addr %s163, 4
      %s165 = scalar_lea.vmem %s0, %s164
      %p166 = scmp.lt.s32.totalorder %s14, 1
      %s167 = scalar_select %p166, %s14, 1
      %s168 = smul.addr %s167, 32
      %s169 = smul.addr %s168, 4
      %s170 = scalar_lea.vmem %s3, %s169
      %v172 = vld [vmem:[%s165] sm:$0xf]
      %v173 = vld [vmem:[%s165 + $0x4] sm:$0xf]
      %v174 = vld [vmem:[%s165 + $0x8] sm:$0xf]
      %v175 = vld [vmem:[%s165 + $0xc] sm:$0xf]
      %v176 = vld [vmem:[%s165 + $0x10] sm:$0xf]
      %v177 = vld [vmem:[%s165 + $0x14] sm:$0xf]
      %v178 = vld [vmem:[%s165 + $0x18] sm:$0xf]
      %v179 = vld [vmem:[%s165 + $0x1c] sm:$0xf]
      %v180 = vld [vmem:[%s165 + $0x20] sm:$0xf]
      %v181 = vld [vmem:[%s165 + $0x24] sm:$0xf]
      %v182 = vld [vmem:[%s165 + $0x28] sm:$0xf]
      %v183 = vld [vmem:[%s165 + $0x2c] sm:$0xf]
      %v184 = vld [vmem:[%s165 + $0x30] sm:$0xf]
      %v185 = vld [vmem:[%s165 + $0x34] sm:$0xf]
      %v186 = vld [vmem:[%s165 + $0x38] sm:$0xf]
      %v187 = vld [vmem:[%s165 + $0x3c] sm:$0xf]
      %v188 = vld [vmem:[%s165 + $0x40] sm:$0xf]
      %v189 = vld [vmem:[%s165 + $0x44] sm:$0xf]
      %v190 = vld [vmem:[%s165 + $0x48] sm:$0xf]
      %v191 = vld [vmem:[%s165 + $0x4c] sm:$0xf]
      %v192 = vld [vmem:[%s165 + $0x50] sm:$0xf]
      %v193 = vld [vmem:[%s165 + $0x54] sm:$0xf]
      %v194 = vld [vmem:[%s165 + $0x58] sm:$0xf]
      %v195 = vld [vmem:[%s165 + $0x5c] sm:$0xf]
      %v196 = vld [vmem:[%s165 + $0x60] sm:$0xf]
      %v197 = vld [vmem:[%s165 + $0x64] sm:$0xf]
      %v198 = vld [vmem:[%s165 + $0x68] sm:$0xf]
      %v199 = vld [vmem:[%s165 + $0x6c] sm:$0xf]
      %v200 = vld [vmem:[%s165 + $0x70] sm:$0xf]
      %v201 = vld [vmem:[%s165 + $0x74] sm:$0xf]
      %v202 = vld [vmem:[%s165 + $0x78] sm:$0xf]
      %v203 = vld [vmem:[%s165 + $0x7c] sm:$0xf]
      %v204 = vld [vmem:[%s1] sm:$0xf]
      %v205 = vld [vmem:[%s2] sm:$0x1]
      %v207 = vperm.slane %v205, 0
      %v241 = vunpack.c.l.b16 %v172
      %v242 = vunpack.c.l.b16 %v173
      %v243 = vunpack.c.l.b16 %v174
      %v244 = vunpack.c.l.b16 %v175
      %v245 = vunpack.c.l.b16 %v176
      %v246 = vunpack.c.l.b16 %v177
      %v247 = vunpack.c.l.b16 %v178
      %v248 = vunpack.c.l.b16 %v179
      %v249 = vunpack.c.l.b16 %v180
      %v250 = vunpack.c.l.b16 %v181
      %v251 = vunpack.c.l.b16 %v182
      %v252 = vunpack.c.l.b16 %v183
      %v253 = vunpack.c.l.b16 %v184
      %v254 = vunpack.c.l.b16 %v185
      %v255 = vunpack.c.l.b16 %v186
      %v256 = vunpack.c.l.b16 %v187
      %v257 = vunpack.c.l.b16 %v188
      %v258 = vunpack.c.l.b16 %v189
      %v259 = vunpack.c.l.b16 %v190
      %v260 = vunpack.c.l.b16 %v191
      %v261 = vunpack.c.l.b16 %v192
      %v262 = vunpack.c.l.b16 %v193
      %v263 = vunpack.c.l.b16 %v194
      %v264 = vunpack.c.l.b16 %v195
      %v265 = vunpack.c.l.b16 %v196
      %v266 = vunpack.c.l.b16 %v197
      %v267 = vunpack.c.l.b16 %v198
      %v268 = vunpack.c.l.b16 %v199
      %v269 = vunpack.c.l.b16 %v200
      %v270 = vunpack.c.l.b16 %v201
      %v271 = vunpack.c.l.b16 %v202
      %v272 = vunpack.c.l.b16 %v203
      %v273 = vpack.c.b16 %v242, %v241
      %v274 = vpack.c.b16 %v244, %v243
      %v275 = vpack.c.b16 %v246, %v245
      %v276 = vpack.c.b16 %v248, %v247
      %v277 = vpack.c.b16 %v250, %v249
      %v278 = vpack.c.b16 %v252, %v251
      %v279 = vpack.c.b16 %v254, %v253
      %v280 = vpack.c.b16 %v256, %v255
      %v281 = vpack.c.b16 %v258, %v257
      %v282 = vpack.c.b16 %v260, %v259
      %v283 = vpack.c.b16 %v262, %v261
      %v284 = vpack.c.b16 %v264, %v263
      %v285 = vpack.c.b16 %v266, %v265
      %v286 = vpack.c.b16 %v268, %v267
      %v287 = vpack.c.b16 %v270, %v269
      %v288 = vpack.c.b16 %v272, %v271
      %vm289 = vcmask 64512
      %v291 = vsel %vm289, %v273, 0
      %v294 = vsel %vm289, %v274, 0
      %v297 = vsel %vm289, %v275, 0
      %v300 = vsel %vm289, %v276, 0
      %v303 = vsel %vm289, %v277, 0
      %v306 = vsel %vm289, %v278, 0
      %v309 = vsel %vm289, %v279, 0
      %v312 = vsel %vm289, %v280, 0
      %v315 = vsel %vm289, %v281, 0
      %v318 = vsel %vm289, %v282, 0
      %v321 = vsel %vm289, %v283, 0
      %v324 = vsel %vm289, %v284, 0
      %v327 = vsel %vm289, %v285, 0
      %v330 = vsel %vm289, %v286, 0
      %v333 = vsel %vm289, %v287, 0
      %v336 = vsel %vm289, %v288, 0
      %vm338 = vcmask 1043456
      %v340 = vsel %vm338, %v204, 0
      %342 = vmatpush.bf16.msra.mxu0 0
      %343 = vmatpush.bf16.msra.mxu0 0
      %344 = vmatpush.bf16.msra.mxu0 0
      %345 = vmatpush.bf16.msra.mxu0 0
      %346 = vmatpush.bf16.msra.mxu0 0
      %347 = vmatpush.bf16.msra.mxu0 0
      %348 = vmatpush.bf16.msra.mxu0 0
      %349 = vmatpush.bf16.msra.mxu0 %v340
      %350 = vmatmul.bf16.gmra.mxu0 %v291
      %v351 = vpop.f32.mrf.mxu0
      %v352 = vadd.f32 %v207, %v351
      %v353 = vpop.f32.mrf.mxu0
      %v354 = vadd.f32 %v207, %v353
      %355 = vmatmul.bf16.gmra.mxu0 %v294
      %v356 = vpop.f32.mrf.mxu0
      %v357 = vadd.f32 %v207, %v356
      %v358 = vpop.f32.mrf.mxu0
      %v359 = vadd.f32 %v207, %v358
      %360 = vmatmul.bf16.gmra.mxu0 %v297
      %v361 = vpop.f32.mrf.mxu0
      %v362 = vadd.f32 %v207, %v361
      %v363 = vpop.f32.mrf.mxu0
      %v364 = vadd.f32 %v207, %v363
      %365 = vmatmul.bf16.gmra.mxu0 %v300
      %v366 = vpop.f32.mrf.mxu0
      %v367 = vadd.f32 %v207, %v366
      %v368 = vpop.f32.mrf.mxu0
      %v369 = vadd.f32 %v207, %v368
      %370 = vmatmul.bf16.gmra.mxu0 %v303
      %v371 = vpop.f32.mrf.mxu0
      %v372 = vadd.f32 %v207, %v371
      %v373 = vpop.f32.mrf.mxu0
      %v374 = vadd.f32 %v207, %v373
      %375 = vmatmul.bf16.gmra.mxu0 %v306
      %v376 = vpop.f32.mrf.mxu0
      %v377 = vadd.f32 %v207, %v376
      %v378 = vpop.f32.mrf.mxu0
      %v379 = vadd.f32 %v207, %v378
      %380 = vmatmul.bf16.gmra.mxu0 %v309
      %v381 = vpop.f32.mrf.mxu0
      %v382 = vadd.f32 %v207, %v381
      %v383 = vpop.f32.mrf.mxu0
      %v384 = vadd.f32 %v207, %v383
      %385 = vmatmul.bf16.gmra.mxu0 %v312
      %v386 = vpop.f32.mrf.mxu0
      %v387 = vadd.f32 %v207, %v386
      %v388 = vpop.f32.mrf.mxu0
      %v389 = vadd.f32 %v207, %v388
      %390 = vmatmul.bf16.gmra.mxu0 %v315
      %v391 = vpop.f32.mrf.mxu0
      %v392 = vadd.f32 %v207, %v391
      %v393 = vpop.f32.mrf.mxu0
      %v394 = vadd.f32 %v207, %v393
      %395 = vmatmul.bf16.gmra.mxu0 %v318
      %v396 = vpop.f32.mrf.mxu0
      %v397 = vadd.f32 %v207, %v396
      %v398 = vpop.f32.mrf.mxu0
      %v399 = vadd.f32 %v207, %v398
      %400 = vmatmul.bf16.gmra.mxu0 %v321
      %v401 = vpop.f32.mrf.mxu0
      %v402 = vadd.f32 %v207, %v401
      %v403 = vpop.f32.mrf.mxu0
      %v404 = vadd.f32 %v207, %v403
      %405 = vmatmul.bf16.gmra.mxu0 %v324
      %v406 = vpop.f32.mrf.mxu0
      %v407 = vadd.f32 %v207, %v406
      %v408 = vpop.f32.mrf.mxu0
      %v409 = vadd.f32 %v207, %v408
      %410 = vmatmul.bf16.gmra.mxu0 %v327
      %v411 = vpop.f32.mrf.mxu0
      %v412 = vadd.f32 %v207, %v411
      %v413 = vpop.f32.mrf.mxu0
      %v414 = vadd.f32 %v207, %v413
      %415 = vmatmul.bf16.gmra.mxu0 %v330
      %v416 = vpop.f32.mrf.mxu0
      %v417 = vadd.f32 %v207, %v416
      %v418 = vpop.f32.mrf.mxu0
      %v419 = vadd.f32 %v207, %v418
      %420 = vmatmul.bf16.gmra.mxu0 %v333
      %v421 = vpop.f32.mrf.mxu0
      %v422 = vadd.f32 %v207, %v421
      %v423 = vpop.f32.mrf.mxu0
      %v424 = vadd.f32 %v207, %v423
      %425 = vmatmul.bf16.gmra.mxu0 %v336
      %v426 = vpop.f32.mrf.mxu0
      %v427 = vadd.f32 %v207, %v426
      %v428 = vpop.f32.mrf.mxu0
      %v429 = vadd.f32 %v207, %v428
      %430 = vdwg.mxu0
      %vm431 = vcmp.ge.f32.partialorder %v352, 0.0
      %vm432 = vcmp.ge.f32.partialorder %v354, 0.0
      %vm433 = vcmp.ge.f32.partialorder %v357, 0.0
      %vm434 = vcmp.ge.f32.partialorder %v359, 0.0
      %vm435 = vcmp.ge.f32.partialorder %v362, 0.0
      %vm436 = vcmp.ge.f32.partialorder %v364, 0.0
      %vm437 = vcmp.ge.f32.partialorder %v367, 0.0
      %vm438 = vcmp.ge.f32.partialorder %v369, 0.0
      %vm439 = vcmp.ge.f32.partialorder %v372, 0.0
      %vm440 = vcmp.ge.f32.partialorder %v374, 0.0
      %vm441 = vcmp.ge.f32.partialorder %v377, 0.0
      %vm442 = vcmp.ge.f32.partialorder %v379, 0.0
      %vm443 = vcmp.ge.f32.partialorder %v382, 0.0
      %vm444 = vcmp.ge.f32.partialorder %v384, 0.0
      %vm445 = vcmp.ge.f32.partialorder %v387, 0.0
      %vm446 = vcmp.ge.f32.partialorder %v389, 0.0
      %vm447 = vcmp.ge.f32.partialorder %v392, 0.0
      %vm448 = vcmp.ge.f32.partialorder %v394, 0.0
      %vm449 = vcmp.ge.f32.partialorder %v397, 0.0
      %vm450 = vcmp.ge.f32.partialorder %v399, 0.0
      %vm451 = vcmp.ge.f32.partialorder %v402, 0.0
      %vm452 = vcmp.ge.f32.partialorder %v404, 0.0
      %vm453 = vcmp.ge.f32.partialorder %v407, 0.0
      %vm454 = vcmp.ge.f32.partialorder %v409, 0.0
      %vm455 = vcmp.ge.f32.partialorder %v412, 0.0
      %vm456 = vcmp.ge.f32.partialorder %v414, 0.0
      %vm457 = vcmp.ge.f32.partialorder %v417, 0.0
      %vm458 = vcmp.ge.f32.partialorder %v419, 0.0
      %vm459 = vcmp.ge.f32.partialorder %v422, 0.0
      %vm460 = vcmp.ge.f32.partialorder %v424, 0.0
      %vm461 = vcmp.ge.f32.partialorder %v427, 0.0
      %vm462 = vcmp.ge.f32.partialorder %v429, 0.0
      %v463 = vmul.f32 %v352, 0.2
      %v464 = vmul.f32 %v354, 0.2
      %v465 = vmul.f32 %v357, 0.2
      %v466 = vmul.f32 %v359, 0.2
      %v467 = vmul.f32 %v362, 0.2
      %v468 = vmul.f32 %v364, 0.2
      %v469 = vmul.f32 %v367, 0.2
      %v470 = vmul.f32 %v369, 0.2
      %v471 = vmul.f32 %v372, 0.2
      %v472 = vmul.f32 %v374, 0.2
      %v473 = vmul.f32 %v377, 0.2
      %v474 = vmul.f32 %v379, 0.2
      %v475 = vmul.f32 %v382, 0.2
      %v476 = vmul.f32 %v384, 0.2
      %v477 = vmul.f32 %v387, 0.2
      %v478 = vmul.f32 %v389, 0.2
      %v479 = vmul.f32 %v392, 0.2
      %v480 = vmul.f32 %v394, 0.2
      %v481 = vmul.f32 %v397, 0.2
      %v482 = vmul.f32 %v399, 0.2
      %v483 = vmul.f32 %v402, 0.2
      %v484 = vmul.f32 %v404, 0.2
      %v485 = vmul.f32 %v407, 0.2
      %v486 = vmul.f32 %v409, 0.2
      %v487 = vmul.f32 %v412, 0.2
      %v488 = vmul.f32 %v414, 0.2
      %v489 = vmul.f32 %v417, 0.2
      %v490 = vmul.f32 %v419, 0.2
      %v491 = vmul.f32 %v422, 0.2
      %v492 = vmul.f32 %v424, 0.2
      %v493 = vmul.f32 %v427, 0.2
      %v494 = vmul.f32 %v429, 0.2
      %v495 = vsel %vm431, %v352, %v463
      %v496 = vsel %vm432, %v354, %v464
      %v497 = vsel %vm433, %v357, %v465
      %v498 = vsel %vm434, %v359, %v466
      %v499 = vsel %vm435, %v362, %v467
      %v500 = vsel %vm436, %v364, %v468
      %v501 = vsel %vm437, %v367, %v469
      %v502 = vsel %vm438, %v369, %v470
      %v503 = vsel %vm439, %v372, %v471
      %v504 = vsel %vm440, %v374, %v472
      %v505 = vsel %vm441, %v377, %v473
      %v506 = vsel %vm442, %v379, %v474
      %v507 = vsel %vm443, %v382, %v475
      %v508 = vsel %vm444, %v384, %v476
      %v509 = vsel %vm445, %v387, %v477
      %v510 = vsel %vm446, %v389, %v478
      %v511 = vsel %vm447, %v392, %v479
      %v512 = vsel %vm448, %v394, %v480
      %v513 = vsel %vm449, %v397, %v481
      %v514 = vsel %vm450, %v399, %v482
      %v515 = vsel %vm451, %v402, %v483
      %v516 = vsel %vm452, %v404, %v484
      %v517 = vsel %vm453, %v407, %v485
      %v518 = vsel %vm454, %v409, %v486
      %v519 = vsel %vm455, %v412, %v487
      %v520 = vsel %vm456, %v414, %v488
      %v521 = vsel %vm457, %v417, %v489
      %v522 = vsel %vm458, %v419, %v490
      %v523 = vsel %vm459, %v422, %v491
      %v524 = vsel %vm460, %v424, %v492
      %v525 = vsel %vm461, %v427, %v493
      %v526 = vsel %vm462, %v429, %v494
      %v527 = vpack.c.bf16 %v495, %v495
      %v528 = vpack.c.bf16 %v496, %v496
      %v529 = vpack.c.bf16 %v497, %v497
      %v530 = vpack.c.bf16 %v498, %v498
      %v531 = vpack.c.bf16 %v499, %v499
      %v532 = vpack.c.bf16 %v500, %v500
      %v533 = vpack.c.bf16 %v501, %v501
      %v534 = vpack.c.bf16 %v502, %v502
      %v535 = vpack.c.bf16 %v503, %v503
      %v536 = vpack.c.bf16 %v504, %v504
      %v537 = vpack.c.bf16 %v505, %v505
      %v538 = vpack.c.bf16 %v506, %v506
      %v539 = vpack.c.bf16 %v507, %v507
      %v540 = vpack.c.bf16 %v508, %v508
      %v541 = vpack.c.bf16 %v509, %v509
      %v542 = vpack.c.bf16 %v510, %v510
      %v543 = vpack.c.bf16 %v511, %v511
      %v544 = vpack.c.bf16 %v512, %v512
      %v545 = vpack.c.bf16 %v513, %v513
      %v546 = vpack.c.bf16 %v514, %v514
      %v547 = vpack.c.bf16 %v515, %v515
      %v548 = vpack.c.bf16 %v516, %v516
      %v549 = vpack.c.bf16 %v517, %v517
      %v550 = vpack.c.bf16 %v518, %v518
      %v551 = vpack.c.bf16 %v519, %v519
      %v552 = vpack.c.bf16 %v520, %v520
      %v553 = vpack.c.bf16 %v521, %v521
      %v554 = vpack.c.bf16 %v522, %v522
      %v555 = vpack.c.bf16 %v523, %v523
      %v556 = vpack.c.bf16 %v524, %v524
      %v557 = vpack.c.bf16 %v525, %v525
      %v558 = vpack.c.bf16 %v526, %v526
      %vm559 = vcmask 125952
      %560 = vst.msk [vmem:[%s170] sm:$0xf] %vm559, %v527
      %561 = vst.msk [vmem:[%s170 + $0x4] sm:$0xf] %vm559, %v528
      %562 = vst.msk [vmem:[%s170 + $0x8] sm:$0xf] %vm559, %v529
      %563 = vst.msk [vmem:[%s170 + $0xc] sm:$0xf] %vm559, %v530
      %564 = vst.msk [vmem:[%s170 + $0x10] sm:$0xf] %vm559, %v531
      %565 = vst.msk [vmem:[%s170 + $0x14] sm:$0xf] %vm559, %v532
      %566 = vst.msk [vmem:[%s170 + $0x18] sm:$0xf] %vm559, %v533
      %567 = vst.msk [vmem:[%s170 + $0x1c] sm:$0xf] %vm559, %v534
      %568 = vst.msk [vmem:[%s170 + $0x20] sm:$0xf] %vm559, %v535
      %569 = vst.msk [vmem:[%s170 + $0x24] sm:$0xf] %vm559, %v536
      %570 = vst.msk [vmem:[%s170 + $0x28] sm:$0xf] %vm559, %v537
      %571 = vst.msk [vmem:[%s170 + $0x2c] sm:$0xf] %vm559, %v538
      %572 = vst.msk [vmem:[%s170 + $0x30] sm:$0xf] %vm559, %v539
      %573 = vst.msk [vmem:[%s170 + $0x34] sm:$0xf] %vm559, %v540
      %574 = vst.msk [vmem:[%s170 + $0x38] sm:$0xf] %vm559, %v541
      %575 = vst.msk [vmem:[%s170 + $0x3c] sm:$0xf] %vm559, %v542
      %576 = vst.msk [vmem:[%s170 + $0x40] sm:$0xf] %vm559, %v543
      %577 = vst.msk [vmem:[%s170 + $0x44] sm:$0xf] %vm559, %v544
      %578 = vst.msk [vmem:[%s170 + $0x48] sm:$0xf] %vm559, %v545
      %579 = vst.msk [vmem:[%s170 + $0x4c] sm:$0xf] %vm559, %v546
      %580 = vst.msk [vmem:[%s170 + $0x50] sm:$0xf] %vm559, %v547
      %581 = vst.msk [vmem:[%s170 + $0x54] sm:$0xf] %vm559, %v548
      %582 = vst.msk [vmem:[%s170 + $0x58] sm:$0xf] %vm559, %v549
      %583 = vst.msk [vmem:[%s170 + $0x5c] sm:$0xf] %vm559, %v550
      %584 = vst.msk [vmem:[%s170 + $0x60] sm:$0xf] %vm559, %v551
      %585 = vst.msk [vmem:[%s170 + $0x64] sm:$0xf] %vm559, %v552
      %586 = vst.msk [vmem:[%s170 + $0x68] sm:$0xf] %vm559, %v553
      %587 = vst.msk [vmem:[%s170 + $0x6c] sm:$0xf] %vm559, %v554
      %588 = vst.msk [vmem:[%s170 + $0x70] sm:$0xf] %vm559, %v555
      %589 = vst.msk [vmem:[%s170 + $0x74] sm:$0xf] %vm559, %v556
      %590 = vst.msk [vmem:[%s170 + $0x78] sm:$0xf] %vm559, %v557
      %591 = vst.msk [vmem:[%s170 + $0x7c] sm:$0xf] %vm559, %v558
      %p592 = scmp.lt.s32.totalorder %s14, 1
      %s593 = scalar_select %p592, %s14, 1
      %s594 = smul.addr %s593, 32
      %s595 = smul.addr %s594, 4
      %s596 = scalar_lea.vmem %s3, %s595
      // Predicated region
      $region33: #{discriminator_forward.7} parent=31 // pred_check
        %p597 = pneg %p100
      $region34: #{discriminator_forward.7} parent=31 // pred_check_branch
        %599 = sbr.rel (%p597) target = $region36
      $region35: #{discriminator_forward.7} parent=31 // pred_region
        _
      $region36: #{discriminator_forward.7} parent=31 // pred_fallthru
        _
    $region32: #{discriminator_forward.7} parent=5 // pred_fallthru
      _
    %p600 = scmp.le.s32.totalorder 2, %s9
    // Predicated region
    $region37: #{discriminator_forward.7} parent=5 // pred_check
      %p601 = pneg %p600
    $region38: #{discriminator_forward.7} parent=5 // pred_check_branch
      %603 = sbr.rel (%p601) target = $region40
    $region39: #{discriminator_forward.7} parent=5 // pred_region
      %s604 = ssub.s32 %s9, 2
      // Predicated region
      $region41: #{discriminator_forward.7} parent=39 // pred_check
        %p605 = pneg %p106
      $region42: #{discriminator_forward.7} parent=39 // pred_check_branch
        %607 = sbr.rel (%p605) target = $region44
      $region43: #{discriminator_forward.7} parent=39 // pred_region
        %p608 = scmp.lt.s32.totalorder %s15, 1
        %s609 = scalar_select %p608, %s15, 1
        %s610 = smul.addr %s609, 32
        %s611 = smul.addr %s610, 4
        %s612 = scalar_lea.vmem %s3, %s611
      $region44: #{discriminator_forward.7} parent=39 // pred_fallthru
        _
    $region40: #{discriminator_forward.7} parent=5 // pred_fallthru
      _
  $region6: #{discriminator_forward.7} parent=0 // loop_footer
    %s13 = sadd.s32 1, %s9
  $region7: #{discriminator_forward.7} parent=0 // loop_footer_branch
    %8 = sbr.rel target = $region3
  $region8: #{discriminator_forward.7} parent=0 // loop_exit
    _

// kernel: discriminator_forward.9
$region0: #{discriminator_forward.9}
  #allocation0 [shape = 'u32[]', space=smem, size = 0x4, offset = 0x4, fixed_abs, tag = 'smem constant byte address 0x4 - core index']
  #allocation1 [shape = 'u32[72,128]{1,0:T(1,128)}', space=vmem, size = 0x9000, scoped, tag = 'internal scratch']
  %s0 = inlined_call_operand.vmem [shape: bf16[2,81,32], index: 0, kind: input, shape index: {}]
  %s1 = inlined_call_operand.vmem [shape: bf16[2,81,32], index: 1, kind: input, shape index: {}]
  %s2 = inlined_call_operand.vmem [shape: bf16[2,81,32], index: 2, kind: input, shape index: {}]
  %s3 = inlined_call_operand.vmem [shape: bf16[2,81,32], index: 3, kind: input, shape index: {}]
  %s4 = inlined_call_operand.vmem [shape: bf16[9,32,32], index: 4, kind: input, shape index: {}]
  %s5 = inlined_call_operand.vmem [shape: f32[1,32], index: 5, kind: input, shape index: {}]
  %s6 = inlined_call_operand.vmem [shape: bf16[2,71,32], index: 6, kind: output, shape index: {}]
  %s7 = sld [smem:[#allocation0]]
  $region57: #{discriminator_forward.9} parent=0
    _
  %s9 = ssub.s32 1, %s7
  %s10 = scalar_select 0, %s9, %s7
  loop: start=0, step=1, limit=4
  $region2: #{discriminator_forward.9} parent=0 // loop_pre_header
    _
  $region3: #{discriminator_forward.9} parent=0 // loop_header
    %s12 = sphi 0, %s16
    %p13 = scmp.ge.s32.totalorder %s12, 4
    %s22 = sphi 0, %s24
    %s25 = sphi 0, %s22
    %s26 = sphi 0, %s25
    %s42 = sphi 0, %s26
    %s48 = sphi 0, %s50
    %s51 = sphi 0, %s48
    %s52 = sphi 0, %s51
    %s68 = sphi 0, %s52
    %s74 = sphi 0, %s76
    %s77 = sphi 0, %s74
    %s78 = sphi 0, %s77
    %s94 = sphi 0, %s78
    %s100 = sphi 0, %s102
    %s103 = sphi 0, %s100
    %s104 = sphi 0, %s103
    %s120 = sphi 0, %s104
    %s124 = sphi 0, %s124
    %s126 = sphi 0, %s124
    %s127 = sphi 0, %s126
    %s141 = sphi 0, %s127
    %s145 = sphi 0, %s145
    %s147 = sphi 0, %s145
    %s148 = sphi 0, %s147
    %s162 = sphi 0, %s148
    %s168 = sphi 0, %s170
    %s171 = sphi 0, %s168
    %s172 = sphi 0, %s171
    %s188 = sphi 0, %s172
  $region4: #{discriminator_forward.9} parent=0 // loop_header_branch
    %15 = sbr.rel (%p13) target = $region8
  $region5: #{discriminator_forward.9} parent=0 // loop_body
    %s17 = ssub.s32 %s12, 1
    %s18 = ssub.s32 %s12, 2
    %s19 = sadd.s32 %s12, 1
    %s20 = ssub.s32 %s12, %s19
    %p21 = scmp.eq.s32.totalorder %s20, 0
    %s23 = sadd.s32 %s22, 1
    %s24 = scalar_select %p21, %s22, %s23
    %p27 = pneg %p21
    %p28 = scmp.eq.s32.totalorder %s12, 1
    %p29 = por %p27, %p28
    %p30 = scmp.ne.s32.totalorder %s22, %s25
    %p31 = scmp.eq.s32.totalorder %s12, 0
    %p32 = por %p30, %p31
    %p33 = scmp.ne.s32.totalorder %s22, %s25
    %p34 = scmp.eq.s32.totalorder %s17, 1
    %p35 = por %p33, %p34
    %p36 = scmp.ne.s32.totalorder %s25, %s26
    %p37 = scmp.eq.s32.totalorder %s17, 0
    %p38 = por %p36, %p37
    %p39 = scmp.ne.s32.totalorder %s25, %s26
    %p40 = scmp.eq.s32.totalorder %s18, 1
    %p41 = por %p39, %p40
    %p43 = scmp.ne.s32.totalorder %s26, %s42
    %p44 = scmp.eq.s32.totalorder %s18, 0
    %p45 = por %p43, %p44
    %s46 = ssub.s32 %s12, %s19
    %p47 = scmp.eq.s32.totalorder %s46, 0
    %s49 = sadd.s32 %s48, 1
    %s50 = scalar_select %p47, %s48, %s49
    %p53 = pneg %p47
    %p54 = scmp.eq.s32.totalorder %s12, 1
    %p55 = por %p53, %p54
    %p56 = scmp.ne.s32.totalorder %s48, %s51
    %p57 = scmp.eq.s32.totalorder %s12, 0
    %p58 = por %p56, %p57
    %p59 = scmp.ne.s32.totalorder %s48, %s51
    %p60 = scmp.eq.s32.totalorder %s17, 1
    %p61 = por %p59, %p60
    %p62 = scmp.ne.s32.totalorder %s51, %s52
    %p63 = scmp.eq.s32.totalorder %s17, 0
    %p64 = por %p62, %p63
    %p65 = scmp.ne.s32.totalorder %s51, %s52
    %p66 = scmp.eq.s32.totalorder %s18, 1
    %p67 = por %p65, %p66
    %p69 = scmp.ne.s32.totalorder %s52, %s68
    %p70 = scmp.eq.s32.totalorder %s18, 0
    %p71 = por %p69, %p70
    %s72 = ssub.s32 %s12, %s19
    %p73 = scmp.eq.s32.totalorder %s72, 0
    %s75 = sadd.s32 %s74, 1
    %s76 = scalar_select %p73, %s74, %s75
    %p79 = pneg %p73
    %p80 = scmp.eq.s32.totalorder %s12, 1
    %p81 = por %p79, %p80
    %p82 = scmp.ne.s32.totalorder %s74, %s77
    %p83 = scmp.eq.s32.totalorder %s12, 0
    %p84 = por %p82, %p83
    %p85 = scmp.ne.s32.totalorder %s74, %s77
    %p86 = scmp.eq.s32.totalorder %s17, 1
    %p87 = por %p85, %p86
    %p88 = scmp.ne.s32.totalorder %s77, %s78
    %p89 = scmp.eq.s32.totalorder %s17, 0
    %p90 = por %p88, %p89
    %p91 = scmp.ne.s32.totalorder %s77, %s78
    %p92 = scmp.eq.s32.totalorder %s18, 1
    %p93 = por %p91, %p92
    %p95 = scmp.ne.s32.totalorder %s78, %s94
    %p96 = scmp.eq.s32.totalorder %s18, 0
    %p97 = por %p95, %p96
    %s98 = ssub.s32 %s12, %s19
    %p99 = scmp.eq.s32.totalorder %s98, 0
    %s101 = sadd.s32 %s100, 1
    %s102 = scalar_select %p99, %s100, %s101
    %p105 = pneg %p99
    %p106 = scmp.eq.s32.totalorder %s12, 1
    %p107 = por %p105, %p106
    %p108 = scmp.ne.s32.totalorder %s100, %s103
    %p109 = scmp.eq.s32.totalorder %s12, 0
    %p110 = por %p108, %p109
    %p111 = scmp.ne.s32.totalorder %s100, %s103
    %p112 = scmp.eq.s32.totalorder %s17, 1
    %p113 = por %p111, %p112
    %p114 = scmp.ne.s32.totalorder %s103, %s104
    %p115 = scmp.eq.s32.totalorder %s17, 0
    %p116 = por %p114, %p115
    %p117 = scmp.ne.s32.totalorder %s103, %s104
    %p118 = scmp.eq.s32.totalorder %s18, 1
    %p119 = por %p117, %p118
    %p121 = scmp.ne.s32.totalorder %s104, %s120
    %p122 = scmp.eq.s32.totalorder %s18, 0
    %p123 = por %p121, %p122
    %s125 = sadd.s32 %s124, 1
    %p128 = scmp.eq.s32.totalorder %s12, 1
    %p129 = scmp.ne.s32.totalorder %s124, %s126
    %p130 = scmp.eq.s32.totalorder %s12, 0
    %p131 = por %p129, %p130
    %p132 = scmp.ne.s32.totalorder %s124, %s126
    %p133 = scmp.eq.s32.totalorder %s17, 1
    %p134 = por %p132, %p133
    %p135 = scmp.ne.s32.totalorder %s126, %s127
    %p136 = scmp.eq.s32.totalorder %s17, 0
    %p137 = por %p135, %p136
    %p138 = scmp.ne.s32.totalorder %s126, %s127
    %p139 = scmp.eq.s32.totalorder %s18, 1
    %p140 = por %p138, %p139
    %p142 = scmp.ne.s32.totalorder %s127, %s141
    %p143 = scmp.eq.s32.totalorder %s18, 0
    %p144 = por %p142, %p143
    %s146 = sadd.s32 %s145, 1
    %p149 = scmp.eq.s32.totalorder %s12, 1
    %p150 = scmp.ne.s32.totalorder %s145, %s147
    %p151 = scmp.eq.s32.totalorder %s12, 0
    %p152 = por %p150, %p151
    %p153 = scmp.ne.s32.totalorder %s145, %s147
    %p154 = scmp.eq.s32.totalorder %s17, 1
    %p155 = por %p153, %p154
    %p156 = scmp.ne.s32.totalorder %s147, %s148
    %p157 = scmp.eq.s32.totalorder %s17, 0
    %p158 = por %p156, %p157
    %p159 = scmp.ne.s32.totalorder %s147, %s148
    %p160 = scmp.eq.s32.totalorder %s18, 1
    %p161 = por %p159, %p160
    %p163 = scmp.ne.s32.totalorder %s148, %s162
    %p164 = scmp.eq.s32.totalorder %s18, 0
    %p165 = por %p163, %p164
    %s166 = ssub.s32 %s12, %s19
    %p167 = scmp.eq.s32.totalorder %s166, 0
    %s169 = sadd.s32 %s168, 1
    %s170 = scalar_select %p167, %s168, %s169
    %p173 = pneg %p167
    %p174 = scmp.eq.s32.totalorder %s12, 1
    %p175 = por %p173, %p174
    %p176 = scmp.ne.s32.totalorder %s168, %s171
    %p177 = scmp.eq.s32.totalorder %s12, 0
    %p178 = por %p176, %p177
    %p179 = scmp.ne.s32.totalorder %s168, %s171
    %p180 = scmp.eq.s32.totalorder %s17, 1
    %p181 = por %p179, %p180
    %p182 = scmp.ne.s32.totalorder %s171, %s172
    %p183 = scmp.eq.s32.totalorder %s17, 0
    %p184 = por %p182, %p183
    %p185 = scmp.ne.s32.totalorder %s171, %s172
    %p186 = scmp.eq.s32.totalorder %s18, 1
    %p187 = por %p185, %p186
    %p189 = scmp.ne.s32.totalorder %s172, %s188
    %p190 = scmp.eq.s32.totalorder %s18, 0
    %p191 = por %p189, %p190
    %p192 = scmp.le.s32.totalorder 1, %s12
    %p193 = scmp.lt.s32.totalorder %s12, 3
    %p194 = pnand %p192, %p193
    %p195 = pneg %p194
    // Predicated region
    $region9: #{discriminator_forward.9} parent=5 // pred_check
      _
    $region10: #{discriminator_forward.9} parent=5 // pred_check_branch
      %197 = sbr.rel (%p194) target = $region12
    $region11: #{discriminator_forward.9} parent=5 // pred_region
      %s198 = ssub.s32 %s12, 1
      // Predicated region
      $region13: #{discriminator_forward.9} parent=11 // pred_check
        %p199 = pneg %p137
      $region14: #{discriminator_forward.9} parent=11 // pred_check_branch
        %201 = sbr.rel (%p199) target = $region16
      $region15: #{discriminator_forward.9} parent=11 // pred_region
        _
      $region16: #{discriminator_forward.9} parent=11 // pred_fallthru
        _
      // Predicated region
      $region17: #{discriminator_forward.9} parent=11 // pred_check
        %p202 = pneg %p158
      $region18: #{discriminator_forward.9} parent=11 // pred_check_branch
        %204 = sbr.rel (%p202) target = $region20
      $region19: #{discriminator_forward.9} parent=11 // pred_region
        _
      $region20: #{discriminator_forward.9} parent=11 // pred_fallthru
        _
    $region12: #{discriminator_forward.9} parent=5 // pred_fallthru
      _
    %p205 = scmp.lt.s32.totalorder %s12, 2
    // Predicated region
    $region21: #{discriminator_forward.9} parent=5 // pred_check
      %p206 = pneg %p205
    $region22: #{discriminator_forward.9} parent=5 // pred_check_branch
      %208 = sbr.rel (%p206) target = $region24
    $region23: #{discriminator_forward.9} parent=5 // pred_region
      // Predicated region
      $region25: #{discriminator_forward.9} parent=23 // pred_check
        %p209 = pneg %p32
      $region26: #{discriminator_forward.9} parent=23 // pred_check_branch
        %211 = sbr.rel (%p209) target = $region28
      $region27: #{discriminator_forward.9} parent=23 // pred_region
        %p212 = scmp.lt.s32.totalorder %s12, 1
        %s213 = scalar_select %p212, %s12, 1
        %s214 = smul.addr %s213, 11
        %s215 = smul.addr %s214, 4
        %s216 = scalar_lea.vmem %s0, %s215
      $region28: #{discriminator_forward.9} parent=23 // pred_fallthru
        _
      // Predicated region
      $region29: #{discriminator_forward.9} parent=23 // pred_check
        %p217 = pneg %p58
      $region30: #{discriminator_forward.9} parent=23 // pred_check_branch
        %219 = sbr.rel (%p217) target = $region32
      $region31: #{discriminator_forward.9} parent=23 // pred_region
        %p220 = scmp.lt.s32.totalorder %s12, 1
        %s221 = scalar_select %p220, %s12, 1
        %s222 = smul.addr %s221, 11
        %s223 = smul.addr %s222, 4
        %s224 = scalar_lea.vmem %s1, %s223
      $region32: #{discriminator_forward.9} parent=23 // pred_fallthru
        _
      // Predicated region
      $region33: #{discriminator_forward.9} parent=23 // pred_check
        %p225 = pneg %p84
      $region34: #{discriminator_forward.9} parent=23 // pred_check_branch
        %227 = sbr.rel (%p225) target = $region36
      $region35: #{discriminator_forward.9} parent=23 // pred_region
        %p228 = scmp.lt.s32.totalorder %s12, 1
        %s229 = scalar_select %p228, %s12, 1
        %s230 = smul.addr %s229, 11
        %s231 = smul.addr %s230, 4
        %s232 = scalar_lea.vmem %s2, %s231
      $region36: #{discriminator_forward.9} parent=23 // pred_fallthru
        _
      // Predicated region
      $region37: #{discriminator_forward.9} parent=23 // pred_check
        %p233 = pneg %p110
      $region38: #{discriminator_forward.9} parent=23 // pred_check_branch
        %235 = sbr.rel (%p233) target = $region40
      $region39: #{discriminator_forward.9} parent=23 // pred_region
        %p236 = scmp.lt.s32.totalorder %s12, 1
        %s237 = scalar_select %p236, %s12, 1
        %s238 = smul.addr %s237, 11
        %s239 = smul.addr %s238, 4
        %s240 = scalar_lea.vmem %s3, %s239
      $region40: #{discriminator_forward.9} parent=23 // pred_fallthru
        _
    $region24: #{discriminator_forward.9} parent=5 // pred_fallthru
      _
    %p241 = scmp.le.s32.totalorder 1, %s12
    %p242 = scmp.lt.s32.totalorder %s12, 3
    %p243 = pnand %p241, %p242
    %p244 = pneg %p243
    // Predicated region
    $region41: #{discriminator_forward.9} parent=5 // pred_check
      _
    $region42: #{discriminator_forward.9} parent=5 // pred_check_branch
      %246 = sbr.rel (%p243) target = $region44
    $region43: #{discriminator_forward.9} parent=5 // pred_region
      %s247 = ssub.s32 %s12, 1
      %p248 = scmp.lt.s32.totalorder %s17, 1
      %s249 = scalar_select %p248, %s17, 1
      %s250 = smul.addr %s249, 11
      %s251 = smul.addr %s250, 4
      %s252 = scalar_lea.vmem %s0, %s251
      %p253 = pneg %p38
      %p254 = pneg %p35
      %p255 = scmp.lt.s32.totalorder %s17, 1
      %s256 = scalar_select %p255, %s17, 1
      %s257 = smul.addr %s256, 11
      %s258 = smul.addr %s257, 4
      %s259 = scalar_lea.vmem %s1, %s258
      %p260 = pneg %p64
      %p261 = pneg %p61
      %p262 = scmp.lt.s32.totalorder %s17, 1
      %s263 = scalar_select %p262, %s17, 1
      %s264 = smul.addr %s263, 11
      %s265 = smul.addr %s264, 4
      %s266 = scalar_lea.vmem %s2, %s265
      %p267 = pneg %p90
      %p268 = pneg %p87
      %p269 = scmp.lt.s32.totalorder %s17, 1
      %s270 = scalar_select %p269, %s17, 1
      %s271 = smul.addr %s270, 11
      %s272 = smul.addr %s271, 4
      %s273 = scalar_lea.vmem %s3, %s272
      %p274 = pneg %p116
      %p275 = pneg %p113
      %p276 = pneg %p137
      %p277 = pneg %p134
      %p278 = pneg %p158
      %p279 = pneg %p155
      %p280 = pneg %p184
      %p281 = pneg %p181
      %p282 = scmp.lt.s32.totalorder %s17, 1
      %s283 = scalar_select %p282, %s17, 1
      %s284 = smul.addr %s283, 9
      %s285 = smul.addr %s284, 4
      %s286 = scalar_lea.vmem %s6, %s285
      %p287 = scmp.lt.s32.totalorder %s17, 1
      %s288 = scalar_select %p287, %s17, 1
      %s289 = smul.addr %s288, 11
      %s290 = smul.addr %s289, 4
      %s291 = scalar_lea.vmem %s0, %s290
      %p292 = scmp.lt.s32.totalorder %s17, 1
      %s293 = scalar_select %p292, %s17, 1
      %s294 = smul.addr %s293, 11
      %s295 = smul.addr %s294, 4
      %s296 = scalar_lea.vmem %s1, %s295
      %p297 = scmp.lt.s32.totalorder %s17, 1
      %s298 = scalar_select %p297, %s17, 1
      %s299 = smul.addr %s298, 11
      %s300 = smul.addr %s299, 4
      %s301 = scalar_lea.vmem %s2, %s300
      %p302 = scmp.lt.s32.totalorder %s17, 1
      %s303 = scalar_select %p302, %s17, 1
      %s304 = smul.addr %s303, 11
      %s305 = smul.addr %s304, 4
      %s306 = scalar_lea.vmem %s3, %s305
      %p307 = scmp.lt.s32.totalorder %s17, 1
      %s308 = scalar_select %p307, %s17, 1
      %s309 = smul.addr %s308, 9
      %s310 = smul.addr %s309, 4
      %s311 = scalar_lea.vmem %s6, %s310
      %v313 = vld [vmem:[%s291] sm:$0xf]
      %v314 = vld [vmem:[%s291 + $0x4] sm:$0xf]
      %v315 = vld [vmem:[%s291 + $0x8] sm:$0xf]
      %v316 = vld [vmem:[%s291 + $0xc] sm:$0xf]
      %v317 = vld [vmem:[%s291 + $0x10] sm:$0xf]
      %v318 = vld [vmem:[%s291 + $0x14] sm:$0xf]
      %v319 = vld [vmem:[%s291 + $0x18] sm:$0xf]
      %v320 = vld [vmem:[%s291 + $0x1c] sm:$0xf]
      %v321 = vld [vmem:[%s291 + $0x20] sm:$0xf]
      %v322 = vld [vmem:[%s4] sm:$0xf]
      %v323 = vld [vmem:[%s4 + $0x4] sm:$0xf]
      %v324 = vld [vmem:[%s4 + $0x8] sm:$0xf]
      %v325 = vld [vmem:[%s4 + $0xc] sm:$0xf]
      %v326 = vld [vmem:[%s296] sm:$0xf]
      %v327 = vld [vmem:[%s296 + $0x4] sm:$0xf]
      %v328 = vld [vmem:[%s296 + $0x8] sm:$0xf]
      %v329 = vld [vmem:[%s296 + $0xc] sm:$0xf]
      %v330 = vld [vmem:[%s296 + $0x10] sm:$0xf]
      %v331 = vld [vmem:[%s296 + $0x14] sm:$0xf]
      %v332 = vld [vmem:[%s296 + $0x18] sm:$0xf]
      %v333 = vld [vmem:[%s296 + $0x1c] sm:$0xf]
      %v334 = vld [vmem:[%s296 + $0x20] sm:$0xf]
      %s335 = scalar_lea.vmem %s4, 16
      %v336 = vld [vmem:[%s335] sm:$0xf]
      %v337 = vld [vmem:[%s335 + $0x4] sm:$0xf]
      %v338 = vld [vmem:[%s335 + $0x8] sm:$0xf]
      %v339 = vld [vmem:[%s335 + $0xc] sm:$0xf]
      %v349 = vunpack.c.l.b16 %v326
      %v350 = vunpack.c.l.b16 %v327
      %v351 = vunpack.c.l.b16 %v328
      %v352 = vunpack.c.l.b16 %v329
      %v353 = vunpack.c.l.b16 %v330
      %v354 = vunpack.c.l.b16 %v331
      %v355 = vunpack.c.l.b16 %v332
      %v356 = vunpack.c.l.b16 %v333
      %v357 = vunpack.c.l.b16 %v334
      %v358 = vpack.c.b16 %v350, %v349
      %v359 = vpack.c.b16 %v352, %v351
      %v360 = vpack.c.b16 %v354, %v353
      %v361 = vpack.c.b16 %v356, %v355
      %v362 = vpack.c.b16 %v357, %v357
      %v367 = vunpack.c.l.b16 %v336
      %v368 = vunpack.c.l.b16 %v337
      %v369 = vunpack.c.l.b16 %v338
      %v370 = vunpack.c.l.b16 %v339
      %v371 = vpack.c.b16 %v368, %v367
      %v372 = vpack.c.b16 %v370, %v369
      %vm375 = vcmask 261120
      %v377 = vsel %vm375, %v358, 0
      %v380 = vsel %vm375, %v359, 0
      %v383 = vsel %vm375, %v360, 0
      %v386 = vsel %vm375, %v361, 0
      %v389 = vsel %vm375, %v362, 0
      %391 = vmatpush.bf16.msra.mxu0 0
      %392 = vmatpush.bf16.msra.mxu0 0
      %393 = vmatpush.bf16.msra.mxu0 0
      %394 = vmatpush.bf16.msra.mxu0 0
      %395 = vmatpush.bf16.msra.mxu0 0
      %396 = vmatpush.bf16.msra.mxu0 0
      %397 = vmatpush.bf16.msra.mxu0 %v372
      %398 = vmatpush.bf16.msra.mxu0 %v371
      %399 = vmatmul.bf16.gmra.mxu0 %v377
      %v400 = vpop.f32.mrf.mxu0
      %v401 = vadd.f32 0.0, %v400
      %v402 = vpop.f32.mrf.mxu0
      %v403 = vadd.f32 0.0, %v402
      %404 = vmatmul.bf16.gmra.mxu0 %v380
      %v405 = vpop.f32.mrf.mxu0
      %v406 = vadd.f32 0.0, %v405
      %v407 = vpop.f32.mrf.mxu0
      %v408 = vadd.f32 0.0, %v407
      %409 = vmatmul.bf16.gmra.mxu0 %v383
      %v410 = vpop.f32.mrf.mxu0
      %v411 = vadd.f32 0.0, %v410
      %v412 = vpop.f32.mrf.mxu0
      %v413 = vadd.f32 0.0, %v412
      %414 = vmatmul.bf16.gmra.mxu0 %v386
      %v415 = vpop.f32.mrf.mxu0
      %v416 = vadd.f32 0.0, %v415
      %v417 = vpop.f32.mrf.mxu0
      %v418 = vadd.f32 0.0, %v417
      %419 = vmatmul.bf16.gmra.mxu0 %v389
      %v420 = vpop.f32.mrf.mxu0
      %v421 = vadd.f32 0.0, %v420
      %v422 = vpop.f32.mrf.mxu0
      %423 = vdwg.mxu0
      %v433 = vunpack.c.l.b16 %v313
      %v434 = vunpack.c.l.b16 %v314
      %v435 = vunpack.c.l.b16 %v315
      %v436 = vunpack.c.l.b16 %v316
      %v437 = vunpack.c.l.b16 %v317
      %v438 = vunpack.c.l.b16 %v318
      %v439 = vunpack.c.l.b16 %v319
      %v440 = vunpack.c.l.b16 %v320
      %v441 = vunpack.c.l.b16 %v321
      %v442 = vpack.c.b16 %v434, %v433
      %v443 = vpack.c.b16 %v436, %v435
      %v444 = vpack.c.b16 %v438, %v437
      %v445 = vpack.c.b16 %v440, %v439
      %v446 = vpack.c.b16 %v441, %v441
      %v451 = vunpack.c.l.b16 %v322
      %v452 = vunpack.c.l.b16 %v323
      %v453 = vunpack.c.l.b16 %v324
      %v454 = vunpack.c.l.b16 %v325
      %v455 = vpack.c.b16 %v452, %v451
      %v456 = vpack.c.b16 %v454, %v453
      %v460 = vsel %vm375, %v442, 0
      %v463 = vsel %vm375, %v443, 0
      %v466 = vsel %vm375, %v444, 0
      %v469 = vsel %vm375, %v445, 0
      %v472 = vsel %vm375, %v446, 0
      %474 = vmatpush.bf16.msra.mxu0 0
      %475 = vmatpush.bf16.msra.mxu0 0
      %476 = vmatpush.bf16.msra.mxu0 0
      %477 = vmatpush.bf16.msra.mxu0 0
      %478 = vmatpush.bf16.msra.mxu0 0
      %479 = vmatpush.bf16.msra.mxu0 0
      %480 = vmatpush.bf16.msra.mxu0 %v456
      %481 = vmatpush.bf16.msra.mxu0 %v455
      %482 = vmatmul.bf16.gmra.mxu0 %v460
      %v483 = vpop.f32.mrf.mxu0
      %v484 = vadd.f32 %v401, %v483
      %v485 = vpop.f32.mrf.mxu0
      %v486 = vadd.f32 %v403, %v485
      %487 = vmatmul.bf16.gmra.mxu0 %v463
      %v488 = vpop.f32.mrf.mxu0
      %v489 = vadd.f32 %v406, %v488
      %v490 = vpop.f32.mrf.mxu0
      %v491 = vadd.f32 %v408, %v490
      %492 = vmatmul.bf16.gmra.mxu0 %v466
      %v493 = vpop.f32.mrf.mxu0
      %v494 = vadd.f32 %v411, %v493
      %v495 = vpop.f32.mrf.mxu0
      %v496 = vadd.f32 %v413, %v495
      %497 = vmatmul.bf16.gmra.mxu0 %v469
      %v498 = vpop.f32.mrf.mxu0
      %v499 = vadd.f32 %v416, %v498
      %v500 = vpop.f32.mrf.mxu0
      %v501 = vadd.f32 %v418, %v500
      %502 = vmatmul.bf16.gmra.mxu0 %v472
      %v503 = vpop.f32.mrf.mxu0
      %v504 = vadd.f32 %v421, %v503
      %v505 = vpop.f32.mrf.mxu0
      %506 = vdwg.mxu0
      %s507 = scalar_lea.vmem %s4, 32
      %v508 = vld [vmem:[%s507] sm:$0xf]
      %v509 = vld [vmem:[%s507 + $0x4] sm:$0xf]
      %v510 = vld [vmem:[%s507 + $0x8] sm:$0xf]
      %v511 = vld [vmem:[%s507 + $0xc] sm:$0xf]
      %vm512 = vsmask.f32 7424
      %v513 = vshrl.u32 %v442, 16
      %v515 = vshll.u32 %v442, 16
      %v517 = vrot.slane %v515, 1
      %v518 = vor.u32 %v513, %v517
      %v519 = vshll.u32 %v443, 16
      %v521 = vrot.slane %v519, 1
      %v522 = vsel %vm512, %v518, %v521
      %v523 = vshrl.u32 %v443, 16
      %v525 = vor.u32 %v523, %v521
      %v526 = vshll.u32 %v444, 16
      %v528 = vrot.slane %v526, 1
      %v529 = vsel %vm512, %v525, %v528
      %v530 = vshrl.u32 %v444, 16
      %v532 = vor.u32 %v530, %v528
      %v533 = vshll.u32 %v445, 16
      %v535 = vrot.slane %v533, 1
      %v536 = vsel %vm512, %v532, %v535
      %v537 = vshrl.u32 %v445, 16
      %v539 = vor.u32 %v537, %v535
      %v540 = vshll.u32 %v446, 16
      %v542 = vrot.slane %v540, 1
      %v543 = vsel %vm512, %v539, %v542
      %v544 = vshrl.u32 %v446, 16
      %v546 = vor.u32 %v544, %v542
      %v551 = vunpack.c.l.b16 %v508
      %v552 = vunpack.c.l.b16 %v509
      %v553 = vunpack.c.l.b16 %v510
      %v554 = vunpack.c.l.b16 %v511
      %v555 = vpack.c.b16 %v552, %v551
      %v556 = vpack.c.b16 %v554, %v553
      %v560 = vsel %vm375, %v522, 0
      %v563 = vsel %vm375, %v529, 0
      %v566 = vsel %vm375, %v536, 0
      %v569 = vsel %vm375, %v543, 0
      %v572 = vsel %vm375, %v546, 0
      %574 = vmatpush.bf16.msra.mxu0 0
      %575 = vmatpush.bf16.msra.mxu0 0
      %576 = vmatpush.bf16.msra.mxu0 0
      %577 = vmatpush.bf16.msra.mxu0 0
      %578 = vmatpush.bf16.msra.mxu0 0
      %579 = vmatpush.bf16.msra.mxu0 0
      %580 = vmatpush.bf16.msra.mxu0 %v556
      %581 = vmatpush.bf16.msra.mxu0 %v555
      %582 = vmatmul.bf16.gmra.mxu0 %v560
      %v583 = vpop.f32.mrf.mxu0
      %v584 = vadd.f32 0.0, %v583
      %v585 = vpop.f32.mrf.mxu0
      %v586 = vadd.f32 0.0, %v585
      %587 = vmatmul.bf16.gmra.mxu0 %v563
      %v588 = vpop.f32.mrf.mxu0
      %v589 = vadd.f32 0.0, %v588
      %v590 = vpop.f32.mrf.mxu0
      %v591 = vadd.f32 0.0, %v590
      %592 = vmatmul.bf16.gmra.mxu0 %v566
      %v593 = vpop.f32.mrf.mxu0
      %v594 = vadd.f32 0.0, %v593
      %v595 = vpop.f32.mrf.mxu0
      %v596 = vadd.f32 0.0, %v595
      %597 = vmatmul.bf16.gmra.mxu0 %v569
      %v598 = vpop.f32.mrf.mxu0
      %v599 = vadd.f32 0.0, %v598
      %v600 = vpop.f32.mrf.mxu0
      %v601 = vadd.f32 0.0, %v600
      %602 = vmatmul.bf16.gmra.mxu0 %v572
      %v603 = vpop.f32.mrf.mxu0
      %v604 = vadd.f32 0.0, %v603
      %v605 = vpop.f32.mrf.mxu0
      %606 = vdwg.mxu0
      %v607 = vadd.f32 %v484, %v584
      %v608 = vadd.f32 %v486, %v586
      %v609 = vadd.f32 %v489, %v589
      %v610 = vadd.f32 %v491, %v591
      %v611 = vadd.f32 %v494, %v594
      %v612 = vadd.f32 %v496, %v596
      %v613 = vadd.f32 %v499, %v599
      %v614 = vadd.f32 %v501, %v601
      %v615 = vadd.f32 %v504, %v604
      %v616 = vld [vmem:[%s301] sm:$0xf]
      %v617 = vld [vmem:[%s301 + $0x4] sm:$0xf]
      %v618 = vld [vmem:[%s301 + $0x8] sm:$0xf]
      %v619 = vld [vmem:[%s301 + $0xc] sm:$0xf]
      %v620 = vld [vmem:[%s301 + $0x10] sm:$0xf]
      %v621 = vld [vmem:[%s301 + $0x14] sm:$0xf]
      %v622 = vld [vmem:[%s301 + $0x18] sm:$0xf]
      %v623 = vld [vmem:[%s301 + $0x1c] sm:$0xf]
      %v624 = vld [vmem:[%s301 + $0x20] sm:$0xf]
      %s625 = scalar_lea.vmem %s4, 48
      %v626 = vld [vmem:[%s625] sm:$0xf]
      %v627 = vld [vmem:[%s625 + $0x4] sm:$0xf]
      %v628 = vld [vmem:[%s625 + $0x8] sm:$0xf]
      %v629 = vld [vmem:[%s625 + $0xc] sm:$0xf]
      %v639 = vunpack.c.l.b16 %v616
      %v640 = vunpack.c.l.b16 %v617
      %v641 = vunpack.c.l.b16 %v618
      %v642 = vunpack.c.l.b16 %v619
      %v643 = vunpack.c.l.b16 %v620
      %v644 = vunpack.c.l.b16 %v621
      %v645 = vunpack.c.l.b16 %v622
      %v646 = vunpack.c.l.b16 %v623
      %v647 = vunpack.c.l.b16 %v624
      %v648 = vpack.c.b16 %v640, %v639
      %v649 = vpack.c.b16 %v642, %v641
      %v650 = vpack.c.b16 %v644, %v643
      %v651 = vpack.c.b16 %v646, %v645
      %v652 = vpack.c.b16 %v647, %v647
      %v657 = vunpack.c.l.b16 %v626
      %v658 = vunpack.c.l.b16 %v627
      %v659 = vunpack.c.l.b16 %v628
      %v660 = vunpack.c.l.b16 %v629
      %v661 = vpack.c.b16 %v658, %v657
      %v662 = vpack.c.b16 %v660, %v659
      %v666 = vsel %vm375, %v648, 0
      %v669 = vsel %vm375, %v649, 0
      %v672 = vsel %vm375, %v650, 0
      %v675 = vsel %vm375, %v651, 0
      %v678 = vsel %vm375, %v652, 0
      %680 = vmatpush.bf16.msra.mxu0 0
      %681 = vmatpush.bf16.msra.mxu0 0
      %682 = vmatpush.bf16.msra.mxu0 0
      %683 = vmatpush.bf16.msra.mxu0 0
      %684 = vmatpush.bf16.msra.mxu0 0
      %685 = vmatpush.bf16.msra.mxu0 0
      %686 = vmatpush.bf16.msra.mxu0 %v662
      %687 = vmatpush.bf16.msra.mxu0 %v661
      %688 = vmatmul.bf16.gmra.mxu0 %v666
      %v689 = vpop.f32.mrf.mxu0
      %v690 = vadd.f32 0.0, %v689
      %v691 = vpop.f32.mrf.mxu0
      %v692 = vadd.f32 0.0, %v691
      %693 = vmatmul.bf16.gmra.mxu0 %v669
      %v694 = vpop.f32.mrf.mxu0
      %v695 = vadd.f32 0.0, %v694
      %v696 = vpop.f32.mrf.mxu0
      %v697 = vadd.f32 0.0, %v696
      %698 = vmatmul.bf16.gmra.mxu0 %v672
      %v699 = vpop.f32.mrf.mxu0
      %v700 = vadd.f32 0.0, %v699
      %v701 = vpop.f32.mrf.mxu0
      %v702 = vadd.f32 0.0, %v701
      %703 = vmatmul.bf16.gmra.mxu0 %v675
      %v704 = vpop.f32.mrf.mxu0
      %v705 = vadd.f32 0.0, %v704
      %v706 = vpop.f32.mrf.mxu0
      %v707 = vadd.f32 0.0, %v706
      %708 = vmatmul.bf16.gmra.mxu0 %v678
      %v709 = vpop.f32.mrf.mxu0
      %v710 = vadd.f32 0.0, %v709
      %v711 = vpop.f32.mrf.mxu0
      %712 = vdwg.mxu0
      %v713 = vadd.f32 %v607, %v690
      %v714 = vadd.f32 %v608, %v692
      %v715 = vadd.f32 %v609, %v695
      %v716 = vadd.f32 %v610, %v697
      %v717 = vadd.f32 %v611, %v700
      %v718 = vadd.f32 %v612, %v702
      %v719 = vadd.f32 %v613, %v705
      %v720 = vadd.f32 %v614, %v707
      %v721 = vadd.f32 %v615, %v710
      %v722 = vld [vmem:[%s306] sm:$0xf]
      %v723 = vld [vmem:[%s306 + $0x4] sm:$0xf]
      %v724 = vld [vmem:[%s306 + $0x8] sm:$0xf]
      %v725 = vld [vmem:[%s306 + $0xc] sm:$0xf]
      %v726 = vld [vmem:[%s306 + $0x10] sm:$0xf]
      %v727 = vld [vmem:[%s306 + $0x14] sm:$0xf]
      %v728 = vld [vmem:[%s306 + $0x18] sm:$0xf]
      %v729 = vld [vmem:[%s306 + $0x1c] sm:$0xf]
      %v730 = vld [vmem:[%s306 + $0x20] sm:$0xf]
      %s731 = scalar_lea.vmem %s4, 64
      %v732 = vld [vmem:[%s731] sm:$0xf]
      %v733 = vld [vmem:[%s731 + $0x4] sm:$0xf]
      %v734 = vld [vmem:[%s731 + $0x8] sm:$0xf]
      %v735 = vld [vmem:[%s731 + $0xc] sm:$0xf]
      %v745 = vunpack.c.l.b16 %v722
      %v746 = vunpack.c.l.b16 %v723
      %v747 = vunpack.c.l.b16 %v724
      %v748 = vunpack.c.l.b16 %v725
      %v749 = vunpack.c.l.b16 %v726
      %v750 = vunpack.c.l.b16 %v727
      %v751 = vunpack.c.l.b16 %v728
      %v752 = vunpack.c.l.b16 %v729
      %v753 = vunpack.c.l.b16 %v730
      %v754 = vpack.c.b16 %v746, %v745
      %v755 = vpack.c.b16 %v748, %v747
      %v756 = vpack.c.b16 %v750, %v749
      %v757 = vpack.c.b16 %v752, %v751
      %v758 = vpack.c.b16 %v753, %v753
      %v763 = vunpack.c.l.b16 %v732
      %v764 = vunpack.c.l.b16 %v733
      %v765 = vunpack.c.l.b16 %v734
      %v766 = vunpack.c.l.b16 %v735
      %v767 = vpack.c.b16 %v764, %v763
      %v768 = vpack.c.b16 %v766, %v765
      %v772 = vsel %vm375, %v754, 0
      %v775 = vsel %vm375, %v755, 0
      %v778 = vsel %vm375, %v756, 0
      %v781 = vsel %vm375, %v757, 0
      %v784 = vsel %vm375, %v758, 0
      %786 = vmatpush.bf16.msra.mxu0 0
      %787 = vmatpush.bf16.msra.mxu0 0
      %788 = vmatpush.bf16.msra.mxu0 0
      %789 = vmatpush.bf16.msra.mxu0 0
      %790 = vmatpush.bf16.msra.mxu0 0
      %791 = vmatpush.bf16.msra.mxu0 0
      %792 = vmatpush.bf16.msra.mxu0 %v768
      %793 = vmatpush.bf16.msra.mxu0 %v767
      %794 = vmatmul.bf16.gmra.mxu0 %v772
      %v795 = vpop.f32.mrf.mxu0
      %v796 = vadd.f32 0.0, %v795
      %v797 = vpop.f32.mrf.mxu0
      %v798 = vadd.f32 0.0, %v797
      %799 = vmatmul.bf16.gmra.mxu0 %v775
      %v800 = vpop.f32.mrf.mxu0
      %v801 = vadd.f32 0.0, %v800
      %v802 = vpop.f32.mrf.mxu0
      %v803 = vadd.f32 0.0, %v802
      %804 = vmatmul.bf16.gmra.mxu0 %v778
      %v805 = vpop.f32.mrf.mxu0
      %v806 = vadd.f32 0.0, %v805
      %v807 = vpop.f32.mrf.mxu0
      %v808 = vadd.f32 0.0, %v807
      %809 = vmatmul.bf16.gmra.mxu0 %v781
      %v810 = vpop.f32.mrf.mxu0
      %v811 = vadd.f32 0.0, %v810
      %v812 = vpop.f32.mrf.mxu0
      %v813 = vadd.f32 0.0, %v812
      %814 = vmatmul.bf16.gmra.mxu0 %v784
      %v815 = vpop.f32.mrf.mxu0
      %v816 = vadd.f32 0.0, %v815
      %v817 = vpop.f32.mrf.mxu0
      %818 = vdwg.mxu0
      %v819 = vadd.f32 %v713, %v796
      %v820 = vadd.f32 %v714, %v798
      %v821 = vadd.f32 %v715, %v801
      %v822 = vadd.f32 %v716, %v803
      %v823 = vadd.f32 %v717, %v806
      %v824 = vadd.f32 %v718, %v808
      %v825 = vadd.f32 %v719, %v811
      %v826 = vadd.f32 %v720, %v813
      %v827 = vadd.f32 %v721, %v816
      %s828 = scalar_lea.vmem %s4, 80
      %v829 = vld [vmem:[%s828] sm:$0xf]
      %v830 = vld [vmem:[%s828 + $0x4] sm:$0xf]
      %v831 = vld [vmem:[%s828 + $0x8] sm:$0xf]
      %v832 = vld [vmem:[%s828 + $0xc] sm:$0xf]
      %v833 = vshrl.u32 %v648, 16
      %v835 = vshll.u32 %v648, 16
      %v837 = vrot.slane %v835, 1
      %v838 = vor.u32 %v833, %v837
      %v839 = vshll.u32 %v649, 16
      %v841 = vrot.slane %v839, 1
      %v842 = vsel %vm512, %v838, %v841
      %v843 = vshrl.u32 %v649, 16
      %v845 = vor.u32 %v843, %v841
      %v846 = vshll.u32 %v650, 16
      %v848 = vrot.slane %v846, 1
      %v849 = vsel %vm512, %v845, %v848
      %v850 = vshrl.u32 %v650, 16
      %v852 = vor.u32 %v850, %v848
      %v853 = vshll.u32 %v651, 16
      %v855 = vrot.slane %v853, 1
      %v856 = vsel %vm512, %v852, %v855
      %v857 = vshrl.u32 %v651, 16
      %v859 = vor.u32 %v857, %v855
      %v860 = vshll.u32 %v652, 16
      %v862 = vrot.slane %v860, 1
      %v863 = vsel %vm512, %v859, %v862
      %v864 = vshrl.u32 %v652, 16
      %v866 = vor.u32 %v864, %v862
      %v871 = vunpack.c.l.b16 %v829
      %v872 = vunpack.c.l.b16 %v830
      %v873 = vunpack.c.l.b16 %v831
      %v874 = vunpack.c.l.b16 %v832
      %v875 = vpack.c.b16 %v872, %v871
      %v876 = vpack.c.b16 %v874, %v873
      %v880 = vsel %vm375, %v842, 0
      %v883 = vsel %vm375, %v849, 0
      %v886 = vsel %vm375, %v856, 0
      %v889 = vsel %vm375, %v863, 0
      %v892 = vsel %vm375, %v866, 0
      %894 = vmatpush.bf16.msra.mxu0 0
      %895 = vmatpush.bf16.msra.mxu0 0
      %896 = vmatpush.bf16.msra.mxu0 0
      %897 = vmatpush.bf16.msra.mxu0 0
      %898 = vmatpush.bf16.msra.mxu0 0
      %899 = vmatpush.bf16.msra.mxu0 0
      %900 = vmatpush.bf16.msra.mxu0 %v876
      %901 = vmatpush.bf16.msra.mxu0 %v875
      %902 = vmatmul.bf16.gmra.mxu0 %v880
      %v903 = vpop.f32.mrf.mxu0
      %v904 = vadd.f32 0.0, %v903
      %v905 = vpop.f32.mrf.mxu0
      %v906 = vadd.f32 0.0, %v905
      %907 = vmatmul.bf16.gmra.mxu0 %v883
      %v908 = vpop.f32.mrf.mxu0
      %v909 = vadd.f32 0.0, %v908
      %v910 = vpop.f32.mrf.mxu0
      %v911 = vadd.f32 0.0, %v910
      %912 = vmatmul.bf16.gmra.mxu0 %v886
      %v913 = vpop.f32.mrf.mxu0
      %v914 = vadd.f32 0.0, %v913
      %v915 = vpop.f32.mrf.mxu0
      %v916 = vadd.f32 0.0, %v915
      %917 = vmatmul.bf16.gmra.mxu0 %v889
      %v918 = vpop.f32.mrf.mxu0
      %v919 = vadd.f32 0.0, %v918
      %v920 = vpop.f32.mrf.mxu0
      %v921 = vadd.f32 0.0, %v920
      %922 = vmatmul.bf16.gmra.mxu0 %v892
      %v923 = vpop.f32.mrf.mxu0
      %v924 = vadd.f32 0.0, %v923
      %v925 = vpop.f32.mrf.mxu0
      %926 = vdwg.mxu0
      %v927 = vadd.f32 %v819, %v904
      %v928 = vadd.f32 %v820, %v906
      %v929 = vadd.f32 %v821, %v909
      %v930 = vadd.f32 %v822, %v911
      %v931 = vadd.f32 %v823, %v914
      %v932 = vadd.f32 %v824, %v916
      %v933 = vadd.f32 %v825, %v919
      %v934 = vadd.f32 %v826, %v921
      %v935 = vadd.f32 %v827, %v924
      %v936 = vld [vmem:[%s291 + $0x4] sm:$0xf]
      %v937 = vld [vmem:[%s291 + $0x8] sm:$0xf]
      %v938 = vld [vmem:[%s291 + $0xc] sm:$0xf]
      %v939 = vld [vmem:[%s291 + $0x10] sm:$0xf]
      %v940 = vld [vmem:[%s291 + $0x14] sm:$0xf]
      %v941 = vld [vmem:[%s291 + $0x18] sm:$0xf]
      %v942 = vld [vmem:[%s291 + $0x1c] sm:$0xf]
      %v943 = vld [vmem:[%s291 + $0x20] sm:$0xf]
      %v944 = vld [vmem:[%s291 + $0x24] sm:$0xf]
      %s945 = scalar_lea.vmem %s4, 96
      %v946 = vld [vmem:[%s945] sm:$0xf]
      %v947 = vld [vmem:[%s945 + $0x4] sm:$0xf]
      %v948 = vld [vmem:[%s945 + $0x8] sm:$0xf]
      %v949 = vld [vmem:[%s945 + $0xc] sm:$0xf]
      %v959 = vunpack.c.l.b16 %v936
      %v960 = vunpack.c.l.b16 %v937
      %v961 = vunpack.c.l.b16 %v938
      %v962 = vunpack.c.l.b16 %v939
      %v963 = vunpack.c.l.b16 %v940
      %v964 = vunpack.c.l.b16 %v941
      %v965 = vunpack.c.l.b16 %v942
      %v966 = vunpack.c.l.b16 %v943
      %v967 = vunpack.c.l.b16 %v944
      %v968 = vpack.c.b16 %v960, %v959
      %v969 = vpack.c.b16 %v962, %v961
      %v970 = vpack.c.b16 %v964, %v963
      %v971 = vpack.c.b16 %v966, %v965
      %v972 = vpack.c.b16 %v967, %v967
      %v974 = vshrl.u32 %v968, 16
      %v976 = vshll.u32 %v968, 16
      %v978 = vrot.slane %v976, 1
      %v979 = vor.u32 %v974, %v978
      %v981 = vshll.u32 %v969, 16
      %v983 = vrot.slane %v981, 1
      %v984 = vsel %vm512, %v979, %v983
      %v985 = vshrl.u32 %v969, 16
      %v987 = vor.u32 %v985, %v983
      %v989 = vshll.u32 %v970, 16
      %v991 = vrot.slane %v989, 1
      %v992 = vsel %vm512, %v987, %v991
      %v993 = vshrl.u32 %v970, 16
      %v995 = vor.u32 %v993, %v991
      %v997 = vshll.u32 %v971, 16
      %v999 = vrot.slane %v997, 1
      %v1000 = vsel %vm512, %v995, %v999
      %v1001 = vshrl.u32 %v971, 16
      %v1003 = vor.u32 %v1001, %v999
      %v1005 = vshll.u32 %v972, 16
      %v1007 = vrot.slane %v1005, 1
      %v1008 = vsel %vm512, %v1003, %v1007
      %v1009 = vshrl.u32 %v972, 16
      %v1011 = vor.u32 %v1009, %v1007
      %v1016 = vunpack.c.l.b16 %v946
      %v1017 = vunpack.c.l.b16 %v947
      %v1018 = vunpack.c.l.b16 %v948
      %v1019 = vunpack.c.l.b16 %v949
      %v1020 = vpack.c.b16 %v1017, %v1016
      %v1021 = vpack.c.b16 %v1019, %v1018
      %v1025 = vsel %vm375, %v984, 0
      %v1028 = vsel %vm375, %v992, 0
      %v1031 = vsel %vm375, %v1000, 0
      %v1034 = vsel %vm375, %v1008, 0
      %v1037 = vsel %vm375, %v1011, 0
      %1039 = vmatpush.bf16.msra.mxu0 0
      %1040 = vmatpush.bf16.msra.mxu0 0
      %1041 = vmatpush.bf16.msra.mxu0 0
      %1042 = vmatpush.bf16.msra.mxu0 0
      %1043 = vmatpush.bf16.msra.mxu0 0
      %1044 = vmatpush.bf16.msra.mxu0 0
      %1045 = vmatpush.bf16.msra.mxu0 %v1021
      %1046 = vmatpush.bf16.msra.mxu0 %v1020
      %1047 = vmatmul.bf16.gmra.mxu0 %v1025
      %v1048 = vpop.f32.mrf.mxu0
      %v1049 = vadd.f32 0.0, %v1048
      %v1050 = vpop.f32.mrf.mxu0
      %v1051 = vadd.f32 0.0, %v1050
      %1052 = vmatmul.bf16.gmra.mxu0 %v1028
      %v1053 = vpop.f32.mrf.mxu0
      %v1054 = vadd.f32 0.0, %v1053
      %v1055 = vpop.f32.mrf.mxu0
      %v1056 = vadd.f32 0.0, %v1055
      %1057 = vmatmul.bf16.gmra.mxu0 %v1031
      %v1058 = vpop.f32.mrf.mxu0
      %v1059 = vadd.f32 0.0, %v1058
      %v1060 = vpop.f32.mrf.mxu0
      %v1061 = vadd.f32 0.0, %v1060
      %1062 = vmatmul.bf16.gmra.mxu0 %v1034
      %v1063 = vpop.f32.mrf.mxu0
      %v1064 = vadd.f32 0.0, %v1063
      %v1065 = vpop.f32.mrf.mxu0
      %v1066 = vadd.f32 0.0, %v1065
      %1067 = vmatmul.bf16.gmra.mxu0 %v1037
      %v1068 = vpop.f32.mrf.mxu0
      %v1069 = vadd.f32 0.0, %v1068
      %v1070 = vpop.f32.mrf.mxu0
      %1071 = vdwg.mxu0
      %v1072 = vadd.f32 %v927, %v1049
      %v1073 = vadd.f32 %v928, %v1051
      %v1074 = vadd.f32 %v929, %v1054
      %v1075 = vadd.f32 %v930, %v1056
      %v1076 = vadd.f32 %v931, %v1059
      %v1077 = vadd.f32 %v932, %v1061
      %v1078 = vadd.f32 %v933, %v1064
      %v1079 = vadd.f32 %v934, %v1066
      %v1080 = vadd.f32 %v935, %v1069
      %v1081 = vld [vmem:[%s296 + $0x4] sm:$0xf]
      %v1082 = vld [vmem:[%s296 + $0x8] sm:$0xf]
      %v1083 = vld [vmem:[%s296 + $0xc] sm:$0xf]
      %v1084 = vld [vmem:[%s296 + $0x10] sm:$0xf]
      %v1085 = vld [vmem:[%s296 + $0x14] sm:$0xf]
      %v1086 = vld [vmem:[%s296 + $0x18] sm:$0xf]
      %v1087 = vld [vmem:[%s296 + $0x1c] sm:$0xf]
      %v1088 = vld [vmem:[%s296 + $0x20] sm:$0xf]
      %v1089 = vld [vmem:[%s296 + $0x24] sm:$0xf]
      %s1090 = scalar_lea.vmem %s4, 112
      %v1091 = vld [vmem:[%s1090] sm:$0xf]
      %v1092 = vld [vmem:[%s1090 + $0x4] sm:$0xf]
      %v1093 = vld [vmem:[%s1090 + $0x8] sm:$0xf]
      %v1094 = vld [vmem:[%s1090 + $0xc] sm:$0xf]
      %v1104 = vunpack.c.l.b16 %v1081
      %v1105 = vunpack.c.l.b16 %v1082
      %v1106 = vunpack.c.l.b16 %v1083
      %v1107 = vunpack.c.l.b16 %v1084
      %v1108 = vunpack.c.l.b16 %v1085
      %v1109 = vunpack.c.l.b16 %v1086
      %v1110 = vunpack.c.l.b16 %v1087
      %v1111 = vunpack.c.l.b16 %v1088
      %v1112 = vunpack.c.l.b16 %v1089
      %v1113 = vpack.c.b16 %v1105, %v1104
      %v1114 = vpack.c.b16 %v1107, %v1106
      %v1115 = vpack.c.b16 %v1109, %v1108
      %v1116 = vpack.c.b16 %v1111, %v1110
      %v1117 = vpack.c.b16 %v1112, %v1112
      %v1119 = vshrl.u32 %v1113, 16
      %v1121 = vshll.u32 %v1113, 16
      %v1123 = vrot.slane %v1121, 1
      %v1124 = vor.u32 %v1119, %v1123
      %v1126 = vshll.u32 %v1114, 16
      %v1128 = vrot.slane %v1126, 1
      %v1129 = vsel %vm512, %v1124, %v1128
      %v1130 = vshrl.u32 %v1114, 16
      %v1132 = vor.u32 %v1130, %v1128
      %v1134 = vshll.u32 %v1115, 16
      %v1136 = vrot.slane %v1134, 1
      %v1137 = vsel %vm512, %v1132, %v1136
      %v1138 = vshrl.u32 %v1115, 16
      %v1140 = vor.u32 %v1138, %v1136
      %v1142 = vshll.u32 %v1116, 16
      %v1144 = vrot.slane %v1142, 1
      %v1145 = vsel %vm512, %v1140, %v1144
      %v1146 = vshrl.u32 %v1116, 16
      %v1148 = vor.u32 %v1146, %v1144
      %v1150 = vshll.u32 %v1117, 16
      %v1152 = vrot.slane %v1150, 1
      %v1153 = vsel %vm512, %v1148, %v1152
      %v1154 = vshrl.u32 %v1117, 16
      %v1156 = vor.u32 %v1154, %v1152
      %v1161 = vunpack.c.l.b16 %v1091
      %v1162 = vunpack.c.l.b16 %v1092
      %v1163 = vunpack.c.l.b16 %v1093
      %v1164 = vunpack.c.l.b16 %v1094
      %v1165 = vpack.c.b16 %v1162, %v1161
      %v1166 = vpack.c.b16 %v1164, %v1163
      %v1170 = vsel %vm375, %v1129, 0
      %v1173 = vsel %vm375, %v1137, 0
      %v1176 = vsel %vm375, %v1145, 0
      %v1179 = vsel %vm375, %v1153, 0
      %v1182 = vsel %vm375, %v1156, 0
      %1184 = vmatpush.bf16.msra.mxu0 0
      %1185 = vmatpush.bf16.msra.mxu0 0
      %1186 = vmatpush.bf16.msra.mxu0 0
      %1187 = vmatpush.bf16.msra.mxu0 0
      %1188 = vmatpush.bf16.msra.mxu0 0
      %1189 = vmatpush.bf16.msra.mxu0 0
      %1190 = vmatpush.bf16.msra.mxu0 %v1166
      %1191 = vmatpush.bf16.msra.mxu0 %v1165
      %1192 = vmatmul.bf16.gmra.mxu0 %v1170
      %v1193 = vpop.f32.mrf.mxu0
      %v1194 = vadd.f32 0.0, %v1193
      %v1195 = vpop.f32.mrf.mxu0
      %v1196 = vadd.f32 0.0, %v1195
      %1197 = vmatmul.bf16.gmra.mxu0 %v1173
      %v1198 = vpop.f32.mrf.mxu0
      %v1199 = vadd.f32 0.0, %v1198
      %v1200 = vpop.f32.mrf.mxu0
      %v1201 = vadd.f32 0.0, %v1200
      %1202 = vmatmul.bf16.gmra.mxu0 %v1176
      %v1203 = vpop.f32.mrf.mxu0
      %v1204 = vadd.f32 0.0, %v1203
      %v1205 = vpop.f32.mrf.mxu0
      %v1206 = vadd.f32 0.0, %v1205
      %1207 = vmatmul.bf16.gmra.mxu0 %v1179
      %v1208 = vpop.f32.mrf.mxu0
      %v1209 = vadd.f32 0.0, %v1208
      %v1210 = vpop.f32.mrf.mxu0
      %v1211 = vadd.f32 0.0, %v1210
      %1212 = vmatmul.bf16.gmra.mxu0 %v1182
      %v1213 = vpop.f32.mrf.mxu0
      %v1214 = vadd.f32 0.0, %v1213
      %v1215 = vpop.f32.mrf.mxu0
      %1216 = vdwg.mxu0
      %v1217 = vadd.f32 %v1072, %v1194
      %v1218 = vadd.f32 %v1073, %v1196
      %v1219 = vadd.f32 %v1074, %v1199
      %v1220 = vadd.f32 %v1075, %v1201
      %v1221 = vadd.f32 %v1076, %v1204
      %v1222 = vadd.f32 %v1077, %v1206
      %v1223 = vadd.f32 %v1078, %v1209
      %v1224 = vadd.f32 %v1079, %v1211
      %v1225 = vadd.f32 %v1080, %v1214
      %v1226 = vld [vmem:[%s291 + $0x4] sm:$0xe]
      %v1227 = vld [vmem:[%s291 + $0x8] sm:$0xf]
      %v1228 = vld [vmem:[%s291 + $0xc] sm:$0xf]
      %v1229 = vld [vmem:[%s291 + $0x10] sm:$0xf]
      %v1230 = vld [vmem:[%s291 + $0x14] sm:$0xf]
      %v1231 = vld [vmem:[%s291 + $0x18] sm:$0xf]
      %v1232 = vld [vmem:[%s291 + $0x1c] sm:$0xf]
      %v1233 = vld [vmem:[%s291 + $0x20] sm:$0xf]
      %v1234 = vld [vmem:[%s291 + $0x24] sm:$0xf]
      %v1235 = vld [vmem:[%s291 + $0x28] sm:$0x1]
      %s1236 = scalar_lea.vmem %s4, 128
      %v1237 = vld [vmem:[%s1236] sm:$0xf]
      %v1238 = vld [vmem:[%s1236 + $0x4] sm:$0xf]
      %v1239 = vld [vmem:[%s1236 + $0x8] sm:$0xf]
      %v1240 = vld [vmem:[%s1236 + $0xc] sm:$0xf]
      %v1251 = vunpack.c.l.b16 %v1226
      %v1252 = vunpack.c.l.b16 %v1227
      %v1253 = vunpack.c.l.b16 %v1228
      %v1254 = vunpack.c.l.b16 %v1229
      %v1255 = vunpack.c.l.b16 %v1230
      %v1256 = vunpack.c.l.b16 %v1231
      %v1257 = vunpack.c.l.b16 %v1232
      %v1258 = vunpack.c.l.b16 %v1233
      %v1259 = vunpack.c.l.b16 %v1234
      %v1260 = vunpack.c.l.b16 %v1235
      %v1261 = vpack.c.b16 %v1252, %v1251
      %v1262 = vpack.c.b16 %v1254, %v1253
      %v1263 = vpack.c.b16 %v1256, %v1255
      %v1264 = vpack.c.b16 %v1258, %v1257
      %v1265 = vpack.c.b16 %v1260, %v1259
      %vm1266 = vcmask 1046528
      %v1267 = vrot.slane %v1261, 1
      %v1268 = vrot.slane %v1262, 1
      %v1269 = vsel %vm1266, %v1267, %v1268
      %v1270 = vrot.slane %v1263, 1
      %v1271 = vsel %vm1266, %v1268, %v1270
      %v1272 = vrot.slane %v1264, 1
      %v1273 = vsel %vm1266, %v1270, %v1272
      %v1274 = vrot.slane %v1265, 1
      %v1275 = vsel %vm1266, %v1272, %v1274
      %v1280 = vunpack.c.l.b16 %v1237
      %v1281 = vunpack.c.l.b16 %v1238
      %v1282 = vunpack.c.l.b16 %v1239
      %v1283 = vunpack.c.l.b16 %v1240
      %v1284 = vpack.c.b16 %v1281, %v1280
      %v1285 = vpack.c.b16 %v1283, %v1282
      %v1289 = vsel %vm375, %v1269, 0
      %v1292 = vsel %vm375, %v1271, 0
      %v1295 = vsel %vm375, %v1273, 0
      %v1298 = vsel %vm375, %v1275, 0
      %v1301 = vsel %vm375, %v1274, 0
      %1303 = vmatpush.bf16.msra.mxu0 0
      %1304 = vmatpush.bf16.msra.mxu0 0
      %1305 = vmatpush.bf16.msra.mxu0 0
      %1306 = vmatpush.bf16.msra.mxu0 0
      %1307 = vmatpush.bf16.msra.mxu0 0
      %1308 = vmatpush.bf16.msra.mxu0 0
      %1309 = vmatpush.bf16.msra.mxu0 %v1285
      %1310 = vmatpush.bf16.msra.mxu0 %v1284
      %1311 = vmatmul.bf16.gmra.mxu0 %v1289
      %v1312 = vpop.f32.mrf.mxu0
      %v1313 = vadd.f32 0.0, %v1312
      %v1314 = vpop.f32.mrf.mxu0
      %v1315 = vadd.f32 0.0, %v1314
      %1316 = vmatmul.bf16.gmra.mxu0 %v1292
      %v1317 = vpop.f32.mrf.mxu0
      %v1318 = vadd.f32 0.0, %v1317
      %v1319 = vpop.f32.mrf.mxu0
      %v1320 = vadd.f32 0.0, %v1319
      %1321 = vmatmul.bf16.gmra.mxu0 %v1295
      %v1322 = vpop.f32.mrf.mxu0
      %v1323 = vadd.f32 0.0, %v1322
      %v1324 = vpop.f32.mrf.mxu0
      %v1325 = vadd.f32 0.0, %v1324
      %1326 = vmatmul.bf16.gmra.mxu0 %v1298
      %v1327 = vpop.f32.mrf.mxu0
      %v1328 = vadd.f32 0.0, %v1327
      %v1329 = vpop.f32.mrf.mxu0
      %v1330 = vadd.f32 0.0, %v1329
      %1331 = vmatmul.bf16.gmra.mxu0 %v1301
      %v1332 = vpop.f32.mrf.mxu0
      %v1333 = vadd.f32 0.0, %v1332
      %v1334 = vpop.f32.mrf.mxu0
      %1335 = vdwg.mxu0
      %v1336 = vadd.f32 %v1217, %v1313
      %v1337 = vadd.f32 %v1218, %v1315
      %v1338 = vadd.f32 %v1219, %v1318
      %v1339 = vadd.f32 %v1220, %v1320
      %v1340 = vadd.f32 %v1221, %v1323
      %v1341 = vadd.f32 %v1222, %v1325
      %v1342 = vadd.f32 %v1223, %v1328
      %v1343 = vadd.f32 %v1224, %v1330
      %v1344 = vadd.f32 %v1225, %v1333
      %v1345 = vld [vmem:[%s5] sm:$0x1]
      %v1347 = vperm.slane %v1345, 0
      %v1349 = vadd.f32 %v1336, %v1347
      %v1350 = vadd.f32 %v1337, %v1347
      %v1351 = vadd.f32 %v1338, %v1347
      %v1352 = vadd.f32 %v1339, %v1347
      %v1353 = vadd.f32 %v1340, %v1347
      %v1354 = vadd.f32 %v1341, %v1347
      %v1355 = vadd.f32 %v1342, %v1347
      %v1356 = vadd.f32 %v1343, %v1347
      %v1357 = vadd.f32 %v1344, %v1347
      %vm1358 = vcmp.ge.f32.partialorder %v1349, 0.0
      %vm1359 = vcmp.ge.f32.partialorder %v1350, 0.0
      %vm1360 = vcmp.ge.f32.partialorder %v1351, 0.0
      %vm1361 = vcmp.ge.f32.partialorder %v1352, 0.0
      %vm1362 = vcmp.ge.f32.partialorder %v1353, 0.0
      %vm1363 = vcmp.ge.f32.partialorder %v1354, 0.0
      %vm1364 = vcmp.ge.f32.partialorder %v1355, 0.0
      %vm1365 = vcmp.ge.f32.partialorder %v1356, 0.0
      %vm1366 = vcmp.ge.f32.partialorder %v1357, 0.0
      %v1367 = vmul.f32 %v1349, 0.2
      %v1368 = vmul.f32 %v1350, 0.2
      %v1369 = vmul.f32 %v1351, 0.2
      %v1370 = vmul.f32 %v1352, 0.2
      %v1371 = vmul.f32 %v1353, 0.2
      %v1372 = vmul.f32 %v1354, 0.2
      %v1373 = vmul.f32 %v1355, 0.2
      %v1374 = vmul.f32 %v1356, 0.2
      %v1375 = vmul.f32 %v1357, 0.2
      %v1376 = vsel %vm1358, %v1349, %v1367
      %v1377 = vsel %vm1359, %v1350, %v1368
      %v1378 = vsel %vm1360, %v1351, %v1369
      %v1379 = vsel %vm1361, %v1352, %v1370
      %v1380 = vsel %vm1362, %v1353, %v1371
      %v1381 = vsel %vm1363, %v1354, %v1372
      %v1382 = vsel %vm1364, %v1355, %v1373
      %v1383 = vsel %vm1365, %v1356, %v1374
      %v1384 = vsel %vm1366, %v1357, %v1375
      %v1385 = vpack.c.bf16 %v1376, %v1376
      %v1386 = vpack.c.bf16 %v1377, %v1377
      %v1387 = vpack.c.bf16 %v1378, %v1378
      %v1388 = vpack.c.bf16 %v1379, %v1379
      %v1389 = vpack.c.bf16 %v1380, %v1380
      %v1390 = vpack.c.bf16 %v1381, %v1381
      %v1391 = vpack.c.bf16 %v1382, %v1382
      %v1392 = vpack.c.bf16 %v1383, %v1383
      %v1393 = vpack.c.bf16 %v1384, %v1384
      %vm1394 = vcmask 257024
      %1395 = vst.msk [vmem:[%s311] sm:$0xf] %vm1394, %v1385
      %1396 = vst.msk [vmem:[%s311 + $0x4] sm:$0xf] %vm1394, %v1386
      %1397 = vst.msk [vmem:[%s311 + $0x8] sm:$0xf] %vm1394, %v1387
      %1398 = vst.msk [vmem:[%s311 + $0xc] sm:$0xf] %vm1394, %v1388
      %1399 = vst.msk [vmem:[%s311 + $0x10] sm:$0xf] %vm1394, %v1389
      %1400 = vst.msk [vmem:[%s311 + $0x14] sm:$0xf] %vm1394, %v1390
      %1401 = vst.msk [vmem:[%s311 + $0x18] sm:$0xf] %vm1394, %v1391
      %1402 = vst.msk [vmem:[%s311 + $0x1c] sm:$0xf] %vm1394, %v1392
      %vm1403 = vcmask 257024
      %vm1404 = vsmask.f32 3328
      %vm1405 = vmand %vm1403, %vm1404
      %v1406 = vld [vmem:[%s311 + $0x20] sm:$0xf]
      %v1407 = vsel %vm1405, %v1393, %v1406
      %1408 = vst [vmem:[%s311 + $0x20] sm:$0xf] %v1407
      %p1409 = scmp.lt.s32.totalorder %s17, 1
      %s1410 = scalar_select %p1409, %s17, 1
      %s1411 = smul.addr %s1410, 9
      %s1412 = smul.addr %s1411, 4
      %s1413 = scalar_lea.vmem %s6, %s1412
      // Predicated region
      $region45: #{discriminator_forward.9} parent=43 // pred_check
        %p1414 = pneg %p181
      $region46: #{discriminator_forward.9} parent=43 // pred_check_branch
        %1416 = sbr.rel (%p1414) target = $region48
      $region47: #{discriminator_forward.9} parent=43 // pred_region
        _
      $region48: #{discriminator_forward.9} parent=43 // pred_fallthru
        _
    $region44: #{discriminator_forward.9} parent=5 // pred_fallthru
      _
    %p1417 = scmp.le.s32.totalorder 2, %s12
    // Predicated region
    $region49: #{discriminator_forward.9} parent=5 // pred_check
      %p1418 = pneg %p1417
    $region50: #{discriminator_forward.9} parent=5 // pred_check_branch
      %1420 = sbr.rel (%p1418) target = $region52
    $region51: #{discriminator_forward.9} parent=5 // pred_region
      %s1421 = ssub.s32 %s12, 2
      // Predicated region
      $region53: #{discriminator_forward.9} parent=51 // pred_check
        %p1422 = pneg %p187
      $region54: #{discriminator_forward.9} parent=51 // pred_check_branch
        %1424 = sbr.rel (%p1422) target = $region56
      $region55: #{discriminator_forward.9} parent=51 // pred_region
        %p1425 = scmp.lt.s32.totalorder %s18, 1
        %s1426 = scalar_select %p1425, %s18, 1
        %s1427 = smul.addr %s1426, 9
        %s1428 = smul.addr %s1427, 4
        %s1429 = scalar_lea.vmem %s6, %s1428
      $region56: #{discriminator_forward.9} parent=51 // pred_fallthru
        _
    $region52: #{discriminator_forward.9} parent=5 // pred_fallthru
      _
  $region6: #{discriminator_forward.9} parent=0 // loop_footer
    %s16 = sadd.s32 1, %s12
  $region7: #{discriminator_forward.9} parent=0 // loop_footer_branch
    %11 = sbr.rel target = $region3
  $region8: #{discriminator_forward.9} parent=0 // loop_exit
    _

// kernel: discriminator_forward.8
$region0: #{discriminator_forward.8}
  #allocation0 [shape = 'u32[]', space=smem, size = 0x4, offset = 0x4, fixed_abs, tag = 'smem constant byte address 0x4 - core index']
  #allocation1 [shape = 'u32[72,128]{1,0:T(1,128)}', space=vmem, size = 0x9000, scoped, tag = 'internal scratch']
  %s0 = inlined_call_operand.vmem [shape: bf16[2,324,16], index: 0, kind: input, shape index: {}]
  %s1 = inlined_call_operand.vmem [shape: bf16[9,16,32], index: 1, kind: input, shape index: {}]
  %s2 = inlined_call_operand.vmem [shape: f32[1,32], index: 2, kind: input, shape index: {}]
  %s3 = inlined_call_operand.vmem [shape: bf16[2,286,32], index: 3, kind: output, shape index: {}]
  %s4 = sld [smem:[#allocation0]]
  $region45: #{discriminator_forward.8} parent=0
    _
  %s6 = ssub.s32 1, %s4
  %s7 = scalar_select 0, %s6, %s4
  loop: start=0, step=1, limit=4
  $region2: #{discriminator_forward.8} parent=0 // loop_pre_header
    _
  $region3: #{discriminator_forward.8} parent=0 // loop_header
    %s9 = sphi 0, %s13
    %p10 = scmp.ge.s32.totalorder %s9, 4
    %s19 = sphi 0, %s21
    %s22 = sphi 0, %s19
    %s23 = sphi 0, %s22
    %s39 = sphi 0, %s23
    %s43 = sphi 0, %s43
    %s45 = sphi 0, %s43
    %s46 = sphi 0, %s45
    %s60 = sphi 0, %s46
    %s64 = sphi 0, %s64
    %s66 = sphi 0, %s64
    %s67 = sphi 0, %s66
    %s81 = sphi 0, %s67
    %s87 = sphi 0, %s89
    %s90 = sphi 0, %s87
    %s91 = sphi 0, %s90
    %s107 = sphi 0, %s91
  $region4: #{discriminator_forward.8} parent=0 // loop_header_branch
    %12 = sbr.rel (%p10) target = $region8
  $region5: #{discriminator_forward.8} parent=0 // loop_body
    %s14 = ssub.s32 %s9, 1
    %s15 = ssub.s32 %s9, 2
    %s16 = sadd.s32 %s9, 1
    %s17 = ssub.s32 %s9, %s16
    %p18 = scmp.eq.s32.totalorder %s17, 0
    %s20 = sadd.s32 %s19, 1
    %s21 = scalar_select %p18, %s19, %s20
    %p24 = pneg %p18
    %p25 = scmp.eq.s32.totalorder %s9, 1
    %p26 = por %p24, %p25
    %p27 = scmp.ne.s32.totalorder %s19, %s22
    %p28 = scmp.eq.s32.totalorder %s9, 0
    %p29 = por %p27, %p28
    %p30 = scmp.ne.s32.totalorder %s19, %s22
    %p31 = scmp.eq.s32.totalorder %s14, 1
    %p32 = por %p30, %p31
    %p33 = scmp.ne.s32.totalorder %s22, %s23
    %p34 = scmp.eq.s32.totalorder %s14, 0
    %p35 = por %p33, %p34
    %p36 = scmp.ne.s32.totalorder %s22, %s23
    %p37 = scmp.eq.s32.totalorder %s15, 1
    %p38 = por %p36, %p37
    %p40 = scmp.ne.s32.totalorder %s23, %s39
    %p41 = scmp.eq.s32.totalorder %s15, 0
    %p42 = por %p40, %p41
    %s44 = sadd.s32 %s43, 1
    %p47 = scmp.eq.s32.totalorder %s9, 1
    %p48 = scmp.ne.s32.totalorder %s43, %s45
    %p49 = scmp.eq.s32.totalorder %s9, 0
    %p50 = por %p48, %p49
    %p51 = scmp.ne.s32.totalorder %s43, %s45
    %p52 = scmp.eq.s32.totalorder %s14, 1
    %p53 = por %p51, %p52
    %p54 = scmp.ne.s32.totalorder %s45, %s46
    %p55 = scmp.eq.s32.totalorder %s14, 0
    %p56 = por %p54, %p55
    %p57 = scmp.ne.s32.totalorder %s45, %s46
    %p58 = scmp.eq.s32.totalorder %s15, 1
    %p59 = por %p57, %p58
    %p61 = scmp.ne.s32.totalorder %s46, %s60
    %p62 = scmp.eq.s32.totalorder %s15, 0
    %p63 = por %p61, %p62
    %s65 = sadd.s32 %s64, 1
    %p68 = scmp.eq.s32.totalorder %s9, 1
    %p69 = scmp.ne.s32.totalorder %s64, %s66
    %p70 = scmp.eq.s32.totalorder %s9, 0
    %p71 = por %p69, %p70
    %p72 = scmp.ne.s32.totalorder %s64, %s66
    %p73 = scmp.eq.s32.totalorder %s14, 1
    %p74 = por %p72, %p73
    %p75 = scmp.ne.s32.totalorder %s66, %s67
    %p76 = scmp.eq.s32.totalorder %s14, 0
    %p77 = por %p75, %p76
    %p78 = scmp.ne.s32.totalorder %s66, %s67
    %p79 = scmp.eq.s32.totalorder %s15, 1
    %p80 = por %p78, %p79
    %p82 = scmp.ne.s32.totalorder %s67, %s81
    %p83 = scmp.eq.s32.totalorder %s15, 0
    %p84 = por %p82, %p83
    %s85 = ssub.s32 %s9, %s16
    %p86 = scmp.eq.s32.totalorder %s85, 0
    %s88 = sadd.s32 %s87, 1
    %s89 = scalar_select %p86, %s87, %s88
    %p92 = pneg %p86
    %p93 = scmp.eq.s32.totalorder %s9, 1
    %p94 = por %p92, %p93
    %p95 = scmp.ne.s32.totalorder %s87, %s90
    %p96 = scmp.eq.s32.totalorder %s9, 0
    %p97 = por %p95, %p96
    %p98 = scmp.ne.s32.totalorder %s87, %s90
    %p99 = scmp.eq.s32.totalorder %s14, 1
    %p100 = por %p98, %p99
    %p101 = scmp.ne.s32.totalorder %s90, %s91
    %p102 = scmp.eq.s32.totalorder %s14, 0
    %p103 = por %p101, %p102
    %p104 = scmp.ne.s32.totalorder %s90, %s91
    %p105 = scmp.eq.s32.totalorder %s15, 1
    %p106 = por %p104, %p105
    %p108 = scmp.ne.s32.totalorder %s91, %s107
    %p109 = scmp.eq.s32.totalorder %s15, 0
    %p110 = por %p108, %p109
    %p111 = scmp.le.s32.totalorder 1, %s9
    %p112 = scmp.lt.s32.totalorder %s9, 3
    %p113 = pnand %p111, %p112
    %p114 = pneg %p113
    // Predicated region
    $region9: #{discriminator_forward.8} parent=5 // pred_check
      _
    $region10: #{discriminator_forward.8} parent=5 // pred_check_branch
      %116 = sbr.rel (%p113) target = $region12
    $region11: #{discriminator_forward.8} parent=5 // pred_region
      %s117 = ssub.s32 %s9, 1
      // Predicated region
      $region13: #{discriminator_forward.8} parent=11 // pred_check
        %p118 = pneg %p56
      $region14: #{discriminator_forward.8} parent=11 // pred_check_branch
        %120 = sbr.rel (%p118) target = $region16
      $region15: #{discriminator_forward.8} parent=11 // pred_region
        _
      $region16: #{discriminator_forward.8} parent=11 // pred_fallthru
        _
      // Predicated region
      $region17: #{discriminator_forward.8} parent=11 // pred_check
        %p121 = pneg %p77
      $region18: #{discriminator_forward.8} parent=11 // pred_check_branch
        %123 = sbr.rel (%p121) target = $region20
      $region19: #{discriminator_forward.8} parent=11 // pred_region
        _
      $region20: #{discriminator_forward.8} parent=11 // pred_fallthru
        _
    $region12: #{discriminator_forward.8} parent=5 // pred_fallthru
      _
    %p124 = scmp.lt.s32.totalorder %s9, 2
    // Predicated region
    $region21: #{discriminator_forward.8} parent=5 // pred_check
      %p125 = pneg %p124
    $region22: #{discriminator_forward.8} parent=5 // pred_check_branch
      %127 = sbr.rel (%p125) target = $region24
    $region23: #{discriminator_forward.8} parent=5 // pred_region
      // Predicated region
      $region25: #{discriminator_forward.8} parent=23 // pred_check
        %p128 = pneg %p29
      $region26: #{discriminator_forward.8} parent=23 // pred_check_branch
        %130 = sbr.rel (%p128) target = $region28
      $region27: #{discriminator_forward.8} parent=23 // pred_region
        %p131 = scmp.lt.s32.totalorder %s9, 1
        %s132 = scalar_select %p131, %s9, 1
        %s133 = smul.addr %s132, 41
        %s134 = smul.addr %s133, 4
        %s135 = scalar_lea.vmem %s0, %s134
      $region28: #{discriminator_forward.8} parent=23 // pred_fallthru
        _
    $region24: #{discriminator_forward.8} parent=5 // pred_fallthru
      _
    %p136 = scmp.le.s32.totalorder 1, %s9
    %p137 = scmp.lt.s32.totalorder %s9, 3
    %p138 = pnand %p136, %p137
    %p139 = pneg %p138
    // Predicated region
    $region29: #{discriminator_forward.8} parent=5 // pred_check
      _
    $region30: #{discriminator_forward.8} parent=5 // pred_check_branch
      %141 = sbr.rel (%p138) target = $region32
    $region31: #{discriminator_forward.8} parent=5 // pred_region
      %s142 = ssub.s32 %s9, 1
      %p143 = scmp.lt.s32.totalorder %s14, 1
      %s144 = scalar_select %p143, %s14, 1
      %s145 = smul.addr %s144, 41
      %s146 = smul.addr %s145, 4
      %s147 = scalar_lea.vmem %s0, %s146
      %p148 = pneg %p35
      %p149 = pneg %p32
      %p150 = pneg %p56
      %p151 = pneg %p53
      %p152 = pneg %p77
      %p153 = pneg %p74
      %p154 = pneg %p103
      %p155 = pneg %p100
      %p156 = scmp.lt.s32.totalorder %s14, 1
      %s157 = scalar_select %p156, %s14, 1
      %s158 = smul.addr %s157, 36
      %s159 = smul.addr %s158, 4
      %s160 = scalar_lea.vmem %s3, %s159
      %p161 = scmp.lt.s32.totalorder %s14, 1
      %s162 = scalar_select %p161, %s14, 1
      %s163 = smul.addr %s162, 41
      %s164 = smul.addr %s163, 4
      %s165 = scalar_lea.vmem %s0, %s164
      %p166 = scmp.lt.s32.totalorder %s14, 1
      %s167 = scalar_select %p166, %s14, 1
      %s168 = smul.addr %s167, 36
      %s169 = smul.addr %s168, 4
      %s170 = scalar_lea.vmem %s3, %s169
      %v172 = vld [vmem:[%s165] sm:$0xf]
      %v173 = vld [vmem:[%s165 + $0x4] sm:$0xf]
      %v174 = vld [vmem:[%s165 + $0x8] sm:$0xf]
      %v175 = vld [vmem:[%s165 + $0xc] sm:$0xf]
      %v176 = vld [vmem:[%s165 + $0x10] sm:$0xf]
      %v177 = vld [vmem:[%s165 + $0x14] sm:$0xf]
      %v178 = vld [vmem:[%s165 + $0x18] sm:$0xf]
      %v179 = vld [vmem:[%s165 + $0x1c] sm:$0xf]
      %v180 = vld [vmem:[%s165 + $0x20] sm:$0xf]
      %v181 = vld [vmem:[%s165 + $0x24] sm:$0xf]
      %v182 = vld [vmem:[%s165 + $0x28] sm:$0xf]
      %v183 = vld [vmem:[%s165 + $0x2c] sm:$0xf]
      %v184 = vld [vmem:[%s165 + $0x30] sm:$0xf]
      %v185 = vld [vmem:[%s165 + $0x34] sm:$0xf]
      %v186 = vld [vmem:[%s165 + $0x38] sm:$0xf]
      %v187 = vld [vmem:[%s165 + $0x3c] sm:$0xf]
      %v188 = vld [vmem:[%s165 + $0x40] sm:$0xf]
      %v189 = vld [vmem:[%s165 + $0x44] sm:$0xf]
      %v190 = vld [vmem:[%s165 + $0x48] sm:$0xf]
      %v191 = vld [vmem:[%s165 + $0x4c] sm:$0xf]
      %v192 = vld [vmem:[%s165 + $0x50] sm:$0xf]
      %v193 = vld [vmem:[%s165 + $0x54] sm:$0xf]
      %v194 = vld [vmem:[%s165 + $0x58] sm:$0xf]
      %v195 = vld [vmem:[%s165 + $0x5c] sm:$0xf]
      %v196 = vld [vmem:[%s165 + $0x60] sm:$0xf]
      %v197 = vld [vmem:[%s165 + $0x64] sm:$0xf]
      %v198 = vld [vmem:[%s165 + $0x68] sm:$0xf]
      %v199 = vld [vmem:[%s165 + $0x6c] sm:$0xf]
      %v200 = vld [vmem:[%s165 + $0x70] sm:$0xf]
      %v201 = vld [vmem:[%s165 + $0x74] sm:$0xf]
      %v202 = vld [vmem:[%s165 + $0x78] sm:$0xf]
      %v203 = vld [vmem:[%s165 + $0x7c] sm:$0xf]
      %v204 = vld [vmem:[%s165 + $0x80] sm:$0xf]
      %v205 = vld [vmem:[%s165 + $0x84] sm:$0xf]
      %v206 = vld [vmem:[%s165 + $0x88] sm:$0xf]
      %v207 = vld [vmem:[%s165 + $0x8c] sm:$0x7]
      %v208 = vld [vmem:[%s1] sm:$0xf]
      %v209 = vld [vmem:[%s1 + $0x4] sm:$0xf]
      %v210 = vld [vmem:[%s165 + $0x8c] sm:$0xf]
      %s211 = scalar_lea.vmem %s1, 8
      %v212 = vld [vmem:[%s211] sm:$0xf]
      %v213 = vld [vmem:[%s211 + $0x4] sm:$0xf]
      %v250 = vunpack.c.l.b16 %v172
      %v251 = vunpack.c.l.b16 %v173
      %v252 = vunpack.c.l.b16 %v174
      %v253 = vunpack.c.l.b16 %v175
      %v254 = vunpack.c.l.b16 %v176
      %v255 = vunpack.c.l.b16 %v177
      %v256 = vunpack.c.l.b16 %v178
      %v257 = vunpack.c.l.b16 %v179
      %v258 = vunpack.c.l.b16 %v180
      %v259 = vunpack.c.l.b16 %v181
      %v260 = vunpack.c.l.b16 %v182
      %v261 = vunpack.c.l.b16 %v183
      %v262 = vunpack.c.l.b16 %v184
      %v263 = vunpack.c.l.b16 %v185
      %v264 = vunpack.c.l.b16 %v186
      %v265 = vunpack.c.l.b16 %v187
      %v266 = vunpack.c.l.b16 %v188
      %v267 = vunpack.c.l.b16 %v189
      %v268 = vunpack.c.l.b16 %v190
      %v269 = vunpack.c.l.b16 %v191
      %v270 = vunpack.c.l.b16 %v192
      %v271 = vunpack.c.l.b16 %v193
      %v272 = vunpack.c.l.b16 %v194
      %v273 = vunpack.c.l.b16 %v195
      %v274 = vunpack.c.l.b16 %v196
      %v275 = vunpack.c.l.b16 %v197
      %v276 = vunpack.c.l.b16 %v198
      %v277 = vunpack.c.l.b16 %v199
      %v278 = vunpack.c.l.b16 %v200
      %v279 = vunpack.c.l.b16 %v201
      %v280 = vunpack.c.l.b16 %v202
      %v281 = vunpack.c.l.b16 %v203
      %v282 = vunpack.c.l.b16 %v204
      %v283 = vunpack.c.l.b16 %v205
      %v284 = vunpack.c.l.b16 %v206
      %v285 = vunpack.c.l.b16 %v210
      %v286 = vpack.c.b16 %v251, %v250
      %v287 = vpack.c.b16 %v253, %v252
      %v288 = vpack.c.b16 %v255, %v254
      %v289 = vpack.c.b16 %v257, %v256
      %v290 = vpack.c.b16 %v259, %v258
      %v291 = vpack.c.b16 %v261, %v260
      %v292 = vpack.c.b16 %v263, %v262
      %v293 = vpack.c.b16 %v265, %v264
      %v294 = vpack.c.b16 %v267, %v266
      %v295 = vpack.c.b16 %v269, %v268
      %v296 = vpack.c.b16 %v271, %v270
      %v297 = vpack.c.b16 %v273, %v272
      %v298 = vpack.c.b16 %v275, %v274
      %v299 = vpack.c.b16 %v277, %v276
      %v300 = vpack.c.b16 %v279, %v278
      %v301 = vpack.c.b16 %v281, %v280
      %v302 = vpack.c.b16 %v283, %v282
      %v303 = vpack.c.b16 %v285, %v284
      %vm304 = vsmask.f32 7424
      %v306 = vshrl.u32 %v286, 16
      %v308 = vshll.u32 %v286, 16
      %v310 = vrot.slane %v308, 1
      %v311 = vor.u32 %v306, %v310
      %v313 = vshll.u32 %v287, 16
      %v315 = vrot.slane %v313, 1
      %v316 = vsel %vm304, %v311, %v315
      %v317 = vshrl.u32 %v287, 16
      %v319 = vor.u32 %v317, %v315
      %v321 = vshll.u32 %v288, 16
      %v323 = vrot.slane %v321, 1
      %v324 = vsel %vm304, %v319, %v323
      %v325 = vshrl.u32 %v288, 16
      %v327 = vor.u32 %v325, %v323
      %v329 = vshll.u32 %v289, 16
      %v331 = vrot.slane %v329, 1
      %v332 = vsel %vm304, %v327, %v331
      %v333 = vshrl.u32 %v289, 16
      %v335 = vor.u32 %v333, %v331
      %v337 = vshll.u32 %v290, 16
      %v339 = vrot.slane %v337, 1
      %v340 = vsel %vm304, %v335, %v339
      %v341 = vshrl.u32 %v290, 16
      %v343 = vor.u32 %v341, %v339
      %v345 = vshll.u32 %v291, 16
      %v347 = vrot.slane %v345, 1
      %v348 = vsel %vm304, %v343, %v347
      %v349 = vshrl.u32 %v291, 16
      %v351 = vor.u32 %v349, %v347
      %v353 = vshll.u32 %v292, 16
      %v355 = vrot.slane %v353, 1
      %v356 = vsel %vm304, %v351, %v355
      %v357 = vshrl.u32 %v292, 16
      %v359 = vor.u32 %v357, %v355
      %v361 = vshll.u32 %v293, 16
      %v363 = vrot.slane %v361, 1
      %v364 = vsel %vm304, %v359, %v363
      %v365 = vshrl.u32 %v293, 16
      %v367 = vor.u32 %v365, %v363
      %v369 = vshll.u32 %v294, 16
      %v371 = vrot.slane %v369, 1
      %v372 = vsel %vm304, %v367, %v371
      %v373 = vshrl.u32 %v294, 16
      %v375 = vor.u32 %v373, %v371
      %v377 = vshll.u32 %v295, 16
      %v379 = vrot.slane %v377, 1
      %v380 = vsel %vm304, %v375, %v379
      %v381 = vshrl.u32 %v295, 16
      %v383 = vor.u32 %v381, %v379
      %v385 = vshll.u32 %v296, 16
      %v387 = vrot.slane %v385, 1
      %v388 = vsel %vm304, %v383, %v387
      %v389 = vshrl.u32 %v296, 16
      %v391 = vor.u32 %v389, %v387
      %v393 = vshll.u32 %v297, 16
      %v395 = vrot.slane %v393, 1
      %v396 = vsel %vm304, %v391, %v395
      %v397 = vshrl.u32 %v297, 16
      %v399 = vor.u32 %v397, %v395
      %v401 = vshll.u32 %v298, 16
      %v403 = vrot.slane %v401, 1
      %v404 = vsel %vm304, %v399, %v403
      %v405 = vshrl.u32 %v298, 16
      %v407 = vor.u32 %v405, %v403
      %v409 = vshll.u32 %v299, 16
      %v411 = vrot.slane %v409, 1
      %v412 = vsel %vm304, %v407, %v411
      %v413 = vshrl.u32 %v299, 16
      %v415 = vor.u32 %v413, %v411
      %v417 = vshll.u32 %v300, 16
      %v419 = vrot.slane %v417, 1
      %v420 = vsel %vm304, %v415, %v419
      %v421 = vshrl.u32 %v300, 16
      %v423 = vor.u32 %v421, %v419
      %v425 = vshll.u32 %v301, 16
      %v427 = vrot.slane %v425, 1
      %v428 = vsel %vm304, %v423, %v427
      %v429 = vshrl.u32 %v301, 16
      %v431 = vor.u32 %v429, %v427
      %v433 = vshll.u32 %v302, 16
      %v435 = vrot.slane %v433, 1
      %v436 = vsel %vm304, %v431, %v435
      %v437 = vshrl.u32 %v302, 16
      %v439 = vor.u32 %v437, %v435
      %v441 = vshll.u32 %v303, 16
      %v443 = vrot.slane %v441, 1
      %v444 = vsel %vm304, %v439, %v443
      %v445 = vshrl.u32 %v303, 16
      %v447 = vor.u32 %v445, %v443
      %v450 = vunpack.c.l.b16 %v212
      %v451 = vunpack.c.l.b16 %v213
      %v452 = vpack.c.b16 %v451, %v450
      %vm454 = vcmask 130048
      %v456 = vsel %vm454, %v316, 0
      %v459 = vsel %vm454, %v324, 0
      %v462 = vsel %vm454, %v332, 0
      %v465 = vsel %vm454, %v340, 0
      %v468 = vsel %vm454, %v348, 0
      %v471 = vsel %vm454, %v356, 0
      %v474 = vsel %vm454, %v364, 0
      %v477 = vsel %vm454, %v372, 0
      %v480 = vsel %vm454, %v380, 0
      %v483 = vsel %vm454, %v388, 0
      %v486 = vsel %vm454, %v396, 0
      %v489 = vsel %vm454, %v404, 0
      %v492 = vsel %vm454, %v412, 0
      %v495 = vsel %vm454, %v420, 0
      %v498 = vsel %vm454, %v428, 0
      %v501 = vsel %vm454, %v436, 0
      %v504 = vsel %vm454, %v444, 0
      %v507 = vsel %vm454, %v447, 0
      %509 = vmatpush.bf16.msra.mxu0 0
      %510 = vmatpush.bf16.msra.mxu0 0
      %511 = vmatpush.bf16.msra.mxu0 0
      %512 = vmatpush.bf16.msra.mxu0 0
      %513 = vmatpush.bf16.msra.mxu0 0
      %514 = vmatpush.bf16.msra.mxu0 0
      %515 = vmatpush.bf16.msra.mxu0 0
      %516 = vmatpush.bf16.msra.mxu0 %v452
      %517 = vmatmul.bf16.gmra.mxu0 %v456
      %v518 = vpop.f32.mrf.mxu0
      %v519 = vadd.f32 0.0, %v518
      %v520 = vpop.f32.mrf.mxu0
      %v521 = vadd.f32 0.0, %v520
      %522 = vmatmul.bf16.gmra.mxu0 %v459
      %v523 = vpop.f32.mrf.mxu0
      %v524 = vadd.f32 0.0, %v523
      %v525 = vpop.f32.mrf.mxu0
      %v526 = vadd.f32 0.0, %v525
      %527 = vmatmul.bf16.gmra.mxu0 %v462
      %v528 = vpop.f32.mrf.mxu0
      %v529 = vadd.f32 0.0, %v528
      %v530 = vpop.f32.mrf.mxu0
      %v531 = vadd.f32 0.0, %v530
      %532 = vmatmul.bf16.gmra.mxu0 %v465
      %v533 = vpop.f32.mrf.mxu0
      %v534 = vadd.f32 0.0, %v533
      %v535 = vpop.f32.mrf.mxu0
      %v536 = vadd.f32 0.0, %v535
      %537 = vmatmul.bf16.gmra.mxu0 %v468
      %v538 = vpop.f32.mrf.mxu0
      %v539 = vadd.f32 0.0, %v538
      %v540 = vpop.f32.mrf.mxu0
      %v541 = vadd.f32 0.0, %v540
      %542 = vmatmul.bf16.gmra.mxu0 %v471
      %v543 = vpop.f32.mrf.mxu0
      %v544 = vadd.f32 0.0, %v543
      %v545 = vpop.f32.mrf.mxu0
      %v546 = vadd.f32 0.0, %v545
      %547 = vmatmul.bf16.gmra.mxu0 %v474
      %v548 = vpop.f32.mrf.mxu0
      %v549 = vadd.f32 0.0, %v548
      %v550 = vpop.f32.mrf.mxu0
      %v551 = vadd.f32 0.0, %v550
      %552 = vmatmul.bf16.gmra.mxu0 %v477
      %v553 = vpop.f32.mrf.mxu0
      %v554 = vadd.f32 0.0, %v553
      %v555 = vpop.f32.mrf.mxu0
      %v556 = vadd.f32 0.0, %v555
      %557 = vmatmul.bf16.gmra.mxu0 %v480
      %v558 = vpop.f32.mrf.mxu0
      %v559 = vadd.f32 0.0, %v558
      %v560 = vpop.f32.mrf.mxu0
      %v561 = vadd.f32 0.0, %v560
      %562 = vmatmul.bf16.gmra.mxu0 %v483
      %v563 = vpop.f32.mrf.mxu0
      %v564 = vadd.f32 0.0, %v563
      %v565 = vpop.f32.mrf.mxu0
      %v566 = vadd.f32 0.0, %v565
      %567 = vmatmul.bf16.gmra.mxu0 %v486
      %v568 = vpop.f32.mrf.mxu0
      %v569 = vadd.f32 0.0, %v568
      %v570 = vpop.f32.mrf.mxu0
      %v571 = vadd.f32 0.0, %v570
      %572 = vmatmul.bf16.gmra.mxu0 %v489
      %v573 = vpop.f32.mrf.mxu0
      %v574 = vadd.f32 0.0, %v573
      %v575 = vpop.f32.mrf.mxu0
      %v576 = vadd.f32 0.0, %v575
      %577 = vmatmul.bf16.gmra.mxu0 %v492
      %v578 = vpop.f32.mrf.mxu0
      %v579 = vadd.f32 0.0, %v578
      %v580 = vpop.f32.mrf.mxu0
      %v581 = vadd.f32 0.0, %v580
      %582 = vmatmul.bf16.gmra.mxu0 %v495
      %v583 = vpop.f32.mrf.mxu0
      %v584 = vadd.f32 0.0, %v583
      %v585 = vpop.f32.mrf.mxu0
      %v586 = vadd.f32 0.0, %v585
      %587 = vmatmul.bf16.gmra.mxu0 %v498
      %v588 = vpop.f32.mrf.mxu0
      %v589 = vadd.f32 0.0, %v588
      %v590 = vpop.f32.mrf.mxu0
      %v591 = vadd.f32 0.0, %v590
      %592 = vmatmul.bf16.gmra.mxu0 %v501
      %v593 = vpop.f32.mrf.mxu0
      %v594 = vadd.f32 0.0, %v593
      %v595 = vpop.f32.mrf.mxu0
      %v596 = vadd.f32 0.0, %v595
      %597 = vmatmul.bf16.gmra.mxu0 %v504
      %v598 = vpop.f32.mrf.mxu0
      %v599 = vadd.f32 0.0, %v598
      %v600 = vpop.f32.mrf.mxu0
      %v601 = vadd.f32 0.0, %v600
      %602 = vmatmul.bf16.gmra.mxu0 %v507
      %v603 = vpop.f32.mrf.mxu0
      %v604 = vadd.f32 0.0, %v603
      %v605 = vpop.f32.mrf.mxu0
      %v606 = vadd.f32 0.0, %v605
      %607 = vdwg.mxu0
      %v609 = vunpack.c.l.b16 %v207
      %v610 = vpack.c.b16 %v609, %v284
      %v613 = vunpack.c.l.b16 %v208
      %v614 = vunpack.c.l.b16 %v209
      %v615 = vpack.c.b16 %v614, %v613
      %v617 = vsel %vm454, %v286, 0
      %v619 = vsel %vm454, %v287, 0
      %v621 = vsel %vm454, %v288, 0
      %v623 = vsel %vm454, %v289, 0
      %v625 = vsel %vm454, %v290, 0
      %v627 = vsel %vm454, %v291, 0
      %v629 = vsel %vm454, %v292, 0
      %v631 = vsel %vm454, %v293, 0
      %v633 = vsel %vm454, %v294, 0
      %v635 = vsel %vm454, %v295, 0
      %v637 = vsel %vm454, %v296, 0
      %v639 = vsel %vm454, %v297, 0
      %v641 = vsel %vm454, %v298, 0
      %v643 = vsel %vm454, %v299, 0
      %v645 = vsel %vm454, %v300, 0
      %v647 = vsel %vm454, %v301, 0
      %v649 = vsel %vm454, %v302, 0
      %v652 = vsel %vm454, %v610, 0
      %654 = vmatpush.bf16.msra.mxu0 0
      %655 = vmatpush.bf16.msra.mxu0 0
      %656 = vmatpush.bf16.msra.mxu0 0
      %657 = vmatpush.bf16.msra.mxu0 0
      %658 = vmatpush.bf16.msra.mxu0 0
      %659 = vmatpush.bf16.msra.mxu0 0
      %660 = vmatpush.bf16.msra.mxu0 0
      %661 = vmatpush.bf16.msra.mxu0 %v615
      %662 = vmatmul.bf16.gmra.mxu0 %v617
      %v663 = vpop.f32.mrf.mxu0
      %v664 = vadd.f32 %v519, %v663
      %v665 = vpop.f32.mrf.mxu0
      %v666 = vadd.f32 %v521, %v665
      %667 = vmatmul.bf16.gmra.mxu0 %v619
      %v668 = vpop.f32.mrf.mxu0
      %v669 = vadd.f32 %v524, %v668
      %v670 = vpop.f32.mrf.mxu0
      %v671 = vadd.f32 %v526, %v670
      %672 = vmatmul.bf16.gmra.mxu0 %v621
      %v673 = vpop.f32.mrf.mxu0
      %v674 = vadd.f32 %v529, %v673
      %v675 = vpop.f32.mrf.mxu0
      %v676 = vadd.f32 %v531, %v675
      %677 = vmatmul.bf16.gmra.mxu0 %v623
      %v678 = vpop.f32.mrf.mxu0
      %v679 = vadd.f32 %v534, %v678
      %v680 = vpop.f32.mrf.mxu0
      %v681 = vadd.f32 %v536, %v680
      %682 = vmatmul.bf16.gmra.mxu0 %v625
      %v683 = vpop.f32.mrf.mxu0
      %v684 = vadd.f32 %v539, %v683
      %v685 = vpop.f32.mrf.mxu0
      %v686 = vadd.f32 %v541, %v685
      %687 = vmatmul.bf16.gmra.mxu0 %v627
      %v688 = vpop.f32.mrf.mxu0
      %v689 = vadd.f32 %v544, %v688
      %v690 = vpop.f32.mrf.mxu0
      %v691 = vadd.f32 %v546, %v690
      %692 = vmatmul.bf16.gmra.mxu0 %v629
      %v693 = vpop.f32.mrf.mxu0
      %v694 = vadd.f32 %v549, %v693
      %v695 = vpop.f32.mrf.mxu0
      %v696 = vadd.f32 %v551, %v695
      %697 = vmatmul.bf16.gmra.mxu0 %v631
      %v698 = vpop.f32.mrf.mxu0
      %v699 = vadd.f32 %v554, %v698
      %v700 = vpop.f32.mrf.mxu0
      %v701 = vadd.f32 %v556, %v700
      %702 = vmatmul.bf16.gmra.mxu0 %v633
      %v703 = vpop.f32.mrf.mxu0
      %v704 = vadd.f32 %v559, %v703
      %v705 = vpop.f32.mrf.mxu0
      %v706 = vadd.f32 %v561, %v705
      %707 = vmatmul.bf16.gmra.mxu0 %v635
      %v708 = vpop.f32.mrf.mxu0
      %v709 = vadd.f32 %v564, %v708
      %v710 = vpop.f32.mrf.mxu0
      %v711 = vadd.f32 %v566, %v710
      %712 = vmatmul.bf16.gmra.mxu0 %v637
      %v713 = vpop.f32.mrf.mxu0
      %v714 = vadd.f32 %v569, %v713
      %v715 = vpop.f32.mrf.mxu0
      %v716 = vadd.f32 %v571, %v715
      %717 = vmatmul.bf16.gmra.mxu0 %v639
      %v718 = vpop.f32.mrf.mxu0
      %v719 = vadd.f32 %v574, %v718
      %v720 = vpop.f32.mrf.mxu0
      %v721 = vadd.f32 %v576, %v720
      %722 = vmatmul.bf16.gmra.mxu0 %v641
      %v723 = vpop.f32.mrf.mxu0
      %v724 = vadd.f32 %v579, %v723
      %v725 = vpop.f32.mrf.mxu0
      %v726 = vadd.f32 %v581, %v725
      %727 = vmatmul.bf16.gmra.mxu0 %v643
      %v728 = vpop.f32.mrf.mxu0
      %v729 = vadd.f32 %v584, %v728
      %v730 = vpop.f32.mrf.mxu0
      %v731 = vadd.f32 %v586, %v730
      %732 = vmatmul.bf16.gmra.mxu0 %v645
      %v733 = vpop.f32.mrf.mxu0
      %v734 = vadd.f32 %v589, %v733
      %v735 = vpop.f32.mrf.mxu0
      %v736 = vadd.f32 %v591, %v735
      %737 = vmatmul.bf16.gmra.mxu0 %v647
      %v738 = vpop.f32.mrf.mxu0
      %v739 = vadd.f32 %v594, %v738
      %v740 = vpop.f32.mrf.mxu0
      %v741 = vadd.f32 %v596, %v740
      %742 = vmatmul.bf16.gmra.mxu0 %v649
      %v743 = vpop.f32.mrf.mxu0
      %v744 = vadd.f32 %v599, %v743
      %v745 = vpop.f32.mrf.mxu0
      %v746 = vadd.f32 %v601, %v745
      %747 = vmatmul.bf16.gmra.mxu0 %v652
      %v748 = vpop.f32.mrf.mxu0
      %v749 = vadd.f32 %v604, %v748
      %v750 = vpop.f32.mrf.mxu0
      %v751 = vadd.f32 %v606, %v750
      %752 = vdwg.mxu0
      %v753 = vld [vmem:[%s165] sm:$0xe]
      %s754 = scalar_lea.vmem %s1, 16
      %v755 = vld [vmem:[%s754] sm:$0xf]
      %v756 = vld [vmem:[%s754 + $0x4] sm:$0xf]
      %v758 = vunpack.c.l.b16 %v753
      %v759 = vpack.c.b16 %v251, %v758
      %vm760 = vcmask 1046528
      %v761 = vrot.slane %v759, 1
      %v762 = vrot.slane %v287, 1
      %v763 = vsel %vm760, %v761, %v762
      %v764 = vrot.slane %v288, 1
      %v765 = vsel %vm760, %v762, %v764
      %v766 = vrot.slane %v289, 1
      %v767 = vsel %vm760, %v764, %v766
      %v768 = vrot.slane %v290, 1
      %v769 = vsel %vm760, %v766, %v768
      %v770 = vrot.slane %v291, 1
      %v771 = vsel %vm760, %v768, %v770
      %v772 = vrot.slane %v292, 1
      %v773 = vsel %vm760, %v770, %v772
      %v774 = vrot.slane %v293, 1
      %v775 = vsel %vm760, %v772, %v774
      %v776 = vrot.slane %v294, 1
      %v777 = vsel %vm760, %v774, %v776
      %v778 = vrot.slane %v295, 1
      %v779 = vsel %vm760, %v776, %v778
      %v780 = vrot.slane %v296, 1
      %v781 = vsel %vm760, %v778, %v780
      %v782 = vrot.slane %v297, 1
      %v783 = vsel %vm760, %v780, %v782
      %v784 = vrot.slane %v298, 1
      %v785 = vsel %vm760, %v782, %v784
      %v786 = vrot.slane %v299, 1
      %v787 = vsel %vm760, %v784, %v786
      %v788 = vrot.slane %v300, 1
      %v789 = vsel %vm760, %v786, %v788
      %v790 = vrot.slane %v301, 1
      %v791 = vsel %vm760, %v788, %v790
      %v792 = vrot.slane %v302, 1
      %v793 = vsel %vm760, %v790, %v792
      %v794 = vrot.slane %v303, 1
      %v795 = vsel %vm760, %v792, %v794
      %v798 = vunpack.c.l.b16 %v755
      %v799 = vunpack.c.l.b16 %v756
      %v800 = vpack.c.b16 %v799, %v798
      %v803 = vsel %vm454, %v763, 0
      %v806 = vsel %vm454, %v765, 0
      %v809 = vsel %vm454, %v767, 0
      %v812 = vsel %vm454, %v769, 0
      %v815 = vsel %vm454, %v771, 0
      %v818 = vsel %vm454, %v773, 0
      %v821 = vsel %vm454, %v775, 0
      %v824 = vsel %vm454, %v777, 0
      %v827 = vsel %vm454, %v779, 0
      %v830 = vsel %vm454, %v781, 0
      %v833 = vsel %vm454, %v783, 0
      %v836 = vsel %vm454, %v785, 0
      %v839 = vsel %vm454, %v787, 0
      %v842 = vsel %vm454, %v789, 0
      %v845 = vsel %vm454, %v791, 0
      %v848 = vsel %vm454, %v793, 0
      %v851 = vsel %vm454, %v795, 0
      %v854 = vsel %vm454, %v794, 0
      %856 = vmatpush.bf16.msra.mxu0 0
      %857 = vmatpush.bf16.msra.mxu0 0
      %858 = vmatpush.bf16.msra.mxu0 0
      %859 = vmatpush.bf16.msra.mxu0 0
      %860 = vmatpush.bf16.msra.mxu0 0
      %861 = vmatpush.bf16.msra.mxu0 0
      %862 = vmatpush.bf16.msra.mxu0 0
      %863 = vmatpush.bf16.msra.mxu0 %v800
      %864 = vmatmul.bf16.gmra.mxu0 %v803
      %v865 = vpop.f32.mrf.mxu0
      %v866 = vadd.f32 0.0, %v865
      %v867 = vpop.f32.mrf.mxu0
      %v868 = vadd.f32 0.0, %v867
      %869 = vmatmul.bf16.gmra.mxu0 %v806
      %v870 = vpop.f32.mrf.mxu0
      %v871 = vadd.f32 0.0, %v870
      %v872 = vpop.f32.mrf.mxu0
      %v873 = vadd.f32 0.0, %v872
      %874 = vmatmul.bf16.gmra.mxu0 %v809
      %v875 = vpop.f32.mrf.mxu0
      %v876 = vadd.f32 0.0, %v875
      %v877 = vpop.f32.mrf.mxu0
      %v878 = vadd.f32 0.0, %v877
      %879 = vmatmul.bf16.gmra.mxu0 %v812
      %v880 = vpop.f32.mrf.mxu0
      %v881 = vadd.f32 0.0, %v880
      %v882 = vpop.f32.mrf.mxu0
      %v883 = vadd.f32 0.0, %v882
      %884 = vmatmul.bf16.gmra.mxu0 %v815
      %v885 = vpop.f32.mrf.mxu0
      %v886 = vadd.f32 0.0, %v885
      %v887 = vpop.f32.mrf.mxu0
      %v888 = vadd.f32 0.0, %v887
      %889 = vmatmul.bf16.gmra.mxu0 %v818
      %v890 = vpop.f32.mrf.mxu0
      %v891 = vadd.f32 0.0, %v890
      %v892 = vpop.f32.mrf.mxu0
      %v893 = vadd.f32 0.0, %v892
      %894 = vmatmul.bf16.gmra.mxu0 %v821
      %v895 = vpop.f32.mrf.mxu0
      %v896 = vadd.f32 0.0, %v895
      %v897 = vpop.f32.mrf.mxu0
      %v898 = vadd.f32 0.0, %v897
      %899 = vmatmul.bf16.gmra.mxu0 %v824
      %v900 = vpop.f32.mrf.mxu0
      %v901 = vadd.f32 0.0, %v900
      %v902 = vpop.f32.mrf.mxu0
      %v903 = vadd.f32 0.0, %v902
      %904 = vmatmul.bf16.gmra.mxu0 %v827
      %v905 = vpop.f32.mrf.mxu0
      %v906 = vadd.f32 0.0, %v905
      %v907 = vpop.f32.mrf.mxu0
      %v908 = vadd.f32 0.0, %v907
      %909 = vmatmul.bf16.gmra.mxu0 %v830
      %v910 = vpop.f32.mrf.mxu0
      %v911 = vadd.f32 0.0, %v910
      %v912 = vpop.f32.mrf.mxu0
      %v913 = vadd.f32 0.0, %v912
      %914 = vmatmul.bf16.gmra.mxu0 %v833
      %v915 = vpop.f32.mrf.mxu0
      %v916 = vadd.f32 0.0, %v915
      %v917 = vpop.f32.mrf.mxu0
      %v918 = vadd.f32 0.0, %v917
      %919 = vmatmul.bf16.gmra.mxu0 %v836
      %v920 = vpop.f32.mrf.mxu0
      %v921 = vadd.f32 0.0, %v920
      %v922 = vpop.f32.mrf.mxu0
      %v923 = vadd.f32 0.0, %v922
      %924 = vmatmul.bf16.gmra.mxu0 %v839
      %v925 = vpop.f32.mrf.mxu0
      %v926 = vadd.f32 0.0, %v925
      %v927 = vpop.f32.mrf.mxu0
      %v928 = vadd.f32 0.0, %v927
      %929 = vmatmul.bf16.gmra.mxu0 %v842
      %v930 = vpop.f32.mrf.mxu0
      %v931 = vadd.f32 0.0, %v930
      %v932 = vpop.f32.mrf.mxu0
      %v933 = vadd.f32 0.0, %v932
      %934 = vmatmul.bf16.gmra.mxu0 %v845
      %v935 = vpop.f32.mrf.mxu0
      %v936 = vadd.f32 0.0, %v935
      %v937 = vpop.f32.mrf.mxu0
      %v938 = vadd.f32 0.0, %v937
      %939 = vmatmul.bf16.gmra.mxu0 %v848
      %v940 = vpop.f32.mrf.mxu0
      %v941 = vadd.f32 0.0, %v940
      %v942 = vpop.f32.mrf.mxu0
      %v943 = vadd.f32 0.0, %v942
      %944 = vmatmul.bf16.gmra.mxu0 %v851
      %v945 = vpop.f32.mrf.mxu0
      %v946 = vadd.f32 0.0, %v945
      %v947 = vpop.f32.mrf.mxu0
      %v948 = vadd.f32 0.0, %v947
      %949 = vmatmul.bf16.gmra.mxu0 %v854
      %v950 = vpop.f32.mrf.mxu0
      %v951 = vadd.f32 0.0, %v950
      %v952 = vpop.f32.mrf.mxu0
      %v953 = vadd.f32 0.0, %v952
      %954 = vdwg.mxu0
      %v955 = vadd.f32 %v664, %v866
      %v956 = vadd.f32 %v666, %v868
      %v957 = vadd.f32 %v669, %v871
      %v958 = vadd.f32 %v671, %v873
      %v959 = vadd.f32 %v674, %v876
      %v960 = vadd.f32 %v676, %v878
      %v961 = vadd.f32 %v679, %v881
      %v962 = vadd.f32 %v681, %v883
      %v963 = vadd.f32 %v684, %v886
      %v964 = vadd.f32 %v686, %v888
      %v965 = vadd.f32 %v689, %v891
      %v966 = vadd.f32 %v691, %v893
      %v967 = vadd.f32 %v694, %v896
      %v968 = vadd.f32 %v696, %v898
      %v969 = vadd.f32 %v699, %v901
      %v970 = vadd.f32 %v701, %v903
      %v971 = vadd.f32 %v704, %v906
      %v972 = vadd.f32 %v706, %v908
      %v973 = vadd.f32 %v709, %v911
      %v974 = vadd.f32 %v711, %v913
      %v975 = vadd.f32 %v714, %v916
      %v976 = vadd.f32 %v716, %v918
      %v977 = vadd.f32 %v719, %v921
      %v978 = vadd.f32 %v721, %v923
      %v979 = vadd.f32 %v724, %v926
      %v980 = vadd.f32 %v726, %v928
      %v981 = vadd.f32 %v729, %v931
      %v982 = vadd.f32 %v731, %v933
      %v983 = vadd.f32 %v734, %v936
      %v984 = vadd.f32 %v736, %v938
      %v985 = vadd.f32 %v739, %v941
      %v986 = vadd.f32 %v741, %v943
      %v987 = vadd.f32 %v744, %v946
      %v988 = vadd.f32 %v746, %v948
      %v989 = vadd.f32 %v749, %v951
      %v990 = vadd.f32 %v751, %v953
      %v991 = vld [vmem:[%s165 + $0x8] sm:$0xe]
      %v992 = vld [vmem:[%s165 + $0xc] sm:$0xf]
      %v993 = vld [vmem:[%s165 + $0x10] sm:$0xf]
      %v994 = vld [vmem:[%s165 + $0x14] sm:$0xf]
      %v995 = vld [vmem:[%s165 + $0x18] sm:$0xf]
      %v996 = vld [vmem:[%s165 + $0x1c] sm:$0xf]
      %v997 = vld [vmem:[%s165 + $0x20] sm:$0xf]
      %v998 = vld [vmem:[%s165 + $0x24] sm:$0xf]
      %v999 = vld [vmem:[%s165 + $0x28] sm:$0xf]
      %v1000 = vld [vmem:[%s165 + $0x2c] sm:$0xf]
      %v1001 = vld [vmem:[%s165 + $0x30] sm:$0xf]
      %v1002 = vld [vmem:[%s165 + $0x34] sm:$0xf]
      %v1003 = vld [vmem:[%s165 + $0x38] sm:$0xf]
      %v1004 = vld [vmem:[%s165 + $0x3c] sm:$0xf]
      %v1005 = vld [vmem:[%s165 + $0x40] sm:$0xf]
      %v1006 = vld [vmem:[%s165 + $0x44] sm:$0xf]
      %v1007 = vld [vmem:[%s165 + $0x48] sm:$0xf]
      %v1008 = vld [vmem:[%s165 + $0x4c] sm:$0xf]
      %v1009 = vld [vmem:[%s165 + $0x50] sm:$0xf]
      %v1010 = vld [vmem:[%s165 + $0x54] sm:$0xf]
      %v1011 = vld [vmem:[%s165 + $0x58] sm:$0xf]
      %v1012 = vld [vmem:[%s165 + $0x5c] sm:$0xf]
      %v1013 = vld [vmem:[%s165 + $0x60] sm:$0xf]
      %v1014 = vld [vmem:[%s165 + $0x64] sm:$0xf]
      %v1015 = vld [vmem:[%s165 + $0x68] sm:$0xf]
      %v1016 = vld [vmem:[%s165 + $0x6c] sm:$0xf]
      %v1017 = vld [vmem:[%s165 + $0x70] sm:$0xf]
      %v1018 = vld [vmem:[%s165 + $0x74] sm:$0xf]
      %v1019 = vld [vmem:[%s165 + $0x78] sm:$0xf]
      %v1020 = vld [vmem:[%s165 + $0x7c] sm:$0xf]
      %v1021 = vld [vmem:[%s165 + $0x80] sm:$0xf]
      %v1022 = vld [vmem:[%s165 + $0x84] sm:$0xf]
      %v1023 = vld [vmem:[%s165 + $0x88] sm:$0xf]
      %v1024 = vld [vmem:[%s165 + $0x8c] sm:$0xf]
      %v1025 = vld [vmem:[%s165 + $0x90] sm:$0xf]
      %v1026 = vld [vmem:[%s165 + $0x94] sm:$0xf]
      %s1027 = scalar_lea.vmem %s1, 24
      %v1028 = vld [vmem:[%s1027] sm:$0xf]
      %v1029 = vld [vmem:[%s1027 + $0x4] sm:$0xf]
      %v1066 = vunpack.c.l.b16 %v991
      %v1067 = vunpack.c.l.b16 %v992
      %v1068 = vunpack.c.l.b16 %v993
      %v1069 = vunpack.c.l.b16 %v994
      %v1070 = vunpack.c.l.b16 %v995
      %v1071 = vunpack.c.l.b16 %v996
      %v1072 = vunpack.c.l.b16 %v997
      %v1073 = vunpack.c.l.b16 %v998
      %v1074 = vunpack.c.l.b16 %v999
      %v1075 = vunpack.c.l.b16 %v1000
      %v1076 = vunpack.c.l.b16 %v1001
      %v1077 = vunpack.c.l.b16 %v1002
      %v1078 = vunpack.c.l.b16 %v1003
      %v1079 = vunpack.c.l.b16 %v1004
      %v1080 = vunpack.c.l.b16 %v1005
      %v1081 = vunpack.c.l.b16 %v1006
      %v1082 = vunpack.c.l.b16 %v1007
      %v1083 = vunpack.c.l.b16 %v1008
      %v1084 = vunpack.c.l.b16 %v1009
      %v1085 = vunpack.c.l.b16 %v1010
      %v1086 = vunpack.c.l.b16 %v1011
      %v1087 = vunpack.c.l.b16 %v1012
      %v1088 = vunpack.c.l.b16 %v1013
      %v1089 = vunpack.c.l.b16 %v1014
      %v1090 = vunpack.c.l.b16 %v1015
      %v1091 = vunpack.c.l.b16 %v1016
      %v1092 = vunpack.c.l.b16 %v1017
      %v1093 = vunpack.c.l.b16 %v1018
      %v1094 = vunpack.c.l.b16 %v1019
      %v1095 = vunpack.c.l.b16 %v1020
      %v1096 = vunpack.c.l.b16 %v1021
      %v1097 = vunpack.c.l.b16 %v1022
      %v1098 = vunpack.c.l.b16 %v1023
      %v1099 = vunpack.c.l.b16 %v1024
      %v1100 = vunpack.c.l.b16 %v1025
      %v1101 = vunpack.c.l.b16 %v1026
      %v1102 = vpack.c.b16 %v1067, %v1066
      %v1103 = vpack.c.b16 %v1069, %v1068
      %v1104 = vpack.c.b16 %v1071, %v1070
      %v1105 = vpack.c.b16 %v1073, %v1072
      %v1106 = vpack.c.b16 %v1075, %v1074
      %v1107 = vpack.c.b16 %v1077, %v1076
      %v1108 = vpack.c.b16 %v1079, %v1078
      %v1109 = vpack.c.b16 %v1081, %v1080
      %v1110 = vpack.c.b16 %v1083, %v1082
      %v1111 = vpack.c.b16 %v1085, %v1084
      %v1112 = vpack.c.b16 %v1087, %v1086
      %v1113 = vpack.c.b16 %v1089, %v1088
      %v1114 = vpack.c.b16 %v1091, %v1090
      %v1115 = vpack.c.b16 %v1093, %v1092
      %v1116 = vpack.c.b16 %v1095, %v1094
      %v1117 = vpack.c.b16 %v1097, %v1096
      %v1118 = vpack.c.b16 %v1099, %v1098
      %v1119 = vpack.c.b16 %v1101, %v1100
      %v1120 = vrot.slane %v1102, 1
      %v1121 = vrot.slane %v1103, 1
      %v1122 = vsel %vm760, %v1120, %v1121
      %v1123 = vrot.slane %v1104, 1
      %v1124 = vsel %vm760, %v1121, %v1123
      %v1125 = vrot.slane %v1105, 1
      %v1126 = vsel %vm760, %v1123, %v1125
      %v1127 = vrot.slane %v1106, 1
      %v1128 = vsel %vm760, %v1125, %v1127
      %v1129 = vrot.slane %v1107, 1
      %v1130 = vsel %vm760, %v1127, %v1129
      %v1131 = vrot.slane %v1108, 1
      %v1132 = vsel %vm760, %v1129, %v1131
      %v1133 = vrot.slane %v1109, 1
      %v1134 = vsel %vm760, %v1131, %v1133
      %v1135 = vrot.slane %v1110, 1
      %v1136 = vsel %vm760, %v1133, %v1135
      %v1137 = vrot.slane %v1111, 1
      %v1138 = vsel %vm760, %v1135, %v1137
      %v1139 = vrot.slane %v1112, 1
      %v1140 = vsel %vm760, %v1137, %v1139
      %v1141 = vrot.slane %v1113, 1
      %v1142 = vsel %vm760, %v1139, %v1141
      %v1143 = vrot.slane %v1114, 1
      %v1144 = vsel %vm760, %v1141, %v1143
      %v1145 = vrot.slane %v1115, 1
      %v1146 = vsel %vm760, %v1143, %v1145
      %v1147 = vrot.slane %v1116, 1
      %v1148 = vsel %vm760, %v1145, %v1147
      %v1149 = vrot.slane %v1117, 1
      %v1150 = vsel %vm760, %v1147, %v1149
      %v1151 = vrot.slane %v1118, 1
      %v1152 = vsel %vm760, %v1149, %v1151
      %v1153 = vrot.slane %v1119, 1
      %v1154 = vsel %vm760, %v1151, %v1153
      %v1157 = vunpack.c.l.b16 %v1028
      %v1158 = vunpack.c.l.b16 %v1029
      %v1159 = vpack.c.b16 %v1158, %v1157
      %v1162 = vsel %vm454, %v1122, 0
      %v1165 = vsel %vm454, %v1124, 0
      %v1168 = vsel %vm454, %v1126, 0
      %v1171 = vsel %vm454, %v1128, 0
      %v1174 = vsel %vm454, %v1130, 0
      %v1177 = vsel %vm454, %v1132, 0
      %v1180 = vsel %vm454, %v1134, 0
      %v1183 = vsel %vm454, %v1136, 0
      %v1186 = vsel %vm454, %v1138, 0
      %v1189 = vsel %vm454, %v1140, 0
      %v1192 = vsel %vm454, %v1142, 0
      %v1195 = vsel %vm454, %v1144, 0
      %v1198 = vsel %vm454, %v1146, 0
      %v1201 = vsel %vm454, %v1148, 0
      %v1204 = vsel %vm454, %v1150, 0
      %v1207 = vsel %vm454, %v1152, 0
      %v1210 = vsel %vm454, %v1154, 0
      %v1213 = vsel %vm454, %v1153, 0
      %1215 = vmatpush.bf16.msra.mxu0 0
      %1216 = vmatpush.bf16.msra.mxu0 0
      %1217 = vmatpush.bf16.msra.mxu0 0
      %1218 = vmatpush.bf16.msra.mxu0 0
      %1219 = vmatpush.bf16.msra.mxu0 0
      %1220 = vmatpush.bf16.msra.mxu0 0
      %1221 = vmatpush.bf16.msra.mxu0 0
      %1222 = vmatpush.bf16.msra.mxu0 %v1159
      %1223 = vmatmul.bf16.gmra.mxu0 %v1162
      %v1224 = vpop.f32.mrf.mxu0
      %v1225 = vadd.f32 0.0, %v1224
      %v1226 = vpop.f32.mrf.mxu0
      %v1227 = vadd.f32 0.0, %v1226
      %1228 = vmatmul.bf16.gmra.mxu0 %v1165
      %v1229 = vpop.f32.mrf.mxu0
      %v1230 = vadd.f32 0.0, %v1229
      %v1231 = vpop.f32.mrf.mxu0
      %v1232 = vadd.f32 0.0, %v1231
      %1233 = vmatmul.bf16.gmra.mxu0 %v1168
      %v1234 = vpop.f32.mrf.mxu0
      %v1235 = vadd.f32 0.0, %v1234
      %v1236 = vpop.f32.mrf.mxu0
      %v1237 = vadd.f32 0.0, %v1236
      %1238 = vmatmul.bf16.gmra.mxu0 %v1171
      %v1239 = vpop.f32.mrf.mxu0
      %v1240 = vadd.f32 0.0, %v1239
      %v1241 = vpop.f32.mrf.mxu0
      %v1242 = vadd.f32 0.0, %v1241
      %1243 = vmatmul.bf16.gmra.mxu0 %v1174
      %v1244 = vpop.f32.mrf.mxu0
      %v1245 = vadd.f32 0.0, %v1244
      %v1246 = vpop.f32.mrf.mxu0
      %v1247 = vadd.f32 0.0, %v1246
      %1248 = vmatmul.bf16.gmra.mxu0 %v1177
      %v1249 = vpop.f32.mrf.mxu0
      %v1250 = vadd.f32 0.0, %v1249
      %v1251 = vpop.f32.mrf.mxu0
      %v1252 = vadd.f32 0.0, %v1251
      %1253 = vmatmul.bf16.gmra.mxu0 %v1180
      %v1254 = vpop.f32.mrf.mxu0
      %v1255 = vadd.f32 0.0, %v1254
      %v1256 = vpop.f32.mrf.mxu0
      %v1257 = vadd.f32 0.0, %v1256
      %1258 = vmatmul.bf16.gmra.mxu0 %v1183
      %v1259 = vpop.f32.mrf.mxu0
      %v1260 = vadd.f32 0.0, %v1259
      %v1261 = vpop.f32.mrf.mxu0
      %v1262 = vadd.f32 0.0, %v1261
      %1263 = vmatmul.bf16.gmra.mxu0 %v1186
      %v1264 = vpop.f32.mrf.mxu0
      %v1265 = vadd.f32 0.0, %v1264
      %v1266 = vpop.f32.mrf.mxu0
      %v1267 = vadd.f32 0.0, %v1266
      %1268 = vmatmul.bf16.gmra.mxu0 %v1189
      %v1269 = vpop.f32.mrf.mxu0
      %v1270 = vadd.f32 0.0, %v1269
      %v1271 = vpop.f32.mrf.mxu0
      %v1272 = vadd.f32 0.0, %v1271
      %1273 = vmatmul.bf16.gmra.mxu0 %v1192
      %v1274 = vpop.f32.mrf.mxu0
      %v1275 = vadd.f32 0.0, %v1274
      %v1276 = vpop.f32.mrf.mxu0
      %v1277 = vadd.f32 0.0, %v1276
      %1278 = vmatmul.bf16.gmra.mxu0 %v1195
      %v1279 = vpop.f32.mrf.mxu0
      %v1280 = vadd.f32 0.0, %v1279
      %v1281 = vpop.f32.mrf.mxu0
      %v1282 = vadd.f32 0.0, %v1281
      %1283 = vmatmul.bf16.gmra.mxu0 %v1198
      %v1284 = vpop.f32.mrf.mxu0
      %v1285 = vadd.f32 0.0, %v1284
      %v1286 = vpop.f32.mrf.mxu0
      %v1287 = vadd.f32 0.0, %v1286
      %1288 = vmatmul.bf16.gmra.mxu0 %v1201
      %v1289 = vpop.f32.mrf.mxu0
      %v1290 = vadd.f32 0.0, %v1289
      %v1291 = vpop.f32.mrf.mxu0
      %v1292 = vadd.f32 0.0, %v1291
      %1293 = vmatmul.bf16.gmra.mxu0 %v1204
      %v1294 = vpop.f32.mrf.mxu0
      %v1295 = vadd.f32 0.0, %v1294
      %v1296 = vpop.f32.mrf.mxu0
      %v1297 = vadd.f32 0.0, %v1296
      %1298 = vmatmul.bf16.gmra.mxu0 %v1207
      %v1299 = vpop.f32.mrf.mxu0
      %v1300 = vadd.f32 0.0, %v1299
      %v1301 = vpop.f32.mrf.mxu0
      %v1302 = vadd.f32 0.0, %v1301
      %1303 = vmatmul.bf16.gmra.mxu0 %v1210
      %v1304 = vpop.f32.mrf.mxu0
      %v1305 = vadd.f32 0.0, %v1304
      %v1306 = vpop.f32.mrf.mxu0
      %v1307 = vadd.f32 0.0, %v1306
      %1308 = vmatmul.bf16.gmra.mxu0 %v1213
      %v1309 = vpop.f32.mrf.mxu0
      %v1310 = vadd.f32 0.0, %v1309
      %v1311 = vpop.f32.mrf.mxu0
      %v1312 = vadd.f32 0.0, %v1311
      %1313 = vdwg.mxu0
      %v1314 = vadd.f32 %v955, %v1225
      %v1315 = vadd.f32 %v956, %v1227
      %v1316 = vadd.f32 %v957, %v1230
      %v1317 = vadd.f32 %v958, %v1232
      %v1318 = vadd.f32 %v959, %v1235
      %v1319 = vadd.f32 %v960, %v1237
      %v1320 = vadd.f32 %v961, %v1240
      %v1321 = vadd.f32 %v962, %v1242
      %v1322 = vadd.f32 %v963, %v1245
      %v1323 = vadd.f32 %v964, %v1247
      %v1324 = vadd.f32 %v965, %v1250
      %v1325 = vadd.f32 %v966, %v1252
      %v1326 = vadd.f32 %v967, %v1255
      %v1327 = vadd.f32 %v968, %v1257
      %v1328 = vadd.f32 %v969, %v1260
      %v1329 = vadd.f32 %v970, %v1262
      %v1330 = vadd.f32 %v971, %v1265
      %v1331 = vadd.f32 %v972, %v1267
      %v1332 = vadd.f32 %v973, %v1270
      %v1333 = vadd.f32 %v974, %v1272
      %v1334 = vadd.f32 %v975, %v1275
      %v1335 = vadd.f32 %v976, %v1277
      %v1336 = vadd.f32 %v977, %v1280
      %v1337 = vadd.f32 %v978, %v1282
      %v1338 = vadd.f32 %v979, %v1285
      %v1339 = vadd.f32 %v980, %v1287
      %v1340 = vadd.f32 %v981, %v1290
      %v1341 = vadd.f32 %v982, %v1292
      %v1342 = vadd.f32 %v983, %v1295
      %v1343 = vadd.f32 %v984, %v1297
      %v1344 = vadd.f32 %v985, %v1300
      %v1345 = vadd.f32 %v986, %v1302
      %v1346 = vadd.f32 %v987, %v1305
      %v1347 = vadd.f32 %v988, %v1307
      %v1348 = vadd.f32 %v989, %v1310
      %v1349 = vadd.f32 %v990, %v1312
      %v1350 = vld [vmem:[%s165 + $0x8] sm:$0xe]
      %v1351 = vld [vmem:[%s165 + $0xc] sm:$0xf]
      %v1352 = vld [vmem:[%s165 + $0x10] sm:$0xf]
      %v1353 = vld [vmem:[%s165 + $0x14] sm:$0xf]
      %v1354 = vld [vmem:[%s165 + $0x18] sm:$0xf]
      %v1355 = vld [vmem:[%s165 + $0x1c] sm:$0xf]
      %v1356 = vld [vmem:[%s165 + $0x20] sm:$0xf]
      %v1357 = vld [vmem:[%s165 + $0x24] sm:$0xf]
      %v1358 = vld [vmem:[%s165 + $0x28] sm:$0xf]
      %v1359 = vld [vmem:[%s165 + $0x2c] sm:$0xf]
      %v1360 = vld [vmem:[%s165 + $0x30] sm:$0xf]
      %v1361 = vld [vmem:[%s165 + $0x34] sm:$0xf]
      %v1362 = vld [vmem:[%s165 + $0x38] sm:$0xf]
      %v1363 = vld [vmem:[%s165 + $0x3c] sm:$0xf]
      %v1364 = vld [vmem:[%s165 + $0x40] sm:$0xf]
      %v1365 = vld [vmem:[%s165 + $0x44] sm:$0xf]
      %v1366 = vld [vmem:[%s165 + $0x48] sm:$0xf]
      %v1367 = vld [vmem:[%s165 + $0x4c] sm:$0xf]
      %v1368 = vld [vmem:[%s165 + $0x50] sm:$0xf]
      %v1369 = vld [vmem:[%s165 + $0x54] sm:$0xf]
      %v1370 = vld [vmem:[%s165 + $0x58] sm:$0xf]
      %v1371 = vld [vmem:[%s165 + $0x5c] sm:$0xf]
      %v1372 = vld [vmem:[%s165 + $0x60] sm:$0xf]
      %v1373 = vld [vmem:[%s165 + $0x64] sm:$0xf]
      %v1374 = vld [vmem:[%s165 + $0x68] sm:$0xf]
      %v1375 = vld [vmem:[%s165 + $0x6c] sm:$0xf]
      %v1376 = vld [vmem:[%s165 + $0x70] sm:$0xf]
      %v1377 = vld [vmem:[%s165 + $0x74] sm:$0xf]
      %v1378 = vld [vmem:[%s165 + $0x78] sm:$0xf]
      %v1379 = vld [vmem:[%s165 + $0x7c] sm:$0xf]
      %v1380 = vld [vmem:[%s165 + $0x80] sm:$0xf]
      %v1381 = vld [vmem:[%s165 + $0x84] sm:$0xf]
      %v1382 = vld [vmem:[%s165 + $0x88] sm:$0xf]
      %v1383 = vld [vmem:[%s165 + $0x8c] sm:$0xf]
      %v1384 = vld [vmem:[%s165 + $0x90] sm:$0xf]
      %v1385 = vld [vmem:[%s165 + $0x94] sm:$0xf]
      %v1386 = vld [vmem:[%s165 + $0x98] sm:$0x1]
      %s1387 = scalar_lea.vmem %s1, 32
      %v1388 = vld [vmem:[%s1387] sm:$0xf]
      %v1389 = vld [vmem:[%s1387 + $0x4] sm:$0xf]
      %v1427 = vunpack.c.l.b16 %v1350
      %v1428 = vunpack.c.l.b16 %v1351
      %v1429 = vunpack.c.l.b16 %v1352
      %v1430 = vunpack.c.l.b16 %v1353
      %v1431 = vunpack.c.l.b16 %v1354
      %v1432 = vunpack.c.l.b16 %v1355
      %v1433 = vunpack.c.l.b16 %v1356
      %v1434 = vunpack.c.l.b16 %v1357
      %v1435 = vunpack.c.l.b16 %v1358
      %v1436 = vunpack.c.l.b16 %v1359
      %v1437 = vunpack.c.l.b16 %v1360
      %v1438 = vunpack.c.l.b16 %v1361
      %v1439 = vunpack.c.l.b16 %v1362
      %v1440 = vunpack.c.l.b16 %v1363
      %v1441 = vunpack.c.l.b16 %v1364
      %v1442 = vunpack.c.l.b16 %v1365
      %v1443 = vunpack.c.l.b16 %v1366
      %v1444 = vunpack.c.l.b16 %v1367
      %v1445 = vunpack.c.l.b16 %v1368
      %v1446 = vunpack.c.l.b16 %v1369
      %v1447 = vunpack.c.l.b16 %v1370
      %v1448 = vunpack.c.l.b16 %v1371
      %v1449 = vunpack.c.l.b16 %v1372
      %v1450 = vunpack.c.l.b16 %v1373
      %v1451 = vunpack.c.l.b16 %v1374
      %v1452 = vunpack.c.l.b16 %v1375
      %v1453 = vunpack.c.l.b16 %v1376
      %v1454 = vunpack.c.l.b16 %v1377
      %v1455 = vunpack.c.l.b16 %v1378
      %v1456 = vunpack.c.l.b16 %v1379
      %v1457 = vunpack.c.l.b16 %v1380
      %v1458 = vunpack.c.l.b16 %v1381
      %v1459 = vunpack.c.l.b16 %v1382
      %v1460 = vunpack.c.l.b16 %v1383
      %v1461 = vunpack.c.l.b16 %v1384
      %v1462 = vunpack.c.l.b16 %v1385
      %v1463 = vunpack.c.l.b16 %v1386
      %v1464 = vpack.c.b16 %v1428, %v1427
      %v1465 = vpack.c.b16 %v1430, %v1429
      %v1466 = vpack.c.b16 %v1432, %v1431
      %v1467 = vpack.c.b16 %v1434, %v1433
      %v1468 = vpack.c.b16 %v1436, %v1435
      %v1469 = vpack.c.b16 %v1438, %v1437
      %v1470 = vpack.c.b16 %v1440, %v1439
      %v1471 = vpack.c.b16 %v1442, %v1441
      %v1472 = vpack.c.b16 %v1444, %v1443
      %v1473 = vpack.c.b16 %v1446, %v1445
      %v1474 = vpack.c.b16 %v1448, %v1447
      %v1475 = vpack.c.b16 %v1450, %v1449
      %v1476 = vpack.c.b16 %v1452, %v1451
      %v1477 = vpack.c.b16 %v1454, %v1453
      %v1478 = vpack.c.b16 %v1456, %v1455
      %v1479 = vpack.c.b16 %v1458, %v1457
      %v1480 = vpack.c.b16 %v1460, %v1459
      %v1481 = vpack.c.b16 %v1462, %v1461
      %v1482 = vpack.c.b16 %v1463, %v1463
      %vm1483 = vsmask.f32 6400
      %v1485 = vshrl.u32 %v1464, 16
      %v1487 = vrot.slane %v1485, 1
      %v1488 = vshll.u32 %v1464, 16
      %v1490 = vrot.slane %v1488, 2
      %v1491 = vor.u32 %v1487, %v1490
      %v1493 = vshrl.u32 %v1465, 16
      %v1495 = vrot.slane %v1493, 1
      %v1496 = vshll.u32 %v1465, 16
      %v1498 = vrot.slane %v1496, 2
      %v1499 = vor.u32 %v1495, %v1498
      %v1500 = vsel %vm1483, %v1491, %v1499
      %v1502 = vshrl.u32 %v1466, 16
      %v1504 = vrot.slane %v1502, 1
      %v1505 = vshll.u32 %v1466, 16
      %v1507 = vrot.slane %v1505, 2
      %v1508 = vor.u32 %v1504, %v1507
      %v1509 = vsel %vm1483, %v1499, %v1508
      %v1511 = vshrl.u32 %v1467, 16
      %v1513 = vrot.slane %v1511, 1
      %v1514 = vshll.u32 %v1467, 16
      %v1516 = vrot.slane %v1514, 2
      %v1517 = vor.u32 %v1513, %v1516
      %v1518 = vsel %vm1483, %v1508, %v1517
      %v1520 = vshrl.u32 %v1468, 16
      %v1522 = vrot.slane %v1520, 1
      %v1523 = vshll.u32 %v1468, 16
      %v1525 = vrot.slane %v1523, 2
      %v1526 = vor.u32 %v1522, %v1525
      %v1527 = vsel %vm1483, %v1517, %v1526
      %v1529 = vshrl.u32 %v1469, 16
      %v1531 = vrot.slane %v1529, 1
      %v1532 = vshll.u32 %v1469, 16
      %v1534 = vrot.slane %v1532, 2
      %v1535 = vor.u32 %v1531, %v1534
      %v1536 = vsel %vm1483, %v1526, %v1535
      %v1538 = vshrl.u32 %v1470, 16
      %v1540 = vrot.slane %v1538, 1
      %v1541 = vshll.u32 %v1470, 16
      %v1543 = vrot.slane %v1541, 2
      %v1544 = vor.u32 %v1540, %v1543
      %v1545 = vsel %vm1483, %v1535, %v1544
      %v1547 = vshrl.u32 %v1471, 16
      %v1549 = vrot.slane %v1547, 1
      %v1550 = vshll.u32 %v1471, 16
      %v1552 = vrot.slane %v1550, 2
      %v1553 = vor.u32 %v1549, %v1552
      %v1554 = vsel %vm1483, %v1544, %v1553
      %v1556 = vshrl.u32 %v1472, 16
      %v1558 = vrot.slane %v1556, 1
      %v1559 = vshll.u32 %v1472, 16
      %v1561 = vrot.slane %v1559, 2
      %v1562 = vor.u32 %v1558, %v1561
      %v1563 = vsel %vm1483, %v1553, %v1562
      %v1565 = vshrl.u32 %v1473, 16
      %v1567 = vrot.slane %v1565, 1
      %v1568 = vshll.u32 %v1473, 16
      %v1570 = vrot.slane %v1568, 2
      %v1571 = vor.u32 %v1567, %v1570
      %v1572 = vsel %vm1483, %v1562, %v1571
      %v1574 = vshrl.u32 %v1474, 16
      %v1576 = vrot.slane %v1574, 1
      %v1577 = vshll.u32 %v1474, 16
      %v1579 = vrot.slane %v1577, 2
      %v1580 = vor.u32 %v1576, %v1579
      %v1581 = vsel %vm1483, %v1571, %v1580
      %v1583 = vshrl.u32 %v1475, 16
      %v1585 = vrot.slane %v1583, 1
      %v1586 = vshll.u32 %v1475, 16
      %v1588 = vrot.slane %v1586, 2
      %v1589 = vor.u32 %v1585, %v1588
      %v1590 = vsel %vm1483, %v1580, %v1589
      %v1592 = vshrl.u32 %v1476, 16
      %v1594 = vrot.slane %v1592, 1
      %v1595 = vshll.u32 %v1476, 16
      %v1597 = vrot.slane %v1595, 2
      %v1598 = vor.u32 %v1594, %v1597
      %v1599 = vsel %vm1483, %v1589, %v1598
      %v1601 = vshrl.u32 %v1477, 16
      %v1603 = vrot.slane %v1601, 1
      %v1604 = vshll.u32 %v1477, 16
      %v1606 = vrot.slane %v1604, 2
      %v1607 = vor.u32 %v1603, %v1606
      %v1608 = vsel %vm1483, %v1598, %v1607
      %v1610 = vshrl.u32 %v1478, 16
      %v1612 = vrot.slane %v1610, 1
      %v1613 = vshll.u32 %v1478, 16
      %v1615 = vrot.slane %v1613, 2
      %v1616 = vor.u32 %v1612, %v1615
      %v1617 = vsel %vm1483, %v1607, %v1616
      %v1619 = vshrl.u32 %v1479, 16
      %v1621 = vrot.slane %v1619, 1
      %v1622 = vshll.u32 %v1479, 16
      %v1624 = vrot.slane %v1622, 2
      %v1625 = vor.u32 %v1621, %v1624
      %v1626 = vsel %vm1483, %v1616, %v1625
      %v1628 = vshrl.u32 %v1480, 16
      %v1630 = vrot.slane %v1628, 1
      %v1631 = vshll.u32 %v1480, 16
      %v1633 = vrot.slane %v1631, 2
      %v1634 = vor.u32 %v1630, %v1633
      %v1635 = vsel %vm1483, %v1625, %v1634
      %v1637 = vshrl.u32 %v1481, 16
      %v1639 = vrot.slane %v1637, 1
      %v1640 = vshll.u32 %v1481, 16
      %v1642 = vrot.slane %v1640, 2
      %v1643 = vor.u32 %v1639, %v1642
      %v1644 = vsel %vm1483, %v1634, %v1643
      %v1646 = vshll.u32 %v1482, 16
      %v1648 = vrot.slane %v1646, 2
      %v1649 = vsel %vm1483, %v1643, %v1648
      %v1652 = vunpack.c.l.b16 %v1388
      %v1653 = vunpack.c.l.b16 %v1389
      %v1654 = vpack.c.b16 %v1653, %v1652
      %v1657 = vsel %vm454, %v1500, 0
      %v1660 = vsel %vm454, %v1509, 0
      %v1663 = vsel %vm454, %v1518, 0
      %v1666 = vsel %vm454, %v1527, 0
      %v1669 = vsel %vm454, %v1536, 0
      %v1672 = vsel %vm454, %v1545, 0
      %v1675 = vsel %vm454, %v1554, 0
      %v1678 = vsel %vm454, %v1563, 0
      %v1681 = vsel %vm454, %v1572, 0
      %v1684 = vsel %vm454, %v1581, 0
      %v1687 = vsel %vm454, %v1590, 0
      %v1690 = vsel %vm454, %v1599, 0
      %v1693 = vsel %vm454, %v1608, 0
      %v1696 = vsel %vm454, %v1617, 0
      %v1699 = vsel %vm454, %v1626, 0
      %v1702 = vsel %vm454, %v1635, 0
      %v1705 = vsel %vm454, %v1644, 0
      %v1708 = vsel %vm454, %v1649, 0
      %1710 = vmatpush.bf16.msra.mxu0 0
      %1711 = vmatpush.bf16.msra.mxu0 0
      %1712 = vmatpush.bf16.msra.mxu0 0
      %1713 = vmatpush.bf16.msra.mxu0 0
      %1714 = vmatpush.bf16.msra.mxu0 0
      %1715 = vmatpush.bf16.msra.mxu0 0
      %1716 = vmatpush.bf16.msra.mxu0 0
      %1717 = vmatpush.bf16.msra.mxu0 %v1654
      %1718 = vmatmul.bf16.gmra.mxu0 %v1657
      %v1719 = vpop.f32.mrf.mxu0
      %v1720 = vadd.f32 0.0, %v1719
      %v1721 = vpop.f32.mrf.mxu0
      %v1722 = vadd.f32 0.0, %v1721
      %1723 = vmatmul.bf16.gmra.mxu0 %v1660
      %v1724 = vpop.f32.mrf.mxu0
      %v1725 = vadd.f32 0.0, %v1724
      %v1726 = vpop.f32.mrf.mxu0
      %v1727 = vadd.f32 0.0, %v1726
      %1728 = vmatmul.bf16.gmra.mxu0 %v1663
      %v1729 = vpop.f32.mrf.mxu0
      %v1730 = vadd.f32 0.0, %v1729
      %v1731 = vpop.f32.mrf.mxu0
      %v1732 = vadd.f32 0.0, %v1731
      %1733 = vmatmul.bf16.gmra.mxu0 %v1666
      %v1734 = vpop.f32.mrf.mxu0
      %v1735 = vadd.f32 0.0, %v1734
      %v1736 = vpop.f32.mrf.mxu0
      %v1737 = vadd.f32 0.0, %v1736
      %1738 = vmatmul.bf16.gmra.mxu0 %v1669
      %v1739 = vpop.f32.mrf.mxu0
      %v1740 = vadd.f32 0.0, %v1739
      %v1741 = vpop.f32.mrf.mxu0
      %v1742 = vadd.f32 0.0, %v1741
      %1743 = vmatmul.bf16.gmra.mxu0 %v1672
      %v1744 = vpop.f32.mrf.mxu0
      %v1745 = vadd.f32 0.0, %v1744
      %v1746 = vpop.f32.mrf.mxu0
      %v1747 = vadd.f32 0.0, %v1746
      %1748 = vmatmul.bf16.gmra.mxu0 %v1675
      %v1749 = vpop.f32.mrf.mxu0
      %v1750 = vadd.f32 0.0, %v1749
      %v1751 = vpop.f32.mrf.mxu0
      %v1752 = vadd.f32 0.0, %v1751
      %1753 = vmatmul.bf16.gmra.mxu0 %v1678
      %v1754 = vpop.f32.mrf.mxu0
      %v1755 = vadd.f32 0.0, %v1754
      %v1756 = vpop.f32.mrf.mxu0
      %v1757 = vadd.f32 0.0, %v1756
      %1758 = vmatmul.bf16.gmra.mxu0 %v1681
      %v1759 = vpop.f32.mrf.mxu0
      %v1760 = vadd.f32 0.0, %v1759
      %v1761 = vpop.f32.mrf.mxu0
      %v1762 = vadd.f32 0.0, %v1761
      %1763 = vmatmul.bf16.gmra.mxu0 %v1684
      %v1764 = vpop.f32.mrf.mxu0
      %v1765 = vadd.f32 0.0, %v1764
      %v1766 = vpop.f32.mrf.mxu0
      %v1767 = vadd.f32 0.0, %v1766
      %1768 = vmatmul.bf16.gmra.mxu0 %v1687
      %v1769 = vpop.f32.mrf.mxu0
      %v1770 = vadd.f32 0.0, %v1769
      %v1771 = vpop.f32.mrf.mxu0
      %v1772 = vadd.f32 0.0, %v1771
      %1773 = vmatmul.bf16.gmra.mxu0 %v1690
      %v1774 = vpop.f32.mrf.mxu0
      %v1775 = vadd.f32 0.0, %v1774
      %v1776 = vpop.f32.mrf.mxu0
      %v1777 = vadd.f32 0.0, %v1776
      %1778 = vmatmul.bf16.gmra.mxu0 %v1693
      %v1779 = vpop.f32.mrf.mxu0
      %v1780 = vadd.f32 0.0, %v1779
      %v1781 = vpop.f32.mrf.mxu0
      %v1782 = vadd.f32 0.0, %v1781
      %1783 = vmatmul.bf16.gmra.mxu0 %v1696
      %v1784 = vpop.f32.mrf.mxu0
      %v1785 = vadd.f32 0.0, %v1784
      %v1786 = vpop.f32.mrf.mxu0
      %v1787 = vadd.f32 0.0, %v1786
      %1788 = vmatmul.bf16.gmra.mxu0 %v1699
      %v1789 = vpop.f32.mrf.mxu0
      %v1790 = vadd.f32 0.0, %v1789
      %v1791 = vpop.f32.mrf.mxu0
      %v1792 = vadd.f32 0.0, %v1791
      %1793 = vmatmul.bf16.gmra.mxu0 %v1702
      %v1794 = vpop.f32.mrf.mxu0
      %v1795 = vadd.f32 0.0, %v1794
      %v1796 = vpop.f32.mrf.mxu0
      %v1797 = vadd.f32 0.0, %v1796
      %1798 = vmatmul.bf16.gmra.mxu0 %v1705
      %v1799 = vpop.f32.mrf.mxu0
      %v1800 = vadd.f32 0.0, %v1799
      %v1801 = vpop.f32.mrf.mxu0
      %v1802 = vadd.f32 0.0, %v1801
      %1803 = vmatmul.bf16.gmra.mxu0 %v1708
      %v1804 = vpop.f32.mrf.mxu0
      %v1805 = vadd.f32 0.0, %v1804
      %v1806 = vpop.f32.mrf.mxu0
      %v1807 = vadd.f32 0.0, %v1806
      %1808 = vdwg.mxu0
      %v1809 = vadd.f32 %v1314, %v1720
      %v1810 = vadd.f32 %v1315, %v1722
      %v1811 = vadd.f32 %v1316, %v1725
      %v1812 = vadd.f32 %v1317, %v1727
      %v1813 = vadd.f32 %v1318, %v1730
      %v1814 = vadd.f32 %v1319, %v1732
      %v1815 = vadd.f32 %v1320, %v1735
      %v1816 = vadd.f32 %v1321, %v1737
      %v1817 = vadd.f32 %v1322, %v1740
      %v1818 = vadd.f32 %v1323, %v1742
      %v1819 = vadd.f32 %v1324, %v1745
      %v1820 = vadd.f32 %v1325, %v1747
      %v1821 = vadd.f32 %v1326, %v1750
      %v1822 = vadd.f32 %v1327, %v1752
      %v1823 = vadd.f32 %v1328, %v1755
      %v1824 = vadd.f32 %v1329, %v1757
      %v1825 = vadd.f32 %v1330, %v1760
      %v1826 = vadd.f32 %v1331, %v1762
      %v1827 = vadd.f32 %v1332, %v1765
      %v1828 = vadd.f32 %v1333, %v1767
      %v1829 = vadd.f32 %v1334, %v1770
      %v1830 = vadd.f32 %v1335, %v1772
      %v1831 = vadd.f32 %v1336, %v1775
      %v1832 = vadd.f32 %v1337, %v1777
      %v1833 = vadd.f32 %v1338, %v1780
      %v1834 = vadd.f32 %v1339, %v1782
      %v1835 = vadd.f32 %v1340, %v1785
      %v1836 = vadd.f32 %v1341, %v1787
      %v1837 = vadd.f32 %v1342, %v1790
      %v1838 = vadd.f32 %v1343, %v1792
      %v1839 = vadd.f32 %v1344, %v1795
      %v1840 = vadd.f32 %v1345, %v1797
      %v1841 = vadd.f32 %v1346, %v1800
      %v1842 = vadd.f32 %v1347, %v1802
      %v1843 = vadd.f32 %v1348, %v1805
      %v1844 = vadd.f32 %v1349, %v1807
      %v1845 = vld [vmem:[%s165 + $0x8] sm:$0xc]
      %s1846 = scalar_lea.vmem %s1, 40
      %v1847 = vld [vmem:[%s1846] sm:$0xf]
      %v1848 = vld [vmem:[%s1846 + $0x4] sm:$0xf]
      %v1850 = vunpack.c.l.b16 %v1845
      %v1851 = vpack.c.b16 %v1428, %v1850
      %vm1852 = vcmask 1045504
      %v1853 = vrot.slane %v1851, 2
      %v1854 = vrot.slane %v1465, 2
      %v1855 = vsel %vm1852, %v1853, %v1854
      %v1856 = vrot.slane %v1466, 2
      %v1857 = vsel %vm1852, %v1854, %v1856
      %v1858 = vrot.slane %v1467, 2
      %v1859 = vsel %vm1852, %v1856, %v1858
      %v1860 = vrot.slane %v1468, 2
      %v1861 = vsel %vm1852, %v1858, %v1860
      %v1862 = vrot.slane %v1469, 2
      %v1863 = vsel %vm1852, %v1860, %v1862
      %v1864 = vrot.slane %v1470, 2
      %v1865 = vsel %vm1852, %v1862, %v1864
      %v1866 = vrot.slane %v1471, 2
      %v1867 = vsel %vm1852, %v1864, %v1866
      %v1868 = vrot.slane %v1472, 2
      %v1869 = vsel %vm1852, %v1866, %v1868
      %v1870 = vrot.slane %v1473, 2
      %v1871 = vsel %vm1852, %v1868, %v1870
      %v1872 = vrot.slane %v1474, 2
      %v1873 = vsel %vm1852, %v1870, %v1872
      %v1874 = vrot.slane %v1475, 2
      %v1875 = vsel %vm1852, %v1872, %v1874
      %v1876 = vrot.slane %v1476, 2
      %v1877 = vsel %vm1852, %v1874, %v1876
      %v1878 = vrot.slane %v1477, 2
      %v1879 = vsel %vm1852, %v1876, %v1878
      %v1880 = vrot.slane %v1478, 2
      %v1881 = vsel %vm1852, %v1878, %v1880
      %v1882 = vrot.slane %v1479, 2
      %v1883 = vsel %vm1852, %v1880, %v1882
      %v1884 = vrot.slane %v1480, 2
      %v1885 = vsel %vm1852, %v1882, %v1884
      %v1886 = vrot.slane %v1481, 2
      %v1887 = vsel %vm1852, %v1884, %v1886
      %v1888 = vrot.slane %v1482, 2
      %v1889 = vsel %vm1852, %v1886, %v1888
      %v1892 = vunpack.c.l.b16 %v1847
      %v1893 = vunpack.c.l.b16 %v1848
      %v1894 = vpack.c.b16 %v1893, %v1892
      %v1897 = vsel %vm454, %v1855, 0
      %v1900 = vsel %vm454, %v1857, 0
      %v1903 = vsel %vm454, %v1859, 0
      %v1906 = vsel %vm454, %v1861, 0
      %v1909 = vsel %vm454, %v1863, 0
      %v1912 = vsel %vm454, %v1865, 0
      %v1915 = vsel %vm454, %v1867, 0
      %v1918 = vsel %vm454, %v1869, 0
      %v1921 = vsel %vm454, %v1871, 0
      %v1924 = vsel %vm454, %v1873, 0
      %v1927 = vsel %vm454, %v1875, 0
      %v1930 = vsel %vm454, %v1877, 0
      %v1933 = vsel %vm454, %v1879, 0
      %v1936 = vsel %vm454, %v1881, 0
      %v1939 = vsel %vm454, %v1883, 0
      %v1942 = vsel %vm454, %v1885, 0
      %v1945 = vsel %vm454, %v1887, 0
      %v1948 = vsel %vm454, %v1889, 0
      %1950 = vmatpush.bf16.msra.mxu0 0
      %1951 = vmatpush.bf16.msra.mxu0 0
      %1952 = vmatpush.bf16.msra.mxu0 0
      %1953 = vmatpush.bf16.msra.mxu0 0
      %1954 = vmatpush.bf16.msra.mxu0 0
      %1955 = vmatpush.bf16.msra.mxu0 0
      %1956 = vmatpush.bf16.msra.mxu0 0
      %1957 = vmatpush.bf16.msra.mxu0 %v1894
      %1958 = vmatmul.bf16.gmra.mxu0 %v1897
      %v1959 = vpop.f32.mrf.mxu0
      %v1960 = vadd.f32 0.0, %v1959
      %v1961 = vpop.f32.mrf.mxu0
      %v1962 = vadd.f32 0.0, %v1961
      %1963 = vmatmul.bf16.gmra.mxu0 %v1900
      %v1964 = vpop.f32.mrf.mxu0
      %v1965 = vadd.f32 0.0, %v1964
      %v1966 = vpop.f32.mrf.mxu0
      %v1967 = vadd.f32 0.0, %v1966
      %1968 = vmatmul.bf16.gmra.mxu0 %v1903
      %v1969 = vpop.f32.mrf.mxu0
      %v1970 = vadd.f32 0.0, %v1969
      %v1971 = vpop.f32.mrf.mxu0
      %v1972 = vadd.f32 0.0, %v1971
      %1973 = vmatmul.bf16.gmra.mxu0 %v1906
      %v1974 = vpop.f32.mrf.mxu0
      %v1975 = vadd.f32 0.0, %v1974
      %v1976 = vpop.f32.mrf.mxu0
      %v1977 = vadd.f32 0.0, %v1976
      %1978 = vmatmul.bf16.gmra.mxu0 %v1909
      %v1979 = vpop.f32.mrf.mxu0
      %v1980 = vadd.f32 0.0, %v1979
      %v1981 = vpop.f32.mrf.mxu0
      %v1982 = vadd.f32 0.0, %v1981
      %1983 = vmatmul.bf16.gmra.mxu0 %v1912
      %v1984 = vpop.f32.mrf.mxu0
      %v1985 = vadd.f32 0.0, %v1984
      %v1986 = vpop.f32.mrf.mxu0
      %v1987 = vadd.f32 0.0, %v1986
      %1988 = vmatmul.bf16.gmra.mxu0 %v1915
      %v1989 = vpop.f32.mrf.mxu0
      %v1990 = vadd.f32 0.0, %v1989
      %v1991 = vpop.f32.mrf.mxu0
      %v1992 = vadd.f32 0.0, %v1991
      %1993 = vmatmul.bf16.gmra.mxu0 %v1918
      %v1994 = vpop.f32.mrf.mxu0
      %v1995 = vadd.f32 0.0, %v1994
      %v1996 = vpop.f32.mrf.mxu0
      %v1997 = vadd.f32 0.0, %v1996
      %1998 = vmatmul.bf16.gmra.mxu0 %v1921
      %v1999 = vpop.f32.mrf.mxu0
      %v2000 = vadd.f32 0.0, %v1999
      %v2001 = vpop.f32.mrf.mxu0
      %v2002 = vadd.f32 0.0, %v2001
      %2003 = vmatmul.bf16.gmra.mxu0 %v1924
      %v2004 = vpop.f32.mrf.mxu0
      %v2005 = vadd.f32 0.0, %v2004
      %v2006 = vpop.f32.mrf.mxu0
      %v2007 = vadd.f32 0.0, %v2006
      %2008 = vmatmul.bf16.gmra.mxu0 %v1927
      %v2009 = vpop.f32.mrf.mxu0
      %v2010 = vadd.f32 0.0, %v2009
      %v2011 = vpop.f32.mrf.mxu0
      %v2012 = vadd.f32 0.0, %v2011
      %2013 = vmatmul.bf16.gmra.mxu0 %v1930
      %v2014 = vpop.f32.mrf.mxu0
      %v2015 = vadd.f32 0.0, %v2014
      %v2016 = vpop.f32.mrf.mxu0
      %v2017 = vadd.f32 0.0, %v2016
      %2018 = vmatmul.bf16.gmra.mxu0 %v1933
      %v2019 = vpop.f32.mrf.mxu0
      %v2020 = vadd.f32 0.0, %v2019
      %v2021 = vpop.f32.mrf.mxu0
      %v2022 = vadd.f32 0.0, %v2021
      %2023 = vmatmul.bf16.gmra.mxu0 %v1936
      %v2024 = vpop.f32.mrf.mxu0
      %v2025 = vadd.f32 0.0, %v2024
      %v2026 = vpop.f32.mrf.mxu0
      %v2027 = vadd.f32 0.0, %v2026
      %2028 = vmatmul.bf16.gmra.mxu0 %v1939
      %v2029 = vpop.f32.mrf.mxu0
      %v2030 = vadd.f32 0.0, %v2029
      %v2031 = vpop.f32.mrf.mxu0
      %v2032 = vadd.f32 0.0, %v2031
      %2033 = vmatmul.bf16.gmra.mxu0 %v1942
      %v2034 = vpop.f32.mrf.mxu0
      %v2035 = vadd.f32 0.0, %v2034
      %v2036 = vpop.f32.mrf.mxu0
      %v2037 = vadd.f32 0.0, %v2036
      %2038 = vmatmul.bf16.gmra.mxu0 %v1945
      %v2039 = vpop.f32.mrf.mxu0
      %v2040 = vadd.f32 0.0, %v2039
      %v2041 = vpop.f32.mrf.mxu0
      %v2042 = vadd.f32 0.0, %v2041
      %2043 = vmatmul.bf16.gmra.mxu0 %v1948
      %v2044 = vpop.f32.mrf.mxu0
      %v2045 = vadd.f32 0.0, %v2044
      %v2046 = vpop.f32.mrf.mxu0
      %v2047 = vadd.f32 0.0, %v2046
      %2048 = vdwg.mxu0
      %v2049 = vadd.f32 %v1809, %v1960
      %v2050 = vadd.f32 %v1810, %v1962
      %v2051 = vadd.f32 %v1811, %v1965
      %v2052 = vadd.f32 %v1812, %v1967
      %v2053 = vadd.f32 %v1813, %v1970
      %v2054 = vadd.f32 %v1814, %v1972
      %v2055 = vadd.f32 %v1815, %v1975
      %v2056 = vadd.f32 %v1816, %v1977
      %v2057 = vadd.f32 %v1817, %v1980
      %v2058 = vadd.f32 %v1818, %v1982
      %v2059 = vadd.f32 %v1819, %v1985
      %v2060 = vadd.f32 %v1820, %v1987
      %v2061 = vadd.f32 %v1821, %v1990
      %v2062 = vadd.f32 %v1822, %v1992
      %v2063 = vadd.f32 %v1823, %v1995
      %v2064 = vadd.f32 %v1824, %v1997
      %v2065 = vadd.f32 %v1825, %v2000
      %v2066 = vadd.f32 %v1826, %v2002
      %v2067 = vadd.f32 %v1827, %v2005
      %v2068 = vadd.f32 %v1828, %v2007
      %v2069 = vadd.f32 %v1829, %v2010
      %v2070 = vadd.f32 %v1830, %v2012
      %v2071 = vadd.f32 %v1831, %v2015
      %v2072 = vadd.f32 %v1832, %v2017
      %v2073 = vadd.f32 %v1833, %v2020
      %v2074 = vadd.f32 %v1834, %v2022
      %v2075 = vadd.f32 %v1835, %v2025
      %v2076 = vadd.f32 %v1836, %v2027
      %v2077 = vadd.f32 %v1837, %v2030
      %v2078 = vadd.f32 %v1838, %v2032
      %v2079 = vadd.f32 %v1839, %v2035
      %v2080 = vadd.f32 %v1840, %v2037
      %v2081 = vadd.f32 %v1841, %v2040
      %v2082 = vadd.f32 %v1842, %v2042
      %v2083 = vadd.f32 %v1843, %v2045
      %v2084 = vadd.f32 %v1844, %v2047
      %v2085 = vld [vmem:[%s165 + $0x10] sm:$0xc]
      %v2086 = vld [vmem:[%s165 + $0x14] sm:$0xf]
      %v2087 = vld [vmem:[%s165 + $0x18] sm:$0xf]
      %v2088 = vld [vmem:[%s165 + $0x1c] sm:$0xf]
      %v2089 = vld [vmem:[%s165 + $0x20] sm:$0xf]
      %v2090 = vld [vmem:[%s165 + $0x24] sm:$0xf]
      %v2091 = vld [vmem:[%s165 + $0x28] sm:$0xf]
      %v2092 = vld [vmem:[%s165 + $0x2c] sm:$0xf]
      %v2093 = vld [vmem:[%s165 + $0x30] sm:$0xf]
      %v2094 = vld [vmem:[%s165 + $0x34] sm:$0xf]
      %v2095 = vld [vmem:[%s165 + $0x38] sm:$0xf]
      %v2096 = vld [vmem:[%s165 + $0x3c] sm:$0xf]
      %v2097 = vld [vmem:[%s165 + $0x40] sm:$0xf]
      %v2098 = vld [vmem:[%s165 + $0x44] sm:$0xf]
      %v2099 = vld [vmem:[%s165 + $0x48] sm:$0xf]
      %v2100 = vld [vmem:[%s165 + $0x4c] sm:$0xf]
      %v2101 = vld [vmem:[%s165 + $0x50] sm:$0xf]
      %v2102 = vld [vmem:[%s165 + $0x54] sm:$0xf]
      %v2103 = vld [vmem:[%s165 + $0x58] sm:$0xf]
      %v2104 = vld [vmem:[%s165 + $0x5c] sm:$0xf]
      %v2105 = vld [vmem:[%s165 + $0x60] sm:$0xf]
      %v2106 = vld [vmem:[%s165 + $0x64] sm:$0xf]
      %v2107 = vld [vmem:[%s165 + $0x68] sm:$0xf]
      %v2108 = vld [vmem:[%s165 + $0x6c] sm:$0xf]
      %v2109 = vld [vmem:[%s165 + $0x70] sm:$0xf]
      %v2110 = vld [vmem:[%s165 + $0x74] sm:$0xf]
      %v2111 = vld [vmem:[%s165 + $0x78] sm:$0xf]
      %v2112 = vld [vmem:[%s165 + $0x7c] sm:$0xf]
      %v2113 = vld [vmem:[%s165 + $0x80] sm:$0xf]
      %v2114 = vld [vmem:[%s165 + $0x84] sm:$0xf]
      %v2115 = vld [vmem:[%s165 + $0x88] sm:$0xf]
      %v2116 = vld [vmem:[%s165 + $0x8c] sm:$0xf]
      %v2117 = vld [vmem:[%s165 + $0x90] sm:$0xf]
      %v2118 = vld [vmem:[%s165 + $0x94] sm:$0xf]
      %v2119 = vld [vmem:[%s165 + $0x98] sm:$0xf]
      %v2120 = vld [vmem:[%s165 + $0x9c] sm:$0xf]
      %v2121 = vld [vmem:[%s165 + $0xa0] sm:$0x1]
      %s2122 = scalar_lea.vmem %s1, 48
      %v2123 = vld [vmem:[%s2122] sm:$0xf]
      %v2124 = vld [vmem:[%s2122 + $0x4] sm:$0xf]
      %v2162 = vunpack.c.l.b16 %v2085
      %v2163 = vunpack.c.l.b16 %v2086
      %v2164 = vunpack.c.l.b16 %v2087
      %v2165 = vunpack.c.l.b16 %v2088
      %v2166 = vunpack.c.l.b16 %v2089
      %v2167 = vunpack.c.l.b16 %v2090
      %v2168 = vunpack.c.l.b16 %v2091
      %v2169 = vunpack.c.l.b16 %v2092
      %v2170 = vunpack.c.l.b16 %v2093
      %v2171 = vunpack.c.l.b16 %v2094
      %v2172 = vunpack.c.l.b16 %v2095
      %v2173 = vunpack.c.l.b16 %v2096
      %v2174 = vunpack.c.l.b16 %v2097
      %v2175 = vunpack.c.l.b16 %v2098
      %v2176 = vunpack.c.l.b16 %v2099
      %v2177 = vunpack.c.l.b16 %v2100
      %v2178 = vunpack.c.l.b16 %v2101
      %v2179 = vunpack.c.l.b16 %v2102
      %v2180 = vunpack.c.l.b16 %v2103
      %v2181 = vunpack.c.l.b16 %v2104
      %v2182 = vunpack.c.l.b16 %v2105
      %v2183 = vunpack.c.l.b16 %v2106
      %v2184 = vunpack.c.l.b16 %v2107
      %v2185 = vunpack.c.l.b16 %v2108
      %v2186 = vunpack.c.l.b16 %v2109
      %v2187 = vunpack.c.l.b16 %v2110
      %v2188 = vunpack.c.l.b16 %v2111
      %v2189 = vunpack.c.l.b16 %v2112
      %v2190 = vunpack.c.l.b16 %v2113
      %v2191 = vunpack.c.l.b16 %v2114
      %v2192 = vunpack.c.l.b16 %v2115
      %v2193 = vunpack.c.l.b16 %v2116
      %v2194 = vunpack.c.l.b16 %v2117
      %v2195 = vunpack.c.l.b16 %v2118
      %v2196 = vunpack.c.l.b16 %v2119
      %v2197 = vunpack.c.l.b16 %v2120
      %v2198 = vunpack.c.l.b16 %v2121
      %v2199 = vpack.c.b16 %v2163, %v2162
      %v2200 = vpack.c.b16 %v2165, %v2164
      %v2201 = vpack.c.b16 %v2167, %v2166
      %v2202 = vpack.c.b16 %v2169, %v2168
      %v2203 = vpack.c.b16 %v2171, %v2170
      %v2204 = vpack.c.b16 %v2173, %v2172
      %v2205 = vpack.c.b16 %v2175, %v2174
      %v2206 = vpack.c.b16 %v2177, %v2176
      %v2207 = vpack.c.b16 %v2179, %v2178
      %v2208 = vpack.c.b16 %v2181, %v2180
      %v2209 = vpack.c.b16 %v2183, %v2182
      %v2210 = vpack.c.b16 %v2185, %v2184
      %v2211 = vpack.c.b16 %v2187, %v2186
      %v2212 = vpack.c.b16 %v2189, %v2188
      %v2213 = vpack.c.b16 %v2191, %v2190
      %v2214 = vpack.c.b16 %v2193, %v2192
      %v2215 = vpack.c.b16 %v2195, %v2194
      %v2216 = vpack.c.b16 %v2197, %v2196
      %v2217 = vpack.c.b16 %v2198, %v2198
      %v2218 = vrot.slane %v2199, 2
      %v2219 = vrot.slane %v2200, 2
      %v2220 = vsel %vm1852, %v2218, %v2219
      %v2221 = vrot.slane %v2201, 2
      %v2222 = vsel %vm1852, %v2219, %v2221
      %v2223 = vrot.slane %v2202, 2
      %v2224 = vsel %vm1852, %v2221, %v2223
      %v2225 = vrot.slane %v2203, 2
      %v2226 = vsel %vm1852, %v2223, %v2225
      %v2227 = vrot.slane %v2204, 2
      %v2228 = vsel %vm1852, %v2225, %v2227
      %v2229 = vrot.slane %v2205, 2
      %v2230 = vsel %vm1852, %v2227, %v2229
      %v2231 = vrot.slane %v2206, 2
      %v2232 = vsel %vm1852, %v2229, %v2231
      %v2233 = vrot.slane %v2207, 2
      %v2234 = vsel %vm1852, %v2231, %v2233
      %v2235 = vrot.slane %v2208, 2
      %v2236 = vsel %vm1852, %v2233, %v2235
      %v2237 = vrot.slane %v2209, 2
      %v2238 = vsel %vm1852, %v2235, %v2237
      %v2239 = vrot.slane %v2210, 2
      %v2240 = vsel %vm1852, %v2237, %v2239
      %v2241 = vrot.slane %v2211, 2
      %v2242 = vsel %vm1852, %v2239, %v2241
      %v2243 = vrot.slane %v2212, 2
      %v2244 = vsel %vm1852, %v2241, %v2243
      %v2245 = vrot.slane %v2213, 2
      %v2246 = vsel %vm1852, %v2243, %v2245
      %v2247 = vrot.slane %v2214, 2
      %v2248 = vsel %vm1852, %v2245, %v2247
      %v2249 = vrot.slane %v2215, 2
      %v2250 = vsel %vm1852, %v2247, %v2249
      %v2251 = vrot.slane %v2216, 2
      %v2252 = vsel %vm1852, %v2249, %v2251
      %v2253 = vrot.slane %v2217, 2
      %v2254 = vsel %vm1852, %v2251, %v2253
      %v2257 = vunpack.c.l.b16 %v2123
      %v2258 = vunpack.c.l.b16 %v2124
      %v2259 = vpack.c.b16 %v2258, %v2257
      %v2262 = vsel %vm454, %v2220, 0
      %v2265 = vsel %vm454, %v2222, 0
      %v2268 = vsel %vm454, %v2224, 0
      %v2271 = vsel %vm454, %v2226, 0
      %v2274 = vsel %vm454, %v2228, 0
      %v2277 = vsel %vm454, %v2230, 0
      %v2280 = vsel %vm454, %v2232, 0
      %v2283 = vsel %vm454, %v2234, 0
      %v2286 = vsel %vm454, %v2236, 0
      %v2289 = vsel %vm454, %v2238, 0
      %v2292 = vsel %vm454, %v2240, 0
      %v2295 = vsel %vm454, %v2242, 0
      %v2298 = vsel %vm454, %v2244, 0
      %v2301 = vsel %vm454, %v2246, 0
      %v2304 = vsel %vm454, %v2248, 0
      %v2307 = vsel %vm454, %v2250, 0
      %v2310 = vsel %vm454, %v2252, 0
      %v2313 = vsel %vm454, %v2254, 0
      %2315 = vmatpush.bf16.msra.mxu0 0
      %2316 = vmatpush.bf16.msra.mxu0 0
      %2317 = vmatpush.bf16.msra.mxu0 0
      %2318 = vmatpush.bf16.msra.mxu0 0
      %2319 = vmatpush.bf16.msra.mxu0 0
      %2320 = vmatpush.bf16.msra.mxu0 0
      %2321 = vmatpush.bf16.msra.mxu0 0
      %2322 = vmatpush.bf16.msra.mxu0 %v2259
      %2323 = vmatmul.bf16.gmra.mxu0 %v2262
      %v2324 = vpop.f32.mrf.mxu0
      %v2325 = vadd.f32 0.0, %v2324
      %v2326 = vpop.f32.mrf.mxu0
      %v2327 = vadd.f32 0.0, %v2326
      %2328 = vmatmul.bf16.gmra.mxu0 %v2265
      %v2329 = vpop.f32.mrf.mxu0
      %v2330 = vadd.f32 0.0, %v2329
      %v2331 = vpop.f32.mrf.mxu0
      %v2332 = vadd.f32 0.0, %v2331
      %2333 = vmatmul.bf16.gmra.mxu0 %v2268
      %v2334 = vpop.f32.mrf.mxu0
      %v2335 = vadd.f32 0.0, %v2334
      %v2336 = vpop.f32.mrf.mxu0
      %v2337 = vadd.f32 0.0, %v2336
      %2338 = vmatmul.bf16.gmra.mxu0 %v2271
      %v2339 = vpop.f32.mrf.mxu0
      %v2340 = vadd.f32 0.0, %v2339
      %v2341 = vpop.f32.mrf.mxu0
      %v2342 = vadd.f32 0.0, %v2341
      %2343 = vmatmul.bf16.gmra.mxu0 %v2274
      %v2344 = vpop.f32.mrf.mxu0
      %v2345 = vadd.f32 0.0, %v2344
      %v2346 = vpop.f32.mrf.mxu0
      %v2347 = vadd.f32 0.0, %v2346
      %2348 = vmatmul.bf16.gmra.mxu0 %v2277
      %v2349 = vpop.f32.mrf.mxu0
      %v2350 = vadd.f32 0.0, %v2349
      %v2351 = vpop.f32.mrf.mxu0
      %v2352 = vadd.f32 0.0, %v2351
      %2353 = vmatmul.bf16.gmra.mxu0 %v2280
      %v2354 = vpop.f32.mrf.mxu0
      %v2355 = vadd.f32 0.0, %v2354
      %v2356 = vpop.f32.mrf.mxu0
      %v2357 = vadd.f32 0.0, %v2356
      %2358 = vmatmul.bf16.gmra.mxu0 %v2283
      %v2359 = vpop.f32.mrf.mxu0
      %v2360 = vadd.f32 0.0, %v2359
      %v2361 = vpop.f32.mrf.mxu0
      %v2362 = vadd.f32 0.0, %v2361
      %2363 = vmatmul.bf16.gmra.mxu0 %v2286
      %v2364 = vpop.f32.mrf.mxu0
      %v2365 = vadd.f32 0.0, %v2364
      %v2366 = vpop.f32.mrf.mxu0
      %v2367 = vadd.f32 0.0, %v2366
      %2368 = vmatmul.bf16.gmra.mxu0 %v2289
      %v2369 = vpop.f32.mrf.mxu0
      %v2370 = vadd.f32 0.0, %v2369
      %v2371 = vpop.f32.mrf.mxu0
      %v2372 = vadd.f32 0.0, %v2371
      %2373 = vmatmul.bf16.gmra.mxu0 %v2292
      %v2374 = vpop.f32.mrf.mxu0
      %v2375 = vadd.f32 0.0, %v2374
      %v2376 = vpop.f32.mrf.mxu0
      %v2377 = vadd.f32 0.0, %v2376
      %2378 = vmatmul.bf16.gmra.mxu0 %v2295
      %v2379 = vpop.f32.mrf.mxu0
      %v2380 = vadd.f32 0.0, %v2379
      %v2381 = vpop.f32.mrf.mxu0
      %v2382 = vadd.f32 0.0, %v2381
      %2383 = vmatmul.bf16.gmra.mxu0 %v2298
      %v2384 = vpop.f32.mrf.mxu0
      %v2385 = vadd.f32 0.0, %v2384
      %v2386 = vpop.f32.mrf.mxu0
      %v2387 = vadd.f32 0.0, %v2386
      %2388 = vmatmul.bf16.gmra.mxu0 %v2301
      %v2389 = vpop.f32.mrf.mxu0
      %v2390 = vadd.f32 0.0, %v2389
      %v2391 = vpop.f32.mrf.mxu0
      %v2392 = vadd.f32 0.0, %v2391
      %2393 = vmatmul.bf16.gmra.mxu0 %v2304
      %v2394 = vpop.f32.mrf.mxu0
      %v2395 = vadd.f32 0.0, %v2394
      %v2396 = vpop.f32.mrf.mxu0
      %v2397 = vadd.f32 0.0, %v2396
      %2398 = vmatmul.bf16.gmra.mxu0 %v2307
      %v2399 = vpop.f32.mrf.mxu0
      %v2400 = vadd.f32 0.0, %v2399
      %v2401 = vpop.f32.mrf.mxu0
      %v2402 = vadd.f32 0.0, %v2401
      %2403 = vmatmul.bf16.gmra.mxu0 %v2310
      %v2404 = vpop.f32.mrf.mxu0
      %v2405 = vadd.f32 0.0, %v2404
      %v2406 = vpop.f32.mrf.mxu0
      %v2407 = vadd.f32 0.0, %v2406
      %2408 = vmatmul.bf16.gmra.mxu0 %v2313
      %v2409 = vpop.f32.mrf.mxu0
      %v2410 = vadd.f32 0.0, %v2409
      %v2411 = vpop.f32.mrf.mxu0
      %v2412 = vadd.f32 0.0, %v2411
      %2413 = vdwg.mxu0
      %v2414 = vadd.f32 %v2049, %v2325
      %v2415 = vadd.f32 %v2050, %v2327
      %v2416 = vadd.f32 %v2051, %v2330
      %v2417 = vadd.f32 %v2052, %v2332
      %v2418 = vadd.f32 %v2053, %v2335
      %v2419 = vadd.f32 %v2054, %v2337
      %v2420 = vadd.f32 %v2055, %v2340
      %v2421 = vadd.f32 %v2056, %v2342
      %v2422 = vadd.f32 %v2057, %v2345
      %v2423 = vadd.f32 %v2058, %v2347
      %v2424 = vadd.f32 %v2059, %v2350
      %v2425 = vadd.f32 %v2060, %v2352
      %v2426 = vadd.f32 %v2061, %v2355
      %v2427 = vadd.f32 %v2062, %v2357
      %v2428 = vadd.f32 %v2063, %v2360
      %v2429 = vadd.f32 %v2064, %v2362
      %v2430 = vadd.f32 %v2065, %v2365
      %v2431 = vadd.f32 %v2066, %v2367
      %v2432 = vadd.f32 %v2067, %v2370
      %v2433 = vadd.f32 %v2068, %v2372
      %v2434 = vadd.f32 %v2069, %v2375
      %v2435 = vadd.f32 %v2070, %v2377
      %v2436 = vadd.f32 %v2071, %v2380
      %v2437 = vadd.f32 %v2072, %v2382
      %v2438 = vadd.f32 %v2073, %v2385
      %v2439 = vadd.f32 %v2074, %v2387
      %v2440 = vadd.f32 %v2075, %v2390
      %v2441 = vadd.f32 %v2076, %v2392
      %v2442 = vadd.f32 %v2077, %v2395
      %v2443 = vadd.f32 %v2078, %v2397
      %v2444 = vadd.f32 %v2079, %v2400
      %v2445 = vadd.f32 %v2080, %v2402
      %v2446 = vadd.f32 %v2081, %v2405
      %v2447 = vadd.f32 %v2082, %v2407
      %v2448 = vadd.f32 %v2083, %v2410
      %v2449 = vadd.f32 %v2084, %v2412
      %v2450 = vld [vmem:[%s165 + $0xa0] sm:$0x3]
      %s2451 = scalar_lea.vmem %s1, 56
      %v2452 = vld [vmem:[%s2451] sm:$0xf]
      %v2453 = vld [vmem:[%s2451 + $0x4] sm:$0xf]
      %v2455 = vunpack.c.l.b16 %v2450
      %v2456 = vpack.c.b16 %v2455, %v2455
      %vm2457 = vsmask.f32 5376
      %v2459 = vshrl.u32 %v2199, 16
      %v2461 = vrot.slane %v2459, 2
      %v2462 = vshll.u32 %v2199, 16
      %v2464 = vrot.slane %v2462, 3
      %v2465 = vor.u32 %v2461, %v2464
      %v2467 = vshrl.u32 %v2200, 16
      %v2469 = vrot.slane %v2467, 2
      %v2470 = vshll.u32 %v2200, 16
      %v2472 = vrot.slane %v2470, 3
      %v2473 = vor.u32 %v2469, %v2472
      %v2474 = vsel %vm2457, %v2465, %v2473
      %v2476 = vshrl.u32 %v2201, 16
      %v2478 = vrot.slane %v2476, 2
      %v2479 = vshll.u32 %v2201, 16
      %v2481 = vrot.slane %v2479, 3
      %v2482 = vor.u32 %v2478, %v2481
      %v2483 = vsel %vm2457, %v2473, %v2482
      %v2485 = vshrl.u32 %v2202, 16
      %v2487 = vrot.slane %v2485, 2
      %v2488 = vshll.u32 %v2202, 16
      %v2490 = vrot.slane %v2488, 3
      %v2491 = vor.u32 %v2487, %v2490
      %v2492 = vsel %vm2457, %v2482, %v2491
      %v2494 = vshrl.u32 %v2203, 16
      %v2496 = vrot.slane %v2494, 2
      %v2497 = vshll.u32 %v2203, 16
      %v2499 = vrot.slane %v2497, 3
      %v2500 = vor.u32 %v2496, %v2499
      %v2501 = vsel %vm2457, %v2491, %v2500
      %v2503 = vshrl.u32 %v2204, 16
      %v2505 = vrot.slane %v2503, 2
      %v2506 = vshll.u32 %v2204, 16
      %v2508 = vrot.slane %v2506, 3
      %v2509 = vor.u32 %v2505, %v2508
      %v2510 = vsel %vm2457, %v2500, %v2509
      %v2512 = vshrl.u32 %v2205, 16
      %v2514 = vrot.slane %v2512, 2
      %v2515 = vshll.u32 %v2205, 16
      %v2517 = vrot.slane %v2515, 3
      %v2518 = vor.u32 %v2514, %v2517
      %v2519 = vsel %vm2457, %v2509, %v2518
      %v2521 = vshrl.u32 %v2206, 16
      %v2523 = vrot.slane %v2521, 2
      %v2524 = vshll.u32 %v2206, 16
      %v2526 = vrot.slane %v2524, 3
      %v2527 = vor.u32 %v2523, %v2526
      %v2528 = vsel %vm2457, %v2518, %v2527
      %v2530 = vshrl.u32 %v2207, 16
      %v2532 = vrot.slane %v2530, 2
      %v2533 = vshll.u32 %v2207, 16
      %v2535 = vrot.slane %v2533, 3
      %v2536 = vor.u32 %v2532, %v2535
      %v2537 = vsel %vm2457, %v2527, %v2536
      %v2539 = vshrl.u32 %v2208, 16
      %v2541 = vrot.slane %v2539, 2
      %v2542 = vshll.u32 %v2208, 16
      %v2544 = vrot.slane %v2542, 3
      %v2545 = vor.u32 %v2541, %v2544
      %v2546 = vsel %vm2457, %v2536, %v2545
      %v2548 = vshrl.u32 %v2209, 16
      %v2550 = vrot.slane %v2548, 2
      %v2551 = vshll.u32 %v2209, 16
      %v2553 = vrot.slane %v2551, 3
      %v2554 = vor.u32 %v2550, %v2553
      %v2555 = vsel %vm2457, %v2545, %v2554
      %v2557 = vshrl.u32 %v2210, 16
      %v2559 = vrot.slane %v2557, 2
      %v2560 = vshll.u32 %v2210, 16
      %v2562 = vrot.slane %v2560, 3
      %v2563 = vor.u32 %v2559, %v2562
      %v2564 = vsel %vm2457, %v2554, %v2563
      %v2566 = vshrl.u32 %v2211, 16
      %v2568 = vrot.slane %v2566, 2
      %v2569 = vshll.u32 %v2211, 16
      %v2571 = vrot.slane %v2569, 3
      %v2572 = vor.u32 %v2568, %v2571
      %v2573 = vsel %vm2457, %v2563, %v2572
      %v2575 = vshrl.u32 %v2212, 16
      %v2577 = vrot.slane %v2575, 2
      %v2578 = vshll.u32 %v2212, 16
      %v2580 = vrot.slane %v2578, 3
      %v2581 = vor.u32 %v2577, %v2580
      %v2582 = vsel %vm2457, %v2572, %v2581
      %v2584 = vshrl.u32 %v2213, 16
      %v2586 = vrot.slane %v2584, 2
      %v2587 = vshll.u32 %v2213, 16
      %v2589 = vrot.slane %v2587, 3
      %v2590 = vor.u32 %v2586, %v2589
      %v2591 = vsel %vm2457, %v2581, %v2590
      %v2593 = vshrl.u32 %v2214, 16
      %v2595 = vrot.slane %v2593, 2
      %v2596 = vshll.u32 %v2214, 16
      %v2598 = vrot.slane %v2596, 3
      %v2599 = vor.u32 %v2595, %v2598
      %v2600 = vsel %vm2457, %v2590, %v2599
      %v2602 = vshrl.u32 %v2215, 16
      %v2604 = vrot.slane %v2602, 2
      %v2605 = vshll.u32 %v2215, 16
      %v2607 = vrot.slane %v2605, 3
      %v2608 = vor.u32 %v2604, %v2607
      %v2609 = vsel %vm2457, %v2599, %v2608
      %v2611 = vshrl.u32 %v2216, 16
      %v2613 = vrot.slane %v2611, 2
      %v2614 = vshll.u32 %v2216, 16
      %v2616 = vrot.slane %v2614, 3
      %v2617 = vor.u32 %v2613, %v2616
      %v2618 = vsel %vm2457, %v2608, %v2617
      %v2620 = vshrl.u32 %v2456, 16
      %v2622 = vrot.slane %v2620, 2
      %v2623 = vshll.u32 %v2456, 16
      %v2625 = vrot.slane %v2623, 3
      %v2626 = vor.u32 %v2622, %v2625
      %v2627 = vsel %vm2457, %v2617, %v2626
      %v2630 = vunpack.c.l.b16 %v2452
      %v2631 = vunpack.c.l.b16 %v2453
      %v2632 = vpack.c.b16 %v2631, %v2630
      %v2635 = vsel %vm454, %v2474, 0
      %v2638 = vsel %vm454, %v2483, 0
      %v2641 = vsel %vm454, %v2492, 0
      %v2644 = vsel %vm454, %v2501, 0
      %v2647 = vsel %vm454, %v2510, 0
      %v2650 = vsel %vm454, %v2519, 0
      %v2653 = vsel %vm454, %v2528, 0
      %v2656 = vsel %vm454, %v2537, 0
      %v2659 = vsel %vm454, %v2546, 0
      %v2662 = vsel %vm454, %v2555, 0
      %v2665 = vsel %vm454, %v2564, 0
      %v2668 = vsel %vm454, %v2573, 0
      %v2671 = vsel %vm454, %v2582, 0
      %v2674 = vsel %vm454, %v2591, 0
      %v2677 = vsel %vm454, %v2600, 0
      %v2680 = vsel %vm454, %v2609, 0
      %v2683 = vsel %vm454, %v2618, 0
      %v2686 = vsel %vm454, %v2627, 0
      %2688 = vmatpush.bf16.msra.mxu0 0
      %2689 = vmatpush.bf16.msra.mxu0 0
      %2690 = vmatpush.bf16.msra.mxu0 0
      %2691 = vmatpush.bf16.msra.mxu0 0
      %2692 = vmatpush.bf16.msra.mxu0 0
      %2693 = vmatpush.bf16.msra.mxu0 0
      %2694 = vmatpush.bf16.msra.mxu0 0
      %2695 = vmatpush.bf16.msra.mxu0 %v2632
      %2696 = vmatmul.bf16.gmra.mxu0 %v2635
      %v2697 = vpop.f32.mrf.mxu0
      %v2698 = vadd.f32 0.0, %v2697
      %v2699 = vpop.f32.mrf.mxu0
      %v2700 = vadd.f32 0.0, %v2699
      %2701 = vmatmul.bf16.gmra.mxu0 %v2638
      %v2702 = vpop.f32.mrf.mxu0
      %v2703 = vadd.f32 0.0, %v2702
      %v2704 = vpop.f32.mrf.mxu0
      %v2705 = vadd.f32 0.0, %v2704
      %2706 = vmatmul.bf16.gmra.mxu0 %v2641
      %v2707 = vpop.f32.mrf.mxu0
      %v2708 = vadd.f32 0.0, %v2707
      %v2709 = vpop.f32.mrf.mxu0
      %v2710 = vadd.f32 0.0, %v2709
      %2711 = vmatmul.bf16.gmra.mxu0 %v2644
      %v2712 = vpop.f32.mrf.mxu0
      %v2713 = vadd.f32 0.0, %v2712
      %v2714 = vpop.f32.mrf.mxu0
      %v2715 = vadd.f32 0.0, %v2714
      %2716 = vmatmul.bf16.gmra.mxu0 %v2647
      %v2717 = vpop.f32.mrf.mxu0
      %v2718 = vadd.f32 0.0, %v2717
      %v2719 = vpop.f32.mrf.mxu0
      %v2720 = vadd.f32 0.0, %v2719
      %2721 = vmatmul.bf16.gmra.mxu0 %v2650
      %v2722 = vpop.f32.mrf.mxu0
      %v2723 = vadd.f32 0.0, %v2722
      %v2724 = vpop.f32.mrf.mxu0
      %v2725 = vadd.f32 0.0, %v2724
      %2726 = vmatmul.bf16.gmra.mxu0 %v2653
      %v2727 = vpop.f32.mrf.mxu0
      %v2728 = vadd.f32 0.0, %v2727
      %v2729 = vpop.f32.mrf.mxu0
      %v2730 = vadd.f32 0.0, %v2729
      %2731 = vmatmul.bf16.gmra.mxu0 %v2656
      %v2732 = vpop.f32.mrf.mxu0
      %v2733 = vadd.f32 0.0, %v2732
      %v2734 = vpop.f32.mrf.mxu0
      %v2735 = vadd.f32 0.0, %v2734
      %2736 = vmatmul.bf16.gmra.mxu0 %v2659
      %v2737 = vpop.f32.mrf.mxu0
      %v2738 = vadd.f32 0.0, %v2737
      %v2739 = vpop.f32.mrf.mxu0
      %v2740 = vadd.f32 0.0, %v2739
      %2741 = vmatmul.bf16.gmra.mxu0 %v2662
      %v2742 = vpop.f32.mrf.mxu0
      %v2743 = vadd.f32 0.0, %v2742
      %v2744 = vpop.f32.mrf.mxu0
      %v2745 = vadd.f32 0.0, %v2744
      %2746 = vmatmul.bf16.gmra.mxu0 %v2665
      %v2747 = vpop.f32.mrf.mxu0
      %v2748 = vadd.f32 0.0, %v2747
      %v2749 = vpop.f32.mrf.mxu0
      %v2750 = vadd.f32 0.0, %v2749
      %2751 = vmatmul.bf16.gmra.mxu0 %v2668
      %v2752 = vpop.f32.mrf.mxu0
      %v2753 = vadd.f32 0.0, %v2752
      %v2754 = vpop.f32.mrf.mxu0
      %v2755 = vadd.f32 0.0, %v2754
      %2756 = vmatmul.bf16.gmra.mxu0 %v2671
      %v2757 = vpop.f32.mrf.mxu0
      %v2758 = vadd.f32 0.0, %v2757
      %v2759 = vpop.f32.mrf.mxu0
      %v2760 = vadd.f32 0.0, %v2759
      %2761 = vmatmul.bf16.gmra.mxu0 %v2674
      %v2762 = vpop.f32.mrf.mxu0
      %v2763 = vadd.f32 0.0, %v2762
      %v2764 = vpop.f32.mrf.mxu0
      %v2765 = vadd.f32 0.0, %v2764
      %2766 = vmatmul.bf16.gmra.mxu0 %v2677
      %v2767 = vpop.f32.mrf.mxu0
      %v2768 = vadd.f32 0.0, %v2767
      %v2769 = vpop.f32.mrf.mxu0
      %v2770 = vadd.f32 0.0, %v2769
      %2771 = vmatmul.bf16.gmra.mxu0 %v2680
      %v2772 = vpop.f32.mrf.mxu0
      %v2773 = vadd.f32 0.0, %v2772
      %v2774 = vpop.f32.mrf.mxu0
      %v2775 = vadd.f32 0.0, %v2774
      %2776 = vmatmul.bf16.gmra.mxu0 %v2683
      %v2777 = vpop.f32.mrf.mxu0
      %v2778 = vadd.f32 0.0, %v2777
      %v2779 = vpop.f32.mrf.mxu0
      %v2780 = vadd.f32 0.0, %v2779
      %2781 = vmatmul.bf16.gmra.mxu0 %v2686
      %v2782 = vpop.f32.mrf.mxu0
      %v2783 = vadd.f32 0.0, %v2782
      %v2784 = vpop.f32.mrf.mxu0
      %v2785 = vadd.f32 0.0, %v2784
      %2786 = vdwg.mxu0
      %v2787 = vadd.f32 %v2414, %v2698
      %v2788 = vadd.f32 %v2415, %v2700
      %v2789 = vadd.f32 %v2416, %v2703
      %v2790 = vadd.f32 %v2417, %v2705
      %v2791 = vadd.f32 %v2418, %v2708
      %v2792 = vadd.f32 %v2419, %v2710
      %v2793 = vadd.f32 %v2420, %v2713
      %v2794 = vadd.f32 %v2421, %v2715
      %v2795 = vadd.f32 %v2422, %v2718
      %v2796 = vadd.f32 %v2423, %v2720
      %v2797 = vadd.f32 %v2424, %v2723
      %v2798 = vadd.f32 %v2425, %v2725
      %v2799 = vadd.f32 %v2426, %v2728
      %v2800 = vadd.f32 %v2427, %v2730
      %v2801 = vadd.f32 %v2428, %v2733
      %v2802 = vadd.f32 %v2429, %v2735
      %v2803 = vadd.f32 %v2430, %v2738
      %v2804 = vadd.f32 %v2431, %v2740
      %v2805 = vadd.f32 %v2432, %v2743
      %v2806 = vadd.f32 %v2433, %v2745
      %v2807 = vadd.f32 %v2434, %v2748
      %v2808 = vadd.f32 %v2435, %v2750
      %v2809 = vadd.f32 %v2436, %v2753
      %v2810 = vadd.f32 %v2437, %v2755
      %v2811 = vadd.f32 %v2438, %v2758
      %v2812 = vadd.f32 %v2439, %v2760
      %v2813 = vadd.f32 %v2440, %v2763
      %v2814 = vadd.f32 %v2441, %v2765
      %v2815 = vadd.f32 %v2442, %v2768
      %v2816 = vadd.f32 %v2443, %v2770
      %v2817 = vadd.f32 %v2444, %v2773
      %v2818 = vadd.f32 %v2445, %v2775
      %v2819 = vadd.f32 %v2446, %v2778
      %v2820 = vadd.f32 %v2447, %v2780
      %v2821 = vadd.f32 %v2448, %v2783
      %v2822 = vadd.f32 %v2449, %v2785
      %v2823 = vld [vmem:[%s165 + $0x10] sm:$0x8]
      %s2824 = scalar_lea.vmem %s1, 64
      %v2825 = vld [vmem:[%s2824] sm:$0xf]
      %v2826 = vld [vmem:[%s2824 + $0x4] sm:$0xf]
      %v2828 = vunpack.c.l.b16 %v2823
      %v2829 = vpack.c.b16 %v2163, %v2828
      %vm2830 = vcmask 1044480
      %v2831 = vrot.slane %v2829, 3
      %v2832 = vrot.slane %v2200, 3
      %v2833 = vsel %vm2830, %v2831, %v2832
      %v2834 = vrot.slane %v2201, 3
      %v2835 = vsel %vm2830, %v2832, %v2834
      %v2836 = vrot.slane %v2202, 3
      %v2837 = vsel %vm2830, %v2834, %v2836
      %v2838 = vrot.slane %v2203, 3
      %v2839 = vsel %vm2830, %v2836, %v2838
      %v2840 = vrot.slane %v2204, 3
      %v2841 = vsel %vm2830, %v2838, %v2840
      %v2842 = vrot.slane %v2205, 3
      %v2843 = vsel %vm2830, %v2840, %v2842
      %v2844 = vrot.slane %v2206, 3
      %v2845 = vsel %vm2830, %v2842, %v2844
      %v2846 = vrot.slane %v2207, 3
      %v2847 = vsel %vm2830, %v2844, %v2846
      %v2848 = vrot.slane %v2208, 3
      %v2849 = vsel %vm2830, %v2846, %v2848
      %v2850 = vrot.slane %v2209, 3
      %v2851 = vsel %vm2830, %v2848, %v2850
      %v2852 = vrot.slane %v2210, 3
      %v2853 = vsel %vm2830, %v2850, %v2852
      %v2854 = vrot.slane %v2211, 3
      %v2855 = vsel %vm2830, %v2852, %v2854
      %v2856 = vrot.slane %v2212, 3
      %v2857 = vsel %vm2830, %v2854, %v2856
      %v2858 = vrot.slane %v2213, 3
      %v2859 = vsel %vm2830, %v2856, %v2858
      %v2860 = vrot.slane %v2214, 3
      %v2861 = vsel %vm2830, %v2858, %v2860
      %v2862 = vrot.slane %v2215, 3
      %v2863 = vsel %vm2830, %v2860, %v2862
      %v2864 = vrot.slane %v2216, 3
      %v2865 = vsel %vm2830, %v2862, %v2864
      %v2866 = vrot.slane %v2456, 3
      %v2867 = vsel %vm2830, %v2864, %v2866
      %v2870 = vunpack.c.l.b16 %v2825
      %v2871 = vunpack.c.l.b16 %v2826
      %v2872 = vpack.c.b16 %v2871, %v2870
      %v2875 = vsel %vm454, %v2833, 0
      %v2878 = vsel %vm454, %v2835, 0
      %v2881 = vsel %vm454, %v2837, 0
      %v2884 = vsel %vm454, %v2839, 0
      %v2887 = vsel %vm454, %v2841, 0
      %v2890 = vsel %vm454, %v2843, 0
      %v2893 = vsel %vm454, %v2845, 0
      %v2896 = vsel %vm454, %v2847, 0
      %v2899 = vsel %vm454, %v2849, 0
      %v2902 = vsel %vm454, %v2851, 0
      %v2905 = vsel %vm454, %v2853, 0
      %v2908 = vsel %vm454, %v2855, 0
      %v2911 = vsel %vm454, %v2857, 0
      %v2914 = vsel %vm454, %v2859, 0
      %v2917 = vsel %vm454, %v2861, 0
      %v2920 = vsel %vm454, %v2863, 0
      %v2923 = vsel %vm454, %v2865, 0
      %v2926 = vsel %vm454, %v2867, 0
      %2928 = vmatpush.bf16.msra.mxu0 0
      %2929 = vmatpush.bf16.msra.mxu0 0
      %2930 = vmatpush.bf16.msra.mxu0 0
      %2931 = vmatpush.bf16.msra.mxu0 0
      %2932 = vmatpush.bf16.msra.mxu0 0
      %2933 = vmatpush.bf16.msra.mxu0 0
      %2934 = vmatpush.bf16.msra.mxu0 0
      %2935 = vmatpush.bf16.msra.mxu0 %v2872
      %2936 = vmatmul.bf16.gmra.mxu0 %v2875
      %v2937 = vpop.f32.mrf.mxu0
      %v2938 = vadd.f32 0.0, %v2937
      %v2939 = vpop.f32.mrf.mxu0
      %v2940 = vadd.f32 0.0, %v2939
      %2941 = vmatmul.bf16.gmra.mxu0 %v2878
      %v2942 = vpop.f32.mrf.mxu0
      %v2943 = vadd.f32 0.0, %v2942
      %v2944 = vpop.f32.mrf.mxu0
      %v2945 = vadd.f32 0.0, %v2944
      %2946 = vmatmul.bf16.gmra.mxu0 %v2881
      %v2947 = vpop.f32.mrf.mxu0
      %v2948 = vadd.f32 0.0, %v2947
      %v2949 = vpop.f32.mrf.mxu0
      %v2950 = vadd.f32 0.0, %v2949
      %2951 = vmatmul.bf16.gmra.mxu0 %v2884
      %v2952 = vpop.f32.mrf.mxu0
      %v2953 = vadd.f32 0.0, %v2952
      %v2954 = vpop.f32.mrf.mxu0
      %v2955 = vadd.f32 0.0, %v2954
      %2956 = vmatmul.bf16.gmra.mxu0 %v2887
      %v2957 = vpop.f32.mrf.mxu0
      %v2958 = vadd.f32 0.0, %v2957
      %v2959 = vpop.f32.mrf.mxu0
      %v2960 = vadd.f32 0.0, %v2959
      %2961 = vmatmul.bf16.gmra.mxu0 %v2890
      %v2962 = vpop.f32.mrf.mxu0
      %v2963 = vadd.f32 0.0, %v2962
      %v2964 = vpop.f32.mrf.mxu0
      %v2965 = vadd.f32 0.0, %v2964
      %2966 = vmatmul.bf16.gmra.mxu0 %v2893
      %v2967 = vpop.f32.mrf.mxu0
      %v2968 = vadd.f32 0.0, %v2967
      %v2969 = vpop.f32.mrf.mxu0
      %v2970 = vadd.f32 0.0, %v2969
      %2971 = vmatmul.bf16.gmra.mxu0 %v2896
      %v2972 = vpop.f32.mrf.mxu0
      %v2973 = vadd.f32 0.0, %v2972
      %v2974 = vpop.f32.mrf.mxu0
      %v2975 = vadd.f32 0.0, %v2974
      %2976 = vmatmul.bf16.gmra.mxu0 %v2899
      %v2977 = vpop.f32.mrf.mxu0
      %v2978 = vadd.f32 0.0, %v2977
      %v2979 = vpop.f32.mrf.mxu0
      %v2980 = vadd.f32 0.0, %v2979
      %2981 = vmatmul.bf16.gmra.mxu0 %v2902
      %v2982 = vpop.f32.mrf.mxu0
      %v2983 = vadd.f32 0.0, %v2982
      %v2984 = vpop.f32.mrf.mxu0
      %v2985 = vadd.f32 0.0, %v2984
      %2986 = vmatmul.bf16.gmra.mxu0 %v2905
      %v2987 = vpop.f32.mrf.mxu0
      %v2988 = vadd.f32 0.0, %v2987
      %v2989 = vpop.f32.mrf.mxu0
      %v2990 = vadd.f32 0.0, %v2989
      %2991 = vmatmul.bf16.gmra.mxu0 %v2908
      %v2992 = vpop.f32.mrf.mxu0
      %v2993 = vadd.f32 0.0, %v2992
      %v2994 = vpop.f32.mrf.mxu0
      %v2995 = vadd.f32 0.0, %v2994
      %2996 = vmatmul.bf16.gmra.mxu0 %v2911
      %v2997 = vpop.f32.mrf.mxu0
      %v2998 = vadd.f32 0.0, %v2997
      %v2999 = vpop.f32.mrf.mxu0
      %v3000 = vadd.f32 0.0, %v2999
      %3001 = vmatmul.bf16.gmra.mxu0 %v2914
      %v3002 = vpop.f32.mrf.mxu0
      %v3003 = vadd.f32 0.0, %v3002
      %v3004 = vpop.f32.mrf.mxu0
      %v3005 = vadd.f32 0.0, %v3004
      %3006 = vmatmul.bf16.gmra.mxu0 %v2917
      %v3007 = vpop.f32.mrf.mxu0
      %v3008 = vadd.f32 0.0, %v3007
      %v3009 = vpop.f32.mrf.mxu0
      %v3010 = vadd.f32 0.0, %v3009
      %3011 = vmatmul.bf16.gmra.mxu0 %v2920
      %v3012 = vpop.f32.mrf.mxu0
      %v3013 = vadd.f32 0.0, %v3012
      %v3014 = vpop.f32.mrf.mxu0
      %v3015 = vadd.f32 0.0, %v3014
      %3016 = vmatmul.bf16.gmra.mxu0 %v2923
      %v3017 = vpop.f32.mrf.mxu0
      %v3018 = vadd.f32 0.0, %v3017
      %v3019 = vpop.f32.mrf.mxu0
      %v3020 = vadd.f32 0.0, %v3019
      %3021 = vmatmul.bf16.gmra.mxu0 %v2926
      %v3022 = vpop.f32.mrf.mxu0
      %v3023 = vadd.f32 0.0, %v3022
      %v3024 = vpop.f32.mrf.mxu0
      %v3025 = vadd.f32 0.0, %v3024
      %3026 = vdwg.mxu0
      %v3027 = vadd.f32 %v2787, %v2938
      %v3028 = vadd.f32 %v2788, %v2940
      %v3029 = vadd.f32 %v2789, %v2943
      %v3030 = vadd.f32 %v2790, %v2945
      %v3031 = vadd.f32 %v2791, %v2948
      %v3032 = vadd.f32 %v2792, %v2950
      %v3033 = vadd.f32 %v2793, %v2953
      %v3034 = vadd.f32 %v2794, %v2955
      %v3035 = vadd.f32 %v2795, %v2958
      %v3036 = vadd.f32 %v2796, %v2960
      %v3037 = vadd.f32 %v2797, %v2963
      %v3038 = vadd.f32 %v2798, %v2965
      %v3039 = vadd.f32 %v2799, %v2968
      %v3040 = vadd.f32 %v2800, %v2970
      %v3041 = vadd.f32 %v2801, %v2973
      %v3042 = vadd.f32 %v2802, %v2975
      %v3043 = vadd.f32 %v2803, %v2978
      %v3044 = vadd.f32 %v2804, %v2980
      %v3045 = vadd.f32 %v2805, %v2983
      %v3046 = vadd.f32 %v2806, %v2985
      %v3047 = vadd.f32 %v2807, %v2988
      %v3048 = vadd.f32 %v2808, %v2990
      %v3049 = vadd.f32 %v2809, %v2993
      %v3050 = vadd.f32 %v2810, %v2995
      %v3051 = vadd.f32 %v2811, %v2998
      %v3052 = vadd.f32 %v2812, %v3000
      %v3053 = vadd.f32 %v2813, %v3003
      %v3054 = vadd.f32 %v2814, %v3005
      %v3055 = vadd.f32 %v2815, %v3008
      %v3056 = vadd.f32 %v2816, %v3010
      %v3057 = vadd.f32 %v2817, %v3013
      %v3058 = vadd.f32 %v2818, %v3015
      %v3059 = vadd.f32 %v2819, %v3018
      %v3060 = vadd.f32 %v2820, %v3020
      %v3061 = vadd.f32 %v2821, %v3023
      %v3062 = vadd.f32 %v2822, %v3025
      %v3063 = vld [vmem:[%s2] sm:$0x1]
      %v3065 = vperm.slane %v3063, 0
      %v3067 = vadd.f32 %v3027, %v3065
      %v3068 = vadd.f32 %v3028, %v3065
      %v3069 = vadd.f32 %v3029, %v3065
      %v3070 = vadd.f32 %v3030, %v3065
      %v3071 = vadd.f32 %v3031, %v3065
      %v3072 = vadd.f32 %v3032, %v3065
      %v3073 = vadd.f32 %v3033, %v3065
      %v3074 = vadd.f32 %v3034, %v3065
      %v3075 = vadd.f32 %v3035, %v3065
      %v3076 = vadd.f32 %v3036, %v3065
      %v3077 = vadd.f32 %v3037, %v3065
      %v3078 = vadd.f32 %v3038, %v3065
      %v3079 = vadd.f32 %v3039, %v3065
      %v3080 = vadd.f32 %v3040, %v3065
      %v3081 = vadd.f32 %v3041, %v3065
      %v3082 = vadd.f32 %v3042, %v3065
      %v3083 = vadd.f32 %v3043, %v3065
      %v3084 = vadd.f32 %v3044, %v3065
      %v3085 = vadd.f32 %v3045, %v3065
      %v3086 = vadd.f32 %v3046, %v3065
      %v3087 = vadd.f32 %v3047, %v3065
      %v3088 = vadd.f32 %v3048, %v3065
      %v3089 = vadd.f32 %v3049, %v3065
      %v3090 = vadd.f32 %v3050, %v3065
      %v3091 = vadd.f32 %v3051, %v3065
      %v3092 = vadd.f32 %v3052, %v3065
      %v3093 = vadd.f32 %v3053, %v3065
      %v3094 = vadd.f32 %v3054, %v3065
      %v3095 = vadd.f32 %v3055, %v3065
      %v3096 = vadd.f32 %v3056, %v3065
      %v3097 = vadd.f32 %v3057, %v3065
      %v3098 = vadd.f32 %v3058, %v3065
      %v3099 = vadd.f32 %v3059, %v3065
      %v3100 = vadd.f32 %v3060, %v3065
      %v3101 = vadd.f32 %v3061, %v3065
      %v3102 = vadd.f32 %v3062, %v3065
      %vm3103 = vcmp.ge.f32.partialorder %v3067, 0.0
      %vm3104 = vcmp.ge.f32.partialorder %v3068, 0.0
      %vm3105 = vcmp.ge.f32.partialorder %v3069, 0.0
      %vm3106 = vcmp.ge.f32.partialorder %v3070, 0.0
      %vm3107 = vcmp.ge.f32.partialorder %v3071, 0.0
      %vm3108 = vcmp.ge.f32.partialorder %v3072, 0.0
      %vm3109 = vcmp.ge.f32.partialorder %v3073, 0.0
      %vm3110 = vcmp.ge.f32.partialorder %v3074, 0.0
      %vm3111 = vcmp.ge.f32.partialorder %v3075, 0.0
      %vm3112 = vcmp.ge.f32.partialorder %v3076, 0.0
      %vm3113 = vcmp.ge.f32.partialorder %v3077, 0.0
      %vm3114 = vcmp.ge.f32.partialorder %v3078, 0.0
      %vm3115 = vcmp.ge.f32.partialorder %v3079, 0.0
      %vm3116 = vcmp.ge.f32.partialorder %v3080, 0.0
      %vm3117 = vcmp.ge.f32.partialorder %v3081, 0.0
      %vm3118 = vcmp.ge.f32.partialorder %v3082, 0.0
      %vm3119 = vcmp.ge.f32.partialorder %v3083, 0.0
      %vm3120 = vcmp.ge.f32.partialorder %v3084, 0.0
      %vm3121 = vcmp.ge.f32.partialorder %v3085, 0.0
      %vm3122 = vcmp.ge.f32.partialorder %v3086, 0.0
      %vm3123 = vcmp.ge.f32.partialorder %v3087, 0.0
      %vm3124 = vcmp.ge.f32.partialorder %v3088, 0.0
      %vm3125 = vcmp.ge.f32.partialorder %v3089, 0.0
      %vm3126 = vcmp.ge.f32.partialorder %v3090, 0.0
      %vm3127 = vcmp.ge.f32.partialorder %v3091, 0.0
      %vm3128 = vcmp.ge.f32.partialorder %v3092, 0.0
      %vm3129 = vcmp.ge.f32.partialorder %v3093, 0.0
      %vm3130 = vcmp.ge.f32.partialorder %v3094, 0.0
      %vm3131 = vcmp.ge.f32.partialorder %v3095, 0.0
      %vm3132 = vcmp.ge.f32.partialorder %v3096, 0.0
      %vm3133 = vcmp.ge.f32.partialorder %v3097, 0.0
      %vm3134 = vcmp.ge.f32.partialorder %v3098, 0.0
      %vm3135 = vcmp.ge.f32.partialorder %v3099, 0.0
      %vm3136 = vcmp.ge.f32.partialorder %v3100, 0.0
      %vm3137 = vcmp.ge.f32.partialorder %v3101, 0.0
      %vm3138 = vcmp.ge.f32.partialorder %v3102, 0.0
      %v3139 = vmul.f32 %v3067, 0.2
      %v3140 = vmul.f32 %v3068, 0.2
      %v3141 = vmul.f32 %v3069, 0.2
      %v3142 = vmul.f32 %v3070, 0.2
      %v3143 = vmul.f32 %v3071, 0.2
      %v3144 = vmul.f32 %v3072, 0.2
      %v3145 = vmul.f32 %v3073, 0.2
      %v3146 = vmul.f32 %v3074, 0.2
      %v3147 = vmul.f32 %v3075, 0.2
      %v3148 = vmul.f32 %v3076, 0.2
      %v3149 = vmul.f32 %v3077, 0.2
      %v3150 = vmul.f32 %v3078, 0.2
      %v3151 = vmul.f32 %v3079, 0.2
      %v3152 = vmul.f32 %v3080, 0.2
      %v3153 = vmul.f32 %v3081, 0.2
      %v3154 = vmul.f32 %v3082, 0.2
      %v3155 = vmul.f32 %v3083, 0.2
      %v3156 = vmul.f32 %v3084, 0.2
      %v3157 = vmul.f32 %v3085, 0.2
      %v3158 = vmul.f32 %v3086, 0.2
      %v3159 = vmul.f32 %v3087, 0.2
      %v3160 = vmul.f32 %v3088, 0.2
      %v3161 = vmul.f32 %v3089, 0.2
      %v3162 = vmul.f32 %v3090, 0.2
      %v3163 = vmul.f32 %v3091, 0.2
      %v3164 = vmul.f32 %v3092, 0.2
      %v3165 = vmul.f32 %v3093, 0.2
      %v3166 = vmul.f32 %v3094, 0.2
      %v3167 = vmul.f32 %v3095, 0.2
      %v3168 = vmul.f32 %v3096, 0.2
      %v3169 = vmul.f32 %v3097, 0.2
      %v3170 = vmul.f32 %v3098, 0.2
      %v3171 = vmul.f32 %v3099, 0.2
      %v3172 = vmul.f32 %v3100, 0.2
      %v3173 = vmul.f32 %v3101, 0.2
      %v3174 = vmul.f32 %v3102, 0.2
      %v3175 = vsel %vm3103, %v3067, %v3139
      %v3176 = vsel %vm3104, %v3068, %v3140
      %v3177 = vsel %vm3105, %v3069, %v3141
      %v3178 = vsel %vm3106, %v3070, %v3142
      %v3179 = vsel %vm3107, %v3071, %v3143
      %v3180 = vsel %vm3108, %v3072, %v3144
      %v3181 = vsel %vm3109, %v3073, %v3145
      %v3182 = vsel %vm3110, %v3074, %v3146
      %v3183 = vsel %vm3111, %v3075, %v3147
      %v3184 = vsel %vm3112, %v3076, %v3148
      %v3185 = vsel %vm3113, %v3077, %v3149
      %v3186 = vsel %vm3114, %v3078, %v3150
      %v3187 = vsel %vm3115, %v3079, %v3151
      %v3188 = vsel %vm3116, %v3080, %v3152
      %v3189 = vsel %vm3117, %v3081, %v3153
      %v3190 = vsel %vm3118, %v3082, %v3154
      %v3191 = vsel %vm3119, %v3083, %v3155
      %v3192 = vsel %vm3120, %v3084, %v3156
      %v3193 = vsel %vm3121, %v3085, %v3157
      %v3194 = vsel %vm3122, %v3086, %v3158
      %v3195 = vsel %vm3123, %v3087, %v3159
      %v3196 = vsel %vm3124, %v3088, %v3160
      %v3197 = vsel %vm3125, %v3089, %v3161
      %v3198 = vsel %vm3126, %v3090, %v3162
      %v3199 = vsel %vm3127, %v3091, %v3163
      %v3200 = vsel %vm3128, %v3092, %v3164
      %v3201 = vsel %vm3129, %v3093, %v3165
      %v3202 = vsel %vm3130, %v3094, %v3166
      %v3203 = vsel %vm3131, %v3095, %v3167
      %v3204 = vsel %vm3132, %v3096, %v3168
      %v3205 = vsel %vm3133, %v3097, %v3169
      %v3206 = vsel %vm3134, %v3098, %v3170
      %v3207 = vsel %vm3135, %v3099, %v3171
      %v3208 = vsel %vm3136, %v3100, %v3172
      %v3209 = vsel %vm3137, %v3101, %v3173
      %v3210 = vsel %vm3138, %v3102, %v3174
      %v3211 = vpack.c.bf16 %v3175, %v3175
      %v3212 = vpack.c.bf16 %v3176, %v3176
      %v3213 = vpack.c.bf16 %v3177, %v3177
      %v3214 = vpack.c.bf16 %v3178, %v3178
      %v3215 = vpack.c.bf16 %v3179, %v3179
      %v3216 = vpack.c.bf16 %v3180, %v3180
      %v3217 = vpack.c.bf16 %v3181, %v3181
      %v3218 = vpack.c.bf16 %v3182, %v3182
      %v3219 = vpack.c.bf16 %v3183, %v3183
      %v3220 = vpack.c.bf16 %v3184, %v3184
      %v3221 = vpack.c.bf16 %v3185, %v3185
      %v3222 = vpack.c.bf16 %v3186, %v3186
      %v3223 = vpack.c.bf16 %v3187, %v3187
      %v3224 = vpack.c.bf16 %v3188, %v3188
      %v3225 = vpack.c.bf16 %v3189, %v3189
      %v3226 = vpack.c.bf16 %v3190, %v3190
      %v3227 = vpack.c.bf16 %v3191, %v3191
      %v3228 = vpack.c.bf16 %v3192, %v3192
      %v3229 = vpack.c.bf16 %v3193, %v3193
      %v3230 = vpack.c.bf16 %v3194, %v3194
      %v3231 = vpack.c.bf16 %v3195, %v3195
      %v3232 = vpack.c.bf16 %v3196, %v3196
      %v3233 = vpack.c.bf16 %v3197, %v3197
      %v3234 = vpack.c.bf16 %v3198, %v3198
      %v3235 = vpack.c.bf16 %v3199, %v3199
      %v3236 = vpack.c.bf16 %v3200, %v3200
      %v3237 = vpack.c.bf16 %v3201, %v3201
      %v3238 = vpack.c.bf16 %v3202, %v3202
      %v3239 = vpack.c.bf16 %v3203, %v3203
      %v3240 = vpack.c.bf16 %v3204, %v3204
      %v3241 = vpack.c.bf16 %v3205, %v3205
      %v3242 = vpack.c.bf16 %v3206, %v3206
      %v3243 = vpack.c.bf16 %v3207, %v3207
      %v3244 = vpack.c.bf16 %v3208, %v3208
      %v3245 = vpack.c.bf16 %v3209, %v3209
      %v3246 = vpack.c.bf16 %v3210, %v3210
      %vm3247 = vcmask 257024
      %3248 = vst.msk [vmem:[%s170] sm:$0xf] %vm3247, %v3211
      %3249 = vst.msk [vmem:[%s170 + $0x4] sm:$0xf] %vm3247, %v3212
      %3250 = vst.msk [vmem:[%s170 + $0x8] sm:$0xf] %vm3247, %v3213
      %3251 = vst.msk [vmem:[%s170 + $0xc] sm:$0xf] %vm3247, %v3214
      %3252 = vst.msk [vmem:[%s170 + $0x10] sm:$0xf] %vm3247, %v3215
      %3253 = vst.msk [vmem:[%s170 + $0x14] sm:$0xf] %vm3247, %v3216
      %3254 = vst.msk [vmem:[%s170 + $0x18] sm:$0xf] %vm3247, %v3217
      %3255 = vst.msk [vmem:[%s170 + $0x1c] sm:$0xf] %vm3247, %v3218
      %3256 = vst.msk [vmem:[%s170 + $0x20] sm:$0xf] %vm3247, %v3219
      %3257 = vst.msk [vmem:[%s170 + $0x24] sm:$0xf] %vm3247, %v3220
      %3258 = vst.msk [vmem:[%s170 + $0x28] sm:$0xf] %vm3247, %v3221
      %3259 = vst.msk [vmem:[%s170 + $0x2c] sm:$0xf] %vm3247, %v3222
      %3260 = vst.msk [vmem:[%s170 + $0x30] sm:$0xf] %vm3247, %v3223
      %3261 = vst.msk [vmem:[%s170 + $0x34] sm:$0xf] %vm3247, %v3224
      %3262 = vst.msk [vmem:[%s170 + $0x38] sm:$0xf] %vm3247, %v3225
      %3263 = vst.msk [vmem:[%s170 + $0x3c] sm:$0xf] %vm3247, %v3226
      %3264 = vst.msk [vmem:[%s170 + $0x40] sm:$0xf] %vm3247, %v3227
      %3265 = vst.msk [vmem:[%s170 + $0x44] sm:$0xf] %vm3247, %v3228
      %3266 = vst.msk [vmem:[%s170 + $0x48] sm:$0xf] %vm3247, %v3229
      %3267 = vst.msk [vmem:[%s170 + $0x4c] sm:$0xf] %vm3247, %v3230
      %3268 = vst.msk [vmem:[%s170 + $0x50] sm:$0xf] %vm3247, %v3231
      %3269 = vst.msk [vmem:[%s170 + $0x54] sm:$0xf] %vm3247, %v3232
      %3270 = vst.msk [vmem:[%s170 + $0x58] sm:$0xf] %vm3247, %v3233
      %3271 = vst.msk [vmem:[%s170 + $0x5c] sm:$0xf] %vm3247, %v3234
      %3272 = vst.msk [vmem:[%s170 + $0x60] sm:$0xf] %vm3247, %v3235
      %3273 = vst.msk [vmem:[%s170 + $0x64] sm:$0xf] %vm3247, %v3236
      %3274 = vst.msk [vmem:[%s170 + $0x68] sm:$0xf] %vm3247, %v3237
      %3275 = vst.msk [vmem:[%s170 + $0x6c] sm:$0xf] %vm3247, %v3238
      %3276 = vst.msk [vmem:[%s170 + $0x70] sm:$0xf] %vm3247, %v3239
      %3277 = vst.msk [vmem:[%s170 + $0x74] sm:$0xf] %vm3247, %v3240
      %3278 = vst.msk [vmem:[%s170 + $0x78] sm:$0xf] %vm3247, %v3241
      %3279 = vst.msk [vmem:[%s170 + $0x7c] sm:$0xf] %vm3247, %v3242
      %3280 = vst.msk [vmem:[%s170 + $0x80] sm:$0xf] %vm3247, %v3243
      %3281 = vst.msk [vmem:[%s170 + $0x84] sm:$0xf] %vm3247, %v3244
      %3282 = vst.msk [vmem:[%s170 + $0x88] sm:$0xf] %vm3247, %v3245
      %vm3283 = vcmask 256000
      %3284 = vst.msk [vmem:[%s170 + $0x8c] sm:$0x7] %vm3283, %v3246
      %p3285 = scmp.lt.s32.totalorder %s14, 1
      %s3286 = scalar_select %p3285, %s14, 1
      %s3287 = smul.addr %s3286, 36
      %s3288 = smul.addr %s3287, 4
      %s3289 = scalar_lea.vmem %s3, %s3288
      // Predicated region
      $region33: #{discriminator_forward.8} parent=31 // pred_check
        %p3290 = pneg %p100
      $region34: #{discriminator_forward.8} parent=31 // pred_check_branch
        %3292 = sbr.rel (%p3290) target = $region36
      $region35: #{discriminator_forward.8} parent=31 // pred_region
        _
      $region36: #{discriminator_forward.8} parent=31 // pred_fallthru
        _
    $region32: #{discriminator_forward.8} parent=5 // pred_fallthru
      _
    %p3293 = scmp.le.s32.totalorder 2, %s9
    // Predicated region
    $region37: #{discriminator_forward.8} parent=5 // pred_check
      %p3294 = pneg %p3293
    $region38: #{discriminator_forward.8} parent=5 // pred_check_branch
      %3296 = sbr.rel (%p3294) target = $region40
    $region39: #{discriminator_forward.8} parent=5 // pred_region
      %s3297 = ssub.s32 %s9, 2
      // Predicated region
      $region41: #{discriminator_forward.8} parent=39 // pred_check
        %p3298 = pneg %p106
      $region42: #{discriminator_forward.8} parent=39 // pred_check_branch
        %3300 = sbr.rel (%p3298) target = $region44
      $region43: #{discriminator_forward.8} parent=39 // pred_region
        %p3301 = scmp.lt.s32.totalorder %s15, 1
        %s3302 = scalar_select %p3301, %s15, 1
        %s3303 = smul.addr %s3302, 36
        %s3304 = smul.addr %s3303, 4
        %s3305 = scalar_lea.vmem %s3, %s3304
      $region44: #{discriminator_forward.8} parent=39 // pred_fallthru
        _
    $region40: #{discriminator_forward.8} parent=5 // pred_fallthru
      _
  $region6: #{discriminator_forward.8} parent=0 // loop_footer
    %s13 = sadd.s32 1, %s9
  $region7: #{discriminator_forward.8} parent=0 // loop_footer_branch
    %8 = sbr.rel target = $region3
  $region8: #{discriminator_forward.8} parent=0 // loop_exit
    _

// kernel: discriminator_forward.10
$region0: #{discriminator_forward.10}
  #allocation0 [shape = 'u32[]', space=smem, size = 0x4, offset = 0x4, fixed_abs, tag = 'smem constant byte address 0x4 - core index']
  #allocation1 [shape = 'u32[72,128]{1,0:T(1,128)}', space=vmem, size = 0x9000, scoped, tag = 'internal scratch']
  %s0 = inlined_call_operand.vmem [shape: bf16[2,100,32], index: 0, kind: input, shape index: {}]
  %s1 = inlined_call_operand.vmem [shape: bf16[9,32,64], index: 1, kind: input, shape index: {}]
  %s2 = inlined_call_operand.vmem [shape: f32[1,64], index: 2, kind: input, shape index: {}]
  %s3 = inlined_call_operand.vmem [shape: bf16[2,78,64], index: 3, kind: output, shape index: {}]
  %s4 = sld [smem:[#allocation0]]
  $region45: #{discriminator_forward.10} parent=0
    _
  %s6 = ssub.s32 1, %s4
  %s7 = scalar_select 0, %s6, %s4
  loop: start=0, step=1, limit=4
  $region2: #{discriminator_forward.10} parent=0 // loop_pre_header
    _
  $region3: #{discriminator_forward.10} parent=0 // loop_header
    %s9 = sphi 0, %s13
    %p10 = scmp.ge.s32.totalorder %s9, 4
    %s19 = sphi 0, %s21
    %s22 = sphi 0, %s19
    %s23 = sphi 0, %s22
    %s39 = sphi 0, %s23
    %s43 = sphi 0, %s43
    %s45 = sphi 0, %s43
    %s46 = sphi 0, %s45
    %s60 = sphi 0, %s46
    %s64 = sphi 0, %s64
    %s66 = sphi 0, %s64
    %s67 = sphi 0, %s66
    %s81 = sphi 0, %s67
    %s87 = sphi 0, %s89
    %s90 = sphi 0, %s87
    %s91 = sphi 0, %s90
    %s107 = sphi 0, %s91
  $region4: #{discriminator_forward.10} parent=0 // loop_header_branch
    %12 = sbr.rel (%p10) target = $region8
  $region5: #{discriminator_forward.10} parent=0 // loop_body
    %s14 = ssub.s32 %s9, 1
    %s15 = ssub.s32 %s9, 2
    %s16 = sadd.s32 %s9, 1
    %s17 = ssub.s32 %s9, %s16
    %p18 = scmp.eq.s32.totalorder %s17, 0
    %s20 = sadd.s32 %s19, 1
    %s21 = scalar_select %p18, %s19, %s20
    %p24 = pneg %p18
    %p25 = scmp.eq.s32.totalorder %s9, 1
    %p26 = por %p24, %p25
    %p27 = scmp.ne.s32.totalorder %s19, %s22
    %p28 = scmp.eq.s32.totalorder %s9, 0
    %p29 = por %p27, %p28
    %p30 = scmp.ne.s32.totalorder %s19, %s22
    %p31 = scmp.eq.s32.totalorder %s14, 1
    %p32 = por %p30, %p31
    %p33 = scmp.ne.s32.totalorder %s22, %s23
    %p34 = scmp.eq.s32.totalorder %s14, 0
    %p35 = por %p33, %p34
    %p36 = scmp.ne.s32.totalorder %s22, %s23
    %p37 = scmp.eq.s32.totalorder %s15, 1
    %p38 = por %p36, %p37
    %p40 = scmp.ne.s32.totalorder %s23, %s39
    %p41 = scmp.eq.s32.totalorder %s15, 0
    %p42 = por %p40, %p41
    %s44 = sadd.s32 %s43, 1
    %p47 = scmp.eq.s32.totalorder %s9, 1
    %p48 = scmp.ne.s32.totalorder %s43, %s45
    %p49 = scmp.eq.s32.totalorder %s9, 0
    %p50 = por %p48, %p49
    %p51 = scmp.ne.s32.totalorder %s43, %s45
    %p52 = scmp.eq.s32.totalorder %s14, 1
    %p53 = por %p51, %p52
    %p54 = scmp.ne.s32.totalorder %s45, %s46
    %p55 = scmp.eq.s32.totalorder %s14, 0
    %p56 = por %p54, %p55
    %p57 = scmp.ne.s32.totalorder %s45, %s46
    %p58 = scmp.eq.s32.totalorder %s15, 1
    %p59 = por %p57, %p58
    %p61 = scmp.ne.s32.totalorder %s46, %s60
    %p62 = scmp.eq.s32.totalorder %s15, 0
    %p63 = por %p61, %p62
    %s65 = sadd.s32 %s64, 1
    %p68 = scmp.eq.s32.totalorder %s9, 1
    %p69 = scmp.ne.s32.totalorder %s64, %s66
    %p70 = scmp.eq.s32.totalorder %s9, 0
    %p71 = por %p69, %p70
    %p72 = scmp.ne.s32.totalorder %s64, %s66
    %p73 = scmp.eq.s32.totalorder %s14, 1
    %p74 = por %p72, %p73
    %p75 = scmp.ne.s32.totalorder %s66, %s67
    %p76 = scmp.eq.s32.totalorder %s14, 0
    %p77 = por %p75, %p76
    %p78 = scmp.ne.s32.totalorder %s66, %s67
    %p79 = scmp.eq.s32.totalorder %s15, 1
    %p80 = por %p78, %p79
    %p82 = scmp.ne.s32.totalorder %s67, %s81
    %p83 = scmp.eq.s32.totalorder %s15, 0
    %p84 = por %p82, %p83
    %s85 = ssub.s32 %s9, %s16
    %p86 = scmp.eq.s32.totalorder %s85, 0
    %s88 = sadd.s32 %s87, 1
    %s89 = scalar_select %p86, %s87, %s88
    %p92 = pneg %p86
    %p93 = scmp.eq.s32.totalorder %s9, 1
    %p94 = por %p92, %p93
    %p95 = scmp.ne.s32.totalorder %s87, %s90
    %p96 = scmp.eq.s32.totalorder %s9, 0
    %p97 = por %p95, %p96
    %p98 = scmp.ne.s32.totalorder %s87, %s90
    %p99 = scmp.eq.s32.totalorder %s14, 1
    %p100 = por %p98, %p99
    %p101 = scmp.ne.s32.totalorder %s90, %s91
    %p102 = scmp.eq.s32.totalorder %s14, 0
    %p103 = por %p101, %p102
    %p104 = scmp.ne.s32.totalorder %s90, %s91
    %p105 = scmp.eq.s32.totalorder %s15, 1
    %p106 = por %p104, %p105
    %p108 = scmp.ne.s32.totalorder %s91, %s107
    %p109 = scmp.eq.s32.totalorder %s15, 0
    %p110 = por %p108, %p109
    %p111 = scmp.le.s32.totalorder 1, %s9
    %p112 = scmp.lt.s32.totalorder %s9, 3
    %p113 = pnand %p111, %p112
    %p114 = pneg %p113
    // Predicated region
    $region9: #{discriminator_forward.10} parent=5 // pred_check
      _
    $region10: #{discriminator_forward.10} parent=5 // pred_check_branch
      %116 = sbr.rel (%p113) target = $region12
    $region11: #{discriminator_forward.10} parent=5 // pred_region
      %s117 = ssub.s32 %s9, 1
      // Predicated region
      $region13: #{discriminator_forward.10} parent=11 // pred_check
        %p118 = pneg %p56
      $region14: #{discriminator_forward.10} parent=11 // pred_check_branch
        %120 = sbr.rel (%p118) target = $region16
      $region15: #{discriminator_forward.10} parent=11 // pred_region
        _
      $region16: #{discriminator_forward.10} parent=11 // pred_fallthru
        _
      // Predicated region
      $region17: #{discriminator_forward.10} parent=11 // pred_check
        %p121 = pneg %p77
      $region18: #{discriminator_forward.10} parent=11 // pred_check_branch
        %123 = sbr.rel (%p121) target = $region20
      $region19: #{discriminator_forward.10} parent=11 // pred_region
        _
      $region20: #{discriminator_forward.10} parent=11 // pred_fallthru
        _
    $region12: #{discriminator_forward.10} parent=5 // pred_fallthru
      _
    %p124 = scmp.lt.s32.totalorder %s9, 2
    // Predicated region
    $region21: #{discriminator_forward.10} parent=5 // pred_check
      %p125 = pneg %p124
    $region22: #{discriminator_forward.10} parent=5 // pred_check_branch
      %127 = sbr.rel (%p125) target = $region24
    $region23: #{discriminator_forward.10} parent=5 // pred_region
      // Predicated region
      $region25: #{discriminator_forward.10} parent=23 // pred_check
        %p128 = pneg %p29
      $region26: #{discriminator_forward.10} parent=23 // pred_check_branch
        %130 = sbr.rel (%p128) target = $region28
      $region27: #{discriminator_forward.10} parent=23 // pred_region
        %p131 = scmp.lt.s32.totalorder %s9, 1
        %s132 = scalar_select %p131, %s9, 1
        %s133 = smul.addr %s132, 13
        %s134 = smul.addr %s133, 4
        %s135 = scalar_lea.vmem %s0, %s134
      $region28: #{discriminator_forward.10} parent=23 // pred_fallthru
        _
    $region24: #{discriminator_forward.10} parent=5 // pred_fallthru
      _
    %p136 = scmp.le.s32.totalorder 1, %s9
    %p137 = scmp.lt.s32.totalorder %s9, 3
    %p138 = pnand %p136, %p137
    %p139 = pneg %p138
    // Predicated region
    $region29: #{discriminator_forward.10} parent=5 // pred_check
      _
    $region30: #{discriminator_forward.10} parent=5 // pred_check_branch
      %141 = sbr.rel (%p138) target = $region32
    $region31: #{discriminator_forward.10} parent=5 // pred_region
      %s142 = ssub.s32 %s9, 1
      %p143 = scmp.lt.s32.totalorder %s14, 1
      %s144 = scalar_select %p143, %s14, 1
      %s145 = smul.addr %s144, 13
      %s146 = smul.addr %s145, 4
      %s147 = scalar_lea.vmem %s0, %s146
      %p148 = pneg %p35
      %p149 = pneg %p32
      %p150 = pneg %p56
      %p151 = pneg %p53
      %p152 = pneg %p77
      %p153 = pneg %p74
      %p154 = pneg %p103
      %p155 = pneg %p100
      %p156 = scmp.lt.s32.totalorder %s14, 1
      %s157 = scalar_select %p156, %s14, 1
      %s158 = smul.addr %s157, 10
      %s159 = smul.addr %s158, 4
      %s160 = scalar_lea.vmem %s3, %s159
      %p161 = scmp.lt.s32.totalorder %s14, 1
      %s162 = scalar_select %p161, %s14, 1
      %s163 = smul.addr %s162, 13
      %s164 = smul.addr %s163, 4
      %s165 = scalar_lea.vmem %s0, %s164
      %p166 = scmp.lt.s32.totalorder %s14, 1
      %s167 = scalar_select %p166, %s14, 1
      %s168 = smul.addr %s167, 10
      %s169 = smul.addr %s168, 4
      %s170 = scalar_lea.vmem %s3, %s169
      %v172 = vld [vmem:[%s165] sm:$0xf]
      %v173 = vld [vmem:[%s165 + $0x4] sm:$0xf]
      %v174 = vld [vmem:[%s165 + $0x8] sm:$0xf]
      %v175 = vld [vmem:[%s165 + $0xc] sm:$0xf]
      %v176 = vld [vmem:[%s165 + $0x10] sm:$0xf]
      %v177 = vld [vmem:[%s165 + $0x14] sm:$0xf]
      %v178 = vld [vmem:[%s165 + $0x18] sm:$0xf]
      %v179 = vld [vmem:[%s165 + $0x1c] sm:$0xf]
      %v180 = vld [vmem:[%s165 + $0x20] sm:$0xf]
      %v181 = vld [vmem:[%s165 + $0x24] sm:$0x7]
      %v182 = vld [vmem:[%s1] sm:$0xf]
      %v183 = vld [vmem:[%s1 + $0x4] sm:$0xf]
      %v184 = vld [vmem:[%s1 + $0x8] sm:$0xf]
      %v185 = vld [vmem:[%s1 + $0xc] sm:$0xf]
      %v186 = vld [vmem:[%s165 + $0x24] sm:$0xf]
      %s187 = scalar_lea.vmem %s1, 16
      %v188 = vld [vmem:[%s187] sm:$0xf]
      %v189 = vld [vmem:[%s187 + $0x4] sm:$0xf]
      %v190 = vld [vmem:[%s187 + $0x8] sm:$0xf]
      %v191 = vld [vmem:[%s187 + $0xc] sm:$0xf]
      %v202 = vunpack.c.l.b16 %v172
      %v203 = vunpack.c.l.b16 %v173
      %v204 = vunpack.c.l.b16 %v174
      %v205 = vunpack.c.l.b16 %v175
      %v206 = vunpack.c.l.b16 %v176
      %v207 = vunpack.c.l.b16 %v177
      %v208 = vunpack.c.l.b16 %v178
      %v209 = vunpack.c.l.b16 %v179
      %v210 = vunpack.c.l.b16 %v180
      %v211 = vunpack.c.l.b16 %v186
      %v212 = vpack.c.b16 %v203, %v202
      %v213 = vpack.c.b16 %v205, %v204
      %v214 = vpack.c.b16 %v207, %v206
      %v215 = vpack.c.b16 %v209, %v208
      %v216 = vpack.c.b16 %v211, %v210
      %vm217 = vsmask.f32 7424
      %v219 = vshrl.u32 %v212, 16
      %v221 = vshll.u32 %v212, 16
      %v223 = vrot.slane %v221, 1
      %v224 = vor.u32 %v219, %v223
      %v226 = vshll.u32 %v213, 16
      %v228 = vrot.slane %v226, 1
      %v229 = vsel %vm217, %v224, %v228
      %v230 = vshrl.u32 %v213, 16
      %v232 = vor.u32 %v230, %v228
      %v234 = vshll.u32 %v214, 16
      %v236 = vrot.slane %v234, 1
      %v237 = vsel %vm217, %v232, %v236
      %v238 = vshrl.u32 %v214, 16
      %v240 = vor.u32 %v238, %v236
      %v242 = vshll.u32 %v215, 16
      %v244 = vrot.slane %v242, 1
      %v245 = vsel %vm217, %v240, %v244
      %v246 = vshrl.u32 %v215, 16
      %v248 = vor.u32 %v246, %v244
      %v250 = vshll.u32 %v216, 16
      %v252 = vrot.slane %v250, 1
      %v253 = vsel %vm217, %v248, %v252
      %v254 = vshrl.u32 %v216, 16
      %v256 = vor.u32 %v254, %v252
      %v261 = vunpack.c.l.b16 %v188
      %v262 = vunpack.c.l.b16 %v189
      %v263 = vunpack.c.l.b16 %v190
      %v264 = vunpack.c.l.b16 %v191
      %v265 = vpack.c.b16 %v262, %v261
      %v266 = vpack.c.b16 %v264, %v263
      %vm269 = vcmask 261120
      %v271 = vsel %vm269, %v229, 0
      %v274 = vsel %vm269, %v237, 0
      %v277 = vsel %vm269, %v245, 0
      %v280 = vsel %vm269, %v253, 0
      %v283 = vsel %vm269, %v256, 0
      %285 = vmatpush.bf16.msra.mxu0 0
      %286 = vmatpush.bf16.msra.mxu0 0
      %287 = vmatpush.bf16.msra.mxu0 0
      %288 = vmatpush.bf16.msra.mxu0 0
      %289 = vmatpush.bf16.msra.mxu0 0
      %290 = vmatpush.bf16.msra.mxu0 0
      %291 = vmatpush.bf16.msra.mxu0 %v266
      %292 = vmatpush.bf16.msra.mxu0 %v265
      %293 = vmatmul.bf16.gmra.mxu0 %v271
      %v294 = vpop.f32.mrf.mxu0
      %v295 = vadd.f32 0.0, %v294
      %v296 = vpop.f32.mrf.mxu0
      %v297 = vadd.f32 0.0, %v296
      %298 = vmatmul.bf16.gmra.mxu0 %v274
      %v299 = vpop.f32.mrf.mxu0
      %v300 = vadd.f32 0.0, %v299
      %v301 = vpop.f32.mrf.mxu0
      %v302 = vadd.f32 0.0, %v301
      %303 = vmatmul.bf16.gmra.mxu0 %v277
      %v304 = vpop.f32.mrf.mxu0
      %v305 = vadd.f32 0.0, %v304
      %v306 = vpop.f32.mrf.mxu0
      %v307 = vadd.f32 0.0, %v306
      %308 = vmatmul.bf16.gmra.mxu0 %v280
      %v309 = vpop.f32.mrf.mxu0
      %v310 = vadd.f32 0.0, %v309
      %v311 = vpop.f32.mrf.mxu0
      %v312 = vadd.f32 0.0, %v311
      %313 = vmatmul.bf16.gmra.mxu0 %v283
      %v314 = vpop.f32.mrf.mxu0
      %v315 = vadd.f32 0.0, %v314
      %v316 = vpop.f32.mrf.mxu0
      %v317 = vadd.f32 0.0, %v316
      %318 = vdwg.mxu0
      %v320 = vunpack.c.l.b16 %v181
      %v321 = vpack.c.b16 %v320, %v210
      %v326 = vunpack.c.l.b16 %v182
      %v327 = vunpack.c.l.b16 %v183
      %v328 = vunpack.c.l.b16 %v184
      %v329 = vunpack.c.l.b16 %v185
      %v330 = vpack.c.b16 %v327, %v326
      %v331 = vpack.c.b16 %v329, %v328
      %v334 = vsel %vm269, %v212, 0
      %v336 = vsel %vm269, %v213, 0
      %v338 = vsel %vm269, %v214, 0
      %v340 = vsel %vm269, %v215, 0
      %v343 = vsel %vm269, %v321, 0
      %345 = vmatpush.bf16.msra.mxu0 0
      %346 = vmatpush.bf16.msra.mxu0 0
      %347 = vmatpush.bf16.msra.mxu0 0
      %348 = vmatpush.bf16.msra.mxu0 0
      %349 = vmatpush.bf16.msra.mxu0 0
      %350 = vmatpush.bf16.msra.mxu0 0
      %351 = vmatpush.bf16.msra.mxu0 %v331
      %352 = vmatpush.bf16.msra.mxu0 %v330
      %353 = vmatmul.bf16.gmra.mxu0 %v334
      %v354 = vpop.f32.mrf.mxu0
      %v355 = vadd.f32 %v295, %v354
      %v356 = vpop.f32.mrf.mxu0
      %v357 = vadd.f32 %v297, %v356
      %358 = vmatmul.bf16.gmra.mxu0 %v336
      %v359 = vpop.f32.mrf.mxu0
      %v360 = vadd.f32 %v300, %v359
      %v361 = vpop.f32.mrf.mxu0
      %v362 = vadd.f32 %v302, %v361
      %363 = vmatmul.bf16.gmra.mxu0 %v338
      %v364 = vpop.f32.mrf.mxu0
      %v365 = vadd.f32 %v305, %v364
      %v366 = vpop.f32.mrf.mxu0
      %v367 = vadd.f32 %v307, %v366
      %368 = vmatmul.bf16.gmra.mxu0 %v340
      %v369 = vpop.f32.mrf.mxu0
      %v370 = vadd.f32 %v310, %v369
      %v371 = vpop.f32.mrf.mxu0
      %v372 = vadd.f32 %v312, %v371
      %373 = vmatmul.bf16.gmra.mxu0 %v343
      %v374 = vpop.f32.mrf.mxu0
      %v375 = vadd.f32 %v315, %v374
      %v376 = vpop.f32.mrf.mxu0
      %v377 = vadd.f32 %v317, %v376
      %378 = vdwg.mxu0
      %v379 = vld [vmem:[%s165] sm:$0xe]
      %s380 = scalar_lea.vmem %s1, 32
      %v381 = vld [vmem:[%s380] sm:$0xf]
      %v382 = vld [vmem:[%s380 + $0x4] sm:$0xf]
      %v383 = vld [vmem:[%s380 + $0x8] sm:$0xf]
      %v384 = vld [vmem:[%s380 + $0xc] sm:$0xf]
      %v386 = vunpack.c.l.b16 %v379
      %v387 = vpack.c.b16 %v203, %v386
      %vm388 = vcmask 1046528
      %v389 = vrot.slane %v387, 1
      %v390 = vrot.slane %v213, 1
      %v391 = vsel %vm388, %v389, %v390
      %v392 = vrot.slane %v214, 1
      %v393 = vsel %vm388, %v390, %v392
      %v394 = vrot.slane %v215, 1
      %v395 = vsel %vm388, %v392, %v394
      %v396 = vrot.slane %v216, 1
      %v397 = vsel %vm388, %v394, %v396
      %v402 = vunpack.c.l.b16 %v381
      %v403 = vunpack.c.l.b16 %v382
      %v404 = vunpack.c.l.b16 %v383
      %v405 = vunpack.c.l.b16 %v384
      %v406 = vpack.c.b16 %v403, %v402
      %v407 = vpack.c.b16 %v405, %v404
      %v411 = vsel %vm269, %v391, 0
      %v414 = vsel %vm269, %v393, 0
      %v417 = vsel %vm269, %v395, 0
      %v420 = vsel %vm269, %v397, 0
      %v423 = vsel %vm269, %v396, 0
      %425 = vmatpush.bf16.msra.mxu0 0
      %426 = vmatpush.bf16.msra.mxu0 0
      %427 = vmatpush.bf16.msra.mxu0 0
      %428 = vmatpush.bf16.msra.mxu0 0
      %429 = vmatpush.bf16.msra.mxu0 0
      %430 = vmatpush.bf16.msra.mxu0 0
      %431 = vmatpush.bf16.msra.mxu0 %v407
      %432 = vmatpush.bf16.msra.mxu0 %v406
      %433 = vmatmul.bf16.gmra.mxu0 %v411
      %v434 = vpop.f32.mrf.mxu0
      %v435 = vadd.f32 0.0, %v434
      %v436 = vpop.f32.mrf.mxu0
      %v437 = vadd.f32 0.0, %v436
      %438 = vmatmul.bf16.gmra.mxu0 %v414
      %v439 = vpop.f32.mrf.mxu0
      %v440 = vadd.f32 0.0, %v439
      %v441 = vpop.f32.mrf.mxu0
      %v442 = vadd.f32 0.0, %v441
      %443 = vmatmul.bf16.gmra.mxu0 %v417
      %v444 = vpop.f32.mrf.mxu0
      %v445 = vadd.f32 0.0, %v444
      %v446 = vpop.f32.mrf.mxu0
      %v447 = vadd.f32 0.0, %v446
      %448 = vmatmul.bf16.gmra.mxu0 %v420
      %v449 = vpop.f32.mrf.mxu0
      %v450 = vadd.f32 0.0, %v449
      %v451 = vpop.f32.mrf.mxu0
      %v452 = vadd.f32 0.0, %v451
      %453 = vmatmul.bf16.gmra.mxu0 %v423
      %v454 = vpop.f32.mrf.mxu0
      %v455 = vadd.f32 0.0, %v454
      %v456 = vpop.f32.mrf.mxu0
      %v457 = vadd.f32 0.0, %v456
      %458 = vdwg.mxu0
      %v459 = vadd.f32 %v355, %v435
      %v460 = vadd.f32 %v357, %v437
      %v461 = vadd.f32 %v360, %v440
      %v462 = vadd.f32 %v362, %v442
      %v463 = vadd.f32 %v365, %v445
      %v464 = vadd.f32 %v367, %v447
      %v465 = vadd.f32 %v370, %v450
      %v466 = vadd.f32 %v372, %v452
      %v467 = vadd.f32 %v375, %v455
      %v468 = vadd.f32 %v377, %v457
      %v469 = vld [vmem:[%s165 + $0x4] sm:$0xe]
      %v470 = vld [vmem:[%s165 + $0x8] sm:$0xf]
      %v471 = vld [vmem:[%s165 + $0xc] sm:$0xf]
      %v472 = vld [vmem:[%s165 + $0x10] sm:$0xf]
      %v473 = vld [vmem:[%s165 + $0x14] sm:$0xf]
      %v474 = vld [vmem:[%s165 + $0x18] sm:$0xf]
      %v475 = vld [vmem:[%s165 + $0x1c] sm:$0xf]
      %v476 = vld [vmem:[%s165 + $0x20] sm:$0xf]
      %v477 = vld [vmem:[%s165 + $0x24] sm:$0xf]
      %v478 = vld [vmem:[%s165 + $0x28] sm:$0xf]
      %s479 = scalar_lea.vmem %s1, 48
      %v480 = vld [vmem:[%s479] sm:$0xf]
      %v481 = vld [vmem:[%s479 + $0x4] sm:$0xf]
      %v482 = vld [vmem:[%s479 + $0x8] sm:$0xf]
      %v483 = vld [vmem:[%s479 + $0xc] sm:$0xf]
      %v494 = vunpack.c.l.b16 %v469
      %v495 = vunpack.c.l.b16 %v470
      %v496 = vunpack.c.l.b16 %v471
      %v497 = vunpack.c.l.b16 %v472
      %v498 = vunpack.c.l.b16 %v473
      %v499 = vunpack.c.l.b16 %v474
      %v500 = vunpack.c.l.b16 %v475
      %v501 = vunpack.c.l.b16 %v476
      %v502 = vunpack.c.l.b16 %v477
      %v503 = vunpack.c.l.b16 %v478
      %v504 = vpack.c.b16 %v495, %v494
      %v505 = vpack.c.b16 %v497, %v496
      %v506 = vpack.c.b16 %v499, %v498
      %v507 = vpack.c.b16 %v501, %v500
      %v508 = vpack.c.b16 %v503, %v502
      %v509 = vrot.slane %v504, 1
      %v510 = vrot.slane %v505, 1
      %v511 = vsel %vm388, %v509, %v510
      %v512 = vrot.slane %v506, 1
      %v513 = vsel %vm388, %v510, %v512
      %v514 = vrot.slane %v507, 1
      %v515 = vsel %vm388, %v512, %v514
      %v516 = vrot.slane %v508, 1
      %v517 = vsel %vm388, %v514, %v516
      %v522 = vunpack.c.l.b16 %v480
      %v523 = vunpack.c.l.b16 %v481
      %v524 = vunpack.c.l.b16 %v482
      %v525 = vunpack.c.l.b16 %v483
      %v526 = vpack.c.b16 %v523, %v522
      %v527 = vpack.c.b16 %v525, %v524
      %v531 = vsel %vm269, %v511, 0
      %v534 = vsel %vm269, %v513, 0
      %v537 = vsel %vm269, %v515, 0
      %v540 = vsel %vm269, %v517, 0
      %v543 = vsel %vm269, %v516, 0
      %545 = vmatpush.bf16.msra.mxu0 0
      %546 = vmatpush.bf16.msra.mxu0 0
      %547 = vmatpush.bf16.msra.mxu0 0
      %548 = vmatpush.bf16.msra.mxu0 0
      %549 = vmatpush.bf16.msra.mxu0 0
      %550 = vmatpush.bf16.msra.mxu0 0
      %551 = vmatpush.bf16.msra.mxu0 %v527
      %552 = vmatpush.bf16.msra.mxu0 %v526
      %553 = vmatmul.bf16.gmra.mxu0 %v531
      %v554 = vpop.f32.mrf.mxu0
      %v555 = vadd.f32 0.0, %v554
      %v556 = vpop.f32.mrf.mxu0
      %v557 = vadd.f32 0.0, %v556
      %558 = vmatmul.bf16.gmra.mxu0 %v534
      %v559 = vpop.f32.mrf.mxu0
      %v560 = vadd.f32 0.0, %v559
      %v561 = vpop.f32.mrf.mxu0
      %v562 = vadd.f32 0.0, %v561
      %563 = vmatmul.bf16.gmra.mxu0 %v537
      %v564 = vpop.f32.mrf.mxu0
      %v565 = vadd.f32 0.0, %v564
      %v566 = vpop.f32.mrf.mxu0
      %v567 = vadd.f32 0.0, %v566
      %568 = vmatmul.bf16.gmra.mxu0 %v540
      %v569 = vpop.f32.mrf.mxu0
      %v570 = vadd.f32 0.0, %v569
      %v571 = vpop.f32.mrf.mxu0
      %v572 = vadd.f32 0.0, %v571
      %573 = vmatmul.bf16.gmra.mxu0 %v543
      %v574 = vpop.f32.mrf.mxu0
      %v575 = vadd.f32 0.0, %v574
      %v576 = vpop.f32.mrf.mxu0
      %v577 = vadd.f32 0.0, %v576
      %578 = vdwg.mxu0
      %v579 = vadd.f32 %v459, %v555
      %v580 = vadd.f32 %v460, %v557
      %v581 = vadd.f32 %v461, %v560
      %v582 = vadd.f32 %v462, %v562
      %v583 = vadd.f32 %v463, %v565
      %v584 = vadd.f32 %v464, %v567
      %v585 = vadd.f32 %v465, %v570
      %v586 = vadd.f32 %v466, %v572
      %v587 = vadd.f32 %v467, %v575
      %v588 = vadd.f32 %v468, %v577
      %v589 = vld [vmem:[%s165 + $0x4] sm:$0xe]
      %v590 = vld [vmem:[%s165 + $0x8] sm:$0xf]
      %v591 = vld [vmem:[%s165 + $0xc] sm:$0xf]
      %v592 = vld [vmem:[%s165 + $0x10] sm:$0xf]
      %v593 = vld [vmem:[%s165 + $0x14] sm:$0xf]
      %v594 = vld [vmem:[%s165 + $0x18] sm:$0xf]
      %v595 = vld [vmem:[%s165 + $0x1c] sm:$0xf]
      %v596 = vld [vmem:[%s165 + $0x20] sm:$0xf]
      %v597 = vld [vmem:[%s165 + $0x24] sm:$0xf]
      %v598 = vld [vmem:[%s165 + $0x28] sm:$0xf]
      %v599 = vld [vmem:[%s165 + $0x2c] sm:$0x1]
      %s600 = scalar_lea.vmem %s1, 64
      %v601 = vld [vmem:[%s600] sm:$0xf]
      %v602 = vld [vmem:[%s600 + $0x4] sm:$0xf]
      %v603 = vld [vmem:[%s600 + $0x8] sm:$0xf]
      %v604 = vld [vmem:[%s600 + $0xc] sm:$0xf]
      %v616 = vunpack.c.l.b16 %v589
      %v617 = vunpack.c.l.b16 %v590
      %v618 = vunpack.c.l.b16 %v591
      %v619 = vunpack.c.l.b16 %v592
      %v620 = vunpack.c.l.b16 %v593
      %v621 = vunpack.c.l.b16 %v594
      %v622 = vunpack.c.l.b16 %v595
      %v623 = vunpack.c.l.b16 %v596
      %v624 = vunpack.c.l.b16 %v597
      %v625 = vunpack.c.l.b16 %v598
      %v626 = vunpack.c.l.b16 %v599
      %v627 = vpack.c.b16 %v617, %v616
      %v628 = vpack.c.b16 %v619, %v618
      %v629 = vpack.c.b16 %v621, %v620
      %v630 = vpack.c.b16 %v623, %v622
      %v631 = vpack.c.b16 %v625, %v624
      %v632 = vpack.c.b16 %v626, %v626
      %vm633 = vsmask.f32 6400
      %v635 = vshrl.u32 %v627, 16
      %v637 = vrot.slane %v635, 1
      %v638 = vshll.u32 %v627, 16
      %v640 = vrot.slane %v638, 2
      %v641 = vor.u32 %v637, %v640
      %v643 = vshrl.u32 %v628, 16
      %v645 = vrot.slane %v643, 1
      %v646 = vshll.u32 %v628, 16
      %v648 = vrot.slane %v646, 2
      %v649 = vor.u32 %v645, %v648
      %v650 = vsel %vm633, %v641, %v649
      %v652 = vshrl.u32 %v629, 16
      %v654 = vrot.slane %v652, 1
      %v655 = vshll.u32 %v629, 16
      %v657 = vrot.slane %v655, 2
      %v658 = vor.u32 %v654, %v657
      %v659 = vsel %vm633, %v649, %v658
      %v661 = vshrl.u32 %v630, 16
      %v663 = vrot.slane %v661, 1
      %v664 = vshll.u32 %v630, 16
      %v666 = vrot.slane %v664, 2
      %v667 = vor.u32 %v663, %v666
      %v668 = vsel %vm633, %v658, %v667
      %v670 = vshrl.u32 %v631, 16
      %v672 = vrot.slane %v670, 1
      %v673 = vshll.u32 %v631, 16
      %v675 = vrot.slane %v673, 2
      %v676 = vor.u32 %v672, %v675
      %v677 = vsel %vm633, %v667, %v676
      %v679 = vshll.u32 %v632, 16
      %v681 = vrot.slane %v679, 2
      %v682 = vsel %vm633, %v676, %v681
      %v687 = vunpack.c.l.b16 %v601
      %v688 = vunpack.c.l.b16 %v602
      %v689 = vunpack.c.l.b16 %v603
      %v690 = vunpack.c.l.b16 %v604
      %v691 = vpack.c.b16 %v688, %v687
      %v692 = vpack.c.b16 %v690, %v689
      %v696 = vsel %vm269, %v650, 0
      %v699 = vsel %vm269, %v659, 0
      %v702 = vsel %vm269, %v668, 0
      %v705 = vsel %vm269, %v677, 0
      %v708 = vsel %vm269, %v682, 0
      %710 = vmatpush.bf16.msra.mxu0 0
      %711 = vmatpush.bf16.msra.mxu0 0
      %712 = vmatpush.bf16.msra.mxu0 0
      %713 = vmatpush.bf16.msra.mxu0 0
      %714 = vmatpush.bf16.msra.mxu0 0
      %715 = vmatpush.bf16.msra.mxu0 0
      %716 = vmatpush.bf16.msra.mxu0 %v692
      %717 = vmatpush.bf16.msra.mxu0 %v691
      %718 = vmatmul.bf16.gmra.mxu0 %v696
      %v719 = vpop.f32.mrf.mxu0
      %v720 = vadd.f32 0.0, %v719
      %v721 = vpop.f32.mrf.mxu0
      %v722 = vadd.f32 0.0, %v721
      %723 = vmatmul.bf16.gmra.mxu0 %v699
      %v724 = vpop.f32.mrf.mxu0
      %v725 = vadd.f32 0.0, %v724
      %v726 = vpop.f32.mrf.mxu0
      %v727 = vadd.f32 0.0, %v726
      %728 = vmatmul.bf16.gmra.mxu0 %v702
      %v729 = vpop.f32.mrf.mxu0
      %v730 = vadd.f32 0.0, %v729
      %v731 = vpop.f32.mrf.mxu0
      %v732 = vadd.f32 0.0, %v731
      %733 = vmatmul.bf16.gmra.mxu0 %v705
      %v734 = vpop.f32.mrf.mxu0
      %v735 = vadd.f32 0.0, %v734
      %v736 = vpop.f32.mrf.mxu0
      %v737 = vadd.f32 0.0, %v736
      %738 = vmatmul.bf16.gmra.mxu0 %v708
      %v739 = vpop.f32.mrf.mxu0
      %v740 = vadd.f32 0.0, %v739
      %v741 = vpop.f32.mrf.mxu0
      %v742 = vadd.f32 0.0, %v741
      %743 = vdwg.mxu0
      %v744 = vadd.f32 %v579, %v720
      %v745 = vadd.f32 %v580, %v722
      %v746 = vadd.f32 %v581, %v725
      %v747 = vadd.f32 %v582, %v727
      %v748 = vadd.f32 %v583, %v730
      %v749 = vadd.f32 %v584, %v732
      %v750 = vadd.f32 %v585, %v735
      %v751 = vadd.f32 %v586, %v737
      %v752 = vadd.f32 %v587, %v740
      %v753 = vadd.f32 %v588, %v742
      %v754 = vld [vmem:[%s165 + $0x4] sm:$0xc]
      %s755 = scalar_lea.vmem %s1, 80
      %v756 = vld [vmem:[%s755] sm:$0xf]
      %v757 = vld [vmem:[%s755 + $0x4] sm:$0xf]
      %v758 = vld [vmem:[%s755 + $0x8] sm:$0xf]
      %v759 = vld [vmem:[%s755 + $0xc] sm:$0xf]
      %v761 = vunpack.c.l.b16 %v754
      %v762 = vpack.c.b16 %v617, %v761
      %vm763 = vcmask 1045504
      %v764 = vrot.slane %v762, 2
      %v765 = vrot.slane %v628, 2
      %v766 = vsel %vm763, %v764, %v765
      %v767 = vrot.slane %v629, 2
      %v768 = vsel %vm763, %v765, %v767
      %v769 = vrot.slane %v630, 2
      %v770 = vsel %vm763, %v767, %v769
      %v771 = vrot.slane %v631, 2
      %v772 = vsel %vm763, %v769, %v771
      %v773 = vrot.slane %v632, 2
      %v774 = vsel %vm763, %v771, %v773
      %v779 = vunpack.c.l.b16 %v756
      %v780 = vunpack.c.l.b16 %v757
      %v781 = vunpack.c.l.b16 %v758
      %v782 = vunpack.c.l.b16 %v759
      %v783 = vpack.c.b16 %v780, %v779
      %v784 = vpack.c.b16 %v782, %v781
      %v788 = vsel %vm269, %v766, 0
      %v791 = vsel %vm269, %v768, 0
      %v794 = vsel %vm269, %v770, 0
      %v797 = vsel %vm269, %v772, 0
      %v800 = vsel %vm269, %v774, 0
      %802 = vmatpush.bf16.msra.mxu0 0
      %803 = vmatpush.bf16.msra.mxu0 0
      %804 = vmatpush.bf16.msra.mxu0 0
      %805 = vmatpush.bf16.msra.mxu0 0
      %806 = vmatpush.bf16.msra.mxu0 0
      %807 = vmatpush.bf16.msra.mxu0 0
      %808 = vmatpush.bf16.msra.mxu0 %v784
      %809 = vmatpush.bf16.msra.mxu0 %v783
      %810 = vmatmul.bf16.gmra.mxu0 %v788
      %v811 = vpop.f32.mrf.mxu0
      %v812 = vadd.f32 0.0, %v811
      %v813 = vpop.f32.mrf.mxu0
      %v814 = vadd.f32 0.0, %v813
      %815 = vmatmul.bf16.gmra.mxu0 %v791
      %v816 = vpop.f32.mrf.mxu0
      %v817 = vadd.f32 0.0, %v816
      %v818 = vpop.f32.mrf.mxu0
      %v819 = vadd.f32 0.0, %v818
      %820 = vmatmul.bf16.gmra.mxu0 %v794
      %v821 = vpop.f32.mrf.mxu0
      %v822 = vadd.f32 0.0, %v821
      %v823 = vpop.f32.mrf.mxu0
      %v824 = vadd.f32 0.0, %v823
      %825 = vmatmul.bf16.gmra.mxu0 %v797
      %v826 = vpop.f32.mrf.mxu0
      %v827 = vadd.f32 0.0, %v826
      %v828 = vpop.f32.mrf.mxu0
      %v829 = vadd.f32 0.0, %v828
      %830 = vmatmul.bf16.gmra.mxu0 %v800
      %v831 = vpop.f32.mrf.mxu0
      %v832 = vadd.f32 0.0, %v831
      %v833 = vpop.f32.mrf.mxu0
      %v834 = vadd.f32 0.0, %v833
      %835 = vdwg.mxu0
      %v836 = vadd.f32 %v744, %v812
      %v837 = vadd.f32 %v745, %v814
      %v838 = vadd.f32 %v746, %v817
      %v839 = vadd.f32 %v747, %v819
      %v840 = vadd.f32 %v748, %v822
      %v841 = vadd.f32 %v749, %v824
      %v842 = vadd.f32 %v750, %v827
      %v843 = vadd.f32 %v751, %v829
      %v844 = vadd.f32 %v752, %v832
      %v845 = vadd.f32 %v753, %v834
      %v846 = vld [vmem:[%s165 + $0x8] sm:$0xc]
      %v847 = vld [vmem:[%s165 + $0xc] sm:$0xf]
      %v848 = vld [vmem:[%s165 + $0x10] sm:$0xf]
      %v849 = vld [vmem:[%s165 + $0x14] sm:$0xf]
      %v850 = vld [vmem:[%s165 + $0x18] sm:$0xf]
      %v851 = vld [vmem:[%s165 + $0x1c] sm:$0xf]
      %v852 = vld [vmem:[%s165 + $0x20] sm:$0xf]
      %v853 = vld [vmem:[%s165 + $0x24] sm:$0xf]
      %v854 = vld [vmem:[%s165 + $0x28] sm:$0xf]
      %v855 = vld [vmem:[%s165 + $0x2c] sm:$0xf]
      %v856 = vld [vmem:[%s165 + $0x30] sm:$0x1]
      %s857 = scalar_lea.vmem %s1, 96
      %v858 = vld [vmem:[%s857] sm:$0xf]
      %v859 = vld [vmem:[%s857 + $0x4] sm:$0xf]
      %v860 = vld [vmem:[%s857 + $0x8] sm:$0xf]
      %v861 = vld [vmem:[%s857 + $0xc] sm:$0xf]
      %v873 = vunpack.c.l.b16 %v846
      %v874 = vunpack.c.l.b16 %v847
      %v875 = vunpack.c.l.b16 %v848
      %v876 = vunpack.c.l.b16 %v849
      %v877 = vunpack.c.l.b16 %v850
      %v878 = vunpack.c.l.b16 %v851
      %v879 = vunpack.c.l.b16 %v852
      %v880 = vunpack.c.l.b16 %v853
      %v881 = vunpack.c.l.b16 %v854
      %v882 = vunpack.c.l.b16 %v855
      %v883 = vunpack.c.l.b16 %v856
      %v884 = vpack.c.b16 %v874, %v873
      %v885 = vpack.c.b16 %v876, %v875
      %v886 = vpack.c.b16 %v878, %v877
      %v887 = vpack.c.b16 %v880, %v879
      %v888 = vpack.c.b16 %v882, %v881
      %v889 = vpack.c.b16 %v883, %v883
      %v890 = vrot.slane %v884, 2
      %v891 = vrot.slane %v885, 2
      %v892 = vsel %vm763, %v890, %v891
      %v893 = vrot.slane %v886, 2
      %v894 = vsel %vm763, %v891, %v893
      %v895 = vrot.slane %v887, 2
      %v896 = vsel %vm763, %v893, %v895
      %v897 = vrot.slane %v888, 2
      %v898 = vsel %vm763, %v895, %v897
      %v899 = vrot.slane %v889, 2
      %v900 = vsel %vm763, %v897, %v899
      %v905 = vunpack.c.l.b16 %v858
      %v906 = vunpack.c.l.b16 %v859
      %v907 = vunpack.c.l.b16 %v860
      %v908 = vunpack.c.l.b16 %v861
      %v909 = vpack.c.b16 %v906, %v905
      %v910 = vpack.c.b16 %v908, %v907
      %v914 = vsel %vm269, %v892, 0
      %v917 = vsel %vm269, %v894, 0
      %v920 = vsel %vm269, %v896, 0
      %v923 = vsel %vm269, %v898, 0
      %v926 = vsel %vm269, %v900, 0
      %928 = vmatpush.bf16.msra.mxu0 0
      %929 = vmatpush.bf16.msra.mxu0 0
      %930 = vmatpush.bf16.msra.mxu0 0
      %931 = vmatpush.bf16.msra.mxu0 0
      %932 = vmatpush.bf16.msra.mxu0 0
      %933 = vmatpush.bf16.msra.mxu0 0
      %934 = vmatpush.bf16.msra.mxu0 %v910
      %935 = vmatpush.bf16.msra.mxu0 %v909
      %936 = vmatmul.bf16.gmra.mxu0 %v914
      %v937 = vpop.f32.mrf.mxu0
      %v938 = vadd.f32 0.0, %v937
      %v939 = vpop.f32.mrf.mxu0
      %v940 = vadd.f32 0.0, %v939
      %941 = vmatmul.bf16.gmra.mxu0 %v917
      %v942 = vpop.f32.mrf.mxu0
      %v943 = vadd.f32 0.0, %v942
      %v944 = vpop.f32.mrf.mxu0
      %v945 = vadd.f32 0.0, %v944
      %946 = vmatmul.bf16.gmra.mxu0 %v920
      %v947 = vpop.f32.mrf.mxu0
      %v948 = vadd.f32 0.0, %v947
      %v949 = vpop.f32.mrf.mxu0
      %v950 = vadd.f32 0.0, %v949
      %951 = vmatmul.bf16.gmra.mxu0 %v923
      %v952 = vpop.f32.mrf.mxu0
      %v953 = vadd.f32 0.0, %v952
      %v954 = vpop.f32.mrf.mxu0
      %v955 = vadd.f32 0.0, %v954
      %956 = vmatmul.bf16.gmra.mxu0 %v926
      %v957 = vpop.f32.mrf.mxu0
      %v958 = vadd.f32 0.0, %v957
      %v959 = vpop.f32.mrf.mxu0
      %v960 = vadd.f32 0.0, %v959
      %961 = vdwg.mxu0
      %v962 = vadd.f32 %v836, %v938
      %v963 = vadd.f32 %v837, %v940
      %v964 = vadd.f32 %v838, %v943
      %v965 = vadd.f32 %v839, %v945
      %v966 = vadd.f32 %v840, %v948
      %v967 = vadd.f32 %v841, %v950
      %v968 = vadd.f32 %v842, %v953
      %v969 = vadd.f32 %v843, %v955
      %v970 = vadd.f32 %v844, %v958
      %v971 = vadd.f32 %v845, %v960
      %v972 = vld [vmem:[%s165 + $0x30] sm:$0x3]
      %s973 = scalar_lea.vmem %s1, 112
      %v974 = vld [vmem:[%s973] sm:$0xf]
      %v975 = vld [vmem:[%s973 + $0x4] sm:$0xf]
      %v976 = vld [vmem:[%s973 + $0x8] sm:$0xf]
      %v977 = vld [vmem:[%s973 + $0xc] sm:$0xf]
      %v979 = vunpack.c.l.b16 %v972
      %v980 = vpack.c.b16 %v979, %v979
      %vm981 = vsmask.f32 5376
      %v983 = vshrl.u32 %v884, 16
      %v985 = vrot.slane %v983, 2
      %v986 = vshll.u32 %v884, 16
      %v988 = vrot.slane %v986, 3
      %v989 = vor.u32 %v985, %v988
      %v991 = vshrl.u32 %v885, 16
      %v993 = vrot.slane %v991, 2
      %v994 = vshll.u32 %v885, 16
      %v996 = vrot.slane %v994, 3
      %v997 = vor.u32 %v993, %v996
      %v998 = vsel %vm981, %v989, %v997
      %v1000 = vshrl.u32 %v886, 16
      %v1002 = vrot.slane %v1000, 2
      %v1003 = vshll.u32 %v886, 16
      %v1005 = vrot.slane %v1003, 3
      %v1006 = vor.u32 %v1002, %v1005
      %v1007 = vsel %vm981, %v997, %v1006
      %v1009 = vshrl.u32 %v887, 16
      %v1011 = vrot.slane %v1009, 2
      %v1012 = vshll.u32 %v887, 16
      %v1014 = vrot.slane %v1012, 3
      %v1015 = vor.u32 %v1011, %v1014
      %v1016 = vsel %vm981, %v1006, %v1015
      %v1018 = vshrl.u32 %v888, 16
      %v1020 = vrot.slane %v1018, 2
      %v1021 = vshll.u32 %v888, 16
      %v1023 = vrot.slane %v1021, 3
      %v1024 = vor.u32 %v1020, %v1023
      %v1025 = vsel %vm981, %v1015, %v1024
      %v1027 = vshrl.u32 %v980, 16
      %v1029 = vrot.slane %v1027, 2
      %v1030 = vshll.u32 %v980, 16
      %v1032 = vrot.slane %v1030, 3
      %v1033 = vor.u32 %v1029, %v1032
      %v1034 = vsel %vm981, %v1024, %v1033
      %v1039 = vunpack.c.l.b16 %v974
      %v1040 = vunpack.c.l.b16 %v975
      %v1041 = vunpack.c.l.b16 %v976
      %v1042 = vunpack.c.l.b16 %v977
      %v1043 = vpack.c.b16 %v1040, %v1039
      %v1044 = vpack.c.b16 %v1042, %v1041
      %v1048 = vsel %vm269, %v998, 0
      %v1051 = vsel %vm269, %v1007, 0
      %v1054 = vsel %vm269, %v1016, 0
      %v1057 = vsel %vm269, %v1025, 0
      %v1060 = vsel %vm269, %v1034, 0
      %1062 = vmatpush.bf16.msra.mxu0 0
      %1063 = vmatpush.bf16.msra.mxu0 0
      %1064 = vmatpush.bf16.msra.mxu0 0
      %1065 = vmatpush.bf16.msra.mxu0 0
      %1066 = vmatpush.bf16.msra.mxu0 0
      %1067 = vmatpush.bf16.msra.mxu0 0
      %1068 = vmatpush.bf16.msra.mxu0 %v1044
      %1069 = vmatpush.bf16.msra.mxu0 %v1043
      %1070 = vmatmul.bf16.gmra.mxu0 %v1048
      %v1071 = vpop.f32.mrf.mxu0
      %v1072 = vadd.f32 0.0, %v1071
      %v1073 = vpop.f32.mrf.mxu0
      %v1074 = vadd.f32 0.0, %v1073
      %1075 = vmatmul.bf16.gmra.mxu0 %v1051
      %v1076 = vpop.f32.mrf.mxu0
      %v1077 = vadd.f32 0.0, %v1076
      %v1078 = vpop.f32.mrf.mxu0
      %v1079 = vadd.f32 0.0, %v1078
      %1080 = vmatmul.bf16.gmra.mxu0 %v1054
      %v1081 = vpop.f32.mrf.mxu0
      %v1082 = vadd.f32 0.0, %v1081
      %v1083 = vpop.f32.mrf.mxu0
      %v1084 = vadd.f32 0.0, %v1083
      %1085 = vmatmul.bf16.gmra.mxu0 %v1057
      %v1086 = vpop.f32.mrf.mxu0
      %v1087 = vadd.f32 0.0, %v1086
      %v1088 = vpop.f32.mrf.mxu0
      %v1089 = vadd.f32 0.0, %v1088
      %1090 = vmatmul.bf16.gmra.mxu0 %v1060
      %v1091 = vpop.f32.mrf.mxu0
      %v1092 = vadd.f32 0.0, %v1091
      %v1093 = vpop.f32.mrf.mxu0
      %v1094 = vadd.f32 0.0, %v1093
      %1095 = vdwg.mxu0
      %v1096 = vadd.f32 %v962, %v1072
      %v1097 = vadd.f32 %v963, %v1074
      %v1098 = vadd.f32 %v964, %v1077
      %v1099 = vadd.f32 %v965, %v1079
      %v1100 = vadd.f32 %v966, %v1082
      %v1101 = vadd.f32 %v967, %v1084
      %v1102 = vadd.f32 %v968, %v1087
      %v1103 = vadd.f32 %v969, %v1089
      %v1104 = vadd.f32 %v970, %v1092
      %v1105 = vadd.f32 %v971, %v1094
      %v1106 = vld [vmem:[%s165 + $0x8] sm:$0x8]
      %s1107 = scalar_lea.vmem %s1, 128
      %v1108 = vld [vmem:[%s1107] sm:$0xf]
      %v1109 = vld [vmem:[%s1107 + $0x4] sm:$0xf]
      %v1110 = vld [vmem:[%s1107 + $0x8] sm:$0xf]
      %v1111 = vld [vmem:[%s1107 + $0xc] sm:$0xf]
      %v1113 = vunpack.c.l.b16 %v1106
      %v1114 = vpack.c.b16 %v874, %v1113
      %vm1115 = vcmask 1044480
      %v1116 = vrot.slane %v1114, 3
      %v1117 = vrot.slane %v885, 3
      %v1118 = vsel %vm1115, %v1116, %v1117
      %v1119 = vrot.slane %v886, 3
      %v1120 = vsel %vm1115, %v1117, %v1119
      %v1121 = vrot.slane %v887, 3
      %v1122 = vsel %vm1115, %v1119, %v1121
      %v1123 = vrot.slane %v888, 3
      %v1124 = vsel %vm1115, %v1121, %v1123
      %v1125 = vrot.slane %v980, 3
      %v1126 = vsel %vm1115, %v1123, %v1125
      %v1131 = vunpack.c.l.b16 %v1108
      %v1132 = vunpack.c.l.b16 %v1109
      %v1133 = vunpack.c.l.b16 %v1110
      %v1134 = vunpack.c.l.b16 %v1111
      %v1135 = vpack.c.b16 %v1132, %v1131
      %v1136 = vpack.c.b16 %v1134, %v1133
      %v1140 = vsel %vm269, %v1118, 0
      %v1143 = vsel %vm269, %v1120, 0
      %v1146 = vsel %vm269, %v1122, 0
      %v1149 = vsel %vm269, %v1124, 0
      %v1152 = vsel %vm269, %v1126, 0
      %1154 = vmatpush.bf16.msra.mxu0 0
      %1155 = vmatpush.bf16.msra.mxu0 0
      %1156 = vmatpush.bf16.msra.mxu0 0
      %1157 = vmatpush.bf16.msra.mxu0 0
      %1158 = vmatpush.bf16.msra.mxu0 0
      %1159 = vmatpush.bf16.msra.mxu0 0
      %1160 = vmatpush.bf16.msra.mxu0 %v1136
      %1161 = vmatpush.bf16.msra.mxu0 %v1135
      %1162 = vmatmul.bf16.gmra.mxu0 %v1140
      %v1163 = vpop.f32.mrf.mxu0
      %v1164 = vadd.f32 0.0, %v1163
      %v1165 = vpop.f32.mrf.mxu0
      %v1166 = vadd.f32 0.0, %v1165
      %1167 = vmatmul.bf16.gmra.mxu0 %v1143
      %v1168 = vpop.f32.mrf.mxu0
      %v1169 = vadd.f32 0.0, %v1168
      %v1170 = vpop.f32.mrf.mxu0
      %v1171 = vadd.f32 0.0, %v1170
      %1172 = vmatmul.bf16.gmra.mxu0 %v1146
      %v1173 = vpop.f32.mrf.mxu0
      %v1174 = vadd.f32 0.0, %v1173
      %v1175 = vpop.f32.mrf.mxu0
      %v1176 = vadd.f32 0.0, %v1175
      %1177 = vmatmul.bf16.gmra.mxu0 %v1149
      %v1178 = vpop.f32.mrf.mxu0
      %v1179 = vadd.f32 0.0, %v1178
      %v1180 = vpop.f32.mrf.mxu0
      %v1181 = vadd.f32 0.0, %v1180
      %1182 = vmatmul.bf16.gmra.mxu0 %v1152
      %v1183 = vpop.f32.mrf.mxu0
      %v1184 = vadd.f32 0.0, %v1183
      %v1185 = vpop.f32.mrf.mxu0
      %v1186 = vadd.f32 0.0, %v1185
      %1187 = vdwg.mxu0
      %v1188 = vadd.f32 %v1096, %v1164
      %v1189 = vadd.f32 %v1097, %v1166
      %v1190 = vadd.f32 %v1098, %v1169
      %v1191 = vadd.f32 %v1099, %v1171
      %v1192 = vadd.f32 %v1100, %v1174
      %v1193 = vadd.f32 %v1101, %v1176
      %v1194 = vadd.f32 %v1102, %v1179
      %v1195 = vadd.f32 %v1103, %v1181
      %v1196 = vadd.f32 %v1104, %v1184
      %v1197 = vadd.f32 %v1105, %v1186
      %v1198 = vld [vmem:[%s2] sm:$0x1]
      %v1200 = vperm.slane %v1198, 0
      %v1202 = vadd.f32 %v1188, %v1200
      %v1203 = vadd.f32 %v1189, %v1200
      %v1204 = vadd.f32 %v1190, %v1200
      %v1205 = vadd.f32 %v1191, %v1200
      %v1206 = vadd.f32 %v1192, %v1200
      %v1207 = vadd.f32 %v1193, %v1200
      %v1208 = vadd.f32 %v1194, %v1200
      %v1209 = vadd.f32 %v1195, %v1200
      %v1210 = vadd.f32 %v1196, %v1200
      %v1211 = vadd.f32 %v1197, %v1200
      %vm1212 = vcmp.ge.f32.partialorder %v1202, 0.0
      %vm1213 = vcmp.ge.f32.partialorder %v1203, 0.0
      %vm1214 = vcmp.ge.f32.partialorder %v1204, 0.0
      %vm1215 = vcmp.ge.f32.partialorder %v1205, 0.0
      %vm1216 = vcmp.ge.f32.partialorder %v1206, 0.0
      %vm1217 = vcmp.ge.f32.partialorder %v1207, 0.0
      %vm1218 = vcmp.ge.f32.partialorder %v1208, 0.0
      %vm1219 = vcmp.ge.f32.partialorder %v1209, 0.0
      %vm1220 = vcmp.ge.f32.partialorder %v1210, 0.0
      %vm1221 = vcmp.ge.f32.partialorder %v1211, 0.0
      %v1222 = vmul.f32 %v1202, 0.2
      %v1223 = vmul.f32 %v1203, 0.2
      %v1224 = vmul.f32 %v1204, 0.2
      %v1225 = vmul.f32 %v1205, 0.2
      %v1226 = vmul.f32 %v1206, 0.2
      %v1227 = vmul.f32 %v1207, 0.2
      %v1228 = vmul.f32 %v1208, 0.2
      %v1229 = vmul.f32 %v1209, 0.2
      %v1230 = vmul.f32 %v1210, 0.2
      %v1231 = vmul.f32 %v1211, 0.2
      %v1232 = vsel %vm1212, %v1202, %v1222
      %v1233 = vsel %vm1213, %v1203, %v1223
      %v1234 = vsel %vm1214, %v1204, %v1224
      %v1235 = vsel %vm1215, %v1205, %v1225
      %v1236 = vsel %vm1216, %v1206, %v1226
      %v1237 = vsel %vm1217, %v1207, %v1227
      %v1238 = vsel %vm1218, %v1208, %v1228
      %v1239 = vsel %vm1219, %v1209, %v1229
      %v1240 = vsel %vm1220, %v1210, %v1230
      %v1241 = vsel %vm1221, %v1211, %v1231
      %v1242 = vpack.c.bf16 %v1232, %v1232
      %v1243 = vpack.c.bf16 %v1233, %v1233
      %v1244 = vpack.c.bf16 %v1234, %v1234
      %v1245 = vpack.c.bf16 %v1235, %v1235
      %v1246 = vpack.c.bf16 %v1236, %v1236
      %v1247 = vpack.c.bf16 %v1237, %v1237
      %v1248 = vpack.c.bf16 %v1238, %v1238
      %v1249 = vpack.c.bf16 %v1239, %v1239
      %v1250 = vpack.c.bf16 %v1240, %v1240
      %v1251 = vpack.c.bf16 %v1241, %v1241
      %vm1252 = vcmask 519168
      %1253 = vst.msk [vmem:[%s170] sm:$0xf] %vm1252, %v1242
      %1254 = vst.msk [vmem:[%s170 + $0x4] sm:$0xf] %vm1252, %v1243
      %1255 = vst.msk [vmem:[%s170 + $0x8] sm:$0xf] %vm1252, %v1244
      %1256 = vst.msk [vmem:[%s170 + $0xc] sm:$0xf] %vm1252, %v1245
      %1257 = vst.msk [vmem:[%s170 + $0x10] sm:$0xf] %vm1252, %v1246
      %1258 = vst.msk [vmem:[%s170 + $0x14] sm:$0xf] %vm1252, %v1247
      %1259 = vst.msk [vmem:[%s170 + $0x18] sm:$0xf] %vm1252, %v1248
      %1260 = vst.msk [vmem:[%s170 + $0x1c] sm:$0xf] %vm1252, %v1249
      %1261 = vst.msk [vmem:[%s170 + $0x20] sm:$0xf] %vm1252, %v1250
      %vm1262 = vcmask 518144
      %1263 = vst.msk [vmem:[%s170 + $0x24] sm:$0x7] %vm1262, %v1251
      %p1264 = scmp.lt.s32.totalorder %s14, 1
      %s1265 = scalar_select %p1264, %s14, 1
      %s1266 = smul.addr %s1265, 10
      %s1267 = smul.addr %s1266, 4
      %s1268 = scalar_lea.vmem %s3, %s1267
      // Predicated region
      $region33: #{discriminator_forward.10} parent=31 // pred_check
        %p1269 = pneg %p100
      $region34: #{discriminator_forward.10} parent=31 // pred_check_branch
        %1271 = sbr.rel (%p1269) target = $region36
      $region35: #{discriminator_forward.10} parent=31 // pred_region
        _
      $region36: #{discriminator_forward.10} parent=31 // pred_fallthru
        _
    $region32: #{discriminator_forward.10} parent=5 // pred_fallthru
      _
    %p1272 = scmp.le.s32.totalorder 2, %s9
    // Predicated region
    $region37: #{discriminator_forward.10} parent=5 // pred_check
      %p1273 = pneg %p1272
    $region38: #{discriminator_forward.10} parent=5 // pred_check_branch
      %1275 = sbr.rel (%p1273) target = $region40
    $region39: #{discriminator_forward.10} parent=5 // pred_region
      %s1276 = ssub.s32 %s9, 2
      // Predicated region
      $region41: #{discriminator_forward.10} parent=39 // pred_check
        %p1277 = pneg %p106
      $region42: #{discriminator_forward.10} parent=39 // pred_check_branch
        %1279 = sbr.rel (%p1277) target = $region44
      $region43: #{discriminator_forward.10} parent=39 // pred_region
        %p1280 = scmp.lt.s32.totalorder %s15, 1
        %s1281 = scalar_select %p1280, %s15, 1
        %s1282 = smul.addr %s1281, 10
        %s1283 = smul.addr %s1282, 4
        %s1284 = scalar_lea.vmem %s3, %s1283
      $region44: #{discriminator_forward.10} parent=39 // pred_fallthru
        _
    $region40: #{discriminator_forward.10} parent=5 // pred_fallthru
      _
  $region6: #{discriminator_forward.10} parent=0 // loop_footer
    %s13 = sadd.s32 1, %s9
  $region7: #{discriminator_forward.10} parent=0 // loop_footer_branch
    %8 = sbr.rel target = $region3
  $region8: #{discriminator_forward.10} parent=0 // loop_exit
    _

// kernel: discriminator_forward.11
$region0: #{discriminator_forward.11}
  #allocation0 [shape = 'u32[]', space=smem, size = 0x4, offset = 0x4, fixed_abs, tag = 'smem constant byte address 0x4 - core index']
  #allocation1 [shape = 'u32[72,128]{1,0:T(1,128)}', space=vmem, size = 0x9000, scoped, tag = 'internal scratch']
  %s0 = inlined_call_operand.vmem [shape: bf16[2,25,64], index: 0, kind: input, shape index: {}]
  %s1 = inlined_call_operand.vmem [shape: bf16[2,25,64], index: 1, kind: input, shape index: {}]
  %s2 = inlined_call_operand.vmem [shape: bf16[2,25,64], index: 2, kind: input, shape index: {}]
  %s3 = inlined_call_operand.vmem [shape: bf16[2,25,64], index: 3, kind: input, shape index: {}]
  %s4 = inlined_call_operand.vmem [shape: bf16[9,64,64], index: 4, kind: input, shape index: {}]
  %s5 = inlined_call_operand.vmem [shape: f32[1,64], index: 5, kind: input, shape index: {}]
  %s6 = inlined_call_operand.vmem [shape: bf16[2,19,64], index: 6, kind: output, shape index: {}]
  %s7 = sld [smem:[#allocation0]]
  $region57: #{discriminator_forward.11} parent=0
    _
  %s9 = ssub.s32 1, %s7
  %s10 = scalar_select 0, %s9, %s7
  loop: start=0, step=1, limit=4
  $region2: #{discriminator_forward.11} parent=0 // loop_pre_header
    _
  $region3: #{discriminator_forward.11} parent=0 // loop_header
    %s12 = sphi 0, %s16
    %p13 = scmp.ge.s32.totalorder %s12, 4
    %s22 = sphi 0, %s24
    %s25 = sphi 0, %s22
    %s26 = sphi 0, %s25
    %s42 = sphi 0, %s26
    %s48 = sphi 0, %s50
    %s51 = sphi 0, %s48
    %s52 = sphi 0, %s51
    %s68 = sphi 0, %s52
    %s74 = sphi 0, %s76
    %s77 = sphi 0, %s74
    %s78 = sphi 0, %s77
    %s94 = sphi 0, %s78
    %s100 = sphi 0, %s102
    %s103 = sphi 0, %s100
    %s104 = sphi 0, %s103
    %s120 = sphi 0, %s104
    %s124 = sphi 0, %s124
    %s126 = sphi 0, %s124
    %s127 = sphi 0, %s126
    %s141 = sphi 0, %s127
    %s145 = sphi 0, %s145
    %s147 = sphi 0, %s145
    %s148 = sphi 0, %s147
    %s162 = sphi 0, %s148
    %s168 = sphi 0, %s170
    %s171 = sphi 0, %s168
    %s172 = sphi 0, %s171
    %s188 = sphi 0, %s172
  $region4: #{discriminator_forward.11} parent=0 // loop_header_branch
    %15 = sbr.rel (%p13) target = $region8
  $region5: #{discriminator_forward.11} parent=0 // loop_body
    %s17 = ssub.s32 %s12, 1
    %s18 = ssub.s32 %s12, 2
    %s19 = sadd.s32 %s12, 1
    %s20 = ssub.s32 %s12, %s19
    %p21 = scmp.eq.s32.totalorder %s20, 0
    %s23 = sadd.s32 %s22, 1
    %s24 = scalar_select %p21, %s22, %s23
    %p27 = pneg %p21
    %p28 = scmp.eq.s32.totalorder %s12, 1
    %p29 = por %p27, %p28
    %p30 = scmp.ne.s32.totalorder %s22, %s25
    %p31 = scmp.eq.s32.totalorder %s12, 0
    %p32 = por %p30, %p31
    %p33 = scmp.ne.s32.totalorder %s22, %s25
    %p34 = scmp.eq.s32.totalorder %s17, 1
    %p35 = por %p33, %p34
    %p36 = scmp.ne.s32.totalorder %s25, %s26
    %p37 = scmp.eq.s32.totalorder %s17, 0
    %p38 = por %p36, %p37
    %p39 = scmp.ne.s32.totalorder %s25, %s26
    %p40 = scmp.eq.s32.totalorder %s18, 1
    %p41 = por %p39, %p40
    %p43 = scmp.ne.s32.totalorder %s26, %s42
    %p44 = scmp.eq.s32.totalorder %s18, 0
    %p45 = por %p43, %p44
    %s46 = ssub.s32 %s12, %s19
    %p47 = scmp.eq.s32.totalorder %s46, 0
    %s49 = sadd.s32 %s48, 1
    %s50 = scalar_select %p47, %s48, %s49
    %p53 = pneg %p47
    %p54 = scmp.eq.s32.totalorder %s12, 1
    %p55 = por %p53, %p54
    %p56 = scmp.ne.s32.totalorder %s48, %s51
    %p57 = scmp.eq.s32.totalorder %s12, 0
    %p58 = por %p56, %p57
    %p59 = scmp.ne.s32.totalorder %s48, %s51
    %p60 = scmp.eq.s32.totalorder %s17, 1
    %p61 = por %p59, %p60
    %p62 = scmp.ne.s32.totalorder %s51, %s52
    %p63 = scmp.eq.s32.totalorder %s17, 0
    %p64 = por %p62, %p63
    %p65 = scmp.ne.s32.totalorder %s51, %s52
    %p66 = scmp.eq.s32.totalorder %s18, 1
    %p67 = por %p65, %p66
    %p69 = scmp.ne.s32.totalorder %s52, %s68
    %p70 = scmp.eq.s32.totalorder %s18, 0
    %p71 = por %p69, %p70
    %s72 = ssub.s32 %s12, %s19
    %p73 = scmp.eq.s32.totalorder %s72, 0
    %s75 = sadd.s32 %s74, 1
    %s76 = scalar_select %p73, %s74, %s75
    %p79 = pneg %p73
    %p80 = scmp.eq.s32.totalorder %s12, 1
    %p81 = por %p79, %p80
    %p82 = scmp.ne.s32.totalorder %s74, %s77
    %p83 = scmp.eq.s32.totalorder %s12, 0
    %p84 = por %p82, %p83
    %p85 = scmp.ne.s32.totalorder %s74, %s77
    %p86 = scmp.eq.s32.totalorder %s17, 1
    %p87 = por %p85, %p86
    %p88 = scmp.ne.s32.totalorder %s77, %s78
    %p89 = scmp.eq.s32.totalorder %s17, 0
    %p90 = por %p88, %p89
    %p91 = scmp.ne.s32.totalorder %s77, %s78
    %p92 = scmp.eq.s32.totalorder %s18, 1
    %p93 = por %p91, %p92
    %p95 = scmp.ne.s32.totalorder %s78, %s94
    %p96 = scmp.eq.s32.totalorder %s18, 0
    %p97 = por %p95, %p96
    %s98 = ssub.s32 %s12, %s19
    %p99 = scmp.eq.s32.totalorder %s98, 0
    %s101 = sadd.s32 %s100, 1
    %s102 = scalar_select %p99, %s100, %s101
    %p105 = pneg %p99
    %p106 = scmp.eq.s32.totalorder %s12, 1
    %p107 = por %p105, %p106
    %p108 = scmp.ne.s32.totalorder %s100, %s103
    %p109 = scmp.eq.s32.totalorder %s12, 0
    %p110 = por %p108, %p109
    %p111 = scmp.ne.s32.totalorder %s100, %s103
    %p112 = scmp.eq.s32.totalorder %s17, 1
    %p113 = por %p111, %p112
    %p114 = scmp.ne.s32.totalorder %s103, %s104
    %p115 = scmp.eq.s32.totalorder %s17, 0
    %p116 = por %p114, %p115
    %p117 = scmp.ne.s32.totalorder %s103, %s104
    %p118 = scmp.eq.s32.totalorder %s18, 1
    %p119 = por %p117, %p118
    %p121 = scmp.ne.s32.totalorder %s104, %s120
    %p122 = scmp.eq.s32.totalorder %s18, 0
    %p123 = por %p121, %p122
    %s125 = sadd.s32 %s124, 1
    %p128 = scmp.eq.s32.totalorder %s12, 1
    %p129 = scmp.ne.s32.totalorder %s124, %s126
    %p130 = scmp.eq.s32.totalorder %s12, 0
    %p131 = por %p129, %p130
    %p132 = scmp.ne.s32.totalorder %s124, %s126
    %p133 = scmp.eq.s32.totalorder %s17, 1
    %p134 = por %p132, %p133
    %p135 = scmp.ne.s32.totalorder %s126, %s127
    %p136 = scmp.eq.s32.totalorder %s17, 0
    %p137 = por %p135, %p136
    %p138 = scmp.ne.s32.totalorder %s126, %s127
    %p139 = scmp.eq.s32.totalorder %s18, 1
    %p140 = por %p138, %p139
    %p142 = scmp.ne.s32.totalorder %s127, %s141
    %p143 = scmp.eq.s32.totalorder %s18, 0
    %p144 = por %p142, %p143
    %s146 = sadd.s32 %s145, 1
    %p149 = scmp.eq.s32.totalorder %s12, 1
    %p150 = scmp.ne.s32.totalorder %s145, %s147
    %p151 = scmp.eq.s32.totalorder %s12, 0
    %p152 = por %p150, %p151
    %p153 = scmp.ne.s32.totalorder %s145, %s147
    %p154 = scmp.eq.s32.totalorder %s17, 1
    %p155 = por %p153, %p154
    %p156 = scmp.ne.s32.totalorder %s147, %s148
    %p157 = scmp.eq.s32.totalorder %s17, 0
    %p158 = por %p156, %p157
    %p159 = scmp.ne.s32.totalorder %s147, %s148
    %p160 = scmp.eq.s32.totalorder %s18, 1
    %p161 = por %p159, %p160
    %p163 = scmp.ne.s32.totalorder %s148, %s162
    %p164 = scmp.eq.s32.totalorder %s18, 0
    %p165 = por %p163, %p164
    %s166 = ssub.s32 %s12, %s19
    %p167 = scmp.eq.s32.totalorder %s166, 0
    %s169 = sadd.s32 %s168, 1
    %s170 = scalar_select %p167, %s168, %s169
    %p173 = pneg %p167
    %p174 = scmp.eq.s32.totalorder %s12, 1
    %p175 = por %p173, %p174
    %p176 = scmp.ne.s32.totalorder %s168, %s171
    %p177 = scmp.eq.s32.totalorder %s12, 0
    %p178 = por %p176, %p177
    %p179 = scmp.ne.s32.totalorder %s168, %s171
    %p180 = scmp.eq.s32.totalorder %s17, 1
    %p181 = por %p179, %p180
    %p182 = scmp.ne.s32.totalorder %s171, %s172
    %p183 = scmp.eq.s32.totalorder %s17, 0
    %p184 = por %p182, %p183
    %p185 = scmp.ne.s32.totalorder %s171, %s172
    %p186 = scmp.eq.s32.totalorder %s18, 1
    %p187 = por %p185, %p186
    %p189 = scmp.ne.s32.totalorder %s172, %s188
    %p190 = scmp.eq.s32.totalorder %s18, 0
    %p191 = por %p189, %p190
    %p192 = scmp.le.s32.totalorder 1, %s12
    %p193 = scmp.lt.s32.totalorder %s12, 3
    %p194 = pnand %p192, %p193
    %p195 = pneg %p194
    // Predicated region
    $region9: #{discriminator_forward.11} parent=5 // pred_check
      _
    $region10: #{discriminator_forward.11} parent=5 // pred_check_branch
      %197 = sbr.rel (%p194) target = $region12
    $region11: #{discriminator_forward.11} parent=5 // pred_region
      %s198 = ssub.s32 %s12, 1
      // Predicated region
      $region13: #{discriminator_forward.11} parent=11 // pred_check
        %p199 = pneg %p137
      $region14: #{discriminator_forward.11} parent=11 // pred_check_branch
        %201 = sbr.rel (%p199) target = $region16
      $region15: #{discriminator_forward.11} parent=11 // pred_region
        _
      $region16: #{discriminator_forward.11} parent=11 // pred_fallthru
        _
      // Predicated region
      $region17: #{discriminator_forward.11} parent=11 // pred_check
        %p202 = pneg %p158
      $region18: #{discriminator_forward.11} parent=11 // pred_check_branch
        %204 = sbr.rel (%p202) target = $region20
      $region19: #{discriminator_forward.11} parent=11 // pred_region
        _
      $region20: #{discriminator_forward.11} parent=11 // pred_fallthru
        _
    $region12: #{discriminator_forward.11} parent=5 // pred_fallthru
      _
    %p205 = scmp.lt.s32.totalorder %s12, 2
    // Predicated region
    $region21: #{discriminator_forward.11} parent=5 // pred_check
      %p206 = pneg %p205
    $region22: #{discriminator_forward.11} parent=5 // pred_check_branch
      %208 = sbr.rel (%p206) target = $region24
    $region23: #{discriminator_forward.11} parent=5 // pred_region
      // Predicated region
      $region25: #{discriminator_forward.11} parent=23 // pred_check
        %p209 = pneg %p32
      $region26: #{discriminator_forward.11} parent=23 // pred_check_branch
        %211 = sbr.rel (%p209) target = $region28
      $region27: #{discriminator_forward.11} parent=23 // pred_region
        %p212 = scmp.lt.s32.totalorder %s12, 1
        %s213 = scalar_select %p212, %s12, 1
        %s214 = smul.addr %s213, 4
        %s215 = smul.addr %s214, 4
        %s216 = scalar_lea.vmem %s0, %s215
      $region28: #{discriminator_forward.11} parent=23 // pred_fallthru
        _
      // Predicated region
      $region29: #{discriminator_forward.11} parent=23 // pred_check
        %p217 = pneg %p58
      $region30: #{discriminator_forward.11} parent=23 // pred_check_branch
        %219 = sbr.rel (%p217) target = $region32
      $region31: #{discriminator_forward.11} parent=23 // pred_region
        %p220 = scmp.lt.s32.totalorder %s12, 1
        %s221 = scalar_select %p220, %s12, 1
        %s222 = smul.addr %s221, 4
        %s223 = smul.addr %s222, 4
        %s224 = scalar_lea.vmem %s1, %s223
      $region32: #{discriminator_forward.11} parent=23 // pred_fallthru
        _
      // Predicated region
      $region33: #{discriminator_forward.11} parent=23 // pred_check
        %p225 = pneg %p84
      $region34: #{discriminator_forward.11} parent=23 // pred_check_branch
        %227 = sbr.rel (%p225) target = $region36
      $region35: #{discriminator_forward.11} parent=23 // pred_region
        %p228 = scmp.lt.s32.totalorder %s12, 1
        %s229 = scalar_select %p228, %s12, 1
        %s230 = smul.addr %s229, 4
        %s231 = smul.addr %s230, 4
        %s232 = scalar_lea.vmem %s2, %s231
      $region36: #{discriminator_forward.11} parent=23 // pred_fallthru
        _
      // Predicated region
      $region37: #{discriminator_forward.11} parent=23 // pred_check
        %p233 = pneg %p110
      $region38: #{discriminator_forward.11} parent=23 // pred_check_branch
        %235 = sbr.rel (%p233) target = $region40
      $region39: #{discriminator_forward.11} parent=23 // pred_region
        %p236 = scmp.lt.s32.totalorder %s12, 1
        %s237 = scalar_select %p236, %s12, 1
        %s238 = smul.addr %s237, 4
        %s239 = smul.addr %s238, 4
        %s240 = scalar_lea.vmem %s3, %s239
      $region40: #{discriminator_forward.11} parent=23 // pred_fallthru
        _
    $region24: #{discriminator_forward.11} parent=5 // pred_fallthru
      _
    %p241 = scmp.le.s32.totalorder 1, %s12
    %p242 = scmp.lt.s32.totalorder %s12, 3
    %p243 = pnand %p241, %p242
    %p244 = pneg %p243
    // Predicated region
    $region41: #{discriminator_forward.11} parent=5 // pred_check
      _
    $region42: #{discriminator_forward.11} parent=5 // pred_check_branch
      %246 = sbr.rel (%p243) target = $region44
    $region43: #{discriminator_forward.11} parent=5 // pred_region
      %s247 = ssub.s32 %s12, 1
      %p248 = scmp.lt.s32.totalorder %s17, 1
      %s249 = scalar_select %p248, %s17, 1
      %s250 = smul.addr %s249, 4
      %s251 = smul.addr %s250, 4
      %s252 = scalar_lea.vmem %s0, %s251
      %p253 = pneg %p38
      %p254 = pneg %p35
      %p255 = scmp.lt.s32.totalorder %s17, 1
      %s256 = scalar_select %p255, %s17, 1
      %s257 = smul.addr %s256, 4
      %s258 = smul.addr %s257, 4
      %s259 = scalar_lea.vmem %s1, %s258
      %p260 = pneg %p64
      %p261 = pneg %p61
      %p262 = scmp.lt.s32.totalorder %s17, 1
      %s263 = scalar_select %p262, %s17, 1
      %s264 = smul.addr %s263, 4
      %s265 = smul.addr %s264, 4
      %s266 = scalar_lea.vmem %s2, %s265
      %p267 = pneg %p90
      %p268 = pneg %p87
      %p269 = scmp.lt.s32.totalorder %s17, 1
      %s270 = scalar_select %p269, %s17, 1
      %s271 = smul.addr %s270, 4
      %s272 = smul.addr %s271, 4
      %s273 = scalar_lea.vmem %s3, %s272
      %p274 = pneg %p116
      %p275 = pneg %p113
      %p276 = pneg %p137
      %p277 = pneg %p134
      %p278 = pneg %p158
      %p279 = pneg %p155
      %p280 = pneg %p184
      %p281 = pneg %p181
      %p282 = scmp.lt.s32.totalorder %s17, 1
      %s283 = scalar_select %p282, %s17, 1
      %s284 = smul.addr %s283, 3
      %s285 = smul.addr %s284, 4
      %s286 = scalar_lea.vmem %s6, %s285
      %p287 = scmp.lt.s32.totalorder %s17, 1
      %s288 = scalar_select %p287, %s17, 1
      %s289 = smul.addr %s288, 4
      %s290 = smul.addr %s289, 4
      %s291 = scalar_lea.vmem %s0, %s290
      %p292 = scmp.lt.s32.totalorder %s17, 1
      %s293 = scalar_select %p292, %s17, 1
      %s294 = smul.addr %s293, 4
      %s295 = smul.addr %s294, 4
      %s296 = scalar_lea.vmem %s1, %s295
      %p297 = scmp.lt.s32.totalorder %s17, 1
      %s298 = scalar_select %p297, %s17, 1
      %s299 = smul.addr %s298, 4
      %s300 = smul.addr %s299, 4
      %s301 = scalar_lea.vmem %s2, %s300
      %p302 = scmp.lt.s32.totalorder %s17, 1
      %s303 = scalar_select %p302, %s17, 1
      %s304 = smul.addr %s303, 4
      %s305 = smul.addr %s304, 4
      %s306 = scalar_lea.vmem %s3, %s305
      %p307 = scmp.lt.s32.totalorder %s17, 1
      %s308 = scalar_select %p307, %s17, 1
      %s309 = smul.addr %s308, 3
      %s310 = smul.addr %s309, 4
      %s311 = scalar_lea.vmem %s6, %s310
      %v313 = vld [vmem:[%s291] sm:$0xf]
      %v314 = vld [vmem:[%s291 + $0x4] sm:$0xf]
      %v315 = vld [vmem:[%s291 + $0x8] sm:$0x3]
      %v316 = vld [vmem:[%s4] sm:$0xf]
      %v317 = vld [vmem:[%s4 + $0x4] sm:$0xf]
      %v318 = vld [vmem:[%s4 + $0x8] sm:$0xf]
      %v319 = vld [vmem:[%s4 + $0xc] sm:$0xf]
      %v320 = vld [vmem:[%s4 + $0x10] sm:$0xf]
      %v321 = vld [vmem:[%s4 + $0x14] sm:$0xf]
      %v322 = vld [vmem:[%s4 + $0x18] sm:$0xf]
      %v323 = vld [vmem:[%s4 + $0x1c] sm:$0xf]
      %v324 = vld [vmem:[%s296] sm:$0xf]
      %v325 = vld [vmem:[%s296 + $0x4] sm:$0xf]
      %v326 = vld [vmem:[%s296 + $0x8] sm:$0x3]
      %s327 = scalar_lea.vmem %s4, 32
      %v328 = vld [vmem:[%s327] sm:$0xf]
      %v329 = vld [vmem:[%s327 + $0x4] sm:$0xf]
      %v330 = vld [vmem:[%s327 + $0x8] sm:$0xf]
      %v331 = vld [vmem:[%s327 + $0xc] sm:$0xf]
      %v332 = vld [vmem:[%s327 + $0x10] sm:$0xf]
      %v333 = vld [vmem:[%s327 + $0x14] sm:$0xf]
      %v334 = vld [vmem:[%s327 + $0x18] sm:$0xf]
      %v335 = vld [vmem:[%s327 + $0x1c] sm:$0xf]
      %v339 = vunpack.c.l.b16 %v324
      %v340 = vunpack.c.l.b16 %v325
      %v341 = vunpack.c.l.b16 %v326
      %v342 = vpack.c.b16 %v340, %v339
      %v343 = vpack.c.b16 %v341, %v341
      %v352 = vunpack.c.l.b16 %v328
      %v353 = vunpack.c.l.b16 %v329
      %v354 = vunpack.c.l.b16 %v330
      %v355 = vunpack.c.l.b16 %v331
      %v356 = vunpack.c.l.b16 %v332
      %v357 = vunpack.c.l.b16 %v333
      %v358 = vunpack.c.l.b16 %v334
      %v359 = vunpack.c.l.b16 %v335
      %v360 = vpack.c.b16 %v353, %v352
      %v361 = vpack.c.b16 %v355, %v354
      %v362 = vpack.c.b16 %v357, %v356
      %v363 = vpack.c.b16 %v359, %v358
      %vm368 = vcmask 523264
      %v370 = vsel %vm368, %v342, 0
      %v373 = vsel %vm368, %v343, 0
      %375 = vmatpush.bf16.msra.mxu0 0
      %376 = vmatpush.bf16.msra.mxu0 0
      %377 = vmatpush.bf16.msra.mxu0 0
      %378 = vmatpush.bf16.msra.mxu0 0
      %379 = vmatpush.bf16.msra.mxu0 %v363
      %380 = vmatpush.bf16.msra.mxu0 %v362
      %381 = vmatpush.bf16.msra.mxu0 %v361
      %382 = vmatpush.bf16.msra.mxu0 %v360
      %383 = vmatmul.bf16.gmra.mxu0 %v370
      %v384 = vpop.f32.mrf.mxu0
      %v385 = vadd.f32 0.0, %v384
      %v386 = vpop.f32.mrf.mxu0
      %v387 = vadd.f32 0.0, %v386
      %388 = vmatmul.bf16.gmra.mxu0 %v373
      %v389 = vpop.f32.mrf.mxu0
      %v390 = vadd.f32 0.0, %v389
      %v391 = vpop.f32.mrf.mxu0
      %392 = vdwg.mxu0
      %v396 = vunpack.c.l.b16 %v313
      %v397 = vunpack.c.l.b16 %v314
      %v398 = vunpack.c.l.b16 %v315
      %v399 = vpack.c.b16 %v397, %v396
      %v400 = vpack.c.b16 %v398, %v398
      %v409 = vunpack.c.l.b16 %v316
      %v410 = vunpack.c.l.b16 %v317
      %v411 = vunpack.c.l.b16 %v318
      %v412 = vunpack.c.l.b16 %v319
      %v413 = vunpack.c.l.b16 %v320
      %v414 = vunpack.c.l.b16 %v321
      %v415 = vunpack.c.l.b16 %v322
      %v416 = vunpack.c.l.b16 %v323
      %v417 = vpack.c.b16 %v410, %v409
      %v418 = vpack.c.b16 %v412, %v411
      %v419 = vpack.c.b16 %v414, %v413
      %v420 = vpack.c.b16 %v416, %v415
      %v426 = vsel %vm368, %v399, 0
      %v429 = vsel %vm368, %v400, 0
      %431 = vmatpush.bf16.msra.mxu0 0
      %432 = vmatpush.bf16.msra.mxu0 0
      %433 = vmatpush.bf16.msra.mxu0 0
      %434 = vmatpush.bf16.msra.mxu0 0
      %435 = vmatpush.bf16.msra.mxu0 %v420
      %436 = vmatpush.bf16.msra.mxu0 %v419
      %437 = vmatpush.bf16.msra.mxu0 %v418
      %438 = vmatpush.bf16.msra.mxu0 %v417
      %439 = vmatmul.bf16.gmra.mxu0 %v426
      %v440 = vpop.f32.mrf.mxu0
      %v441 = vadd.f32 %v385, %v440
      %v442 = vpop.f32.mrf.mxu0
      %v443 = vadd.f32 %v387, %v442
      %444 = vmatmul.bf16.gmra.mxu0 %v429
      %v445 = vpop.f32.mrf.mxu0
      %v446 = vadd.f32 %v390, %v445
      %v447 = vpop.f32.mrf.mxu0
      %448 = vdwg.mxu0
      %s449 = scalar_lea.vmem %s4, 64
      %v450 = vld [vmem:[%s449] sm:$0xf]
      %v451 = vld [vmem:[%s449 + $0x4] sm:$0xf]
      %v452 = vld [vmem:[%s449 + $0x8] sm:$0xf]
      %v453 = vld [vmem:[%s449 + $0xc] sm:$0xf]
      %v454 = vld [vmem:[%s449 + $0x10] sm:$0xf]
      %v455 = vld [vmem:[%s449 + $0x14] sm:$0xf]
      %v456 = vld [vmem:[%s449 + $0x18] sm:$0xf]
      %v457 = vld [vmem:[%s449 + $0x1c] sm:$0xf]
      %vm458 = vsmask.f32 7424
      %v459 = vshrl.u32 %v399, 16
      %v461 = vshll.u32 %v399, 16
      %v463 = vrot.slane %v461, 1
      %v464 = vor.u32 %v459, %v463
      %v465 = vshll.u32 %v400, 16
      %v467 = vrot.slane %v465, 1
      %v468 = vsel %vm458, %v464, %v467
      %v469 = vshrl.u32 %v400, 16
      %v471 = vor.u32 %v469, %v467
      %v480 = vunpack.c.l.b16 %v450
      %v481 = vunpack.c.l.b16 %v451
      %v482 = vunpack.c.l.b16 %v452
      %v483 = vunpack.c.l.b16 %v453
      %v484 = vunpack.c.l.b16 %v454
      %v485 = vunpack.c.l.b16 %v455
      %v486 = vunpack.c.l.b16 %v456
      %v487 = vunpack.c.l.b16 %v457
      %v488 = vpack.c.b16 %v481, %v480
      %v489 = vpack.c.b16 %v483, %v482
      %v490 = vpack.c.b16 %v485, %v484
      %v491 = vpack.c.b16 %v487, %v486
      %v497 = vsel %vm368, %v468, 0
      %v500 = vsel %vm368, %v471, 0
      %502 = vmatpush.bf16.msra.mxu0 0
      %503 = vmatpush.bf16.msra.mxu0 0
      %504 = vmatpush.bf16.msra.mxu0 0
      %505 = vmatpush.bf16.msra.mxu0 0
      %506 = vmatpush.bf16.msra.mxu0 %v491
      %507 = vmatpush.bf16.msra.mxu0 %v490
      %508 = vmatpush.bf16.msra.mxu0 %v489
      %509 = vmatpush.bf16.msra.mxu0 %v488
      %510 = vmatmul.bf16.gmra.mxu0 %v497
      %v511 = vpop.f32.mrf.mxu0
      %v512 = vadd.f32 0.0, %v511
      %v513 = vpop.f32.mrf.mxu0
      %v514 = vadd.f32 0.0, %v513
      %515 = vmatmul.bf16.gmra.mxu0 %v500
      %v516 = vpop.f32.mrf.mxu0
      %v517 = vadd.f32 0.0, %v516
      %v518 = vpop.f32.mrf.mxu0
      %519 = vdwg.mxu0
      %v520 = vadd.f32 %v441, %v512
      %v521 = vadd.f32 %v443, %v514
      %v522 = vadd.f32 %v446, %v517
      %v523 = vld [vmem:[%s301] sm:$0xf]
      %v524 = vld [vmem:[%s301 + $0x4] sm:$0xf]
      %v525 = vld [vmem:[%s301 + $0x8] sm:$0x3]
      %s526 = scalar_lea.vmem %s4, 96
      %v527 = vld [vmem:[%s526] sm:$0xf]
      %v528 = vld [vmem:[%s526 + $0x4] sm:$0xf]
      %v529 = vld [vmem:[%s526 + $0x8] sm:$0xf]
      %v530 = vld [vmem:[%s526 + $0xc] sm:$0xf]
      %v531 = vld [vmem:[%s526 + $0x10] sm:$0xf]
      %v532 = vld [vmem:[%s526 + $0x14] sm:$0xf]
      %v533 = vld [vmem:[%s526 + $0x18] sm:$0xf]
      %v534 = vld [vmem:[%s526 + $0x1c] sm:$0xf]
      %v538 = vunpack.c.l.b16 %v523
      %v539 = vunpack.c.l.b16 %v524
      %v540 = vunpack.c.l.b16 %v525
      %v541 = vpack.c.b16 %v539, %v538
      %v542 = vpack.c.b16 %v540, %v540
      %v551 = vunpack.c.l.b16 %v527
      %v552 = vunpack.c.l.b16 %v528
      %v553 = vunpack.c.l.b16 %v529
      %v554 = vunpack.c.l.b16 %v530
      %v555 = vunpack.c.l.b16 %v531
      %v556 = vunpack.c.l.b16 %v532
      %v557 = vunpack.c.l.b16 %v533
      %v558 = vunpack.c.l.b16 %v534
      %v559 = vpack.c.b16 %v552, %v551
      %v560 = vpack.c.b16 %v554, %v553
      %v561 = vpack.c.b16 %v556, %v555
      %v562 = vpack.c.b16 %v558, %v557
      %v568 = vsel %vm368, %v541, 0
      %v571 = vsel %vm368, %v542, 0
      %573 = vmatpush.bf16.msra.mxu0 0
      %574 = vmatpush.bf16.msra.mxu0 0
      %575 = vmatpush.bf16.msra.mxu0 0
      %576 = vmatpush.bf16.msra.mxu0 0
      %577 = vmatpush.bf16.msra.mxu0 %v562
      %578 = vmatpush.bf16.msra.mxu0 %v561
      %579 = vmatpush.bf16.msra.mxu0 %v560
      %580 = vmatpush.bf16.msra.mxu0 %v559
      %581 = vmatmul.bf16.gmra.mxu0 %v568
      %v582 = vpop.f32.mrf.mxu0
      %v583 = vadd.f32 0.0, %v582
      %v584 = vpop.f32.mrf.mxu0
      %v585 = vadd.f32 0.0, %v584
      %586 = vmatmul.bf16.gmra.mxu0 %v571
      %v587 = vpop.f32.mrf.mxu0
      %v588 = vadd.f32 0.0, %v587
      %v589 = vpop.f32.mrf.mxu0
      %590 = vdwg.mxu0
      %v591 = vadd.f32 %v520, %v583
      %v592 = vadd.f32 %v521, %v585
      %v593 = vadd.f32 %v522, %v588
      %v594 = vld [vmem:[%s306] sm:$0xf]
      %v595 = vld [vmem:[%s306 + $0x4] sm:$0xf]
      %v596 = vld [vmem:[%s306 + $0x8] sm:$0x3]
      %s597 = scalar_lea.vmem %s4, 128
      %v598 = vld [vmem:[%s597] sm:$0xf]
      %v599 = vld [vmem:[%s597 + $0x4] sm:$0xf]
      %v600 = vld [vmem:[%s597 + $0x8] sm:$0xf]
      %v601 = vld [vmem:[%s597 + $0xc] sm:$0xf]
      %v602 = vld [vmem:[%s597 + $0x10] sm:$0xf]
      %v603 = vld [vmem:[%s597 + $0x14] sm:$0xf]
      %v604 = vld [vmem:[%s597 + $0x18] sm:$0xf]
      %v605 = vld [vmem:[%s597 + $0x1c] sm:$0xf]
      %v609 = vunpack.c.l.b16 %v594
      %v610 = vunpack.c.l.b16 %v595
      %v611 = vunpack.c.l.b16 %v596
      %v612 = vpack.c.b16 %v610, %v609
      %v613 = vpack.c.b16 %v611, %v611
      %v622 = vunpack.c.l.b16 %v598
      %v623 = vunpack.c.l.b16 %v599
      %v624 = vunpack.c.l.b16 %v600
      %v625 = vunpack.c.l.b16 %v601
      %v626 = vunpack.c.l.b16 %v602
      %v627 = vunpack.c.l.b16 %v603
      %v628 = vunpack.c.l.b16 %v604
      %v629 = vunpack.c.l.b16 %v605
      %v630 = vpack.c.b16 %v623, %v622
      %v631 = vpack.c.b16 %v625, %v624
      %v632 = vpack.c.b16 %v627, %v626
      %v633 = vpack.c.b16 %v629, %v628
      %v639 = vsel %vm368, %v612, 0
      %v642 = vsel %vm368, %v613, 0
      %644 = vmatpush.bf16.msra.mxu0 0
      %645 = vmatpush.bf16.msra.mxu0 0
      %646 = vmatpush.bf16.msra.mxu0 0
      %647 = vmatpush.bf16.msra.mxu0 0
      %648 = vmatpush.bf16.msra.mxu0 %v633
      %649 = vmatpush.bf16.msra.mxu0 %v632
      %650 = vmatpush.bf16.msra.mxu0 %v631
      %651 = vmatpush.bf16.msra.mxu0 %v630
      %652 = vmatmul.bf16.gmra.mxu0 %v639
      %v653 = vpop.f32.mrf.mxu0
      %v654 = vadd.f32 0.0, %v653
      %v655 = vpop.f32.mrf.mxu0
      %v656 = vadd.f32 0.0, %v655
      %657 = vmatmul.bf16.gmra.mxu0 %v642
      %v658 = vpop.f32.mrf.mxu0
      %v659 = vadd.f32 0.0, %v658
      %v660 = vpop.f32.mrf.mxu0
      %661 = vdwg.mxu0
      %v662 = vadd.f32 %v591, %v654
      %v663 = vadd.f32 %v592, %v656
      %v664 = vadd.f32 %v593, %v659
      %s665 = scalar_lea.vmem %s4, 160
      %v666 = vld [vmem:[%s665] sm:$0xf]
      %v667 = vld [vmem:[%s665 + $0x4] sm:$0xf]
      %v668 = vld [vmem:[%s665 + $0x8] sm:$0xf]
      %v669 = vld [vmem:[%s665 + $0xc] sm:$0xf]
      %v670 = vld [vmem:[%s665 + $0x10] sm:$0xf]
      %v671 = vld [vmem:[%s665 + $0x14] sm:$0xf]
      %v672 = vld [vmem:[%s665 + $0x18] sm:$0xf]
      %v673 = vld [vmem:[%s665 + $0x1c] sm:$0xf]
      %v674 = vshrl.u32 %v541, 16
      %v676 = vshll.u32 %v541, 16
      %v678 = vrot.slane %v676, 1
      %v679 = vor.u32 %v674, %v678
      %v680 = vshll.u32 %v542, 16
      %v682 = vrot.slane %v680, 1
      %v683 = vsel %vm458, %v679, %v682
      %v684 = vshrl.u32 %v542, 16
      %v686 = vor.u32 %v684, %v682
      %v695 = vunpack.c.l.b16 %v666
      %v696 = vunpack.c.l.b16 %v667
      %v697 = vunpack.c.l.b16 %v668
      %v698 = vunpack.c.l.b16 %v669
      %v699 = vunpack.c.l.b16 %v670
      %v700 = vunpack.c.l.b16 %v671
      %v701 = vunpack.c.l.b16 %v672
      %v702 = vunpack.c.l.b16 %v673
      %v703 = vpack.c.b16 %v696, %v695
      %v704 = vpack.c.b16 %v698, %v697
      %v705 = vpack.c.b16 %v700, %v699
      %v706 = vpack.c.b16 %v702, %v701
      %v712 = vsel %vm368, %v683, 0
      %v715 = vsel %vm368, %v686, 0
      %717 = vmatpush.bf16.msra.mxu0 0
      %718 = vmatpush.bf16.msra.mxu0 0
      %719 = vmatpush.bf16.msra.mxu0 0
      %720 = vmatpush.bf16.msra.mxu0 0
      %721 = vmatpush.bf16.msra.mxu0 %v706
      %722 = vmatpush.bf16.msra.mxu0 %v705
      %723 = vmatpush.bf16.msra.mxu0 %v704
      %724 = vmatpush.bf16.msra.mxu0 %v703
      %725 = vmatmul.bf16.gmra.mxu0 %v712
      %v726 = vpop.f32.mrf.mxu0
      %v727 = vadd.f32 0.0, %v726
      %v728 = vpop.f32.mrf.mxu0
      %v729 = vadd.f32 0.0, %v728
      %730 = vmatmul.bf16.gmra.mxu0 %v715
      %v731 = vpop.f32.mrf.mxu0
      %v732 = vadd.f32 0.0, %v731
      %v733 = vpop.f32.mrf.mxu0
      %734 = vdwg.mxu0
      %v735 = vadd.f32 %v662, %v727
      %v736 = vadd.f32 %v663, %v729
      %v737 = vadd.f32 %v664, %v732
      %v738 = vld [vmem:[%s291] sm:$0xc]
      %v739 = vld [vmem:[%s291 + $0x8] sm:$0xf]
      %s740 = scalar_lea.vmem %s4, 192
      %v741 = vld [vmem:[%s740] sm:$0xf]
      %v742 = vld [vmem:[%s740 + $0x4] sm:$0xf]
      %v743 = vld [vmem:[%s740 + $0x8] sm:$0xf]
      %v744 = vld [vmem:[%s740 + $0xc] sm:$0xf]
      %v745 = vld [vmem:[%s740 + $0x10] sm:$0xf]
      %v746 = vld [vmem:[%s740 + $0x14] sm:$0xf]
      %v747 = vld [vmem:[%s740 + $0x18] sm:$0xf]
      %v748 = vld [vmem:[%s740 + $0x1c] sm:$0xf]
      %v751 = vunpack.c.l.b16 %v738
      %v752 = vunpack.c.l.b16 %v739
      %v753 = vpack.c.b16 %v397, %v751
      %v754 = vpack.c.b16 %v752, %v752
      %vm755 = vsmask.f32 5376
      %v757 = vshrl.u32 %v753, 16
      %v759 = vrot.slane %v757, 2
      %v760 = vshll.u32 %v753, 16
      %v762 = vrot.slane %v760, 3
      %v763 = vor.u32 %v759, %v762
      %v765 = vshrl.u32 %v754, 16
      %v767 = vrot.slane %v765, 2
      %v768 = vshll.u32 %v754, 16
      %v770 = vrot.slane %v768, 3
      %v771 = vor.u32 %v767, %v770
      %v772 = vsel %vm755, %v763, %v771
      %v781 = vunpack.c.l.b16 %v741
      %v782 = vunpack.c.l.b16 %v742
      %v783 = vunpack.c.l.b16 %v743
      %v784 = vunpack.c.l.b16 %v744
      %v785 = vunpack.c.l.b16 %v745
      %v786 = vunpack.c.l.b16 %v746
      %v787 = vunpack.c.l.b16 %v747
      %v788 = vunpack.c.l.b16 %v748
      %v789 = vpack.c.b16 %v782, %v781
      %v790 = vpack.c.b16 %v784, %v783
      %v791 = vpack.c.b16 %v786, %v785
      %v792 = vpack.c.b16 %v788, %v787
      %v798 = vsel %vm368, %v772, 0
      %v801 = vsel %vm368, %v771, 0
      %803 = vmatpush.bf16.msra.mxu0 0
      %804 = vmatpush.bf16.msra.mxu0 0
      %805 = vmatpush.bf16.msra.mxu0 0
      %806 = vmatpush.bf16.msra.mxu0 0
      %807 = vmatpush.bf16.msra.mxu0 %v792
      %808 = vmatpush.bf16.msra.mxu0 %v791
      %809 = vmatpush.bf16.msra.mxu0 %v790
      %810 = vmatpush.bf16.msra.mxu0 %v789
      %811 = vmatmul.bf16.gmra.mxu0 %v798
      %v812 = vpop.f32.mrf.mxu0
      %v813 = vadd.f32 0.0, %v812
      %v814 = vpop.f32.mrf.mxu0
      %v815 = vadd.f32 0.0, %v814
      %816 = vmatmul.bf16.gmra.mxu0 %v801
      %v817 = vpop.f32.mrf.mxu0
      %v818 = vadd.f32 0.0, %v817
      %v819 = vpop.f32.mrf.mxu0
      %820 = vdwg.mxu0
      %v821 = vadd.f32 %v735, %v813
      %v822 = vadd.f32 %v736, %v815
      %v823 = vadd.f32 %v737, %v818
      %v824 = vld [vmem:[%s296] sm:$0xc]
      %v825 = vld [vmem:[%s296 + $0x8] sm:$0xf]
      %s826 = scalar_lea.vmem %s4, 224
      %v827 = vld [vmem:[%s826] sm:$0xf]
      %v828 = vld [vmem:[%s826 + $0x4] sm:$0xf]
      %v829 = vld [vmem:[%s826 + $0x8] sm:$0xf]
      %v830 = vld [vmem:[%s826 + $0xc] sm:$0xf]
      %v831 = vld [vmem:[%s826 + $0x10] sm:$0xf]
      %v832 = vld [vmem:[%s826 + $0x14] sm:$0xf]
      %v833 = vld [vmem:[%s826 + $0x18] sm:$0xf]
      %v834 = vld [vmem:[%s826 + $0x1c] sm:$0xf]
      %v837 = vunpack.c.l.b16 %v824
      %v838 = vunpack.c.l.b16 %v825
      %v839 = vpack.c.b16 %v340, %v837
      %v840 = vpack.c.b16 %v838, %v838
      %v842 = vshrl.u32 %v839, 16
      %v844 = vrot.slane %v842, 2
      %v845 = vshll.u32 %v839, 16
      %v847 = vrot.slane %v845, 3
      %v848 = vor.u32 %v844, %v847
      %v850 = vshrl.u32 %v840, 16
      %v852 = vrot.slane %v850, 2
      %v853 = vshll.u32 %v840, 16
      %v855 = vrot.slane %v853, 3
      %v856 = vor.u32 %v852, %v855
      %v857 = vsel %vm755, %v848, %v856
      %v866 = vunpack.c.l.b16 %v827
      %v867 = vunpack.c.l.b16 %v828
      %v868 = vunpack.c.l.b16 %v829
      %v869 = vunpack.c.l.b16 %v830
      %v870 = vunpack.c.l.b16 %v831
      %v871 = vunpack.c.l.b16 %v832
      %v872 = vunpack.c.l.b16 %v833
      %v873 = vunpack.c.l.b16 %v834
      %v874 = vpack.c.b16 %v867, %v866
      %v875 = vpack.c.b16 %v869, %v868
      %v876 = vpack.c.b16 %v871, %v870
      %v877 = vpack.c.b16 %v873, %v872
      %v883 = vsel %vm368, %v857, 0
      %v886 = vsel %vm368, %v856, 0
      %888 = vmatpush.bf16.msra.mxu0 0
      %889 = vmatpush.bf16.msra.mxu0 0
      %890 = vmatpush.bf16.msra.mxu0 0
      %891 = vmatpush.bf16.msra.mxu0 0
      %892 = vmatpush.bf16.msra.mxu0 %v877
      %893 = vmatpush.bf16.msra.mxu0 %v876
      %894 = vmatpush.bf16.msra.mxu0 %v875
      %895 = vmatpush.bf16.msra.mxu0 %v874
      %896 = vmatmul.bf16.gmra.mxu0 %v883
      %v897 = vpop.f32.mrf.mxu0
      %v898 = vadd.f32 0.0, %v897
      %v899 = vpop.f32.mrf.mxu0
      %v900 = vadd.f32 0.0, %v899
      %901 = vmatmul.bf16.gmra.mxu0 %v886
      %v902 = vpop.f32.mrf.mxu0
      %v903 = vadd.f32 0.0, %v902
      %v904 = vpop.f32.mrf.mxu0
      %905 = vdwg.mxu0
      %v906 = vadd.f32 %v821, %v898
      %v907 = vadd.f32 %v822, %v900
      %v908 = vadd.f32 %v823, %v903
      %v909 = vld [vmem:[%s291] sm:$0x8]
      %v910 = vld [vmem:[%s291 + $0x4] sm:$0xf]
      %v911 = vld [vmem:[%s291 + $0x8] sm:$0xf]
      %v912 = vld [vmem:[%s291 + $0xc] sm:$0x1]
      %s913 = scalar_lea.vmem %s4, 256
      %v914 = vld [vmem:[%s913] sm:$0xf]
      %v915 = vld [vmem:[%s913 + $0x4] sm:$0xf]
      %v916 = vld [vmem:[%s913 + $0x8] sm:$0xf]
      %v917 = vld [vmem:[%s913 + $0xc] sm:$0xf]
      %v918 = vld [vmem:[%s913 + $0x10] sm:$0xf]
      %v919 = vld [vmem:[%s913 + $0x14] sm:$0xf]
      %v920 = vld [vmem:[%s913 + $0x18] sm:$0xf]
      %v921 = vld [vmem:[%s913 + $0x1c] sm:$0xf]
      %v926 = vunpack.c.l.b16 %v909
      %v927 = vunpack.c.l.b16 %v910
      %v928 = vunpack.c.l.b16 %v911
      %v929 = vunpack.c.l.b16 %v912
      %v930 = vpack.c.b16 %v927, %v926
      %v931 = vpack.c.b16 %v929, %v928
      %vm932 = vcmask 1044480
      %v933 = vrot.slane %v930, 3
      %v934 = vrot.slane %v931, 3
      %v935 = vsel %vm932, %v933, %v934
      %v944 = vunpack.c.l.b16 %v914
      %v945 = vunpack.c.l.b16 %v915
      %v946 = vunpack.c.l.b16 %v916
      %v947 = vunpack.c.l.b16 %v917
      %v948 = vunpack.c.l.b16 %v918
      %v949 = vunpack.c.l.b16 %v919
      %v950 = vunpack.c.l.b16 %v920
      %v951 = vunpack.c.l.b16 %v921
      %v952 = vpack.c.b16 %v945, %v944
      %v953 = vpack.c.b16 %v947, %v946
      %v954 = vpack.c.b16 %v949, %v948
      %v955 = vpack.c.b16 %v951, %v950
      %v961 = vsel %vm368, %v935, 0
      %v964 = vsel %vm368, %v934, 0
      %966 = vmatpush.bf16.msra.mxu0 0
      %967 = vmatpush.bf16.msra.mxu0 0
      %968 = vmatpush.bf16.msra.mxu0 0
      %969 = vmatpush.bf16.msra.mxu0 0
      %970 = vmatpush.bf16.msra.mxu0 %v955
      %971 = vmatpush.bf16.msra.mxu0 %v954
      %972 = vmatpush.bf16.msra.mxu0 %v953
      %973 = vmatpush.bf16.msra.mxu0 %v952
      %974 = vmatmul.bf16.gmra.mxu0 %v961
      %v975 = vpop.f32.mrf.mxu0
      %v976 = vadd.f32 0.0, %v975
      %v977 = vpop.f32.mrf.mxu0
      %v978 = vadd.f32 0.0, %v977
      %979 = vmatmul.bf16.gmra.mxu0 %v964
      %v980 = vpop.f32.mrf.mxu0
      %v981 = vadd.f32 0.0, %v980
      %v982 = vpop.f32.mrf.mxu0
      %983 = vdwg.mxu0
      %v984 = vadd.f32 %v906, %v976
      %v985 = vadd.f32 %v907, %v978
      %v986 = vadd.f32 %v908, %v981
      %v987 = vld [vmem:[%s5] sm:$0x1]
      %v989 = vperm.slane %v987, 0
      %v991 = vadd.f32 %v984, %v989
      %v992 = vadd.f32 %v985, %v989
      %v993 = vadd.f32 %v986, %v989
      %vm994 = vcmp.ge.f32.partialorder %v991, 0.0
      %vm995 = vcmp.ge.f32.partialorder %v992, 0.0
      %vm996 = vcmp.ge.f32.partialorder %v993, 0.0
      %v997 = vmul.f32 %v991, 0.2
      %v998 = vmul.f32 %v992, 0.2
      %v999 = vmul.f32 %v993, 0.2
      %v1000 = vsel %vm994, %v991, %v997
      %v1001 = vsel %vm995, %v992, %v998
      %v1002 = vsel %vm996, %v993, %v999
      %v1003 = vpack.c.bf16 %v1000, %v1000
      %v1004 = vpack.c.bf16 %v1001, %v1001
      %v1005 = vpack.c.bf16 %v1002, %v1002
      %vm1006 = vcmask 519168
      %1007 = vst.msk [vmem:[%s311] sm:$0xf] %vm1006, %v1003
      %1008 = vst.msk [vmem:[%s311 + $0x4] sm:$0xf] %vm1006, %v1004
      %vm1009 = vcmask 517120
      %vm1010 = vsmask.f32 1280
      %vm1011 = vmand %vm1009, %vm1010
      %v1012 = vld [vmem:[%s311 + $0x8] sm:$0x3]
      %v1013 = vsel %vm1011, %v1005, %v1012
      %1014 = vst [vmem:[%s311 + $0x8] sm:$0x3] %v1013
      %p1015 = scmp.lt.s32.totalorder %s17, 1
      %s1016 = scalar_select %p1015, %s17, 1
      %s1017 = smul.addr %s1016, 3
      %s1018 = smul.addr %s1017, 4
      %s1019 = scalar_lea.vmem %s6, %s1018
      // Predicated region
      $region45: #{discriminator_forward.11} parent=43 // pred_check
        %p1020 = pneg %p181
      $region46: #{discriminator_forward.11} parent=43 // pred_check_branch
        %1022 = sbr.rel (%p1020) target = $region48
      $region47: #{discriminator_forward.11} parent=43 // pred_region
        _
      $region48: #{discriminator_forward.11} parent=43 // pred_fallthru
        _
    $region44: #{discriminator_forward.11} parent=5 // pred_fallthru
      _
    %p1023 = scmp.le.s32.totalorder 2, %s12
    // Predicated region
    $region49: #{discriminator_forward.11} parent=5 // pred_check
      %p1024 = pneg %p1023
    $region50: #{discriminator_forward.11} parent=5 // pred_check_branch
      %1026 = sbr.rel (%p1024) target = $region52
    $region51: #{discriminator_forward.11} parent=5 // pred_region
      %s1027 = ssub.s32 %s12, 2
      // Predicated region
      $region53: #{discriminator_forward.11} parent=51 // pred_check
        %p1028 = pneg %p187
      $region54: #{discriminator_forward.11} parent=51 // pred_check_branch
        %1030 = sbr.rel (%p1028) target = $region56
      $region55: #{discriminator_forward.11} parent=51 // pred_region
        %p1031 = scmp.lt.s32.totalorder %s18, 1
        %s1032 = scalar_select %p1031, %s18, 1
        %s1033 = smul.addr %s1032, 3
        %s1034 = smul.addr %s1033, 4
        %s1035 = scalar_lea.vmem %s6, %s1034
      $region56: #{discriminator_forward.11} parent=51 // pred_fallthru
        _
    $region52: #{discriminator_forward.11} parent=5 // pred_fallthru
      _
  $region6: #{discriminator_forward.11} parent=0 // loop_footer
    %s16 = sadd.s32 1, %s12
  $region7: #{discriminator_forward.11} parent=0 // loop_footer_branch
    %11 = sbr.rel target = $region3
  $region8: #{discriminator_forward.11} parent=0 // loop_exit
    _

// kernel: discriminator_forward.12
$region0: #{discriminator_forward.12}
  #allocation0 [shape = 'u32[]', space=smem, size = 0x4, offset = 0x4, fixed_abs, tag = 'smem constant byte address 0x4 - core index']
  #allocation1 [shape = 'u32[72,128]{1,0:T(1,128)}', space=vmem, size = 0x9000, scoped, tag = 'internal scratch']
  %s0 = inlined_call_operand.vmem [shape: bf16[2,36,64], index: 0, kind: input, shape index: {}]
  %s1 = inlined_call_operand.vmem [shape: bf16[9,64,64], index: 1, kind: input, shape index: {}]
  %s2 = inlined_call_operand.vmem [shape: f32[1,64], index: 2, kind: input, shape index: {}]
  %s3 = inlined_call_operand.vmem [shape: bf16[2,22,64], index: 3, kind: output, shape index: {}]
  %s4 = sld [smem:[#allocation0]]
  $region45: #{discriminator_forward.12} parent=0
    _
  %s6 = ssub.s32 1, %s4
  %s7 = scalar_select 0, %s6, %s4
  loop: start=0, step=1, limit=4
  $region2: #{discriminator_forward.12} parent=0 // loop_pre_header
    _
  $region3: #{discriminator_forward.12} parent=0 // loop_header
    %s9 = sphi 0, %s13
    %p10 = scmp.ge.s32.totalorder %s9, 4
    %s19 = sphi 0, %s21
    %s22 = sphi 0, %s19
    %s23 = sphi 0, %s22
    %s39 = sphi 0, %s23
    %s43 = sphi 0, %s43
    %s45 = sphi 0, %s43
    %s46 = sphi 0, %s45
    %s60 = sphi 0, %s46
    %s64 = sphi 0, %s64
    %s66 = sphi 0, %s64
    %s67 = sphi 0, %s66
    %s81 = sphi 0, %s67
    %s87 = sphi 0, %s89
    %s90 = sphi 0, %s87
    %s91 = sphi 0, %s90
    %s107 = sphi 0, %s91
  $region4: #{discriminator_forward.12} parent=0 // loop_header_branch
    %12 = sbr.rel (%p10) target = $region8
  $region5: #{discriminator_forward.12} parent=0 // loop_body
    %s14 = ssub.s32 %s9, 1
    %s15 = ssub.s32 %s9, 2
    %s16 = sadd.s32 %s9, 1
    %s17 = ssub.s32 %s9, %s16
    %p18 = scmp.eq.s32.totalorder %s17, 0
    %s20 = sadd.s32 %s19, 1
    %s21 = scalar_select %p18, %s19, %s20
    %p24 = pneg %p18
    %p25 = scmp.eq.s32.totalorder %s9, 1
    %p26 = por %p24, %p25
    %p27 = scmp.ne.s32.totalorder %s19, %s22
    %p28 = scmp.eq.s32.totalorder %s9, 0
    %p29 = por %p27, %p28
    %p30 = scmp.ne.s32.totalorder %s19, %s22
    %p31 = scmp.eq.s32.totalorder %s14, 1
    %p32 = por %p30, %p31
    %p33 = scmp.ne.s32.totalorder %s22, %s23
    %p34 = scmp.eq.s32.totalorder %s14, 0
    %p35 = por %p33, %p34
    %p36 = scmp.ne.s32.totalorder %s22, %s23
    %p37 = scmp.eq.s32.totalorder %s15, 1
    %p38 = por %p36, %p37
    %p40 = scmp.ne.s32.totalorder %s23, %s39
    %p41 = scmp.eq.s32.totalorder %s15, 0
    %p42 = por %p40, %p41
    %s44 = sadd.s32 %s43, 1
    %p47 = scmp.eq.s32.totalorder %s9, 1
    %p48 = scmp.ne.s32.totalorder %s43, %s45
    %p49 = scmp.eq.s32.totalorder %s9, 0
    %p50 = por %p48, %p49
    %p51 = scmp.ne.s32.totalorder %s43, %s45
    %p52 = scmp.eq.s32.totalorder %s14, 1
    %p53 = por %p51, %p52
    %p54 = scmp.ne.s32.totalorder %s45, %s46
    %p55 = scmp.eq.s32.totalorder %s14, 0
    %p56 = por %p54, %p55
    %p57 = scmp.ne.s32.totalorder %s45, %s46
    %p58 = scmp.eq.s32.totalorder %s15, 1
    %p59 = por %p57, %p58
    %p61 = scmp.ne.s32.totalorder %s46, %s60
    %p62 = scmp.eq.s32.totalorder %s15, 0
    %p63 = por %p61, %p62
    %s65 = sadd.s32 %s64, 1
    %p68 = scmp.eq.s32.totalorder %s9, 1
    %p69 = scmp.ne.s32.totalorder %s64, %s66
    %p70 = scmp.eq.s32.totalorder %s9, 0
    %p71 = por %p69, %p70
    %p72 = scmp.ne.s32.totalorder %s64, %s66
    %p73 = scmp.eq.s32.totalorder %s14, 1
    %p74 = por %p72, %p73
    %p75 = scmp.ne.s32.totalorder %s66, %s67
    %p76 = scmp.eq.s32.totalorder %s14, 0
    %p77 = por %p75, %p76
    %p78 = scmp.ne.s32.totalorder %s66, %s67
    %p79 = scmp.eq.s32.totalorder %s15, 1
    %p80 = por %p78, %p79
    %p82 = scmp.ne.s32.totalorder %s67, %s81
    %p83 = scmp.eq.s32.totalorder %s15, 0
    %p84 = por %p82, %p83
    %s85 = ssub.s32 %s9, %s16
    %p86 = scmp.eq.s32.totalorder %s85, 0
    %s88 = sadd.s32 %s87, 1
    %s89 = scalar_select %p86, %s87, %s88
    %p92 = pneg %p86
    %p93 = scmp.eq.s32.totalorder %s9, 1
    %p94 = por %p92, %p93
    %p95 = scmp.ne.s32.totalorder %s87, %s90
    %p96 = scmp.eq.s32.totalorder %s9, 0
    %p97 = por %p95, %p96
    %p98 = scmp.ne.s32.totalorder %s87, %s90
    %p99 = scmp.eq.s32.totalorder %s14, 1
    %p100 = por %p98, %p99
    %p101 = scmp.ne.s32.totalorder %s90, %s91
    %p102 = scmp.eq.s32.totalorder %s14, 0
    %p103 = por %p101, %p102
    %p104 = scmp.ne.s32.totalorder %s90, %s91
    %p105 = scmp.eq.s32.totalorder %s15, 1
    %p106 = por %p104, %p105
    %p108 = scmp.ne.s32.totalorder %s91, %s107
    %p109 = scmp.eq.s32.totalorder %s15, 0
    %p110 = por %p108, %p109
    %p111 = scmp.le.s32.totalorder 1, %s9
    %p112 = scmp.lt.s32.totalorder %s9, 3
    %p113 = pnand %p111, %p112
    %p114 = pneg %p113
    // Predicated region
    $region9: #{discriminator_forward.12} parent=5 // pred_check
      _
    $region10: #{discriminator_forward.12} parent=5 // pred_check_branch
      %116 = sbr.rel (%p113) target = $region12
    $region11: #{discriminator_forward.12} parent=5 // pred_region
      %s117 = ssub.s32 %s9, 1
      // Predicated region
      $region13: #{discriminator_forward.12} parent=11 // pred_check
        %p118 = pneg %p56
      $region14: #{discriminator_forward.12} parent=11 // pred_check_branch
        %120 = sbr.rel (%p118) target = $region16
      $region15: #{discriminator_forward.12} parent=11 // pred_region
        _
      $region16: #{discriminator_forward.12} parent=11 // pred_fallthru
        _
      // Predicated region
      $region17: #{discriminator_forward.12} parent=11 // pred_check
        %p121 = pneg %p77
      $region18: #{discriminator_forward.12} parent=11 // pred_check_branch
        %123 = sbr.rel (%p121) target = $region20
      $region19: #{discriminator_forward.12} parent=11 // pred_region
        _
      $region20: #{discriminator_forward.12} parent=11 // pred_fallthru
        _
    $region12: #{discriminator_forward.12} parent=5 // pred_fallthru
      _
    %p124 = scmp.lt.s32.totalorder %s9, 2
    // Predicated region
    $region21: #{discriminator_forward.12} parent=5 // pred_check
      %p125 = pneg %p124
    $region22: #{discriminator_forward.12} parent=5 // pred_check_branch
      %127 = sbr.rel (%p125) target = $region24
    $region23: #{discriminator_forward.12} parent=5 // pred_region
      // Predicated region
      $region25: #{discriminator_forward.12} parent=23 // pred_check
        %p128 = pneg %p29
      $region26: #{discriminator_forward.12} parent=23 // pred_check_branch
        %130 = sbr.rel (%p128) target = $region28
      $region27: #{discriminator_forward.12} parent=23 // pred_region
        %p131 = scmp.lt.s32.totalorder %s9, 1
        %s132 = scalar_select %p131, %s9, 1
        %s133 = smul.addr %s132, 5
        %s134 = smul.addr %s133, 4
        %s135 = scalar_lea.vmem %s0, %s134
      $region28: #{discriminator_forward.12} parent=23 // pred_fallthru
        _
    $region24: #{discriminator_forward.12} parent=5 // pred_fallthru
      _
    %p136 = scmp.le.s32.totalorder 1, %s9
    %p137 = scmp.lt.s32.totalorder %s9, 3
    %p138 = pnand %p136, %p137
    %p139 = pneg %p138
    // Predicated region
    $region29: #{discriminator_forward.12} parent=5 // pred_check
      _
    $region30: #{discriminator_forward.12} parent=5 // pred_check_branch
      %141 = sbr.rel (%p138) target = $region32
    $region31: #{discriminator_forward.12} parent=5 // pred_region
      %s142 = ssub.s32 %s9, 1
      %p143 = scmp.lt.s32.totalorder %s14, 1
      %s144 = scalar_select %p143, %s14, 1
      %s145 = smul.addr %s144, 5
      %s146 = smul.addr %s145, 4
      %s147 = scalar_lea.vmem %s0, %s146
      %p148 = pneg %p35
      %p149 = pneg %p32
      %p150 = pneg %p56
      %p151 = pneg %p53
      %p152 = pneg %p77
      %p153 = pneg %p74
      %p154 = pneg %p103
      %p155 = pneg %p100
      %p156 = scmp.lt.s32.totalorder %s14, 1
      %s157 = scalar_select %p156, %s14, 1
      %s158 = smul.addr %s157, 3
      %s159 = smul.addr %s158, 4
      %s160 = scalar_lea.vmem %s3, %s159
      %p161 = scmp.lt.s32.totalorder %s14, 1
      %s162 = scalar_select %p161, %s14, 1
      %s163 = smul.addr %s162, 5
      %s164 = smul.addr %s163, 4
      %s165 = scalar_lea.vmem %s0, %s164
      %p166 = scmp.lt.s32.totalorder %s14, 1
      %s167 = scalar_select %p166, %s14, 1
      %s168 = smul.addr %s167, 3
      %s169 = smul.addr %s168, 4
      %s170 = scalar_lea.vmem %s3, %s169
      %v172 = vld [vmem:[%s165] sm:$0xf]
      %v173 = vld [vmem:[%s165 + $0x4] sm:$0xf]
      %v174 = vld [vmem:[%s165 + $0x8] sm:$0x7]
      %v175 = vld [vmem:[%s1] sm:$0xf]
      %v176 = vld [vmem:[%s1 + $0x4] sm:$0xf]
      %v177 = vld [vmem:[%s1 + $0x8] sm:$0xf]
      %v178 = vld [vmem:[%s1 + $0xc] sm:$0xf]
      %v179 = vld [vmem:[%s1 + $0x10] sm:$0xf]
      %v180 = vld [vmem:[%s1 + $0x14] sm:$0xf]
      %v181 = vld [vmem:[%s1 + $0x18] sm:$0xf]
      %v182 = vld [vmem:[%s1 + $0x1c] sm:$0xf]
      %v183 = vld [vmem:[%s165 + $0x8] sm:$0xf]
      %s184 = scalar_lea.vmem %s1, 32
      %v185 = vld [vmem:[%s184] sm:$0xf]
      %v186 = vld [vmem:[%s184 + $0x4] sm:$0xf]
      %v187 = vld [vmem:[%s184 + $0x8] sm:$0xf]
      %v188 = vld [vmem:[%s184 + $0xc] sm:$0xf]
      %v189 = vld [vmem:[%s184 + $0x10] sm:$0xf]
      %v190 = vld [vmem:[%s184 + $0x14] sm:$0xf]
      %v191 = vld [vmem:[%s184 + $0x18] sm:$0xf]
      %v192 = vld [vmem:[%s184 + $0x1c] sm:$0xf]
      %v196 = vunpack.c.l.b16 %v172
      %v197 = vunpack.c.l.b16 %v173
      %v198 = vunpack.c.l.b16 %v183
      %v199 = vpack.c.b16 %v197, %v196
      %v200 = vpack.c.b16 %v198, %v198
      %vm201 = vsmask.f32 7424
      %v203 = vshrl.u32 %v199, 16
      %v205 = vshll.u32 %v199, 16
      %v207 = vrot.slane %v205, 1
      %v208 = vor.u32 %v203, %v207
      %v210 = vshll.u32 %v200, 16
      %v212 = vrot.slane %v210, 1
      %v213 = vsel %vm201, %v208, %v212
      %v214 = vshrl.u32 %v200, 16
      %v216 = vor.u32 %v214, %v212
      %v225 = vunpack.c.l.b16 %v185
      %v226 = vunpack.c.l.b16 %v186
      %v227 = vunpack.c.l.b16 %v187
      %v228 = vunpack.c.l.b16 %v188
      %v229 = vunpack.c.l.b16 %v189
      %v230 = vunpack.c.l.b16 %v190
      %v231 = vunpack.c.l.b16 %v191
      %v232 = vunpack.c.l.b16 %v192
      %v233 = vpack.c.b16 %v226, %v225
      %v234 = vpack.c.b16 %v228, %v227
      %v235 = vpack.c.b16 %v230, %v229
      %v236 = vpack.c.b16 %v232, %v231
      %vm241 = vcmask 523264
      %v243 = vsel %vm241, %v213, 0
      %v246 = vsel %vm241, %v216, 0
      %248 = vmatpush.bf16.msra.mxu0 0
      %249 = vmatpush.bf16.msra.mxu0 0
      %250 = vmatpush.bf16.msra.mxu0 0
      %251 = vmatpush.bf16.msra.mxu0 0
      %252 = vmatpush.bf16.msra.mxu0 %v236
      %253 = vmatpush.bf16.msra.mxu0 %v235
      %254 = vmatpush.bf16.msra.mxu0 %v234
      %255 = vmatpush.bf16.msra.mxu0 %v233
      %256 = vmatmul.bf16.gmra.mxu0 %v243
      %v257 = vpop.f32.mrf.mxu0
      %v258 = vadd.f32 0.0, %v257
      %v259 = vpop.f32.mrf.mxu0
      %v260 = vadd.f32 0.0, %v259
      %261 = vmatmul.bf16.gmra.mxu0 %v246
      %v262 = vpop.f32.mrf.mxu0
      %v263 = vadd.f32 0.0, %v262
      %v264 = vpop.f32.mrf.mxu0
      %265 = vdwg.mxu0
      %v267 = vunpack.c.l.b16 %v174
      %v268 = vpack.c.b16 %v267, %v267
      %v277 = vunpack.c.l.b16 %v175
      %v278 = vunpack.c.l.b16 %v176
      %v279 = vunpack.c.l.b16 %v177
      %v280 = vunpack.c.l.b16 %v178
      %v281 = vunpack.c.l.b16 %v179
      %v282 = vunpack.c.l.b16 %v180
      %v283 = vunpack.c.l.b16 %v181
      %v284 = vunpack.c.l.b16 %v182
      %v285 = vpack.c.b16 %v278, %v277
      %v286 = vpack.c.b16 %v280, %v279
      %v287 = vpack.c.b16 %v282, %v281
      %v288 = vpack.c.b16 %v284, %v283
      %v293 = vsel %vm241, %v199, 0
      %v296 = vsel %vm241, %v268, 0
      %298 = vmatpush.bf16.msra.mxu0 0
      %299 = vmatpush.bf16.msra.mxu0 0
      %300 = vmatpush.bf16.msra.mxu0 0
      %301 = vmatpush.bf16.msra.mxu0 0
      %302 = vmatpush.bf16.msra.mxu0 %v288
      %303 = vmatpush.bf16.msra.mxu0 %v287
      %304 = vmatpush.bf16.msra.mxu0 %v286
      %305 = vmatpush.bf16.msra.mxu0 %v285
      %306 = vmatmul.bf16.gmra.mxu0 %v293
      %v307 = vpop.f32.mrf.mxu0
      %v308 = vadd.f32 %v258, %v307
      %v309 = vpop.f32.mrf.mxu0
      %v310 = vadd.f32 %v260, %v309
      %311 = vmatmul.bf16.gmra.mxu0 %v296
      %v312 = vpop.f32.mrf.mxu0
      %v313 = vadd.f32 %v263, %v312
      %v314 = vpop.f32.mrf.mxu0
      %315 = vdwg.mxu0
      %v316 = vld [vmem:[%s165] sm:$0xe]
      %s317 = scalar_lea.vmem %s1, 64
      %v318 = vld [vmem:[%s317] sm:$0xf]
      %v319 = vld [vmem:[%s317 + $0x4] sm:$0xf]
      %v320 = vld [vmem:[%s317 + $0x8] sm:$0xf]
      %v321 = vld [vmem:[%s317 + $0xc] sm:$0xf]
      %v322 = vld [vmem:[%s317 + $0x10] sm:$0xf]
      %v323 = vld [vmem:[%s317 + $0x14] sm:$0xf]
      %v324 = vld [vmem:[%s317 + $0x18] sm:$0xf]
      %v325 = vld [vmem:[%s317 + $0x1c] sm:$0xf]
      %v327 = vunpack.c.l.b16 %v316
      %v328 = vpack.c.b16 %v197, %v327
      %vm329 = vcmask 1046528
      %v330 = vrot.slane %v328, 1
      %v331 = vrot.slane %v200, 1
      %v332 = vsel %vm329, %v330, %v331
      %v341 = vunpack.c.l.b16 %v318
      %v342 = vunpack.c.l.b16 %v319
      %v343 = vunpack.c.l.b16 %v320
      %v344 = vunpack.c.l.b16 %v321
      %v345 = vunpack.c.l.b16 %v322
      %v346 = vunpack.c.l.b16 %v323
      %v347 = vunpack.c.l.b16 %v324
      %v348 = vunpack.c.l.b16 %v325
      %v349 = vpack.c.b16 %v342, %v341
      %v350 = vpack.c.b16 %v344, %v343
      %v351 = vpack.c.b16 %v346, %v345
      %v352 = vpack.c.b16 %v348, %v347
      %v358 = vsel %vm241, %v332, 0
      %v361 = vsel %vm241, %v331, 0
      %363 = vmatpush.bf16.msra.mxu0 0
      %364 = vmatpush.bf16.msra.mxu0 0
      %365 = vmatpush.bf16.msra.mxu0 0
      %366 = vmatpush.bf16.msra.mxu0 0
      %367 = vmatpush.bf16.msra.mxu0 %v352
      %368 = vmatpush.bf16.msra.mxu0 %v351
      %369 = vmatpush.bf16.msra.mxu0 %v350
      %370 = vmatpush.bf16.msra.mxu0 %v349
      %371 = vmatmul.bf16.gmra.mxu0 %v358
      %v372 = vpop.f32.mrf.mxu0
      %v373 = vadd.f32 0.0, %v372
      %v374 = vpop.f32.mrf.mxu0
      %v375 = vadd.f32 0.0, %v374
      %376 = vmatmul.bf16.gmra.mxu0 %v361
      %v377 = vpop.f32.mrf.mxu0
      %v378 = vadd.f32 0.0, %v377
      %v379 = vpop.f32.mrf.mxu0
      %380 = vdwg.mxu0
      %v381 = vadd.f32 %v308, %v373
      %v382 = vadd.f32 %v310, %v375
      %v383 = vadd.f32 %v313, %v378
      %v384 = vld [vmem:[%s165] sm:$0x8]
      %v385 = vld [vmem:[%s165 + $0x4] sm:$0xf]
      %v386 = vld [vmem:[%s165 + $0x8] sm:$0xf]
      %v387 = vld [vmem:[%s165 + $0xc] sm:$0x3]
      %s388 = scalar_lea.vmem %s1, 96
      %v389 = vld [vmem:[%s388] sm:$0xf]
      %v390 = vld [vmem:[%s388 + $0x4] sm:$0xf]
      %v391 = vld [vmem:[%s388 + $0x8] sm:$0xf]
      %v392 = vld [vmem:[%s388 + $0xc] sm:$0xf]
      %v393 = vld [vmem:[%s388 + $0x10] sm:$0xf]
      %v394 = vld [vmem:[%s388 + $0x14] sm:$0xf]
      %v395 = vld [vmem:[%s388 + $0x18] sm:$0xf]
      %v396 = vld [vmem:[%s388 + $0x1c] sm:$0xf]
      %v401 = vunpack.c.l.b16 %v384
      %v402 = vunpack.c.l.b16 %v385
      %v403 = vunpack.c.l.b16 %v386
      %v404 = vunpack.c.l.b16 %v387
      %v405 = vpack.c.b16 %v402, %v401
      %v406 = vpack.c.b16 %v404, %v403
      %vm407 = vcmask 1044480
      %v408 = vrot.slane %v405, 3
      %v409 = vrot.slane %v406, 3
      %v410 = vsel %vm407, %v408, %v409
      %v419 = vunpack.c.l.b16 %v389
      %v420 = vunpack.c.l.b16 %v390
      %v421 = vunpack.c.l.b16 %v391
      %v422 = vunpack.c.l.b16 %v392
      %v423 = vunpack.c.l.b16 %v393
      %v424 = vunpack.c.l.b16 %v394
      %v425 = vunpack.c.l.b16 %v395
      %v426 = vunpack.c.l.b16 %v396
      %v427 = vpack.c.b16 %v420, %v419
      %v428 = vpack.c.b16 %v422, %v421
      %v429 = vpack.c.b16 %v424, %v423
      %v430 = vpack.c.b16 %v426, %v425
      %v436 = vsel %vm241, %v410, 0
      %v439 = vsel %vm241, %v409, 0
      %441 = vmatpush.bf16.msra.mxu0 0
      %442 = vmatpush.bf16.msra.mxu0 0
      %443 = vmatpush.bf16.msra.mxu0 0
      %444 = vmatpush.bf16.msra.mxu0 0
      %445 = vmatpush.bf16.msra.mxu0 %v430
      %446 = vmatpush.bf16.msra.mxu0 %v429
      %447 = vmatpush.bf16.msra.mxu0 %v428
      %448 = vmatpush.bf16.msra.mxu0 %v427
      %449 = vmatmul.bf16.gmra.mxu0 %v436
      %v450 = vpop.f32.mrf.mxu0
      %v451 = vadd.f32 0.0, %v450
      %v452 = vpop.f32.mrf.mxu0
      %v453 = vadd.f32 0.0, %v452
      %454 = vmatmul.bf16.gmra.mxu0 %v439
      %v455 = vpop.f32.mrf.mxu0
      %v456 = vadd.f32 0.0, %v455
      %v457 = vpop.f32.mrf.mxu0
      %458 = vdwg.mxu0
      %v459 = vadd.f32 %v381, %v451
      %v460 = vadd.f32 %v382, %v453
      %v461 = vadd.f32 %v383, %v456
      %v462 = vld [vmem:[%s165 + $0xc] sm:$0x7]
      %s463 = scalar_lea.vmem %s1, 128
      %v464 = vld [vmem:[%s463] sm:$0xf]
      %v465 = vld [vmem:[%s463 + $0x4] sm:$0xf]
      %v466 = vld [vmem:[%s463 + $0x8] sm:$0xf]
      %v467 = vld [vmem:[%s463 + $0xc] sm:$0xf]
      %v468 = vld [vmem:[%s463 + $0x10] sm:$0xf]
      %v469 = vld [vmem:[%s463 + $0x14] sm:$0xf]
      %v470 = vld [vmem:[%s463 + $0x18] sm:$0xf]
      %v471 = vld [vmem:[%s463 + $0x1c] sm:$0xf]
      %v473 = vunpack.c.l.b16 %v462
      %v474 = vpack.c.b16 %v473, %v403
      %vm475 = vsmask.f32 4352
      %v477 = vshrl.u32 %v405, 16
      %v479 = vrot.slane %v477, 3
      %v480 = vshll.u32 %v405, 16
      %v482 = vrot.slane %v480, 4
      %v483 = vor.u32 %v479, %v482
      %v485 = vshrl.u32 %v474, 16
      %v487 = vrot.slane %v485, 3
      %v488 = vshll.u32 %v474, 16
      %v490 = vrot.slane %v488, 4
      %v491 = vor.u32 %v487, %v490
      %v492 = vsel %vm475, %v483, %v491
      %v501 = vunpack.c.l.b16 %v464
      %v502 = vunpack.c.l.b16 %v465
      %v503 = vunpack.c.l.b16 %v466
      %v504 = vunpack.c.l.b16 %v467
      %v505 = vunpack.c.l.b16 %v468
      %v506 = vunpack.c.l.b16 %v469
      %v507 = vunpack.c.l.b16 %v470
      %v508 = vunpack.c.l.b16 %v471
      %v509 = vpack.c.b16 %v502, %v501
      %v510 = vpack.c.b16 %v504, %v503
      %v511 = vpack.c.b16 %v506, %v505
      %v512 = vpack.c.b16 %v508, %v507
      %v518 = vsel %vm241, %v492, 0
      %v521 = vsel %vm241, %v491, 0
      %523 = vmatpush.bf16.msra.mxu0 0
      %524 = vmatpush.bf16.msra.mxu0 0
      %525 = vmatpush.bf16.msra.mxu0 0
      %526 = vmatpush.bf16.msra.mxu0 0
      %527 = vmatpush.bf16.msra.mxu0 %v512
      %528 = vmatpush.bf16.msra.mxu0 %v511
      %529 = vmatpush.bf16.msra.mxu0 %v510
      %530 = vmatpush.bf16.msra.mxu0 %v509
      %531 = vmatmul.bf16.gmra.mxu0 %v518
      %v532 = vpop.f32.mrf.mxu0
      %v533 = vadd.f32 0.0, %v532
      %v534 = vpop.f32.mrf.mxu0
      %v535 = vadd.f32 0.0, %v534
      %536 = vmatmul.bf16.gmra.mxu0 %v521
      %v537 = vpop.f32.mrf.mxu0
      %v538 = vadd.f32 0.0, %v537
      %v539 = vpop.f32.mrf.mxu0
      %540 = vdwg.mxu0
      %v541 = vadd.f32 %v459, %v533
      %v542 = vadd.f32 %v460, %v535
      %v543 = vadd.f32 %v461, %v538
      %s544 = scalar_lea.vmem %s1, 160
      %v545 = vld [vmem:[%s544] sm:$0xf]
      %v546 = vld [vmem:[%s544 + $0x4] sm:$0xf]
      %v547 = vld [vmem:[%s544 + $0x8] sm:$0xf]
      %v548 = vld [vmem:[%s544 + $0xc] sm:$0xf]
      %v549 = vld [vmem:[%s544 + $0x10] sm:$0xf]
      %v550 = vld [vmem:[%s544 + $0x14] sm:$0xf]
      %v551 = vld [vmem:[%s544 + $0x18] sm:$0xf]
      %v552 = vld [vmem:[%s544 + $0x1c] sm:$0xf]
      %v553 = vpack.c.b16 %v403, %v402
      %v554 = vpack.c.b16 %v473, %v473
      %v563 = vunpack.c.l.b16 %v545
      %v564 = vunpack.c.l.b16 %v546
      %v565 = vunpack.c.l.b16 %v547
      %v566 = vunpack.c.l.b16 %v548
      %v567 = vunpack.c.l.b16 %v549
      %v568 = vunpack.c.l.b16 %v550
      %v569 = vunpack.c.l.b16 %v551
      %v570 = vunpack.c.l.b16 %v552
      %v571 = vpack.c.b16 %v564, %v563
      %v572 = vpack.c.b16 %v566, %v565
      %v573 = vpack.c.b16 %v568, %v567
      %v574 = vpack.c.b16 %v570, %v569
      %v580 = vsel %vm241, %v553, 0
      %v583 = vsel %vm241, %v554, 0
      %585 = vmatpush.bf16.msra.mxu0 0
      %586 = vmatpush.bf16.msra.mxu0 0
      %587 = vmatpush.bf16.msra.mxu0 0
      %588 = vmatpush.bf16.msra.mxu0 0
      %589 = vmatpush.bf16.msra.mxu0 %v574
      %590 = vmatpush.bf16.msra.mxu0 %v573
      %591 = vmatpush.bf16.msra.mxu0 %v572
      %592 = vmatpush.bf16.msra.mxu0 %v571
      %593 = vmatmul.bf16.gmra.mxu0 %v580
      %v594 = vpop.f32.mrf.mxu0
      %v595 = vadd.f32 0.0, %v594
      %v596 = vpop.f32.mrf.mxu0
      %v597 = vadd.f32 0.0, %v596
      %598 = vmatmul.bf16.gmra.mxu0 %v583
      %v599 = vpop.f32.mrf.mxu0
      %v600 = vadd.f32 0.0, %v599
      %v601 = vpop.f32.mrf.mxu0
      %602 = vdwg.mxu0
      %v603 = vadd.f32 %v541, %v595
      %v604 = vadd.f32 %v542, %v597
      %v605 = vadd.f32 %v543, %v600
      %v606 = vld [vmem:[%s165 + $0x4] sm:$0xc]
      %v607 = vld [vmem:[%s165 + $0x8] sm:$0xf]
      %v608 = vld [vmem:[%s165 + $0xc] sm:$0xf]
      %v609 = vld [vmem:[%s165 + $0x10] sm:$0x1]
      %s610 = scalar_lea.vmem %s1, 192
      %v611 = vld [vmem:[%s610] sm:$0xf]
      %v612 = vld [vmem:[%s610 + $0x4] sm:$0xf]
      %v613 = vld [vmem:[%s610 + $0x8] sm:$0xf]
      %v614 = vld [vmem:[%s610 + $0xc] sm:$0xf]
      %v615 = vld [vmem:[%s610 + $0x10] sm:$0xf]
      %v616 = vld [vmem:[%s610 + $0x14] sm:$0xf]
      %v617 = vld [vmem:[%s610 + $0x18] sm:$0xf]
      %v618 = vld [vmem:[%s610 + $0x1c] sm:$0xf]
      %v623 = vunpack.c.l.b16 %v606
      %v624 = vunpack.c.l.b16 %v607
      %v625 = vunpack.c.l.b16 %v608
      %v626 = vunpack.c.l.b16 %v609
      %v627 = vpack.c.b16 %v624, %v623
      %v628 = vpack.c.b16 %v626, %v625
      %vm629 = vcmask 1045504
      %v630 = vrot.slane %v627, 2
      %v631 = vrot.slane %v628, 2
      %v632 = vsel %vm629, %v630, %v631
      %v641 = vunpack.c.l.b16 %v611
      %v642 = vunpack.c.l.b16 %v612
      %v643 = vunpack.c.l.b16 %v613
      %v644 = vunpack.c.l.b16 %v614
      %v645 = vunpack.c.l.b16 %v615
      %v646 = vunpack.c.l.b16 %v616
      %v647 = vunpack.c.l.b16 %v617
      %v648 = vunpack.c.l.b16 %v618
      %v649 = vpack.c.b16 %v642, %v641
      %v650 = vpack.c.b16 %v644, %v643
      %v651 = vpack.c.b16 %v646, %v645
      %v652 = vpack.c.b16 %v648, %v647
      %v658 = vsel %vm241, %v632, 0
      %v661 = vsel %vm241, %v631, 0
      %663 = vmatpush.bf16.msra.mxu0 0
      %664 = vmatpush.bf16.msra.mxu0 0
      %665 = vmatpush.bf16.msra.mxu0 0
      %666 = vmatpush.bf16.msra.mxu0 0
      %667 = vmatpush.bf16.msra.mxu0 %v652
      %668 = vmatpush.bf16.msra.mxu0 %v651
      %669 = vmatpush.bf16.msra.mxu0 %v650
      %670 = vmatpush.bf16.msra.mxu0 %v649
      %671 = vmatmul.bf16.gmra.mxu0 %v658
      %v672 = vpop.f32.mrf.mxu0
      %v673 = vadd.f32 0.0, %v672
      %v674 = vpop.f32.mrf.mxu0
      %v675 = vadd.f32 0.0, %v674
      %676 = vmatmul.bf16.gmra.mxu0 %v661
      %v677 = vpop.f32.mrf.mxu0
      %v678 = vadd.f32 0.0, %v677
      %v679 = vpop.f32.mrf.mxu0
      %680 = vdwg.mxu0
      %v681 = vadd.f32 %v603, %v673
      %v682 = vadd.f32 %v604, %v675
      %v683 = vadd.f32 %v605, %v678
      %v684 = vld [vmem:[%s165 + $0x10] sm:$0x3]
      %s685 = scalar_lea.vmem %s1, 224
      %v686 = vld [vmem:[%s685] sm:$0xf]
      %v687 = vld [vmem:[%s685 + $0x4] sm:$0xf]
      %v688 = vld [vmem:[%s685 + $0x8] sm:$0xf]
      %v689 = vld [vmem:[%s685 + $0xc] sm:$0xf]
      %v690 = vld [vmem:[%s685 + $0x10] sm:$0xf]
      %v691 = vld [vmem:[%s685 + $0x14] sm:$0xf]
      %v692 = vld [vmem:[%s685 + $0x18] sm:$0xf]
      %v693 = vld [vmem:[%s685 + $0x1c] sm:$0xf]
      %v695 = vunpack.c.l.b16 %v684
      %v696 = vpack.c.b16 %v695, %v625
      %vm697 = vsmask.f32 5376
      %v699 = vshrl.u32 %v627, 16
      %v701 = vrot.slane %v699, 2
      %v702 = vshll.u32 %v627, 16
      %v704 = vrot.slane %v702, 3
      %v705 = vor.u32 %v701, %v704
      %v707 = vshrl.u32 %v696, 16
      %v709 = vrot.slane %v707, 2
      %v710 = vshll.u32 %v696, 16
      %v712 = vrot.slane %v710, 3
      %v713 = vor.u32 %v709, %v712
      %v714 = vsel %vm697, %v705, %v713
      %v723 = vunpack.c.l.b16 %v686
      %v724 = vunpack.c.l.b16 %v687
      %v725 = vunpack.c.l.b16 %v688
      %v726 = vunpack.c.l.b16 %v689
      %v727 = vunpack.c.l.b16 %v690
      %v728 = vunpack.c.l.b16 %v691
      %v729 = vunpack.c.l.b16 %v692
      %v730 = vunpack.c.l.b16 %v693
      %v731 = vpack.c.b16 %v724, %v723
      %v732 = vpack.c.b16 %v726, %v725
      %v733 = vpack.c.b16 %v728, %v727
      %v734 = vpack.c.b16 %v730, %v729
      %v740 = vsel %vm241, %v714, 0
      %v743 = vsel %vm241, %v713, 0
      %745 = vmatpush.bf16.msra.mxu0 0
      %746 = vmatpush.bf16.msra.mxu0 0
      %747 = vmatpush.bf16.msra.mxu0 0
      %748 = vmatpush.bf16.msra.mxu0 0
      %749 = vmatpush.bf16.msra.mxu0 %v734
      %750 = vmatpush.bf16.msra.mxu0 %v733
      %751 = vmatpush.bf16.msra.mxu0 %v732
      %752 = vmatpush.bf16.msra.mxu0 %v731
      %753 = vmatmul.bf16.gmra.mxu0 %v740
      %v754 = vpop.f32.mrf.mxu0
      %v755 = vadd.f32 0.0, %v754
      %v756 = vpop.f32.mrf.mxu0
      %v757 = vadd.f32 0.0, %v756
      %758 = vmatmul.bf16.gmra.mxu0 %v743
      %v759 = vpop.f32.mrf.mxu0
      %v760 = vadd.f32 0.0, %v759
      %v761 = vpop.f32.mrf.mxu0
      %762 = vdwg.mxu0
      %v763 = vadd.f32 %v681, %v755
      %v764 = vadd.f32 %v682, %v757
      %v765 = vadd.f32 %v683, %v760
      %v766 = vld [vmem:[%s165 + $0x4] sm:$0x8]
      %s767 = scalar_lea.vmem %s1, 256
      %v768 = vld [vmem:[%s767] sm:$0xf]
      %v769 = vld [vmem:[%s767 + $0x4] sm:$0xf]
      %v770 = vld [vmem:[%s767 + $0x8] sm:$0xf]
      %v771 = vld [vmem:[%s767 + $0xc] sm:$0xf]
      %v772 = vld [vmem:[%s767 + $0x10] sm:$0xf]
      %v773 = vld [vmem:[%s767 + $0x14] sm:$0xf]
      %v774 = vld [vmem:[%s767 + $0x18] sm:$0xf]
      %v775 = vld [vmem:[%s767 + $0x1c] sm:$0xf]
      %v777 = vunpack.c.l.b16 %v766
      %v778 = vpack.c.b16 %v624, %v777
      %v779 = vrot.slane %v778, 3
      %v780 = vrot.slane %v696, 3
      %v781 = vsel %vm407, %v779, %v780
      %v790 = vunpack.c.l.b16 %v768
      %v791 = vunpack.c.l.b16 %v769
      %v792 = vunpack.c.l.b16 %v770
      %v793 = vunpack.c.l.b16 %v771
      %v794 = vunpack.c.l.b16 %v772
      %v795 = vunpack.c.l.b16 %v773
      %v796 = vunpack.c.l.b16 %v774
      %v797 = vunpack.c.l.b16 %v775
      %v798 = vpack.c.b16 %v791, %v790
      %v799 = vpack.c.b16 %v793, %v792
      %v800 = vpack.c.b16 %v795, %v794
      %v801 = vpack.c.b16 %v797, %v796
      %v807 = vsel %vm241, %v781, 0
      %v810 = vsel %vm241, %v780, 0
      %812 = vmatpush.bf16.msra.mxu0 0
      %813 = vmatpush.bf16.msra.mxu0 0
      %814 = vmatpush.bf16.msra.mxu0 0
      %815 = vmatpush.bf16.msra.mxu0 0
      %816 = vmatpush.bf16.msra.mxu0 %v801
      %817 = vmatpush.bf16.msra.mxu0 %v800
      %818 = vmatpush.bf16.msra.mxu0 %v799
      %819 = vmatpush.bf16.msra.mxu0 %v798
      %820 = vmatmul.bf16.gmra.mxu0 %v807
      %v821 = vpop.f32.mrf.mxu0
      %v822 = vadd.f32 0.0, %v821
      %v823 = vpop.f32.mrf.mxu0
      %v824 = vadd.f32 0.0, %v823
      %825 = vmatmul.bf16.gmra.mxu0 %v810
      %v826 = vpop.f32.mrf.mxu0
      %v827 = vadd.f32 0.0, %v826
      %v828 = vpop.f32.mrf.mxu0
      %829 = vdwg.mxu0
      %v830 = vadd.f32 %v763, %v822
      %v831 = vadd.f32 %v764, %v824
      %v832 = vadd.f32 %v765, %v827
      %v833 = vld [vmem:[%s2] sm:$0x1]
      %v835 = vperm.slane %v833, 0
      %v837 = vadd.f32 %v830, %v835
      %v838 = vadd.f32 %v831, %v835
      %v839 = vadd.f32 %v832, %v835
      %vm840 = vcmp.ge.f32.partialorder %v837, 0.0
      %vm841 = vcmp.ge.f32.partialorder %v838, 0.0
      %vm842 = vcmp.ge.f32.partialorder %v839, 0.0
      %v843 = vmul.f32 %v837, 0.2
      %v844 = vmul.f32 %v838, 0.2
      %v845 = vmul.f32 %v839, 0.2
      %v846 = vsel %vm840, %v837, %v843
      %v847 = vsel %vm841, %v838, %v844
      %v848 = vsel %vm842, %v839, %v845
      %v849 = vpack.c.bf16 %v846, %v846
      %v850 = vpack.c.bf16 %v847, %v847
      %v851 = vpack.c.bf16 %v848, %v848
      %vm852 = vcmask 519168
      %853 = vst.msk [vmem:[%s170] sm:$0xf] %vm852, %v849
      %854 = vst.msk [vmem:[%s170 + $0x4] sm:$0xf] %vm852, %v850
      %vm855 = vcmask 518144
      %856 = vst.msk [vmem:[%s170 + $0x8] sm:$0x7] %vm855, %v851
      %p857 = scmp.lt.s32.totalorder %s14, 1
      %s858 = scalar_select %p857, %s14, 1
      %s859 = smul.addr %s858, 3
      %s860 = smul.addr %s859, 4
      %s861 = scalar_lea.vmem %s3, %s860
      // Predicated region
      $region33: #{discriminator_forward.12} parent=31 // pred_check
        %p862 = pneg %p100
      $region34: #{discriminator_forward.12} parent=31 // pred_check_branch
        %864 = sbr.rel (%p862) target = $region36
      $region35: #{discriminator_forward.12} parent=31 // pred_region
        _
      $region36: #{discriminator_forward.12} parent=31 // pred_fallthru
        _
    $region32: #{discriminator_forward.12} parent=5 // pred_fallthru
      _
    %p865 = scmp.le.s32.totalorder 2, %s9
    // Predicated region
    $region37: #{discriminator_forward.12} parent=5 // pred_check
      %p866 = pneg %p865
    $region38: #{discriminator_forward.12} parent=5 // pred_check_branch
      %868 = sbr.rel (%p866) target = $region40
    $region39: #{discriminator_forward.12} parent=5 // pred_region
      %s869 = ssub.s32 %s9, 2
      // Predicated region
      $region41: #{discriminator_forward.12} parent=39 // pred_check
        %p870 = pneg %p106
      $region42: #{discriminator_forward.12} parent=39 // pred_check_branch
        %872 = sbr.rel (%p870) target = $region44
      $region43: #{discriminator_forward.12} parent=39 // pred_region
        %p873 = scmp.lt.s32.totalorder %s15, 1
        %s874 = scalar_select %p873, %s15, 1
        %s875 = smul.addr %s874, 3
        %s876 = smul.addr %s875, 4
        %s877 = scalar_lea.vmem %s3, %s876
      $region44: #{discriminator_forward.12} parent=39 // pred_fallthru
        _
    $region40: #{discriminator_forward.12} parent=5 // pred_fallthru
      _
  $region6: #{discriminator_forward.12} parent=0 // loop_footer
    %s13 = sadd.s32 1, %s9
  $region7: #{discriminator_forward.12} parent=0 // loop_footer_branch
    %8 = sbr.rel target = $region3
  $region8: #{discriminator_forward.12} parent=0 // loop_exit
    _

// kernel: discriminator_forward.13
$region0: #{discriminator_forward.13}
  #allocation0 [shape = 'u32[]', space=smem, size = 0x4, offset = 0x4, fixed_abs, tag = 'smem constant byte address 0x4 - core index']
  #allocation1 [shape = 'u32[72,128]{1,0:T(1,128)}', space=vmem, size = 0x9000, scoped, tag = 'internal scratch']
  #allocation2 [shape = 'f32[16,128]{1,0:T(8,128)}', space=vmem, size = 0x2000, scoped, tag = 'scratch operand']
  %s0 = inlined_call_operand.vmem [shape: bf16[16,1024], index: 0, kind: input, shape index: {}]
  %s1 = inlined_call_operand.vmem [shape: bf16[1024,128], index: 1, kind: input, shape index: {}]
  %s2 = inlined_call_operand.vmem [shape: f32[1,128], index: 2, kind: input, shape index: {}]
  %s3 = inlined_call_operand.vmem [shape: f32[16,128], index: 3, kind: output, shape index: {}]
  %s4 = sld [smem:[#allocation0]]
  $region76: #{discriminator_forward.13} parent=0
    _
  %s6 = ssub.s32 1, %s4
  %s7 = scalar_select 0, %s6, %s4
  $region1: #{discriminator_forward.13} parent=0
    #allocation3 [shape = 'u8[32768]{0}', space=vmem, size = 0x8000, scoped, tag = 'input window, operand 0']
    loop: start=0, step=1, limit=4
    $region2: #{discriminator_forward.13} parent=1 // loop_pre_header
      _
    $region3: #{discriminator_forward.13} parent=1 // loop_header
      %s9 = sphi 0, %s13
      %p10 = scmp.ge.s32.totalorder %s9, 4
      %s16 = sphi 0, %s28
      %s17 = sphi 0, %s24
      %s18 = sphi 0, %s16
      %s19 = sphi 0, %s17
      %s20 = sphi 0, %s18
      %s21 = sphi 0, %s19
      %s33 = sphi 0, %s35
      %s36 = sphi 0, %s33
      %s37 = sphi 0, %s36
      %s53 = sphi 0, %s37
      %s59 = sphi 0, %s61
      %s62 = sphi 0, %s59
      %s63 = sphi 0, %s62
      %s79 = sphi 0, %s63
      %s83 = sphi 0, %s83
      %s85 = sphi 0, %s83
      %s86 = sphi 0, %s85
      %s100 = sphi 0, %s86
      %s106 = sphi 0, %s108
      %s109 = sphi 0, %s106
      %s110 = sphi 0, %s109
      %s126 = sphi 0, %s110
    $region4: #{discriminator_forward.13} parent=1 // loop_header_branch
      %12 = sbr.rel (%p10) target = $region8
    $region5: #{discriminator_forward.13} parent=1 // loop_body
      %s14 = ssub.s32 %s9, 1
      %s15 = ssub.s32 %s9, 2
      %s22 = sadd.s32 1, %s17
      %p23 = scmp.ge.s32.totalorder %s22, 2
      %s24 = scalar_select %p23, 0, %s22
      %s25 = sadd.s32 1, %s16
      %s26 = scalar_select %p23, %s25, %s16
      %p27 = scmp.ge.s32.totalorder %s26, 1
      %s28 = scalar_select %p27, 0, %s26
      %s29 = ssub.s32 %s16, %s28
      %s30 = ssub.s32 %s17, %s24
      %s31 = sor.u32 %s29, %s30
      %p32 = scmp.eq.s32.totalorder %s31, 0
      %s34 = sadd.s32 %s33, 1
      %s35 = scalar_select %p32, %s33, %s34
      %p38 = pneg %p32
      %p39 = scmp.eq.s32.totalorder %s9, 1
      %p40 = por %p38, %p39
      %p41 = scmp.ne.s32.totalorder %s33, %s36
      %p42 = scmp.eq.s32.totalorder %s9, 0
      %p43 = por %p41, %p42
      %p44 = scmp.ne.s32.totalorder %s33, %s36
      %p45 = scmp.eq.s32.totalorder %s14, 1
      %p46 = por %p44, %p45
      %p47 = scmp.ne.s32.totalorder %s36, %s37
      %p48 = scmp.eq.s32.totalorder %s14, 0
      %p49 = por %p47, %p48
      %p50 = scmp.ne.s32.totalorder %s36, %s37
      %p51 = scmp.eq.s32.totalorder %s15, 1
      %p52 = por %p50, %p51
      %p54 = scmp.ne.s32.totalorder %s37, %s53
      %p55 = scmp.eq.s32.totalorder %s15, 0
      %p56 = por %p54, %p55
      %s57 = ssub.s32 %s17, %s24
      %p58 = scmp.eq.s32.totalorder %s57, 0
      %s60 = sadd.s32 %s59, 1
      %s61 = scalar_select %p58, %s59, %s60
      %p64 = pneg %p58
      %p65 = scmp.eq.s32.totalorder %s9, 1
      %p66 = por %p64, %p65
      %p67 = scmp.ne.s32.totalorder %s59, %s62
      %p68 = scmp.eq.s32.totalorder %s9, 0
      %p69 = por %p67, %p68
      %p70 = scmp.ne.s32.totalorder %s59, %s62
      %p71 = scmp.eq.s32.totalorder %s14, 1
      %p72 = por %p70, %p71
      %p73 = scmp.ne.s32.totalorder %s62, %s63
      %p74 = scmp.eq.s32.totalorder %s14, 0
      %p75 = por %p73, %p74
      %p76 = scmp.ne.s32.totalorder %s62, %s63
      %p77 = scmp.eq.s32.totalorder %s15, 1
      %p78 = por %p76, %p77
      %p80 = scmp.ne.s32.totalorder %s63, %s79
      %p81 = scmp.eq.s32.totalorder %s15, 0
      %p82 = por %p80, %p81
      %s84 = sadd.s32 %s83, 1
      %p87 = scmp.eq.s32.totalorder %s9, 1
      %p88 = scmp.ne.s32.totalorder %s83, %s85
      %p89 = scmp.eq.s32.totalorder %s9, 0
      %p90 = por %p88, %p89
      %p91 = scmp.ne.s32.totalorder %s83, %s85
      %p92 = scmp.eq.s32.totalorder %s14, 1
      %p93 = por %p91, %p92
      %p94 = scmp.ne.s32.totalorder %s85, %s86
      %p95 = scmp.eq.s32.totalorder %s14, 0
      %p96 = por %p94, %p95
      %p97 = scmp.ne.s32.totalorder %s85, %s86
      %p98 = scmp.eq.s32.totalorder %s15, 1
      %p99 = por %p97, %p98
      %p101 = scmp.ne.s32.totalorder %s86, %s100
      %p102 = scmp.eq.s32.totalorder %s15, 0
      %p103 = por %p101, %p102
      %s104 = ssub.s32 %s16, %s28
      %p105 = scmp.eq.s32.totalorder %s104, 0
      %s107 = sadd.s32 %s106, 1
      %s108 = scalar_select %p105, %s106, %s107
      %p111 = pneg %p105
      %p112 = scmp.eq.s32.totalorder %s9, 1
      %p113 = por %p111, %p112
      %p114 = scmp.ne.s32.totalorder %s106, %s109
      %p115 = scmp.eq.s32.totalorder %s9, 0
      %p116 = por %p114, %p115
      %p117 = scmp.ne.s32.totalorder %s106, %s109
      %p118 = scmp.eq.s32.totalorder %s14, 1
      %p119 = por %p117, %p118
      %p120 = scmp.ne.s32.totalorder %s109, %s110
      %p121 = scmp.eq.s32.totalorder %s14, 0
      %p122 = por %p120, %p121
      %p123 = scmp.ne.s32.totalorder %s109, %s110
      %p124 = scmp.eq.s32.totalorder %s15, 1
      %p125 = por %p123, %p124
      %p127 = scmp.ne.s32.totalorder %s110, %s126
      %p128 = scmp.eq.s32.totalorder %s15, 0
      %p129 = por %p127, %p128
      %p130 = scmp.le.s32.totalorder 1, %s9
      %p131 = scmp.lt.s32.totalorder %s9, 3
      %p132 = pnand %p130, %p131
      %p133 = pneg %p132
      // Predicated region
      $region9: #{discriminator_forward.13} parent=5 // pred_check
        _
      $region10: #{discriminator_forward.13} parent=5 // pred_check_branch
        %135 = sbr.rel (%p132) target = $region12
      $region11: #{discriminator_forward.13} parent=5 // pred_region
        %s136 = ssub.s32 %s9, 1
        // Predicated region
        $region13: #{discriminator_forward.13} parent=11 // pred_check
          %p137 = pneg %p96
        $region14: #{discriminator_forward.13} parent=11 // pred_check_branch
          %139 = sbr.rel (%p137) target = $region16
        $region15: #{discriminator_forward.13} parent=11 // pred_region
          _
        $region16: #{discriminator_forward.13} parent=11 // pred_fallthru
          _
      $region12: #{discriminator_forward.13} parent=5 // pred_fallthru
        _
      %p140 = scmp.lt.s32.totalorder %s9, 2
      // Predicated region
      $region17: #{discriminator_forward.13} parent=5 // pred_check
        %p141 = pneg %p140
      $region18: #{discriminator_forward.13} parent=5 // pred_check_branch
        %143 = sbr.rel (%p141) target = $region20
      $region19: #{discriminator_forward.13} parent=5 // pred_region
        // Predicated region
        $region21: #{discriminator_forward.13} parent=19 // pred_check
          %p144 = pneg %p43
        $region22: #{discriminator_forward.13} parent=19 // pred_check_branch
          %146 = sbr.rel (%p144) target = $region24
        $region23: #{discriminator_forward.13} parent=19 // pred_region
          %s147 = sand.u32 %s33, 1
          %s148 = sand.u32 %s33, 1
          %s149 = smul.addr %s148, 32
          %s150 = scalar_lea.vmem [#allocation3], %s149
          %s151 = smul.u32 2, %s16
          %s152 = smul.u32 4, %s17
          %s153 = smul.addr %s151, 8
          %s154 = sadd.s32 %s152, %s153
          %s155 = smul.addr %s154, 4
          %s156 = scalar_lea.vmem %s0, %s155
          // Predicated region
          $region25: #{discriminator_forward.13} parent=23 // pred_check
            _
          $region26: #{discriminator_forward.13} parent=23 // pred_check_branch
            %158 = sbr.rel (0) target = $region28
          $region27: #{discriminator_forward.13} parent=23 // pred_region
            // Predicated region
            $region29: #{discriminator_forward.13} parent=27 // pred_check
              _
            $region30: #{discriminator_forward.13} parent=27 // pred_check_branch
              %160 = sbr.rel (0) target = $region32
            $region31: #{discriminator_forward.13} parent=27 // pred_region
              loop: start=0, step=1, limit=1
              $region33: #{discriminator_forward.13} parent=31 // loop_pre_header
                _
              $region34: #{discriminator_forward.13} parent=31 // loop_header
                %s162 = sphi 0, %s166
                %p163 = scmp.ge.s32.totalorder %s162, 1
                %s167 = sphi %s156, %s156
                %s168 = sphi %s150, %s150
              $region35: #{discriminator_forward.13} parent=31 // loop_header_branch
                %165 = sbr.rel (%p163) target = $region39
              $region36: #{discriminator_forward.13} parent=31 // loop_body
                %v169 = vld [vmem:[%s167] sm:$0xff]
                %170 = vst [vmem:[%s168] sm:$0xff] %v169
                %v171 = vld [vmem:[%s167 + $0x8] sm:$0xff]
                %172 = vst [vmem:[%s168 + $0x8] sm:$0xff] %v171
                %v173 = vld [vmem:[%s167 + $0x20] sm:$0xff]
                %174 = vst [vmem:[%s168 + $0x10] sm:$0xff] %v173
                %v175 = vld [vmem:[%s167 + $0x28] sm:$0xff]
                %176 = vst [vmem:[%s168 + $0x18] sm:$0xff] %v175
              $region37: #{discriminator_forward.13} parent=31 // loop_footer
                %s166 = sadd.s32 1, %s162
              $region38: #{discriminator_forward.13} parent=31 // loop_footer_branch
                %161 = sbr.rel target = $region34
              $region39: #{discriminator_forward.13} parent=31 // loop_exit
                _
            $region32: #{discriminator_forward.13} parent=27 // pred_fallthru
              _
            // Predicated region
            $region40: #{discriminator_forward.13} parent=27 // pred_check
              _
            $region41: #{discriminator_forward.13} parent=27 // pred_check_branch
              %178 = sbr.rel target = $region43
            $region42: #{discriminator_forward.13} parent=27 // pred_region
              _
            $region43: #{discriminator_forward.13} parent=27 // pred_fallthru
              _
          $region28: #{discriminator_forward.13} parent=23 // pred_fallthru
            _
          %179 = vnop
        $region24: #{discriminator_forward.13} parent=19 // pred_fallthru
          _
        // Predicated region
        $region44: #{discriminator_forward.13} parent=19 // pred_check
          %p180 = pneg %p69
        $region45: #{discriminator_forward.13} parent=19 // pred_check_branch
          %182 = sbr.rel (%p180) target = $region47
        $region46: #{discriminator_forward.13} parent=19 // pred_region
          %s183 = smul.u32 64, %s17
          %p184 = scmp.lt.s32.totalorder %s183, 127
          %s185 = scalar_select %p184, %s183, 127
          %s186 = smul.addr %s185, 4
          %s187 = scalar_lea.vmem %s1, %s186
          %s188 = smul.u32 64, %s17
        $region47: #{discriminator_forward.13} parent=19 // pred_fallthru
          _
      $region20: #{discriminator_forward.13} parent=5 // pred_fallthru
        _
      %p189 = scmp.le.s32.totalorder 1, %s9
      %p190 = scmp.lt.s32.totalorder %s9, 3
      %p191 = pnand %p189, %p190
      %p192 = pneg %p191
      // Predicated region
      $region48: #{discriminator_forward.13} parent=5 // pred_check
        _
      $region49: #{discriminator_forward.13} parent=5 // pred_check_branch
        %194 = sbr.rel (%p191) target = $region51
      $region50: #{discriminator_forward.13} parent=5 // pred_region
        %s195 = ssub.s32 %s9, 1
        %s196 = sand.u32 %s36, 1
        %s197 = sand.u32 %s36, 1
        %s198 = smul.addr %s197, 32
        %s199 = scalar_lea.vmem [#allocation3], %s198
        // Predicated region
        $region52: #{discriminator_forward.13} parent=50 // pred_check
          %p200 = pneg %p49
        $region53: #{discriminator_forward.13} parent=50 // pred_check_branch
          %202 = sbr.rel (%p200) target = $region55
        $region54: #{discriminator_forward.13} parent=50 // pred_region
          _
        $region55: #{discriminator_forward.13} parent=50 // pred_fallthru
          _
        %s203 = sand.u32 %s36, 1
        %s204 = sand.u32 %s36, 1
        %s205 = smul.addr %s204, 32
        %s206 = scalar_lea.vmem [#allocation3], %s205
        %p207 = pneg %p49
        %p208 = pneg %p46
        %s209 = smul.u32 64, %s19
        %p210 = scmp.lt.s32.totalorder %s209, 127
        %s211 = scalar_select %p210, %s209, 127
        %s212 = smul.addr %s211, 4
        %s213 = scalar_lea.vmem %s1, %s212
        %p214 = pneg %p75
        %p215 = pneg %p72
        %p216 = pneg %p96
        %p217 = pneg %p93
        %p218 = pneg %p122
        %p219 = pneg %p119
        %s220 = smul.u32 2, %s18
        %p221 = scmp.lt.s32.totalorder %s220, 1
        %s222 = scalar_select %p221, %s220, 1
        %s223 = smul.addr %s222, 8
        %s224 = scalar_lea.vmem %s3, %s223
        %s225 = smul.u32 2, %s18
        %s226 = smul.u32 4, %s19
        %s227 = smul.u32 64, %s19
        %p228 = scmp.lt.s32.totalorder %s227, 127
        %s229 = scalar_select %p228, %s227, 127
        %s230 = smul.addr %s229, 4
        %s231 = scalar_lea.vmem %s1, %s230
        %s232 = smul.u32 64, %s19
        %s233 = smul.u32 2, %s18
        %p234 = scmp.lt.s32.totalorder %s233, 1
        %s235 = scalar_select %p234, %s233, 1
        %s236 = smul.addr %s235, 8
        %s237 = scalar_lea.vmem %s3, %s236
        %s238 = smul.u32 2, %s18
        %p239 = scmp.eq.s32.totalorder %s19, 0
        // Predicated region
        $region56: #{discriminator_forward.13} parent=50 // pred_check
          %p240 = pneg %p239
        $region57: #{discriminator_forward.13} parent=50 // pred_check_branch
          %242 = sbr.rel (%p240) target = $region59
        $region58: #{discriminator_forward.13} parent=50 // pred_region
          %243 = vst [vmem:[#allocation2] sm:$0xff] 0.0
          %244 = vst [vmem:[#allocation2 + $0x8] sm:$0xff] 0.0
        $region59: #{discriminator_forward.13} parent=50 // pred_fallthru
          _
        %v245 = vld [vmem:[#allocation2] sm:$0xff]
        %v246 = vld [vmem:[#allocation2 + $0x8] sm:$0xff]
        %v247 = vld [vmem:[%s199] sm:$0xff]
        %v248 = vld [vmem:[%s199 + $0x8] sm:$0xff]
        %v249 = vld [vmem:[%s199 + $0x10] sm:$0xff]
        %v250 = vld [vmem:[%s199 + $0x18] sm:$0xff]
        %v251 = vld [vmem:[%s231] sm:$0xf]
        %v252 = vld [vmem:[%s231 + $0x4] sm:$0xf]
        %v253 = vld [vmem:[%s231 + $0x8] sm:$0xf]
        %v254 = vld [vmem:[%s231 + $0xc] sm:$0xf]
        %v255 = vld [vmem:[%s231 + $0x10] sm:$0xf]
        %v256 = vld [vmem:[%s231 + $0x14] sm:$0xf]
        %v257 = vld [vmem:[%s231 + $0x18] sm:$0xf]
        %v258 = vld [vmem:[%s231 + $0x1c] sm:$0xf]
        %v259 = vld [vmem:[%s231 + $0x20] sm:$0xf]
        %v260 = vld [vmem:[%s231 + $0x24] sm:$0xf]
        %v261 = vld [vmem:[%s231 + $0x28] sm:$0xf]
        %v262 = vld [vmem:[%s231 + $0x2c] sm:$0xf]
        %v263 = vld [vmem:[%s231 + $0x30] sm:$0xf]
        %v264 = vld [vmem:[%s231 + $0x34] sm:$0xf]
        %v265 = vld [vmem:[%s231 + $0x38] sm:$0xf]
        %v266 = vld [vmem:[%s231 + $0x3c] sm:$0xf]
        %v267 = vld [vmem:[%s231 + $0x40] sm:$0xf]
        %v268 = vld [vmem:[%s231 + $0x44] sm:$0xf]
        %v269 = vld [vmem:[%s231 + $0x48] sm:$0xf]
        %v270 = vld [vmem:[%s231 + $0x4c] sm:$0xf]
        %v271 = vld [vmem:[%s231 + $0x50] sm:$0xf]
        %v272 = vld [vmem:[%s231 + $0x54] sm:$0xf]
        %v273 = vld [vmem:[%s231 + $0x58] sm:$0xf]
        %v274 = vld [vmem:[%s231 + $0x5c] sm:$0xf]
        %v275 = vld [vmem:[%s231 + $0x60] sm:$0xf]
        %v276 = vld [vmem:[%s231 + $0x64] sm:$0xf]
        %v277 = vld [vmem:[%s231 + $0x68] sm:$0xf]
        %v278 = vld [vmem:[%s231 + $0x6c] sm:$0xf]
        %v279 = vld [vmem:[%s231 + $0x70] sm:$0xf]
        %v280 = vld [vmem:[%s231 + $0x74] sm:$0xf]
        %v281 = vld [vmem:[%s231 + $0x78] sm:$0xf]
        %v282 = vld [vmem:[%s231 + $0x7c] sm:$0xf]
        %v283 = vld [vmem:[%s231 + $0x80] sm:$0xf]
        %v284 = vld [vmem:[%s231 + $0x84] sm:$0xf]
        %v285 = vld [vmem:[%s231 + $0x88] sm:$0xf]
        %v286 = vld [vmem:[%s231 + $0x8c] sm:$0xf]
        %v287 = vld [vmem:[%s231 + $0x90] sm:$0xf]
        %v288 = vld [vmem:[%s231 + $0x94] sm:$0xf]
        %v289 = vld [vmem:[%s231 + $0x98] sm:$0xf]
        %v290 = vld [vmem:[%s231 + $0x9c] sm:$0xf]
        %v291 = vld [vmem:[%s231 + $0xa0] sm:$0xf]
        %v292 = vld [vmem:[%s231 + $0xa4] sm:$0xf]
        %v293 = vld [vmem:[%s231 + $0xa8] sm:$0xf]
        %v294 = vld [vmem:[%s231 + $0xac] sm:$0xf]
        %v295 = vld [vmem:[%s231 + $0xb0] sm:$0xf]
        %v296 = vld [vmem:[%s231 + $0xb4] sm:$0xf]
        %v297 = vld [vmem:[%s231 + $0xb8] sm:$0xf]
        %v298 = vld [vmem:[%s231 + $0xbc] sm:$0xf]
        %v299 = vld [vmem:[%s231 + $0xc0] sm:$0xf]
        %v300 = vld [vmem:[%s231 + $0xc4] sm:$0xf]
        %v301 = vld [vmem:[%s231 + $0xc8] sm:$0xf]
        %v302 = vld [vmem:[%s231 + $0xcc] sm:$0xf]
        %v303 = vld [vmem:[%s231 + $0xd0] sm:$0xf]
        %v304 = vld [vmem:[%s231 + $0xd4] sm:$0xf]
        %v305 = vld [vmem:[%s231 + $0xd8] sm:$0xf]
        %v306 = vld [vmem:[%s231 + $0xdc] sm:$0xf]
        %v307 = vld [vmem:[%s231 + $0xe0] sm:$0xf]
        %v308 = vld [vmem:[%s231 + $0xe4] sm:$0xf]
        %v309 = vld [vmem:[%s231 + $0xe8] sm:$0xf]
        %v310 = vld [vmem:[%s231 + $0xec] sm:$0xf]
        %v311 = vld [vmem:[%s231 + $0xf0] sm:$0xf]
        %v312 = vld [vmem:[%s231 + $0xf4] sm:$0xf]
        %v313 = vld [vmem:[%s231 + $0xf8] sm:$0xf]
        %v314 = vld [vmem:[%s231 + $0xfc] sm:$0xf]
        %v319 = vunpack.c.l.b16 %v247
        %v320 = vunpack.c.h.b16 %v247
        %v321 = vunpack.c.l.b16 %v248
        %v322 = vunpack.c.h.b16 %v248
        %v323 = vunpack.c.l.b16 %v249
        %v324 = vunpack.c.h.b16 %v249
        %v325 = vunpack.c.l.b16 %v250
        %v326 = vunpack.c.h.b16 %v250
        %v327 = vpack.c.b16 %v323, %v319
        %v328 = vpack.c.b16 %v324, %v320
        %v329 = vpack.c.b16 %v325, %v321
        %v330 = vpack.c.b16 %v326, %v322
        %v399 = vunpack.c.l.b16 %v251
        %v400 = vunpack.c.l.b16 %v252
        %v401 = vunpack.c.l.b16 %v253
        %v402 = vunpack.c.l.b16 %v254
        %v403 = vunpack.c.l.b16 %v255
        %v404 = vunpack.c.l.b16 %v256
        %v405 = vunpack.c.l.b16 %v257
        %v406 = vunpack.c.l.b16 %v258
        %v407 = vunpack.c.l.b16 %v259
        %v408 = vunpack.c.l.b16 %v260
        %v409 = vunpack.c.l.b16 %v261
        %v410 = vunpack.c.l.b16 %v262
        %v411 = vunpack.c.l.b16 %v263
        %v412 = vunpack.c.l.b16 %v264
        %v413 = vunpack.c.l.b16 %v265
        %v414 = vunpack.c.l.b16 %v266
        %v415 = vunpack.c.l.b16 %v267
        %v416 = vunpack.c.l.b16 %v268
        %v417 = vunpack.c.l.b16 %v269
        %v418 = vunpack.c.l.b16 %v270
        %v419 = vunpack.c.l.b16 %v271
        %v420 = vunpack.c.l.b16 %v272
        %v421 = vunpack.c.l.b16 %v273
        %v422 = vunpack.c.l.b16 %v274
        %v423 = vunpack.c.l.b16 %v275
        %v424 = vunpack.c.l.b16 %v276
        %v425 = vunpack.c.l.b16 %v277
        %v426 = vunpack.c.l.b16 %v278
        %v427 = vunpack.c.l.b16 %v279
        %v428 = vunpack.c.l.b16 %v280
        %v429 = vunpack.c.l.b16 %v281
        %v430 = vunpack.c.l.b16 %v282
        %v431 = vunpack.c.l.b16 %v283
        %v432 = vunpack.c.l.b16 %v284
        %v433 = vunpack.c.l.b16 %v285
        %v434 = vunpack.c.l.b16 %v286
        %v435 = vunpack.c.l.b16 %v287
        %v436 = vunpack.c.l.b16 %v288
        %v437 = vunpack.c.l.b16 %v289
        %v438 = vunpack.c.l.b16 %v290
        %v439 = vunpack.c.l.b16 %v291
        %v440 = vunpack.c.l.b16 %v292
        %v441 = vunpack.c.l.b16 %v293
        %v442 = vunpack.c.l.b16 %v294
        %v443 = vunpack.c.l.b16 %v295
        %v444 = vunpack.c.l.b16 %v296
        %v445 = vunpack.c.l.b16 %v297
        %v446 = vunpack.c.l.b16 %v298
        %v447 = vunpack.c.l.b16 %v299
        %v448 = vunpack.c.l.b16 %v300
        %v449 = vunpack.c.l.b16 %v301
        %v450 = vunpack.c.l.b16 %v302
        %v451 = vunpack.c.l.b16 %v303
        %v452 = vunpack.c.l.b16 %v304
        %v453 = vunpack.c.l.b16 %v305
        %v454 = vunpack.c.l.b16 %v306
        %v455 = vunpack.c.l.b16 %v307
        %v456 = vunpack.c.l.b16 %v308
        %v457 = vunpack.c.l.b16 %v309
        %v458 = vunpack.c.l.b16 %v310
        %v459 = vunpack.c.l.b16 %v311
        %v460 = vunpack.c.l.b16 %v312
        %v461 = vunpack.c.l.b16 %v313
        %v462 = vunpack.c.l.b16 %v314
        %v463 = vpack.c.b16 %v400, %v399
        %v464 = vpack.c.b16 %v402, %v401
        %v465 = vpack.c.b16 %v404, %v403
        %v466 = vpack.c.b16 %v406, %v405
        %v467 = vpack.c.b16 %v408, %v407
        %v468 = vpack.c.b16 %v410, %v409
        %v469 = vpack.c.b16 %v412, %v411
        %v470 = vpack.c.b16 %v414, %v413
        %v471 = vpack.c.b16 %v416, %v415
        %v472 = vpack.c.b16 %v418, %v417
        %v473 = vpack.c.b16 %v420, %v419
        %v474 = vpack.c.b16 %v422, %v421
        %v475 = vpack.c.b16 %v424, %v423
        %v476 = vpack.c.b16 %v426, %v425
        %v477 = vpack.c.b16 %v428, %v427
        %v478 = vpack.c.b16 %v430, %v429
        %v479 = vpack.c.b16 %v432, %v431
        %v480 = vpack.c.b16 %v434, %v433
        %v481 = vpack.c.b16 %v436, %v435
        %v482 = vpack.c.b16 %v438, %v437
        %v483 = vpack.c.b16 %v440, %v439
        %v484 = vpack.c.b16 %v442, %v441
        %v485 = vpack.c.b16 %v444, %v443
        %v486 = vpack.c.b16 %v446, %v445
        %v487 = vpack.c.b16 %v448, %v447
        %v488 = vpack.c.b16 %v450, %v449
        %v489 = vpack.c.b16 %v452, %v451
        %v490 = vpack.c.b16 %v454, %v453
        %v491 = vpack.c.b16 %v456, %v455
        %v492 = vpack.c.b16 %v458, %v457
        %v493 = vpack.c.b16 %v460, %v459
        %v494 = vpack.c.b16 %v462, %v461
        %527 = vmatpush.bf16.msra.mxu0 %v470
        %528 = vmatpush.bf16.msra.mxu0 %v469
        %529 = vmatpush.bf16.msra.mxu0 %v468
        %530 = vmatpush.bf16.msra.mxu0 %v467
        %531 = vmatpush.bf16.msra.mxu0 %v466
        %532 = vmatpush.bf16.msra.mxu0 %v465
        %533 = vmatpush.bf16.msra.mxu0 %v464
        %534 = vmatpush.bf16.msra.mxu0 %v463
        %535 = vmatmul.bf16.gmra.mxu0 %v327
        %v536 = vpop.f32.mrf.mxu0
        %v537 = vadd.f32 0.0, %v536
        %v538 = vpop.f32.mrf.mxu0
        %v539 = vadd.f32 0.0, %v538
        %540 = vdwg.mxu0
        %541 = vmatpush.bf16.msra.mxu0 %v478
        %542 = vmatpush.bf16.msra.mxu0 %v477
        %543 = vmatpush.bf16.msra.mxu0 %v476
        %544 = vmatpush.bf16.msra.mxu0 %v475
        %545 = vmatpush.bf16.msra.mxu0 %v474
        %546 = vmatpush.bf16.msra.mxu0 %v473
        %547 = vmatpush.bf16.msra.mxu0 %v472
        %548 = vmatpush.bf16.msra.mxu0 %v471
        %549 = vmatmul.bf16.gmra.mxu0 %v328
        %v550 = vpop.f32.mrf.mxu0
        %v551 = vadd.f32 %v537, %v550
        %v552 = vpop.f32.mrf.mxu0
        %v553 = vadd.f32 %v539, %v552
        %554 = vdwg.mxu0
        %555 = vmatpush.bf16.msra.mxu0 %v486
        %556 = vmatpush.bf16.msra.mxu0 %v485
        %557 = vmatpush.bf16.msra.mxu0 %v484
        %558 = vmatpush.bf16.msra.mxu0 %v483
        %559 = vmatpush.bf16.msra.mxu0 %v482
        %560 = vmatpush.bf16.msra.mxu0 %v481
        %561 = vmatpush.bf16.msra.mxu0 %v480
        %562 = vmatpush.bf16.msra.mxu0 %v479
        %563 = vmatmul.bf16.gmra.mxu0 %v329
        %v564 = vpop.f32.mrf.mxu0
        %v565 = vadd.f32 %v551, %v564
        %v566 = vpop.f32.mrf.mxu0
        %v567 = vadd.f32 %v553, %v566
        %568 = vdwg.mxu0
        %569 = vmatpush.bf16.msra.mxu0 %v494
        %570 = vmatpush.bf16.msra.mxu0 %v493
        %571 = vmatpush.bf16.msra.mxu0 %v492
        %572 = vmatpush.bf16.msra.mxu0 %v491
        %573 = vmatpush.bf16.msra.mxu0 %v490
        %574 = vmatpush.bf16.msra.mxu0 %v489
        %575 = vmatpush.bf16.msra.mxu0 %v488
        %576 = vmatpush.bf16.msra.mxu0 %v487
        %577 = vmatmul.bf16.gmra.mxu0 %v330
        %v578 = vpop.f32.mrf.mxu0
        %v579 = vadd.f32 %v565, %v578
        %v580 = vpop.f32.mrf.mxu0
        %v581 = vadd.f32 %v567, %v580
        %582 = vdwg.mxu0
        %v583 = vadd.f32 %v245, %v579
        %v584 = vadd.f32 %v246, %v581
        %585 = vst [vmem:[#allocation2] sm:$0xff] %v583
        %586 = vst [vmem:[#allocation2 + $0x8] sm:$0xff] %v584
        %p587 = scmp.eq.s32.totalorder %s19, 1
        // Predicated region
        $region60: #{discriminator_forward.13} parent=50 // pred_check
          %p588 = pneg %p587
        $region61: #{discriminator_forward.13} parent=50 // pred_check_branch
          %590 = sbr.rel (%p588) target = $region63
        $region62: #{discriminator_forward.13} parent=50 // pred_region
          %v591 = vld [vmem:[#allocation2] sm:$0xff]
          %v592 = vld [vmem:[#allocation2 + $0x8] sm:$0xff]
          %v593 = vld [vmem:[%s2] sm:$0x1]
          %v595 = vperm.slane %v593, 0
          %v597 = vadd.f32 %v591, %v595
          %v598 = vadd.f32 %v592, %v595
          %vm599 = vcmp.ge.f32.partialorder %v597, 0.0
          %vm600 = vcmp.ge.f32.partialorder %v598, 0.0
          %v601 = vmul.f32 %v597, 0.2
          %v602 = vmul.f32 %v598, 0.2
          %v603 = vsel %vm599, %v597, %v601
          %v604 = vsel %vm600, %v598, %v602
          %605 = vst [vmem:[%s237] sm:$0xff] %v603
          %606 = vst [vmem:[%s237 + $0x8] sm:$0xff] %v604
        $region63: #{discriminator_forward.13} parent=50 // pred_fallthru
          _
        %s607 = smul.u32 2, %s18
        %p608 = scmp.lt.s32.totalorder %s607, 1
        %s609 = scalar_select %p608, %s607, 1
        %s610 = smul.addr %s609, 8
        %s611 = scalar_lea.vmem %s3, %s610
        // Predicated region
        $region64: #{discriminator_forward.13} parent=50 // pred_check
          %p612 = pneg %p119
        $region65: #{discriminator_forward.13} parent=50 // pred_check_branch
          %614 = sbr.rel (%p612) target = $region67
        $region66: #{discriminator_forward.13} parent=50 // pred_region
          %s615 = smul.u32 2, %s18
        $region67: #{discriminator_forward.13} parent=50 // pred_fallthru
          _
        // Predicated region
        $region68: #{discriminator_forward.13} parent=50 // pred_check
          %p616 = pneg %p119
        $region69: #{discriminator_forward.13} parent=50 // pred_check_branch
          %618 = sbr.rel (%p616) target = $region71
        $region70: #{discriminator_forward.13} parent=50 // pred_region
          %s619 = smul.u32 2, %s18
          %p620 = scmp.lt.s32.totalorder %s619, 1
          %s621 = scalar_select %p620, %s619, 1
          %s622 = smul.addr %s621, 8
          %s623 = scalar_lea.vmem %s3, %s622
        $region71: #{discriminator_forward.13} parent=50 // pred_fallthru
          _
      $region51: #{discriminator_forward.13} parent=5 // pred_fallthru
        _
      %p624 = scmp.le.s32.totalorder 2, %s9
      // Predicated region
      $region72: #{discriminator_forward.13} parent=5 // pred_check
        %p625 = pneg %p624
      $region73: #{discriminator_forward.13} parent=5 // pred_check_branch
        %627 = sbr.rel (%p625) target = $region75
      $region74: #{discriminator_forward.13} parent=5 // pred_region
        %s628 = ssub.s32 %s9, 2
      $region75: #{discriminator_forward.13} parent=5 // pred_fallthru
        _
    $region6: #{discriminator_forward.13} parent=1 // loop_footer
      %s13 = sadd.s32 1, %s9
    $region7: #{discriminator_forward.13} parent=1 // loop_footer_branch
      %8 = sbr.rel target = $region3
    $region8: #{discriminator_forward.13} parent=1 // loop_exit
      _

</llo_original>
